<compile_context>
chip_gen: v6e
topology: v6e:2x2x1
jax: 0.10.0
libtpu: 0.0.40
codegen_flags: <defaults>
</compile_context>

<pallas_src>
import functools

import jax
import jax.numpy as jnp
from jax import lax
from jax.experimental import pallas as pl
from jax.experimental.pallas import tpu as pltpu

HIDDEN = 256          # fixed by the module (MultiScaleLSTM hidden_size=256)
HIDDEN_AUX = HIDDEN // 2
LN_EPS = 1e-5


# ----------------------------------------------------------------------------
# Pallas kernels
# ----------------------------------------------------------------------------
def _lstm_cell(gates, c, H):
    """PyTorch LSTM cell (gate order i, f, g, o); gates: (BP, 4H) f32."""
    i = jax.nn.sigmoid(gates[:, 0:H])
    f = jax.nn.sigmoid(gates[:, H:2 * H])
    g = jnp.tanh(gates[:, 2 * H:3 * H])
    o = jax.nn.sigmoid(gates[:, 3 * H:4 * H])
    c_new = f * c + i * g
    h_new = o * jnp.tanh(c_new)
    return h_new, c_new


def _main_lstm_kernel(x_ref, wih0_ref, whh0_ref, b0_ref,
                      wih1_ref, whh1_ref, b1_ref,
                      out_ref, g_scr, *, T, BP, H):
    """Fused 2-layer LSTM, single invocation.

    x_ref: (T*BP, F) time-major rows (row = t*BP + b); out_ref: (T*BP, H) same layout.
    Layer-0 input projection hoisted out of the recurrence into one big matmul.
    """
    f32 = jnp.float32
    bf16 = jnp.bfloat16

    # Hoisted time-invariant projection for layer 0: (T*BP, F) @ (F, 4H).
    g_scr[...] = (jnp.dot(x_ref[...].astype(bf16), wih0_ref[...],
                          preferred_element_type=f32) + b0_ref[...])

    whh0 = whh0_ref[...]
    wih1 = wih1_ref[...]
    whh1 = whh1_ref[...]
    b1 = b1_ref[...]

    h0 = jnp.zeros((BP, H), f32)
    c0 = jnp.zeros((BP, H), f32)
    h1 = jnp.zeros((BP, H), f32)
    c1 = jnp.zeros((BP, H), f32)
    for t in range(T):   # static unroll; state stays in vregs, weights in VMEM
        gates0 = g_scr[t * BP:(t + 1) * BP, :] + jnp.dot(
            h0.astype(bf16), whh0, preferred_element_type=f32)
        h0, c0 = _lstm_cell(gates0, c0, H)
        gates1 = (jnp.dot(h0.astype(bf16), wih1, preferred_element_type=f32) + b1
                  + jnp.dot(h1.astype(bf16), whh1, preferred_element_type=f32))
        h1, c1 = _lstm_cell(gates1, c1, H)
        out_ref[t * BP:(t + 1) * BP, :] = h1


def _aux_lstm_kernel(x_ref, wih_ref, whh_ref, b_ref, out_ref, g_scr, *, T, BP, H):
    """Single-layer LSTM (aux branch), same layout conventions as the main kernel."""
    f32 = jnp.float32
    bf16 = jnp.bfloat16
    g_scr[...] = (jnp.dot(x_ref[...].astype(bf16), wih_ref[...],
                          preferred_element_type=f32) + b_ref[...])
    whh = whh_ref[...]
    h = jnp.zeros((BP, H), f32)
    c = jnp.zeros((BP, H), f32)
    for t in range(T):
        gates = g_scr[t * BP:(t + 1) * BP, :] + jnp.dot(
            h.astype(bf16), whh, preferred_element_type=f32)
        h, c = _lstm_cell(gates, c, H)
        out_ref[t * BP:(t + 1) * BP, :] = h


def _tail_kernel(om_ref, oa_ref, wfm_ref, wfa_ref, bf_ref,
                 wq_ref, bq_ref, wk_ref, bk_ref, wv_ref, bv_ref,
                 w1_ref, b1_ref, g_ref, beta_ref, w2_ref, b2_ref, w3_ref, b3_ref,
                 out_ref, *, T, BP, scale):
    """Fusion Linear + TemporalAttention (only last query row) + decoder MLP.

    Inputs are time-major flat: row = t*BP + b. Attention normalization matches
    PyTorch Softmax(dim=1), i.e. over the *query* axis, per batch element (batch
    separation enforced with a same-batch mask on the joint score matrix).
    """
    f32 = jnp.float32
    bf16 = jnp.bfloat16
    TBP = T * BP

    om = om_ref[...].astype(bf16)                      # (TBP, 256)
    oa = oa_ref[...].astype(bf16)                      # (TBP, 128)
    # fusion Linear on concat([out_main, out_aux]) == split-weight matmuls
    fused = (jnp.dot(om, wfm_ref[...], preferred_element_type=f32)
             + jnp.dot(oa, wfa_ref[...], preferred_element_type=f32)
             + bf_ref[...])                            # (TBP, 256)
    fb = fused.astype(bf16)

    q = jnp.dot(fb, wq_ref[...], preferred_element_type=f32) + bq_ref[...]
    k = jnp.dot(fb, wk_ref[...], preferred_element_type=f32) + bk_ref[...]
    v = jnp.dot(fb, wv_ref[...], preferred_element_type=f32) + bv_ref[...]

    # scores over all (query, key) rows; mask out cross-batch pairs.
    s = lax.dot_general(q.astype(bf16), k.astype(bf16),
                        dimension_numbers=(((1,), (1,)), ((), ())),
                        preferred_element_type=f32) * scale       # (TBP, TBP)
    ri = lax.broadcasted_iota(jnp.int32, (TBP, TBP), 0)
    ci = lax.broadcasted_iota(jnp.int32, (TBP, TBP), 1)
    s = jnp.where((ri % BP) == (ci % BP), s, -1e30)

    # Softmax over the QUERY axis (PyTorch Softmax(dim=1) on (B, Tq, Tk)).
    s = s - jnp.max(s, axis=0, keepdims=True)
    e = jnp.exp(s)
    denom = jnp.sum(e, axis=0, keepdims=True)                     # (1, TBP)
    # Only the last time step's query rows are needed (context = attn_out[:, -1]).
    attn_last = e[TBP - BP:, :] * pl.reciprocal(denom, approx=True)   # (BP, TBP)
    ctx = jnp.dot(attn_last.astype(bf16), v.astype(bf16),
                  preferred_element_type=f32)                     # (BP, 256)

    # Decoder: Linear(256,128) -> LayerNorm -> ReLU -> [Dropout=id]
    #          -> Linear(128,64) -> ReLU -> Linear(64, pred_steps)
    h = jnp.dot(ctx.astype(bf16), w1_ref[...], preferred_element_type=f32) + b1_ref[...]
    mean = jnp.mean(h, axis=-1, keepdims=True)
    var = jnp.mean((h - mean) ** 2, axis=-1, keepdims=True)
    h = (h - mean) * lax.rsqrt(var + LN_EPS) * g_ref[...] + beta_ref[...]
    h = jnp.maximum(h, 0.0)
    h = jnp.dot(h.astype(bf16), w2_ref[...], preferred_element_type=f32) + b2_ref[...]
    h = jnp.maximum(h, 0.0)
    out_ref[...] = jnp.dot(h.astype(bf16), w3_ref[...],
                           preferred_element_type=f32) + b3_ref[...]


# ----------------------------------------------------------------------------
# pallas_call wrappers
# ----------------------------------------------------------------------------
def main_lstm(x2d, p0, p1, *, T, BP):
    H = HIDDEN
    return pl.pallas_call(
        functools.partial(_main_lstm_kernel, T=T, BP=BP, H=H),
        out_shape=jax.ShapeDtypeStruct((T * BP, H), jnp.float32),
        scratch_shapes=[pltpu.VMEM((T * BP, 4 * H), jnp.float32)],
    )(x2d, p0["w_ih"], p0["w_hh"], p0["b"], p1["w_ih"], p1["w_hh"], p1["b"])


def aux_lstm(x2d, p, *, T, BP):
    H = HIDDEN_AUX
    return pl.pallas_call(
        functools.partial(_aux_lstm_kernel, T=T, BP=BP, H=H),
        out_shape=jax.ShapeDtypeStruct((T * BP, H), jnp.float32),
        scratch_shapes=[pltpu.VMEM((T * BP, 4 * H), jnp.float32)],
    )(x2d, p["w_ih"], p["w_hh"], p["b"])


def fused_tail(out_main, out_aux, params, *, T, BP):
    d = params["decoder"]
    pred_steps = d["w3"].shape[1]
    scale = 1.0 / (HIDDEN ** 0.5)
    return pl.pallas_call(
        functools.partial(_tail_kernel, T=T, BP=BP, scale=scale),
        out_shape=jax.ShapeDtypeStruct((BP, pred_steps), jnp.float32),
    )(out_main, out_aux,
      params["fusion_w_main"], params["fusion_w_aux"], params["fusion_b"],
      params["wq"], params["bq"], params["wk"], params["bk"],
      params["wv"], params["bv"],
      d["w1"], d["b1"], d["ln_g"], d["ln_b"], d["w2"], d["b2"], d["w3"], d["b3"])


# ----------------------------------------------------------------------------
# Plain-JAX glue (resampling — not a compute hot path)
# ----------------------------------------------------------------------------
def avgpool1d_k3s2p1(x):
    """nn.AvgPool1d(kernel_size=3, stride=2, padding=1), count_include_pad=True.
       Pools over the time axis: (B, T, F) -> (B, T_out, F)."""
    B, T, F = x.shape
    xp = jnp.pad(x, ((0, 0), (1, 1), (0, 0)))
    T_out = (T - 1) // 2 + 1
    starts = jnp.arange(T_out) * 2
    win = xp[:, starts[:, None] + jnp.arange(3)[None, :], :]          # (B, T_out, 3, F)
    return jnp.mean(win, axis=2)


def linear_interp_time_axis0(y, out_len):
    """F.interpolate(mode='linear', align_corners=True) along axis 0 (time-major)."""
    T_in = y.shape[0]
    if T_in == 1:
        return jnp.broadcast_to(y, (out_len,) + y.shape[1:])
    pos = jnp.arange(out_len, dtype=jnp.float32) * ((T_in - 1) / (out_len - 1))
    lo = jnp.clip(jnp.floor(pos).astype(jnp.int32), 0, T_in - 1)
    hi = jnp.minimum(lo + 1, T_in - 1)
    w = (pos - lo.astype(jnp.float32))[:, None, None]
    return y[lo] * (1.0 - w) + y[hi] * w


# ----------------------------------------------------------------------------
# Parameter init (deterministic; matmul weights stored as bf16, biases f32)
# ----------------------------------------------------------------------------
def _init_linear(key, din, dout):
    kw, kb = jax.random.split(key)
    s = 1.0 / (din ** 0.5)
    w = jax.random.uniform(kw, (din, dout), minval=-s, maxval=s,
                           dtype=jnp.float32).astype(jnp.bfloat16)
    b = jax.random.uniform(kb, (1, dout), minval=-s, maxval=s, dtype=jnp.float32)
    return w, b


def _init_lstm(key, din, h):
    k1, k2, k3, k4 = jax.random.split(key, 4)
    s = 1.0 / (h ** 0.5)
    w_ih = jax.random.uniform(k1, (din, 4 * h), minval=-s, maxval=s,
                              dtype=jnp.float32).astype(jnp.bfloat16)
    w_hh = jax.random.uniform(k2, (h, 4 * h), minval=-s, maxval=s,
                              dtype=jnp.float32).astype(jnp.bfloat16)
    b = (jax.random.uniform(k3, (1, 4 * h), minval=-s, maxval=s, dtype=jnp.float32)
         + jax.random.uniform(k4, (1, 4 * h), minval=-s, maxval=s, dtype=jnp.float32))
    return {"w_ih": w_ih, "w_hh": w_hh, "b": b}


def init_params(key, num_features, pred_steps):
    keys = jax.random.split(key, 12)
    params = {
        "lstm_main0": _init_lstm(keys[0], num_features, HIDDEN),
        "lstm_main1": _init_lstm(keys[1], HIDDEN, HIDDEN),
        "lstm_aux": _init_lstm(keys[2], num_features, HIDDEN_AUX),
    }
    fw, fb = _init_linear(keys[3], HIDDEN + HIDDEN_AUX, HIDDEN)
    params["fusion_w_main"] = fw[:HIDDEN]          # (256, 256)
    params["fusion_w_aux"] = fw[HIDDEN:]           # (128, 256)
    params["fusion_b"] = fb
    params["wq"], params["bq"] = _init_linear(keys[4], HIDDEN, HIDDEN)
    params["wk"], params["bk"] = _init_linear(keys[5], HIDDEN, HIDDEN)
    params["wv"], params["bv"] = _init_linear(keys[6], HIDDEN, HIDDEN)
    dec = {}
    dec["w1"], dec["b1"] = _init_linear(keys[7], HIDDEN, 128)
    dec["ln_g"] = jnp.ones((1, 128), jnp.float32)
    dec["ln_b"] = jnp.zeros((1, 128), jnp.float32)
    dec["w2"], dec["b2"] = _init_linear(keys[8], 128, 64)
    dec["w3"], dec["b3"] = _init_linear(keys[9], 64, pred_steps)
    params["decoder"] = dec
    return params


# ----------------------------------------------------------------------------
# Full forward pass (ImprovedLSTMModel, pred_steps <= 90 branch)
# ----------------------------------------------------------------------------
def improved_lstm_forward(x, params):
    B, T, F = x.shape
    BP = ((B + 7) // 8) * 8                          # pad batch to full sublane tiles
    xp = jnp.pad(x, ((0, BP - B), (0, 0), (0, 0))) if BP != B else x

    # time-major flat layout: row = t*BP + b
    x2d = jnp.transpose(xp, (1, 0, 2)).reshape(T * BP, F)

    # --- MultiScaleLSTM ---
    out_main = main_lstm(x2d, params["lstm_main0"], params["lstm_main1"],
                         T=T, BP=BP)                 # (T*BP, 256)

    x_ds = avgpool1d_k3s2p1(xp)                      # (BP, T_ds, F)
    T_ds = x_ds.shape[1]
    xds2d = jnp.transpose(x_ds, (1, 0, 2)).reshape(T_ds * BP, F)
    out_aux = aux_lstm(xds2d, params["lstm_aux"], T=T_ds, BP=BP)   # (T_ds*BP, 128)
    out_aux = linear_interp_time_axis0(out_aux.reshape(T_ds, BP, HIDDEN_AUX), T)
    out_aux2d = out_aux.reshape(T * BP, HIDDEN_AUX)  # (T*BP, 128)

    # --- fusion Linear + TemporalAttention(last row) + decoder, one kernel ---
    out = fused_tail(out_main, out_aux2d, params, T=T, BP=BP)      # (BP, pred_steps)
    return out[:B]

    # TODO(synk): pred_steps > 90 autoregressive LSTMCell branch not exercised here.


if __name__ == "__main__":
    B, T, NUM_FEATURES = 2, 8, 8
    PRED_STEPS = 16

    key = jax.random.PRNGKey(0)
    k_x, k_p = jax.random.split(key)
    x = jax.random.normal(k_x, (B, T, NUM_FEATURES), dtype=jnp.float32)
    params = init_params(k_p, NUM_FEATURES, PRED_STEPS)

    fwd = jax.jit(improved_lstm_forward)
    out = fwd(x, params)
    out = jax.block_until_ready(out)
    assert out.shape == (B, PRED_STEPS), out.shape
    assert bool(jnp.all(jnp.isfinite(out)))
    print("KERNEL_OK")
</pallas_src>

<mosaic_0001>
module attributes {stable_mosaic.version = 11 : i64} {
  func.func @_aux_lstm_kernel(%arg0: memref<32x8xf32, #tpu.memory_space<vmem>>, %arg1: memref<8x512xbf16, #tpu.memory_space<vmem>>, %arg2: memref<128x512xbf16, #tpu.memory_space<vmem>>, %arg3: memref<1x512xf32, #tpu.memory_space<vmem>>, %arg4: memref<32x128xf32, #tpu.memory_space<vmem>>, %arg5: memref<32x512xf32, #tpu.memory_space<vmem>>) attributes {dimension_semantics = [], scalar_prefetch = 0 : i64, scratch_operands = 1 : i64, tpu.core_type = #tpu.core_type<tc>} {
    %c0 = arith.constant 0 : index
    %c0_0 = arith.constant 0 : index
    %0 = vector.load %arg0[%c0, %c0_0] : memref<32x8xf32, #tpu.memory_space<vmem>>, vector<32x8xf32>
    %1 = arith.truncf %0 : vector<32x8xf32> to vector<32x8xbf16>
    %c0_1 = arith.constant 0 : index
    %c0_2 = arith.constant 0 : index
    %2 = vector.load %arg1[%c0_1, %c0_2] : memref<8x512xbf16, #tpu.memory_space<vmem>>, vector<8x512xbf16>
    %cst = arith.constant dense<0.000000e+00> : vector<32x512xf32>
    %3 = tpu.matmul %1, %2, %cst {dimension_numbers = #tpu.dot_dimension_numbers<[1], [0], [0], [1], [0, 0, 1, 1], [], []>} : vector<32x8xbf16>, vector<8x512xbf16>, vector<32x512xf32> -> vector<32x512xf32>
    %c0_3 = arith.constant 0 : index
    %c0_4 = arith.constant 0 : index
    %4 = vector.load %arg3[%c0_3, %c0_4] : memref<1x512xf32, #tpu.memory_space<vmem>>, vector<1x512xf32>
    %5 = vector.broadcast %4 : vector<1x512xf32> to vector<32x512xf32>
    %6 = arith.addf %3, %5 : vector<32x512xf32>
    %c0_5 = arith.constant 0 : index
    %c0_6 = arith.constant 0 : index
    %7 = vector.load %arg5[%c0_5, %c0_6] : memref<32x512xf32, #tpu.memory_space<vmem>>, vector<32x512xf32>
    tpu.vector_store %arg5[%c0_5, %c0_6], %6 {strides = array<i32>} : memref<32x512xf32, #tpu.memory_space<vmem>>, vector<32x512xf32>,
    %c0_7 = arith.constant 0 : index
    %c0_8 = arith.constant 0 : index
    %8 = vector.load %arg2[%c0_7, %c0_8] : memref<128x512xbf16, #tpu.memory_space<vmem>>, vector<128x512xbf16>
    %cst_9 = arith.constant 0.000000e+00 : f32
    %9 = vector.broadcast %cst_9 : f32 to vector<8x128xf32>
    %cst_10 = arith.constant 0.000000e+00 : f32
    %10 = vector.broadcast %cst_10 : f32 to vector<8x128xf32>
    %c0_11 = arith.constant 0 : index
    %c0_12 = arith.constant 0 : index
    %11 = vector.load %arg5[%c0_11, %c0_12] : memref<32x512xf32, #tpu.memory_space<vmem>>, vector<8x512xf32>
    %12 = arith.truncf %9 : vector<8x128xf32> to vector<8x128xbf16>
    %cst_13 = arith.constant dense<0.000000e+00> : vector<8x512xf32>
    %13 = tpu.matmul %12, %8, %cst_13 {dimension_numbers = #tpu.dot_dimension_numbers<[1], [0], [0], [1], [0, 0, 1, 1], [], []>} : vector<8x128xbf16>, vector<128x512xbf16>, vector<8x512xf32> -> vector<8x512xf32>
    %14 = arith.addf %11, %13 : vector<8x512xf32>
    %15 = vector.extract_strided_slice %14 {offsets = [0, 0], sizes = [8, 128], strides = [1, 1]} : vector<8x512xf32> to vector<8x128xf32>
    %16 = arith.negf %15 : vector<8x128xf32>
    %17 = math.exp %16 : vector<8x128xf32>
    %cst_14 = arith.constant 1.000000e+00 : f32
    %18 = vector.broadcast %cst_14 : f32 to vector<8x128xf32>
    %19 = arith.addf %18, %17 : vector<8x128xf32>
    %20 = arith.divf %18, %19 : vector<8x128xf32>
    %21 = vector.extract_strided_slice %14 {offsets = [0, 128], sizes = [8, 128], strides = [1, 1]} : vector<8x512xf32> to vector<8x128xf32>
    %22 = arith.negf %21 : vector<8x128xf32>
    %23 = math.exp %22 : vector<8x128xf32>
    %cst_15 = arith.constant 1.000000e+00 : f32
    %24 = vector.broadcast %cst_15 : f32 to vector<8x128xf32>
    %25 = arith.addf %24, %23 : vector<8x128xf32>
    %26 = arith.divf %24, %25 : vector<8x128xf32>
    %27 = vector.extract_strided_slice %14 {offsets = [0, 256], sizes = [8, 128], strides = [1, 1]} : vector<8x512xf32> to vector<8x128xf32>
    %28 = math.tanh %27 : vector<8x128xf32>
    %29 = vector.extract_strided_slice %14 {offsets = [0, 384], sizes = [8, 128], strides = [1, 1]} : vector<8x512xf32> to vector<8x128xf32>
    %30 = arith.negf %29 : vector<8x128xf32>
    %31 = math.exp %30 : vector<8x128xf32>
    %cst_16 = arith.constant 1.000000e+00 : f32
    %32 = vector.broadcast %cst_16 : f32 to vector<8x128xf32>
    %33 = arith.addf %32, %31 : vector<8x128xf32>
    %34 = arith.divf %32, %33 : vector<8x128xf32>
    %35 = arith.mulf %26, %10 : vector<8x128xf32>
    %36 = arith.mulf %20, %28 : vector<8x128xf32>
    %37 = arith.addf %35, %36 : vector<8x128xf32>
    %38 = math.tanh %37 : vector<8x128xf32>
    %39 = arith.mulf %34, %38 : vector<8x128xf32>
    %c0_17 = arith.constant 0 : index
    %c0_18 = arith.constant 0 : index
    %40 = vector.load %arg4[%c0_17, %c0_18] : memref<32x128xf32, #tpu.memory_space<vmem>>, vector<8x128xf32>
    tpu.vector_store %arg4[%c0_17, %c0_18], %39 {strides = array<i32>} : memref<32x128xf32, #tpu.memory_space<vmem>>, vector<8x128xf32>,
    %c8 = arith.constant 8 : index
    %c0_19 = arith.constant 0 : index
    %41 = vector.load %arg5[%c8, %c0_19] : memref<32x512xf32, #tpu.memory_space<vmem>>, vector<8x512xf32>
    %42 = arith.truncf %39 : vector<8x128xf32> to vector<8x128xbf16>
    %cst_20 = arith.constant dense<0.000000e+00> : vector<8x512xf32>
    %43 = tpu.matmul %42, %8, %cst_20 {dimension_numbers = #tpu.dot_dimension_numbers<[1], [0], [0], [1], [0, 0, 1, 1], [], []>} : vector<8x128xbf16>, vector<128x512xbf16>, vector<8x512xf32> -> vector<8x512xf32>
    %44 = arith.addf %41, %43 : vector<8x512xf32>
    %45 = vector.extract_strided_slice %44 {offsets = [0, 0], sizes = [8, 128], strides = [1, 1]} : vector<8x512xf32> to vector<8x128xf32>
    %46 = arith.negf %45 : vector<8x128xf32>
    %47 = math.exp %46 : vector<8x128xf32>
    %cst_21 = arith.constant 1.000000e+00 : f32
    %48 = vector.broadcast %cst_21 : f32 to vector<8x128xf32>
    %49 = arith.addf %48, %47 : vector<8x128xf32>
    %50 = arith.divf %48, %49 : vector<8x128xf32>
    %51 = vector.extract_strided_slice %44 {offsets = [0, 128], sizes = [8, 128], strides = [1, 1]} : vector<8x512xf32> to vector<8x128xf32>
    %52 = arith.negf %51 : vector<8x128xf32>
    %53 = math.exp %52 : vector<8x128xf32>
    %cst_22 = arith.constant 1.000000e+00 : f32
    %54 = vector.broadcast %cst_22 : f32 to vector<8x128xf32>
    %55 = arith.addf %54, %53 : vector<8x128xf32>
    %56 = arith.divf %54, %55 : vector<8x128xf32>
    %57 = vector.extract_strided_slice %44 {offsets = [0, 256], sizes = [8, 128], strides = [1, 1]} : vector<8x512xf32> to vector<8x128xf32>
    %58 = math.tanh %57 : vector<8x128xf32>
    %59 = vector.extract_strided_slice %44 {offsets = [0, 384], sizes = [8, 128], strides = [1, 1]} : vector<8x512xf32> to vector<8x128xf32>
    %60 = arith.negf %59 : vector<8x128xf32>
    %61 = math.exp %60 : vector<8x128xf32>
    %cst_23 = arith.constant 1.000000e+00 : f32
    %62 = vector.broadcast %cst_23 : f32 to vector<8x128xf32>
    %63 = arith.addf %62, %61 : vector<8x128xf32>
    %64 = arith.divf %62, %63 : vector<8x128xf32>
    %65 = arith.mulf %56, %37 : vector<8x128xf32>
    %66 = arith.mulf %50, %58 : vector<8x128xf32>
    %67 = arith.addf %65, %66 : vector<8x128xf32>
    %68 = math.tanh %67 : vector<8x128xf32>
    %69 = arith.mulf %64, %68 : vector<8x128xf32>
    %c8_24 = arith.constant 8 : index
    %c0_25 = arith.constant 0 : index
    %70 = vector.load %arg4[%c8_24, %c0_25] : memref<32x128xf32, #tpu.memory_space<vmem>>, vector<8x128xf32>
    tpu.vector_store %arg4[%c8_24, %c0_25], %69 {strides = array<i32>} : memref<32x128xf32, #tpu.memory_space<vmem>>, vector<8x128xf32>,
    %c16 = arith.constant 16 : index
    %c0_26 = arith.constant 0 : index
    %71 = vector.load %arg5[%c16, %c0_26] : memref<32x512xf32, #tpu.memory_space<vmem>>, vector<8x512xf32>
    %72 = arith.truncf %69 : vector<8x128xf32> to vector<8x128xbf16>
    %cst_27 = arith.constant dense<0.000000e+00> : vector<8x512xf32>
    %73 = tpu.matmul %72, %8, %cst_27 {dimension_numbers = #tpu.dot_dimension_numbers<[1], [0], [0], [1], [0, 0, 1, 1], [], []>} : vector<8x128xbf16>, vector<128x512xbf16>, vector<8x512xf32> -> vector<8x512xf32>
    %74 = arith.addf %71, %73 : vector<8x512xf32>
    %75 = vector.extract_strided_slice %74 {offsets = [0, 0], sizes = [8, 128], strides = [1, 1]} : vector<8x512xf32> to vector<8x128xf32>
    %76 = arith.negf %75 : vector<8x128xf32>
    %77 = math.exp %76 : vector<8x128xf32>
    %cst_28 = arith.constant 1.000000e+00 : f32
    %78 = vector.broadcast %cst_28 : f32 to vector<8x128xf32>
    %79 = arith.addf %78, %77 : vector<8x128xf32>
    %80 = arith.divf %78, %79 : vector<8x128xf32>
    %81 = vector.extract_strided_slice %74 {offsets = [0, 128], sizes = [8, 128], strides = [1, 1]} : vector<8x512xf32> to vector<8x128xf32>
    %82 = arith.negf %81 : vector<8x128xf32>
    %83 = math.exp %82 : vector<8x128xf32>
    %cst_29 = arith.constant 1.000000e+00 : f32
    %84 = vector.broadcast %cst_29 : f32 to vector<8x128xf32>
    %85 = arith.addf %84, %83 : vector<8x128xf32>
    %86 = arith.divf %84, %85 : vector<8x128xf32>
    %87 = vector.extract_strided_slice %74 {offsets = [0, 256], sizes = [8, 128], strides = [1, 1]} : vector<8x512xf32> to vector<8x128xf32>
    %88 = math.tanh %87 : vector<8x128xf32>
    %89 = vector.extract_strided_slice %74 {offsets = [0, 384], sizes = [8, 128], strides = [1, 1]} : vector<8x512xf32> to vector<8x128xf32>
    %90 = arith.negf %89 : vector<8x128xf32>
    %91 = math.exp %90 : vector<8x128xf32>
    %cst_30 = arith.constant 1.000000e+00 : f32
    %92 = vector.broadcast %cst_30 : f32 to vector<8x128xf32>
    %93 = arith.addf %92, %91 : vector<8x128xf32>
    %94 = arith.divf %92, %93 : vector<8x128xf32>
    %95 = arith.mulf %86, %67 : vector<8x128xf32>
    %96 = arith.mulf %80, %88 : vector<8x128xf32>
    %97 = arith.addf %95, %96 : vector<8x128xf32>
    %98 = math.tanh %97 : vector<8x128xf32>
    %99 = arith.mulf %94, %98 : vector<8x128xf32>
    %c16_31 = arith.constant 16 : index
    %c0_32 = arith.constant 0 : index
    %100 = vector.load %arg4[%c16_31, %c0_32] : memref<32x128xf32, #tpu.memory_space<vmem>>, vector<8x128xf32>
    tpu.vector_store %arg4[%c16_31, %c0_32], %99 {strides = array<i32>} : memref<32x128xf32, #tpu.memory_space<vmem>>, vector<8x128xf32>,
    %c24 = arith.constant 24 : index
    %c0_33 = arith.constant 0 : index
    %101 = vector.load %arg5[%c24, %c0_33] : memref<32x512xf32, #tpu.memory_space<vmem>>, vector<8x512xf32>
    %102 = arith.truncf %99 : vector<8x128xf32> to vector<8x128xbf16>
    %cst_34 = arith.constant dense<0.000000e+00> : vector<8x512xf32>
    %103 = tpu.matmul %102, %8, %cst_34 {dimension_numbers = #tpu.dot_dimension_numbers<[1], [0], [0], [1], [0, 0, 1, 1], [], []>} : vector<8x128xbf16>, vector<128x512xbf16>, vector<8x512xf32> -> vector<8x512xf32>
    %104 = arith.addf %101, %103 : vector<8x512xf32>
    %105 = vector.extract_strided_slice %104 {offsets = [0, 0], sizes = [8, 128], strides = [1, 1]} : vector<8x512xf32> to vector<8x128xf32>
    %106 = arith.negf %105 : vector<8x128xf32>
    %107 = math.exp %106 : vector<8x128xf32>
    %cst_35 = arith.constant 1.000000e+00 : f32
    %108 = vector.broadcast %cst_35 : f32 to vector<8x128xf32>
    %109 = arith.addf %108, %107 : vector<8x128xf32>
    %110 = arith.divf %108, %109 : vector<8x128xf32>
    %111 = vector.extract_strided_slice %104 {offsets = [0, 128], sizes = [8, 128], strides = [1, 1]} : vector<8x512xf32> to vector<8x128xf32>
    %112 = arith.negf %111 : vector<8x128xf32>
    %113 = math.exp %112 : vector<8x128xf32>
    %cst_36 = arith.constant 1.000000e+00 : f32
    %114 = vector.broadcast %cst_36 : f32 to vector<8x128xf32>
    %115 = arith.addf %114, %113 : vector<8x128xf32>
    %116 = arith.divf %114, %115 : vector<8x128xf32>
    %117 = vector.extract_strided_slice %104 {offsets = [0, 256], sizes = [8, 128], strides = [1, 1]} : vector<8x512xf32> to vector<8x128xf32>
    %118 = math.tanh %117 : vector<8x128xf32>
    %119 = vector.extract_strided_slice %104 {offsets = [0, 384], sizes = [8, 128], strides = [1, 1]} : vector<8x512xf32> to vector<8x128xf32>
    %120 = arith.negf %119 : vector<8x128xf32>
    %121 = math.exp %120 : vector<8x128xf32>
    %cst_37 = arith.constant 1.000000e+00 : f32
    %122 = vector.broadcast %cst_37 : f32 to vector<8x128xf32>
    %123 = arith.addf %122, %121 : vector<8x128xf32>
    %124 = arith.divf %122, %123 : vector<8x128xf32>
    %125 = arith.mulf %116, %97 : vector<8x128xf32>
    %126 = arith.mulf %110, %118 : vector<8x128xf32>
    %127 = arith.addf %125, %126 : vector<8x128xf32>
    %128 = math.tanh %127 : vector<8x128xf32>
    %129 = arith.mulf %124, %128 : vector<8x128xf32>
    %c24_38 = arith.constant 24 : index
    %c0_39 = arith.constant 0 : index
    %130 = vector.load %arg4[%c24_38, %c0_39] : memref<32x128xf32, #tpu.memory_space<vmem>>, vector<8x128xf32>
    tpu.vector_store %arg4[%c24_38, %c0_39], %129 {strides = array<i32>} : memref<32x128xf32, #tpu.memory_space<vmem>>, vector<8x128xf32>,
    return
  }
}

module attributes {stable_mosaic.version = 11 : i64} {
  func.func @_tail_kernel(%arg0: memref<64x256xf32, #tpu.memory_space<vmem>>, %arg1: memref<64x128xf32, #tpu.memory_space<vmem>>, %arg2: memref<256x256xbf16, #tpu.memory_space<vmem>>, %arg3: memref<128x256xbf16, #tpu.memory_space<vmem>>, %arg4: memref<1x256xf32, #tpu.memory_space<vmem>>, %arg5: memref<256x256xbf16, #tpu.memory_space<vmem>>, %arg6: memref<1x256xf32, #tpu.memory_space<vmem>>, %arg7: memref<256x256xbf16, #tpu.memory_space<vmem>>, %arg8: memref<1x256xf32, #tpu.memory_space<vmem>>, %arg9: memref<256x256xbf16, #tpu.memory_space<vmem>>, %arg10: memref<1x256xf32, #tpu.memory_space<vmem>>, %arg11: memref<256x128xbf16, #tpu.memory_space<vmem>>, %arg12: memref<1x128xf32, #tpu.memory_space<vmem>>, %arg13: memref<1x128xf32, #tpu.memory_space<vmem>>, %arg14: memref<1x128xf32, #tpu.memory_space<vmem>>, %arg15: memref<128x64xbf16, #tpu.memory_space<vmem>>, %arg16: memref<1x64xf32, #tpu.memory_space<vmem>>, %arg17: memref<64x16xbf16, #tpu.memory_space<vmem>>, %arg18: memref<1x16xf32, #tpu.memory_space<vmem>>, %arg19: memref<8x16xf32, #tpu.memory_space<vmem>>) attributes {dimension_semantics = [], scalar_prefetch = 0 : i64, scratch_operands = 0 : i64, tpu.core_type = #tpu.core_type<tc>} {
    %c0 = arith.constant 0 : index
    %c0_0 = arith.constant 0 : index
    %0 = vector.load %arg0[%c0, %c0_0] : memref<64x256xf32, #tpu.memory_space<vmem>>, vector<64x256xf32>
    %1 = arith.truncf %0 : vector<64x256xf32> to vector<64x256xbf16>
    %c0_1 = arith.constant 0 : index
    %c0_2 = arith.constant 0 : index
    %2 = vector.load %arg1[%c0_1, %c0_2] : memref<64x128xf32, #tpu.memory_space<vmem>>, vector<64x128xf32>
    %3 = arith.truncf %2 : vector<64x128xf32> to vector<64x128xbf16>
    %c0_3 = arith.constant 0 : index
    %c0_4 = arith.constant 0 : index
    %4 = vector.load %arg2[%c0_3, %c0_4] : memref<256x256xbf16, #tpu.memory_space<vmem>>, vector<256x256xbf16>
    %cst = arith.constant dense<0.000000e+00> : vector<64x256xf32>
    %5 = tpu.matmul %1, %4, %cst {dimension_numbers = #tpu.dot_dimension_numbers<[1], [0], [0], [1], [0, 0, 1, 1], [], []>} : vector<64x256xbf16>, vector<256x256xbf16>, vector<64x256xf32> -> vector<64x256xf32>
    %c0_5 = arith.constant 0 : index
    %c0_6 = arith.constant 0 : index
    %6 = vector.load %arg3[%c0_5, %c0_6] : memref<128x256xbf16, #tpu.memory_space<vmem>>, vector<128x256xbf16>
    %cst_7 = arith.constant dense<0.000000e+00> : vector<64x256xf32>
    %7 = tpu.matmul %3, %6, %cst_7 {dimension_numbers = #tpu.dot_dimension_numbers<[1], [0], [0], [1], [0, 0, 1, 1], [], []>} : vector<64x128xbf16>, vector<128x256xbf16>, vector<64x256xf32> -> vector<64x256xf32>
    %8 = arith.addf %5, %7 : vector<64x256xf32>
    %c0_8 = arith.constant 0 : index
    %c0_9 = arith.constant 0 : index
    %9 = vector.load %arg4[%c0_8, %c0_9] : memref<1x256xf32, #tpu.memory_space<vmem>>, vector<1x256xf32>
    %10 = vector.broadcast %9 : vector<1x256xf32> to vector<64x256xf32>
    %11 = arith.addf %8, %10 : vector<64x256xf32>
    %12 = arith.truncf %11 : vector<64x256xf32> to vector<64x256xbf16>
    %c0_10 = arith.constant 0 : index
    %c0_11 = arith.constant 0 : index
    %13 = vector.load %arg5[%c0_10, %c0_11] : memref<256x256xbf16, #tpu.memory_space<vmem>>, vector<256x256xbf16>
    %cst_12 = arith.constant dense<0.000000e+00> : vector<64x256xf32>
    %14 = tpu.matmul %12, %13, %cst_12 {dimension_numbers = #tpu.dot_dimension_numbers<[1], [0], [0], [1], [0, 0, 1, 1], [], []>} : vector<64x256xbf16>, vector<256x256xbf16>, vector<64x256xf32> -> vector<64x256xf32>
    %c0_13 = arith.constant 0 : index
    %c0_14 = arith.constant 0 : index
    %15 = vector.load %arg6[%c0_13, %c0_14] : memref<1x256xf32, #tpu.memory_space<vmem>>, vector<1x256xf32>
    %16 = vector.broadcast %15 : vector<1x256xf32> to vector<64x256xf32>
    %17 = arith.addf %14, %16 : vector<64x256xf32>
    %c0_15 = arith.constant 0 : index
    %c0_16 = arith.constant 0 : index
    %18 = vector.load %arg7[%c0_15, %c0_16] : memref<256x256xbf16, #tpu.memory_space<vmem>>, vector<256x256xbf16>
    %cst_17 = arith.constant dense<0.000000e+00> : vector<64x256xf32>
    %19 = tpu.matmul %12, %18, %cst_17 {dimension_numbers = #tpu.dot_dimension_numbers<[1], [0], [0], [1], [0, 0, 1, 1], [], []>} : vector<64x256xbf16>, vector<256x256xbf16>, vector<64x256xf32> -> vector<64x256xf32>
    %c0_18 = arith.constant 0 : index
    %c0_19 = arith.constant 0 : index
    %20 = vector.load %arg8[%c0_18, %c0_19] : memref<1x256xf32, #tpu.memory_space<vmem>>, vector<1x256xf32>
    %21 = vector.broadcast %20 : vector<1x256xf32> to vector<64x256xf32>
    %22 = arith.addf %19, %21 : vector<64x256xf32>
    %c0_20 = arith.constant 0 : index
    %c0_21 = arith.constant 0 : index
    %23 = vector.load %arg9[%c0_20, %c0_21] : memref<256x256xbf16, #tpu.memory_space<vmem>>, vector<256x256xbf16>
    %cst_22 = arith.constant dense<0.000000e+00> : vector<64x256xf32>
    %24 = tpu.matmul %12, %23, %cst_22 {dimension_numbers = #tpu.dot_dimension_numbers<[1], [0], [0], [1], [0, 0, 1, 1], [], []>} : vector<64x256xbf16>, vector<256x256xbf16>, vector<64x256xf32> -> vector<64x256xf32>
    %c0_23 = arith.constant 0 : index
    %c0_24 = arith.constant 0 : index
    %25 = vector.load %arg10[%c0_23, %c0_24] : memref<1x256xf32, #tpu.memory_space<vmem>>, vector<1x256xf32>
    %26 = vector.broadcast %25 : vector<1x256xf32> to vector<64x256xf32>
    %27 = arith.addf %24, %26 : vector<64x256xf32>
    %28 = arith.truncf %17 : vector<64x256xf32> to vector<64x256xbf16>
    %29 = arith.truncf %22 : vector<64x256xf32> to vector<64x256xbf16>
    %cst_25 = arith.constant dense<0.000000e+00> : vector<64x64xf32>
    %30 = tpu.matmul %28, %29, %cst_25 {dimension_numbers = #tpu.dot_dimension_numbers<[1], [1], [0], [0], [0, 0, 1, 0], [], []>} : vector<64x256xbf16>, vector<64x256xbf16>, vector<64x64xf32> -> vector<64x64xf32>
    %cst_26 = arith.constant 6.250000e-02 : f32
    %31 = vector.broadcast %cst_26 : f32 to vector<64x64xf32>
    %32 = arith.mulf %30, %31 : vector<64x64xf32>
    %33 = tpu.iota {dimensions = array<i32: 0>} : vector<64x64xi32>
    %34 = tpu.iota {dimensions = array<i32: 1>} : vector<64x64xi32>
    %c8_i32 = arith.constant 8 : i32
    %c0_i32 = arith.constant 0 : i32
    %35 = arith.cmpi eq, %c8_i32, %c0_i32 : i32
    %c1_i32 = arith.constant 1 : i32
    %36 = arith.select %35, %c1_i32, %c8_i32 : i32
    %37 = vector.broadcast %36 : i32 to vector<64x64xi32>
    %38 = arith.remsi %33, %37 : vector<64x64xi32>
    %c0_i32_27 = arith.constant 0 : i32
    %39 = vector.broadcast %c0_i32_27 : i32 to vector<64x64xi32>
    %40 = arith.cmpi ne, %38, %39 : vector<64x64xi32>
    %c0_i32_28 = arith.constant 0 : i32
    %41 = vector.broadcast %c0_i32_28 : i32 to vector<64x64xi32>
    %42 = arith.cmpi slt, %38, %41 : vector<64x64xi32>
    %c0_i32_29 = arith.constant 0 : i32
    %43 = arith.cmpi slt, %36, %c0_i32_29 : i32
    %44 = vector.broadcast %43 : i1 to vector<64x64xi1>
    %45 = vector.broadcast %44 : vector<64x64xi1> to vector<64x64xi1>
    %46 = arith.xori %42, %45 : vector<64x64xi1>
    %47 = arith.andi %46, %40 : vector<64x64xi1>
    %48 = vector.broadcast %36 : i32 to vector<64x64xi32>
    %49 = arith.addi %38, %48 : vector<64x64xi32>
    %50 = arith.select %47, %49, %38 : vector<64x64xi1>, vector<64x64xi32>
    %c8_i32_30 = arith.constant 8 : i32
    %c0_i32_31 = arith.constant 0 : i32
    %51 = arith.cmpi eq, %c8_i32_30, %c0_i32_31 : i32
    %c1_i32_32 = arith.constant 1 : i32
    %52 = arith.select %51, %c1_i32_32, %c8_i32_30 : i32
    %53 = vector.broadcast %52 : i32 to vector<64x64xi32>
    %54 = arith.remsi %34, %53 : vector<64x64xi32>
    %c0_i32_33 = arith.constant 0 : i32
    %55 = vector.broadcast %c0_i32_33 : i32 to vector<64x64xi32>
    %56 = arith.cmpi ne, %54, %55 : vector<64x64xi32>
    %c0_i32_34 = arith.constant 0 : i32
    %57 = vector.broadcast %c0_i32_34 : i32 to vector<64x64xi32>
    %58 = arith.cmpi slt, %54, %57 : vector<64x64xi32>
    %c0_i32_35 = arith.constant 0 : i32
    %59 = arith.cmpi slt, %52, %c0_i32_35 : i32
    %60 = vector.broadcast %59 : i1 to vector<64x64xi1>
    %61 = vector.broadcast %60 : vector<64x64xi1> to vector<64x64xi1>
    %62 = arith.xori %58, %61 : vector<64x64xi1>
    %63 = arith.andi %62, %56 : vector<64x64xi1>
    %64 = vector.broadcast %52 : i32 to vector<64x64xi32>
    %65 = arith.addi %54, %64 : vector<64x64xi32>
    %66 = arith.select %63, %65, %54 : vector<64x64xi1>, vector<64x64xi32>
    %67 = arith.cmpi eq, %50, %66 : vector<64x64xi32>
    %cst_36 = arith.constant -1.000000e+30 : f32
    %68 = vector.broadcast %cst_36 : f32 to vector<64x64xf32>
    %69 = arith.select %67, %32, %68 : vector<64x64xi1>, vector<64x64xf32>
    %cst_37 = arith.constant dense<0xFF800000> : vector<64xf32>
    %70 = vector.multi_reduction <maximumf>, %69, %cst_37 [0] : vector<64x64xf32> to vector<64xf32>
    %71 = vector.shape_cast %70 : vector<64xf32> to vector<1x64xf32>
    %72 = vector.broadcast %71 : vector<1x64xf32> to vector<64x64xf32>
    %73 = arith.subf %69, %72 : vector<64x64xf32>
    %74 = math.exp %73 : vector<64x64xf32>
    %cst_38 = arith.constant dense<0.000000e+00> : vector<64xf32>
    %75 = vector.multi_reduction <add>, %74, %cst_38 [0] : vector<64x64xf32> to vector<64xf32>
    %76 = vector.shape_cast %75 : vector<64xf32> to vector<1x64xf32>
    %77 = vector.extract_strided_slice %74 {offsets = [56, 0], sizes = [8, 64], strides = [1, 1]} : vector<64x64xf32> to vector<8x64xf32>
    %78 = tpu.reciprocal %76 {approx = true} : vector<1x64xf32> -> vector<1x64xf32>
    %79 = vector.broadcast %78 : vector<1x64xf32> to vector<8x64xf32>
    %80 = arith.mulf %77, %79 : vector<8x64xf32>
    %81 = arith.truncf %80 : vector<8x64xf32> to vector<8x64xbf16>
    %82 = arith.truncf %27 : vector<64x256xf32> to vector<64x256xbf16>
    %cst_39 = arith.constant dense<0.000000e+00> : vector<8x256xf32>
    %83 = tpu.matmul %81, %82, %cst_39 {dimension_numbers = #tpu.dot_dimension_numbers<[1], [0], [0], [1], [0, 0, 1, 1], [], []>} : vector<8x64xbf16>, vector<64x256xbf16>, vector<8x256xf32> -> vector<8x256xf32>
    %84 = arith.truncf %83 : vector<8x256xf32> to vector<8x256xbf16>
    %c0_40 = arith.constant 0 : index
    %c0_41 = arith.constant 0 : index
    %85 = vector.load %arg11[%c0_40, %c0_41] : memref<256x128xbf16, #tpu.memory_space<vmem>>, vector<256x128xbf16>
    %cst_42 = arith.constant dense<0.000000e+00> : vector<8x128xf32>
    %86 = tpu.matmul %84, %85, %cst_42 {dimension_numbers = #tpu.dot_dimension_numbers<[1], [0], [0], [1], [0, 0, 1, 1], [], []>} : vector<8x256xbf16>, vector<256x128xbf16>, vector<8x128xf32> -> vector<8x128xf32>
    %c0_43 = arith.constant 0 : index
    %c0_44 = arith.constant 0 : index
    %87 = vector.load %arg12[%c0_43, %c0_44] : memref<1x128xf32, #tpu.memory_space<vmem>>, vector<1x128xf32>
    %88 = vector.broadcast %87 : vector<1x128xf32> to vector<8x128xf32>
    %89 = arith.addf %86, %88 : vector<8x128xf32>
    %cst_45 = arith.constant dense<0.000000e+00> : vector<8xf32>
    %90 = vector.multi_reduction <add>, %89, %cst_45 [1] : vector<8x128xf32> to vector<8xf32>
    %91 = vector.shape_cast %90 : vector<8xf32> to vector<8x1xf32>
    %cst_46 = arith.constant 1.280000e+02 : f32
    %92 = vector.broadcast %cst_46 : f32 to vector<8x1xf32>
    %93 = arith.divf %91, %92 : vector<8x1xf32>
    %94 = vector.broadcast %93 : vector<8x1xf32> to vector<8x128xf32>
    %95 = arith.subf %89, %94 : vector<8x128xf32>
    %96 = arith.mulf %95, %95 : vector<8x128xf32>
    %cst_47 = arith.constant dense<0.000000e+00> : vector<8xf32>
    %97 = vector.multi_reduction <add>, %96, %cst_47 [1] : vector<8x128xf32> to vector<8xf32>
    %98 = vector.shape_cast %97 : vector<8xf32> to vector<8x1xf32>
    %cst_48 = arith.constant 1.280000e+02 : f32
    %99 = vector.broadcast %cst_48 : f32 to vector<8x1xf32>
    %100 = arith.divf %98, %99 : vector<8x1xf32>
    %101 = vector.broadcast %93 : vector<8x1xf32> to vector<8x128xf32>
    %102 = arith.subf %89, %101 : vector<8x128xf32>
    %cst_49 = arith.constant 9.99999974E-6 : f32
    %103 = vector.broadcast %cst_49 : f32 to vector<8x1xf32>
    %104 = arith.addf %100, %103 : vector<8x1xf32>
    %105 = math.rsqrt %104 : vector<8x1xf32>
    %106 = vector.broadcast %105 : vector<8x1xf32> to vector<8x128xf32>
    %107 = arith.mulf %102, %106 : vector<8x128xf32>
    %c0_50 = arith.constant 0 : index
    %c0_51 = arith.constant 0 : index
    %108 = vector.load %arg13[%c0_50, %c0_51] : memref<1x128xf32, #tpu.memory_space<vmem>>, vector<1x128xf32>
    %109 = vector.broadcast %108 : vector<1x128xf32> to vector<8x128xf32>
    %110 = arith.mulf %107, %109 : vector<8x128xf32>
    %c0_52 = arith.constant 0 : index
    %c0_53 = arith.constant 0 : index
    %111 = vector.load %arg14[%c0_52, %c0_53] : memref<1x128xf32, #tpu.memory_space<vmem>>, vector<1x128xf32>
    %112 = vector.broadcast %111 : vector<1x128xf32> to vector<8x128xf32>
    %113 = arith.addf %110, %112 : vector<8x128xf32>
    %cst_54 = arith.constant 0.000000e+00 : f32
    %114 = vector.broadcast %cst_54 : f32 to vector<8x128xf32>
    %115 = arith.maximumf %113, %114 : vector<8x128xf32>
    %116 = arith.truncf %115 : vector<8x128xf32> to vector<8x128xbf16>
    %c0_55 = arith.constant 0 : index
    %c0_56 = arith.constant 0 : index
    %117 = vector.load %arg15[%c0_55, %c0_56] : memref<128x64xbf16, #tpu.memory_space<vmem>>, vector<128x64xbf16>
    %cst_57 = arith.constant dense<0.000000e+00> : vector<8x64xf32>
    %118 = tpu.matmul %116, %117, %cst_57 {dimension_numbers = #tpu.dot_dimension_numbers<[1], [0], [0], [1], [0, 0, 1, 1], [], []>} : vector<8x128xbf16>, vector<128x64xbf16>, vector<8x64xf32> -> vector<8x64xf32>
    %c0_58 = arith.constant 0 : index
    %c0_59 = arith.constant 0 : index
    %119 = vector.load %arg16[%c0_58, %c0_59] : memref<1x64xf32, #tpu.memory_space<vmem>>, vector<1x64xf32>
    %120 = vector.broadcast %119 : vector<1x64xf32> to vector<8x64xf32>
    %121 = arith.addf %118, %120 : vector<8x64xf32>
    %cst_60 = arith.constant 0.000000e+00 : f32
    %122 = vector.broadcast %cst_60 : f32 to vector<8x64xf32>
    %123 = arith.maximumf %121, %122 : vector<8x64xf32>
    %124 = arith.truncf %123 : vector<8x64xf32> to vector<8x64xbf16>
    %c0_61 = arith.constant 0 : index
    %c0_62 = arith.constant 0 : index
    %125 = vector.load %arg17[%c0_61, %c0_62] : memref<64x16xbf16, #tpu.memory_space<vmem>>, vector<64x16xbf16>
    %cst_63 = arith.constant dense<0.000000e+00> : vector<8x16xf32>
    %126 = tpu.matmul %124, %125, %cst_63 {dimension_numbers = #tpu.dot_dimension_numbers<[1], [0], [0], [1], [0, 0, 1, 1], [], []>} : vector<8x64xbf16>, vector<64x16xbf16>, vector<8x16xf32> -> vector<8x16xf32>
    %c0_64 = arith.constant 0 : index
    %c0_65 = arith.constant 0 : index
    %127 = vector.load %arg18[%c0_64, %c0_65] : memref<1x16xf32, #tpu.memory_space<vmem>>, vector<1x16xf32>
    %128 = vector.broadcast %127 : vector<1x16xf32> to vector<8x16xf32>
    %129 = arith.addf %126, %128 : vector<8x16xf32>
    %c0_66 = arith.constant 0 : index
    %c0_67 = arith.constant 0 : index
    %130 = vector.load %arg19[%c0_66, %c0_67] : memref<8x16xf32, #tpu.memory_space<vmem>>, vector<8x16xf32>
    tpu.vector_store %arg19[%c0_66, %c0_67], %129 {strides = array<i32>} : memref<8x16xf32, #tpu.memory_space<vmem>>, vector<8x16xf32>,
    return
  }
}

module attributes {stable_mosaic.version = 11 : i64} {
  func.func @_main_lstm_kernel(%arg0: memref<64x8xf32, #tpu.memory_space<vmem>>, %arg1: memref<8x1024xbf16, #tpu.memory_space<vmem>>, %arg2: memref<256x1024xbf16, #tpu.memory_space<vmem>>, %arg3: memref<1x1024xf32, #tpu.memory_space<vmem>>, %arg4: memref<256x1024xbf16, #tpu.memory_space<vmem>>, %arg5: memref<256x1024xbf16, #tpu.memory_space<vmem>>, %arg6: memref<1x1024xf32, #tpu.memory_space<vmem>>, %arg7: memref<64x256xf32, #tpu.memory_space<vmem>>, %arg8: memref<64x1024xf32, #tpu.memory_space<vmem>>) attributes {dimension_semantics = [], scalar_prefetch = 0 : i64, scratch_operands = 1 : i64, tpu.core_type = #tpu.core_type<tc>} {
    %c0 = arith.constant 0 : index
    %c0_0 = arith.constant 0 : index
    %0 = vector.load %arg0[%c0, %c0_0] : memref<64x8xf32, #tpu.memory_space<vmem>>, vector<64x8xf32>
    %1 = arith.truncf %0 : vector<64x8xf32> to vector<64x8xbf16>
    %c0_1 = arith.constant 0 : index
    %c0_2 = arith.constant 0 : index
    %2 = vector.load %arg1[%c0_1, %c0_2] : memref<8x1024xbf16, #tpu.memory_space<vmem>>, vector<8x1024xbf16>
    %cst = arith.constant dense<0.000000e+00> : vector<64x1024xf32>
    %3 = tpu.matmul %1, %2, %cst {dimension_numbers = #tpu.dot_dimension_numbers<[1], [0], [0], [1], [0, 0, 1, 1], [], []>} : vector<64x8xbf16>, vector<8x1024xbf16>, vector<64x1024xf32> -> vector<64x1024xf32>
    %c0_3 = arith.constant 0 : index
    %c0_4 = arith.constant 0 : index
    %4 = vector.load %arg3[%c0_3, %c0_4] : memref<1x1024xf32, #tpu.memory_space<vmem>>, vector<1x1024xf32>
    %5 = vector.broadcast %4 : vector<1x1024xf32> to vector<64x1024xf32>
    %6 = arith.addf %3, %5 : vector<64x1024xf32>
    %c0_5 = arith.constant 0 : index
    %c0_6 = arith.constant 0 : index
    %7 = vector.load %arg8[%c0_5, %c0_6] : memref<64x1024xf32, #tpu.memory_space<vmem>>, vector<64x1024xf32>
    tpu.vector_store %arg8[%c0_5, %c0_6], %6 {strides = array<i32>} : memref<64x1024xf32, #tpu.memory_space<vmem>>, vector<64x1024xf32>,
    %c0_7 = arith.constant 0 : index
    %c0_8 = arith.constant 0 : index
    %8 = vector.load %arg2[%c0_7, %c0_8] : memref<256x1024xbf16, #tpu.memory_space<vmem>>, vector<256x1024xbf16>
    %c0_9 = arith.constant 0 : index
    %c0_10 = arith.constant 0 : index
    %9 = vector.load %arg4[%c0_9, %c0_10] : memref<256x1024xbf16, #tpu.memory_space<vmem>>, vector<256x1024xbf16>
    %c0_11 = arith.constant 0 : index
    %c0_12 = arith.constant 0 : index
    %10 = vector.load %arg5[%c0_11, %c0_12] : memref<256x1024xbf16, #tpu.memory_space<vmem>>, vector<256x1024xbf16>
    %c0_13 = arith.constant 0 : index
    %c0_14 = arith.constant 0 : index
    %11 = vector.load %arg6[%c0_13, %c0_14] : memref<1x1024xf32, #tpu.memory_space<vmem>>, vector<1x1024xf32>
    %cst_15 = arith.constant 0.000000e+00 : f32
    %12 = vector.broadcast %cst_15 : f32 to vector<8x256xf32>
    %cst_16 = arith.constant 0.000000e+00 : f32
    %13 = vector.broadcast %cst_16 : f32 to vector<8x256xf32>
    %cst_17 = arith.constant 0.000000e+00 : f32
    %14 = vector.broadcast %cst_17 : f32 to vector<8x256xf32>
    %cst_18 = arith.constant 0.000000e+00 : f32
    %15 = vector.broadcast %cst_18 : f32 to vector<8x256xf32>
    %c0_19 = arith.constant 0 : index
    %c0_20 = arith.constant 0 : index
    %16 = vector.load %arg8[%c0_19, %c0_20] : memref<64x1024xf32, #tpu.memory_space<vmem>>, vector<8x1024xf32>
    %17 = arith.truncf %12 : vector<8x256xf32> to vector<8x256xbf16>
    %cst_21 = arith.constant dense<0.000000e+00> : vector<8x1024xf32>
    %18 = tpu.matmul %17, %8, %cst_21 {dimension_numbers = #tpu.dot_dimension_numbers<[1], [0], [0], [1], [0, 0, 1, 1], [], []>} : vector<8x256xbf16>, vector<256x1024xbf16>, vector<8x1024xf32> -> vector<8x1024xf32>
    %19 = arith.addf %16, %18 : vector<8x1024xf32>
    %20 = vector.extract_strided_slice %19 {offsets = [0, 0], sizes = [8, 256], strides = [1, 1]} : vector<8x1024xf32> to vector<8x256xf32>
    %21 = arith.negf %20 : vector<8x256xf32>
    %22 = math.exp %21 : vector<8x256xf32>
    %cst_22 = arith.constant 1.000000e+00 : f32
    %23 = vector.broadcast %cst_22 : f32 to vector<8x256xf32>
    %24 = arith.addf %23, %22 : vector<8x256xf32>
    %25 = arith.divf %23, %24 : vector<8x256xf32>
    %26 = vector.extract_strided_slice %19 {offsets = [0, 256], sizes = [8, 256], strides = [1, 1]} : vector<8x1024xf32> to vector<8x256xf32>
    %27 = arith.negf %26 : vector<8x256xf32>
    %28 = math.exp %27 : vector<8x256xf32>
    %cst_23 = arith.constant 1.000000e+00 : f32
    %29 = vector.broadcast %cst_23 : f32 to vector<8x256xf32>
    %30 = arith.addf %29, %28 : vector<8x256xf32>
    %31 = arith.divf %29, %30 : vector<8x256xf32>
    %32 = vector.extract_strided_slice %19 {offsets = [0, 512], sizes = [8, 256], strides = [1, 1]} : vector<8x1024xf32> to vector<8x256xf32>
    %33 = math.tanh %32 : vector<8x256xf32>
    %34 = vector.extract_strided_slice %19 {offsets = [0, 768], sizes = [8, 256], strides = [1, 1]} : vector<8x1024xf32> to vector<8x256xf32>
    %35 = arith.negf %34 : vector<8x256xf32>
    %36 = math.exp %35 : vector<8x256xf32>
    %cst_24 = arith.constant 1.000000e+00 : f32
    %37 = vector.broadcast %cst_24 : f32 to vector<8x256xf32>
    %38 = arith.addf %37, %36 : vector<8x256xf32>
    %39 = arith.divf %37, %38 : vector<8x256xf32>
    %40 = arith.mulf %31, %13 : vector<8x256xf32>
    %41 = arith.mulf %25, %33 : vector<8x256xf32>
    %42 = arith.addf %40, %41 : vector<8x256xf32>
    %43 = math.tanh %42 : vector<8x256xf32>
    %44 = arith.mulf %39, %43 : vector<8x256xf32>
    %45 = arith.truncf %44 : vector<8x256xf32> to vector<8x256xbf16>
    %cst_25 = arith.constant dense<0.000000e+00> : vector<8x1024xf32>
    %46 = tpu.matmul %45, %9, %cst_25 {dimension_numbers = #tpu.dot_dimension_numbers<[1], [0], [0], [1], [0, 0, 1, 1], [], []>} : vector<8x256xbf16>, vector<256x1024xbf16>, vector<8x1024xf32> -> vector<8x1024xf32>
    %47 = vector.broadcast %11 : vector<1x1024xf32> to vector<8x1024xf32>
    %48 = arith.addf %46, %47 : vector<8x1024xf32>
    %49 = arith.truncf %14 : vector<8x256xf32> to vector<8x256xbf16>
    %cst_26 = arith.constant dense<0.000000e+00> : vector<8x1024xf32>
    %50 = tpu.matmul %49, %10, %cst_26 {dimension_numbers = #tpu.dot_dimension_numbers<[1], [0], [0], [1], [0, 0, 1, 1], [], []>} : vector<8x256xbf16>, vector<256x1024xbf16>, vector<8x1024xf32> -> vector<8x1024xf32>
    %51 = arith.addf %48, %50 : vector<8x1024xf32>
    %52 = vector.extract_strided_slice %51 {offsets = [0, 0], sizes = [8, 256], strides = [1, 1]} : vector<8x1024xf32> to vector<8x256xf32>
    %53 = arith.negf %52 : vector<8x256xf32>
    %54 = math.exp %53 : vector<8x256xf32>
    %cst_27 = arith.constant 1.000000e+00 : f32
    %55 = vector.broadcast %cst_27 : f32 to vector<8x256xf32>
    %56 = arith.addf %55, %54 : vector<8x256xf32>
    %57 = arith.divf %55, %56 : vector<8x256xf32>
    %58 = vector.extract_strided_slice %51 {offsets = [0, 256], sizes = [8, 256], strides = [1, 1]} : vector<8x1024xf32> to vector<8x256xf32>
    %59 = arith.negf %58 : vector<8x256xf32>
    %60 = math.exp %59 : vector<8x256xf32>
    %cst_28 = arith.constant 1.000000e+00 : f32
    %61 = vector.broadcast %cst_28 : f32 to vector<8x256xf32>
    %62 = arith.addf %61, %60 : vector<8x256xf32>
    %63 = arith.divf %61, %62 : vector<8x256xf32>
    %64 = vector.extract_strided_slice %51 {offsets = [0, 512], sizes = [8, 256], strides = [1, 1]} : vector<8x1024xf32> to vector<8x256xf32>
    %65 = math.tanh %64 : vector<8x256xf32>
    %66 = vector.extract_strided_slice %51 {offsets = [0, 768], sizes = [8, 256], strides = [1, 1]} : vector<8x1024xf32> to vector<8x256xf32>
    %67 = arith.negf %66 : vector<8x256xf32>
    %68 = math.exp %67 : vector<8x256xf32>
    %cst_29 = arith.constant 1.000000e+00 : f32
    %69 = vector.broadcast %cst_29 : f32 to vector<8x256xf32>
    %70 = arith.addf %69, %68 : vector<8x256xf32>
    %71 = arith.divf %69, %70 : vector<8x256xf32>
    %72 = arith.mulf %63, %15 : vector<8x256xf32>
    %73 = arith.mulf %57, %65 : vector<8x256xf32>
    %74 = arith.addf %72, %73 : vector<8x256xf32>
    %75 = math.tanh %74 : vector<8x256xf32>
    %76 = arith.mulf %71, %75 : vector<8x256xf32>
    %c0_30 = arith.constant 0 : index
    %c0_31 = arith.constant 0 : index
    %77 = vector.load %arg7[%c0_30, %c0_31] : memref<64x256xf32, #tpu.memory_space<vmem>>, vector<8x256xf32>
    tpu.vector_store %arg7[%c0_30, %c0_31], %76 {strides = array<i32>} : memref<64x256xf32, #tpu.memory_space<vmem>>, vector<8x256xf32>,
    %c8 = arith.constant 8 : index
    %c0_32 = arith.constant 0 : index
    %78 = vector.load %arg8[%c8, %c0_32] : memref<64x1024xf32, #tpu.memory_space<vmem>>, vector<8x1024xf32>
    %79 = arith.truncf %44 : vector<8x256xf32> to vector<8x256xbf16>
    %cst_33 = arith.constant dense<0.000000e+00> : vector<8x1024xf32>
    %80 = tpu.matmul %79, %8, %cst_33 {dimension_numbers = #tpu.dot_dimension_numbers<[1], [0], [0], [1], [0, 0, 1, 1], [], []>} : vector<8x256xbf16>, vector<256x1024xbf16>, vector<8x1024xf32> -> vector<8x1024xf32>
    %81 = arith.addf %78, %80 : vector<8x1024xf32>
    %82 = vector.extract_strided_slice %81 {offsets = [0, 0], sizes = [8, 256], strides = [1, 1]} : vector<8x1024xf32> to vector<8x256xf32>
    %83 = arith.negf %82 : vector<8x256xf32>
    %84 = math.exp %83 : vector<8x256xf32>
    %cst_34 = arith.constant 1.000000e+00 : f32
    %85 = vector.broadcast %cst_34 : f32 to vector<8x256xf32>
    %86 = arith.addf %85, %84 : vector<8x256xf32>
    %87 = arith.divf %85, %86 : vector<8x256xf32>
    %88 = vector.extract_strided_slice %81 {offsets = [0, 256], sizes = [8, 256], strides = [1, 1]} : vector<8x1024xf32> to vector<8x256xf32>
    %89 = arith.negf %88 : vector<8x256xf32>
    %90 = math.exp %89 : vector<8x256xf32>
    %cst_35 = arith.constant 1.000000e+00 : f32
    %91 = vector.broadcast %cst_35 : f32 to vector<8x256xf32>
    %92 = arith.addf %91, %90 : vector<8x256xf32>
    %93 = arith.divf %91, %92 : vector<8x256xf32>
    %94 = vector.extract_strided_slice %81 {offsets = [0, 512], sizes = [8, 256], strides = [1, 1]} : vector<8x1024xf32> to vector<8x256xf32>
    %95 = math.tanh %94 : vector<8x256xf32>
    %96 = vector.extract_strided_slice %81 {offsets = [0, 768], sizes = [8, 256], strides = [1, 1]} : vector<8x1024xf32> to vector<8x256xf32>
    %97 = arith.negf %96 : vector<8x256xf32>
    %98 = math.exp %97 : vector<8x256xf32>
    %cst_36 = arith.constant 1.000000e+00 : f32
    %99 = vector.broadcast %cst_36 : f32 to vector<8x256xf32>
    %100 = arith.addf %99, %98 : vector<8x256xf32>
    %101 = arith.divf %99, %100 : vector<8x256xf32>
    %102 = arith.mulf %93, %42 : vector<8x256xf32>
    %103 = arith.mulf %87, %95 : vector<8x256xf32>
    %104 = arith.addf %102, %103 : vector<8x256xf32>
    %105 = math.tanh %104 : vector<8x256xf32>
    %106 = arith.mulf %101, %105 : vector<8x256xf32>
    %107 = arith.truncf %106 : vector<8x256xf32> to vector<8x256xbf16>
    %cst_37 = arith.constant dense<0.000000e+00> : vector<8x1024xf32>
    %108 = tpu.matmul %107, %9, %cst_37 {dimension_numbers = #tpu.dot_dimension_numbers<[1], [0], [0], [1], [0, 0, 1, 1], [], []>} : vector<8x256xbf16>, vector<256x1024xbf16>, vector<8x1024xf32> -> vector<8x1024xf32>
    %109 = vector.broadcast %11 : vector<1x1024xf32> to vector<8x1024xf32>
    %110 = arith.addf %108, %109 : vector<8x1024xf32>
    %111 = arith.truncf %76 : vector<8x256xf32> to vector<8x256xbf16>
    %cst_38 = arith.constant dense<0.000000e+00> : vector<8x1024xf32>
    %112 = tpu.matmul %111, %10, %cst_38 {dimension_numbers = #tpu.dot_dimension_numbers<[1], [0], [0], [1], [0, 0, 1, 1], [], []>} : vector<8x256xbf16>, vector<256x1024xbf16>, vector<8x1024xf32> -> vector<8x1024xf32>
    %113 = arith.addf %110, %112 : vector<8x1024xf32>
    %114 = vector.extract_strided_slice %113 {offsets = [0, 0], sizes = [8, 256], strides = [1, 1]} : vector<8x1024xf32> to vector<8x256xf32>
    %115 = arith.negf %114 : vector<8x256xf32>
    %116 = math.exp %115 : vector<8x256xf32>
    %cst_39 = arith.constant 1.000000e+00 : f32
    %117 = vector.broadcast %cst_39 : f32 to vector<8x256xf32>
    %118 = arith.addf %117, %116 : vector<8x256xf32>
    %119 = arith.divf %117, %118 : vector<8x256xf32>
    %120 = vector.extract_strided_slice %113 {offsets = [0, 256], sizes = [8, 256], strides = [1, 1]} : vector<8x1024xf32> to vector<8x256xf32>
    %121 = arith.negf %120 : vector<8x256xf32>
    %122 = math.exp %121 : vector<8x256xf32>
    %cst_40 = arith.constant 1.000000e+00 : f32
    %123 = vector.broadcast %cst_40 : f32 to vector<8x256xf32>
    %124 = arith.addf %123, %122 : vector<8x256xf32>
    %125 = arith.divf %123, %124 : vector<8x256xf32>
    %126 = vector.extract_strided_slice %113 {offsets = [0, 512], sizes = [8, 256], strides = [1, 1]} : vector<8x1024xf32> to vector<8x256xf32>
    %127 = math.tanh %126 : vector<8x256xf32>
    %128 = vector.extract_strided_slice %113 {offsets = [0, 768], sizes = [8, 256], strides = [1, 1]} : vector<8x1024xf32> to vector<8x256xf32>
    %129 = arith.negf %128 : vector<8x256xf32>
    %130 = math.exp %129 : vector<8x256xf32>
    %cst_41 = arith.constant 1.000000e+00 : f32
    %131 = vector.broadcast %cst_41 : f32 to vector<8x256xf32>
    %132 = arith.addf %131, %130 : vector<8x256xf32>
    %133 = arith.divf %131, %132 : vector<8x256xf32>
    %134 = arith.mulf %125, %74 : vector<8x256xf32>
    %135 = arith.mulf %119, %127 : vector<8x256xf32>
    %136 = arith.addf %134, %135 : vector<8x256xf32>
    %137 = math.tanh %136 : vector<8x256xf32>
    %138 = arith.mulf %133, %137 : vector<8x256xf32>
    %c8_42 = arith.constant 8 : index
    %c0_43 = arith.constant 0 : index
    %139 = vector.load %arg7[%c8_42, %c0_43] : memref<64x256xf32, #tpu.memory_space<vmem>>, vector<8x256xf32>
    tpu.vector_store %arg7[%c8_42, %c0_43], %138 {strides = array<i32>} : memref<64x256xf32, #tpu.memory_space<vmem>>, vector<8x256xf32>,
    %c16 = arith.constant 16 : index
    %c0_44 = arith.constant 0 : index
    %140 = vector.load %arg8[%c16, %c0_44] : memref<64x1024xf32, #tpu.memory_space<vmem>>, vector<8x1024xf32>
    %141 = arith.truncf %106 : vector<8x256xf32> to vector<8x256xbf16>
    %cst_45 = arith.constant dense<0.000000e+00> : vector<8x1024xf32>
    %142 = tpu.matmul %141, %8, %cst_45 {dimension_numbers = #tpu.dot_dimension_numbers<[1], [0], [0], [1], [0, 0, 1, 1], [], []>} : vector<8x256xbf16>, vector<256x1024xbf16>, vector<8x1024xf32> -> vector<8x1024xf32>
    %143 = arith.addf %140, %142 : vector<8x1024xf32>
    %144 = vector.extract_strided_slice %143 {offsets = [0, 0], sizes = [8, 256], strides = [1, 1]} : vector<8x1024xf32> to vector<8x256xf32>
    %145 = arith.negf %144 : vector<8x256xf32>
    %146 = math.exp %145 : vector<8x256xf32>
    %cst_46 = arith.constant 1.000000e+00 : f32
    %147 = vector.broadcast %cst_46 : f32 to vector<8x256xf32>
    %148 = arith.addf %147, %146 : vector<8x256xf32>
    %149 = arith.divf %147, %148 : vector<8x256xf32>
    %150 = vector.extract_strided_slice %143 {offsets = [0, 256], sizes = [8, 256], strides = [1, 1]} : vector<8x1024xf32> to vector<8x256xf32>
    %151 = arith.negf %150 : vector<8x256xf32>
    %152 = math.exp %151 : vector<8x256xf32>
    %cst_47 = arith.constant 1.000000e+00 : f32
    %153 = vector.broadcast %cst_47 : f32 to vector<8x256xf32>
    %154 = arith.addf %153, %152 : vector<8x256xf32>
    %155 = arith.divf %153, %154 : vector<8x256xf32>
    %156 = vector.extract_strided_slice %143 {offsets = [0, 512], sizes = [8, 256], strides = [1, 1]} : vector<8x1024xf32> to vector<8x256xf32>
    %157 = math.tanh %156 : vector<8x256xf32>
    %158 = vector.extract_strided_slice %143 {offsets = [0, 768], sizes = [8, 256], strides = [1, 1]} : vector<8x1024xf32> to vector<8x256xf32>
    %159 = arith.negf %158 : vector<8x256xf32>
    %160 = math.exp %159 : vector<8x256xf32>
    %cst_48 = arith.constant 1.000000e+00 : f32
    %161 = vector.broadcast %cst_48 : f32 to vector<8x256xf32>
    %162 = arith.addf %161, %160 : vector<8x256xf32>
    %163 = arith.divf %161, %162 : vector<8x256xf32>
    %164 = arith.mulf %155, %104 : vector<8x256xf32>
    %165 = arith.mulf %149, %157 : vector<8x256xf32>
    %166 = arith.addf %164, %165 : vector<8x256xf32>
    %167 = math.tanh %166 : vector<8x256xf32>
    %168 = arith.mulf %163, %167 : vector<8x256xf32>
    %169 = arith.truncf %168 : vector<8x256xf32> to vector<8x256xbf16>
    %cst_49 = arith.constant dense<0.000000e+00> : vector<8x1024xf32>
    %170 = tpu.matmul %169, %9, %cst_49 {dimension_numbers = #tpu.dot_dimension_numbers<[1], [0], [0], [1], [0, 0, 1, 1], [], []>} : vector<8x256xbf16>, vector<256x1024xbf16>, vector<8x1024xf32> -> vector<8x1024xf32>
    %171 = vector.broadcast %11 : vector<1x1024xf32> to vector<8x1024xf32>
    %172 = arith.addf %170, %171 : vector<8x1024xf32>
    %173 = arith.truncf %138 : vector<8x256xf32> to vector<8x256xbf16>
    %cst_50 = arith.constant dense<0.000000e+00> : vector<8x1024xf32>
    %174 = tpu.matmul %173, %10, %cst_50 {dimension_numbers = #tpu.dot_dimension_numbers<[1], [0], [0], [1], [0, 0, 1, 1], [], []>} : vector<8x256xbf16>, vector<256x1024xbf16>, vector<8x1024xf32> -> vector<8x1024xf32>
    %175 = arith.addf %172, %174 : vector<8x1024xf32>
    %176 = vector.extract_strided_slice %175 {offsets = [0, 0], sizes = [8, 256], strides = [1, 1]} : vector<8x1024xf32> to vector<8x256xf32>
    %177 = arith.negf %176 : vector<8x256xf32>
    %178 = math.exp %177 : vector<8x256xf32>
    %cst_51 = arith.constant 1.000000e+00 : f32
    %179 = vector.broadcast %cst_51 : f32 to vector<8x256xf32>
    %180 = arith.addf %179, %178 : vector<8x256xf32>
    %181 = arith.divf %179, %180 : vector<8x256xf32>
    %182 = vector.extract_strided_slice %175 {offsets = [0, 256], sizes = [8, 256], strides = [1, 1]} : vector<8x1024xf32> to vector<8x256xf32>
    %183 = arith.negf %182 : vector<8x256xf32>
    %184 = math.exp %183 : vector<8x256xf32>
    %cst_52 = arith.constant 1.000000e+00 : f32
    %185 = vector.broadcast %cst_52 : f32 to vector<8x256xf32>
    %186 = arith.addf %185, %184 : vector<8x256xf32>
    %187 = arith.divf %185, %186 : vector<8x256xf32>
    %188 = vector.extract_strided_slice %175 {offsets = [0, 512], sizes = [8, 256], strides = [1, 1]} : vector<8x1024xf32> to vector<8x256xf32>
    %189 = math.tanh %188 : vector<8x256xf32>
    %190 = vector.extract_strided_slice %175 {offsets = [0, 768], sizes = [8, 256], strides = [1, 1]} : vector<8x1024xf32> to vector<8x256xf32>
    %191 = arith.negf %190 : vector<8x256xf32>
    %192 = math.exp %191 : vector<8x256xf32>
    %cst_53 = arith.constant 1.000000e+00 : f32
    %193 = vector.broadcast %cst_53 : f32 to vector<8x256xf32>
    %194 = arith.addf %193, %192 : vector<8x256xf32>
    %195 = arith.divf %193, %194 : vector<8x256xf32>
    %196 = arith.mulf %187, %136 : vector<8x256xf32>
    %197 = arith.mulf %181, %189 : vector<8x256xf32>
    %198 = arith.addf %196, %197 : vector<8x256xf32>
    %199 = math.tanh %198 : vector<8x256xf32>
    %200 = arith.mulf %195, %199 : vector<8x256xf32>
    %c16_54 = arith.constant 16 : index
    %c0_55 = arith.constant 0 : index
    %201 = vector.load %arg7[%c16_54, %c0_55] : memref<64x256xf32, #tpu.memory_space<vmem>>, vector<8x256xf32>
    tpu.vector_store %arg7[%c16_54, %c0_55], %200 {strides = array<i32>} : memref<64x256xf32, #tpu.memory_space<vmem>>, vector<8x256xf32>,
    %c24 = arith.constant 24 : index
    %c0_56 = arith.constant 0 : index
    %202 = vector.load %arg8[%c24, %c0_56] : memref<64x1024xf32, #tpu.memory_space<vmem>>, vector<8x1024xf32>
    %203 = arith.truncf %168 : vector<8x256xf32> to vector<8x256xbf16>
    %cst_57 = arith.constant dense<0.000000e+00> : vector<8x1024xf32>
    %204 = tpu.matmul %203, %8, %cst_57 {dimension_numbers = #tpu.dot_dimension_numbers<[1], [0], [0], [1], [0, 0, 1, 1], [], []>} : vector<8x256xbf16>, vector<256x1024xbf16>, vector<8x1024xf32> -> vector<8x1024xf32>
    %205 = arith.addf %202, %204 : vector<8x1024xf32>
    %206 = vector.extract_strided_slice %205 {offsets = [0, 0], sizes = [8, 256], strides = [1, 1]} : vector<8x1024xf32> to vector<8x256xf32>
    %207 = arith.negf %206 : vector<8x256xf32>
    %208 = math.exp %207 : vector<8x256xf32>
    %cst_58 = arith.constant 1.000000e+00 : f32
    %209 = vector.broadcast %cst_58 : f32 to vector<8x256xf32>
    %210 = arith.addf %209, %208 : vector<8x256xf32>
    %211 = arith.divf %209, %210 : vector<8x256xf32>
    %212 = vector.extract_strided_slice %205 {offsets = [0, 256], sizes = [8, 256], strides = [1, 1]} : vector<8x1024xf32> to vector<8x256xf32>
    %213 = arith.negf %212 : vector<8x256xf32>
    %214 = math.exp %213 : vector<8x256xf32>
    %cst_59 = arith.constant 1.000000e+00 : f32
    %215 = vector.broadcast %cst_59 : f32 to vector<8x256xf32>
    %216 = arith.addf %215, %214 : vector<8x256xf32>
    %217 = arith.divf %215, %216 : vector<8x256xf32>
    %218 = vector.extract_strided_slice %205 {offsets = [0, 512], sizes = [8, 256], strides = [1, 1]} : vector<8x1024xf32> to vector<8x256xf32>
    %219 = math.tanh %218 : vector<8x256xf32>
    %220 = vector.extract_strided_slice %205 {offsets = [0, 768], sizes = [8, 256], strides = [1, 1]} : vector<8x1024xf32> to vector<8x256xf32>
    %221 = arith.negf %220 : vector<8x256xf32>
    %222 = math.exp %221 : vector<8x256xf32>
    %cst_60 = arith.constant 1.000000e+00 : f32
    %223 = vector.broadcast %cst_60 : f32 to vector<8x256xf32>
    %224 = arith.addf %223, %222 : vector<8x256xf32>
    %225 = arith.divf %223, %224 : vector<8x256xf32>
    %226 = arith.mulf %217, %166 : vector<8x256xf32>
    %227 = arith.mulf %211, %219 : vector<8x256xf32>
    %228 = arith.addf %226, %227 : vector<8x256xf32>
    %229 = math.tanh %228 : vector<8x256xf32>
    %230 = arith.mulf %225, %229 : vector<8x256xf32>
    %231 = arith.truncf %230 : vector<8x256xf32> to vector<8x256xbf16>
    %cst_61 = arith.constant dense<0.000000e+00> : vector<8x1024xf32>
    %232 = tpu.matmul %231, %9, %cst_61 {dimension_numbers = #tpu.dot_dimension_numbers<[1], [0], [0], [1], [0, 0, 1, 1], [], []>} : vector<8x256xbf16>, vector<256x1024xbf16>, vector<8x1024xf32> -> vector<8x1024xf32>
    %233 = vector.broadcast %11 : vector<1x1024xf32> to vector<8x1024xf32>
    %234 = arith.addf %232, %233 : vector<8x1024xf32>
    %235 = arith.truncf %200 : vector<8x256xf32> to vector<8x256xbf16>
    %cst_62 = arith.constant dense<0.000000e+00> : vector<8x1024xf32>
    %236 = tpu.matmul %235, %10, %cst_62 {dimension_numbers = #tpu.dot_dimension_numbers<[1], [0], [0], [1], [0, 0, 1, 1], [], []>} : vector<8x256xbf16>, vector<256x1024xbf16>, vector<8x1024xf32> -> vector<8x1024xf32>
    %237 = arith.addf %234, %236 : vector<8x1024xf32>
    %238 = vector.extract_strided_slice %237 {offsets = [0, 0], sizes = [8, 256], strides = [1, 1]} : vector<8x1024xf32> to vector<8x256xf32>
    %239 = arith.negf %238 : vector<8x256xf32>
    %240 = math.exp %239 : vector<8x256xf32>
    %cst_63 = arith.constant 1.000000e+00 : f32
    %241 = vector.broadcast %cst_63 : f32 to vector<8x256xf32>
    %242 = arith.addf %241, %240 : vector<8x256xf32>
    %243 = arith.divf %241, %242 : vector<8x256xf32>
    %244 = vector.extract_strided_slice %237 {offsets = [0, 256], sizes = [8, 256], strides = [1, 1]} : vector<8x1024xf32> to vector<8x256xf32>
    %245 = arith.negf %244 : vector<8x256xf32>
    %246 = math.exp %245 : vector<8x256xf32>
    %cst_64 = arith.constant 1.000000e+00 : f32
    %247 = vector.broadcast %cst_64 : f32 to vector<8x256xf32>
    %248 = arith.addf %247, %246 : vector<8x256xf32>
    %249 = arith.divf %247, %248 : vector<8x256xf32>
    %250 = vector.extract_strided_slice %237 {offsets = [0, 512], sizes = [8, 256], strides = [1, 1]} : vector<8x1024xf32> to vector<8x256xf32>
    %251 = math.tanh %250 : vector<8x256xf32>
    %252 = vector.extract_strided_slice %237 {offsets = [0, 768], sizes = [8, 256], strides = [1, 1]} : vector<8x1024xf32> to vector<8x256xf32>
    %253 = arith.negf %252 : vector<8x256xf32>
    %254 = math.exp %253 : vector<8x256xf32>
    %cst_65 = arith.constant 1.000000e+00 : f32
    %255 = vector.broadcast %cst_65 : f32 to vector<8x256xf32>
    %256 = arith.addf %255, %254 : vector<8x256xf32>
    %257 = arith.divf %255, %256 : vector<8x256xf32>
    %258 = arith.mulf %249, %198 : vector<8x256xf32>
    %259 = arith.mulf %243, %251 : vector<8x256xf32>
    %260 = arith.addf %258, %259 : vector<8x256xf32>
    %261 = math.tanh %260 : vector<8x256xf32>
    %262 = arith.mulf %257, %261 : vector<8x256xf32>
    %c24_66 = arith.constant 24 : index
    %c0_67 = arith.constant 0 : index
    %263 = vector.load %arg7[%c24_66, %c0_67] : memref<64x256xf32, #tpu.memory_space<vmem>>, vector<8x256xf32>
    tpu.vector_store %arg7[%c24_66, %c0_67], %262 {strides = array<i32>} : memref<64x256xf32, #tpu.memory_space<vmem>>, vector<8x256xf32>,
    %c32 = arith.constant 32 : index
    %c0_68 = arith.constant 0 : index
    %264 = vector.load %arg8[%c32, %c0_68] : memref<64x1024xf32, #tpu.memory_space<vmem>>, vector<8x1024xf32>
    %265 = arith.truncf %230 : vector<8x256xf32> to vector<8x256xbf16>
    %cst_69 = arith.constant dense<0.000000e+00> : vector<8x1024xf32>
    %266 = tpu.matmul %265, %8, %cst_69 {dimension_numbers = #tpu.dot_dimension_numbers<[1], [0], [0], [1], [0, 0, 1, 1], [], []>} : vector<8x256xbf16>, vector<256x1024xbf16>, vector<8x1024xf32> -> vector<8x1024xf32>
    %267 = arith.addf %264, %266 : vector<8x1024xf32>
    %268 = vector.extract_strided_slice %267 {offsets = [0, 0], sizes = [8, 256], strides = [1, 1]} : vector<8x1024xf32> to vector<8x256xf32>
    %269 = arith.negf %268 : vector<8x256xf32>
    %270 = math.exp %269 : vector<8x256xf32>
    %cst_70 = arith.constant 1.000000e+00 : f32
    %271 = vector.broadcast %cst_70 : f32 to vector<8x256xf32>
    %272 = arith.addf %271, %270 : vector<8x256xf32>
    %273 = arith.divf %271, %272 : vector<8x256xf32>
    %274 = vector.extract_strided_slice %267 {offsets = [0, 256], sizes = [8, 256], strides = [1, 1]} : vector<8x1024xf32> to vector<8x256xf32>
    %275 = arith.negf %274 : vector<8x256xf32>
    %276 = math.exp %275 : vector<8x256xf32>
    %cst_71 = arith.constant 1.000000e+00 : f32
    %277 = vector.broadcast %cst_71 : f32 to vector<8x256xf32>
    %278 = arith.addf %277, %276 : vector<8x256xf32>
    %279 = arith.divf %277, %278 : vector<8x256xf32>
    %280 = vector.extract_strided_slice %267 {offsets = [0, 512], sizes = [8, 256], strides = [1, 1]} : vector<8x1024xf32> to vector<8x256xf32>
    %281 = math.tanh %280 : vector<8x256xf32>
    %282 = vector.extract_strided_slice %267 {offsets = [0, 768], sizes = [8, 256], strides = [1, 1]} : vector<8x1024xf32> to vector<8x256xf32>
    %283 = arith.negf %282 : vector<8x256xf32>
    %284 = math.exp %283 : vector<8x256xf32>
    %cst_72 = arith.constant 1.000000e+00 : f32
    %285 = vector.broadcast %cst_72 : f32 to vector<8x256xf32>
    %286 = arith.addf %285, %284 : vector<8x256xf32>
    %287 = arith.divf %285, %286 : vector<8x256xf32>
    %288 = arith.mulf %279, %228 : vector<8x256xf32>
    %289 = arith.mulf %273, %281 : vector<8x256xf32>
    %290 = arith.addf %288, %289 : vector<8x256xf32>
    %291 = math.tanh %290 : vector<8x256xf32>
    %292 = arith.mulf %287, %291 : vector<8x256xf32>
    %293 = arith.truncf %292 : vector<8x256xf32> to vector<8x256xbf16>
    %cst_73 = arith.constant dense<0.000000e+00> : vector<8x1024xf32>
    %294 = tpu.matmul %293, %9, %cst_73 {dimension_numbers = #tpu.dot_dimension_numbers<[1], [0], [0], [1], [0, 0, 1, 1], [], []>} : vector<8x256xbf16>, vector<256x1024xbf16>, vector<8x1024xf32> -> vector<8x1024xf32>
    %295 = vector.broadcast %11 : vector<1x1024xf32> to vector<8x1024xf32>
    %296 = arith.addf %294, %295 : vector<8x1024xf32>
    %297 = arith.truncf %262 : vector<8x256xf32> to vector<8x256xbf16>
    %cst_74 = arith.constant dense<0.000000e+00> : vector<8x1024xf32>
    %298 = tpu.matmul %297, %10, %cst_74 {dimension_numbers = #tpu.dot_dimension_numbers<[1], [0], [0], [1], [0, 0, 1, 1], [], []>} : vector<8x256xbf16>, vector<256x1024xbf16>, vector<8x1024xf32> -> vector<8x1024xf32>
    %299 = arith.addf %296, %298 : vector<8x1024xf32>
    %300 = vector.extract_strided_slice %299 {offsets = [0, 0], sizes = [8, 256], strides = [1, 1]} : vector<8x1024xf32> to vector<8x256xf32>
    %301 = arith.negf %300 : vector<8x256xf32>
    %302 = math.exp %301 : vector<8x256xf32>
    %cst_75 = arith.constant 1.000000e+00 : f32
    %303 = vector.broadcast %cst_75 : f32 to vector<8x256xf32>
    %304 = arith.addf %303, %302 : vector<8x256xf32>
    %305 = arith.divf %303, %304 : vector<8x256xf32>
    %306 = vector.extract_strided_slice %299 {offsets = [0, 256], sizes = [8, 256], strides = [1, 1]} : vector<8x1024xf32> to vector<8x256xf32>
    %307 = arith.negf %306 : vector<8x256xf32>
    %308 = math.exp %307 : vector<8x256xf32>
    %cst_76 = arith.constant 1.000000e+00 : f32
    %309 = vector.broadcast %cst_76 : f32 to vector<8x256xf32>
    %310 = arith.addf %309, %308 : vector<8x256xf32>
    %311 = arith.divf %309, %310 : vector<8x256xf32>
    %312 = vector.extract_strided_slice %299 {offsets = [0, 512], sizes = [8, 256], strides = [1, 1]} : vector<8x1024xf32> to vector<8x256xf32>
    %313 = math.tanh %312 : vector<8x256xf32>
    %314 = vector.extract_strided_slice %299 {offsets = [0, 768], sizes = [8, 256], strides = [1, 1]} : vector<8x1024xf32> to vector<8x256xf32>
    %315 = arith.negf %314 : vector<8x256xf32>
    %316 = math.exp %315 : vector<8x256xf32>
    %cst_77 = arith.constant 1.000000e+00 : f32
    %317 = vector.broadcast %cst_77 : f32 to vector<8x256xf32>
    %318 = arith.addf %317, %316 : vector<8x256xf32>
    %319 = arith.divf %317, %318 : vector<8x256xf32>
    %320 = arith.mulf %311, %260 : vector<8x256xf32>
    %321 = arith.mulf %305, %313 : vector<8x256xf32>
    %322 = arith.addf %320, %321 : vector<8x256xf32>
    %323 = math.tanh %322 : vector<8x256xf32>
    %324 = arith.mulf %319, %323 : vector<8x256xf32>
    %c32_78 = arith.constant 32 : index
    %c0_79 = arith.constant 0 : index
    %325 = vector.load %arg7[%c32_78, %c0_79] : memref<64x256xf32, #tpu.memory_space<vmem>>, vector<8x256xf32>
    tpu.vector_store %arg7[%c32_78, %c0_79], %324 {strides = array<i32>} : memref<64x256xf32, #tpu.memory_space<vmem>>, vector<8x256xf32>,
    %c40 = arith.constant 40 : index
    %c0_80 = arith.constant 0 : index
    %326 = vector.load %arg8[%c40, %c0_80] : memref<64x1024xf32, #tpu.memory_space<vmem>>, vector<8x1024xf32>
    %327 = arith.truncf %292 : vector<8x256xf32> to vector<8x256xbf16>
    %cst_81 = arith.constant dense<0.000000e+00> : vector<8x1024xf32>
    %328 = tpu.matmul %327, %8, %cst_81 {dimension_numbers = #tpu.dot_dimension_numbers<[1], [0], [0], [1], [0, 0, 1, 1], [], []>} : vector<8x256xbf16>, vector<256x1024xbf16>, vector<8x1024xf32> -> vector<8x1024xf32>
    %329 = arith.addf %326, %328 : vector<8x1024xf32>
    %330 = vector.extract_strided_slice %329 {offsets = [0, 0], sizes = [8, 256], strides = [1, 1]} : vector<8x1024xf32> to vector<8x256xf32>
    %331 = arith.negf %330 : vector<8x256xf32>
    %332 = math.exp %331 : vector<8x256xf32>
    %cst_82 = arith.constant 1.000000e+00 : f32
    %333 = vector.broadcast %cst_82 : f32 to vector<8x256xf32>
    %334 = arith.addf %333, %332 : vector<8x256xf32>
    %335 = arith.divf %333, %334 : vector<8x256xf32>
    %336 = vector.extract_strided_slice %329 {offsets = [0, 256], sizes = [8, 256], strides = [1, 1]} : vector<8x1024xf32> to vector<8x256xf32>
    %337 = arith.negf %336 : vector<8x256xf32>
    %338 = math.exp %337 : vector<8x256xf32>
    %cst_83 = arith.constant 1.000000e+00 : f32
    %339 = vector.broadcast %cst_83 : f32 to vector<8x256xf32>
    %340 = arith.addf %339, %338 : vector<8x256xf32>
    %341 = arith.divf %339, %340 : vector<8x256xf32>
    %342 = vector.extract_strided_slice %329 {offsets = [0, 512], sizes = [8, 256], strides = [1, 1]} : vector<8x1024xf32> to vector<8x256xf32>
    %343 = math.tanh %342 : vector<8x256xf32>
    %344 = vector.extract_strided_slice %329 {offsets = [0, 768], sizes = [8, 256], strides = [1, 1]} : vector<8x1024xf32> to vector<8x256xf32>
    %345 = arith.negf %344 : vector<8x256xf32>
    %346 = math.exp %345 : vector<8x256xf32>
    %cst_84 = arith.constant 1.000000e+00 : f32
    %347 = vector.broadcast %cst_84 : f32 to vector<8x256xf32>
    %348 = arith.addf %347, %346 : vector<8x256xf32>
    %349 = arith.divf %347, %348 : vector<8x256xf32>
    %350 = arith.mulf %341, %290 : vector<8x256xf32>
    %351 = arith.mulf %335, %343 : vector<8x256xf32>
    %352 = arith.addf %350, %351 : vector<8x256xf32>
    %353 = math.tanh %352 : vector<8x256xf32>
    %354 = arith.mulf %349, %353 : vector<8x256xf32>
    %355 = arith.truncf %354 : vector<8x256xf32> to vector<8x256xbf16>
    %cst_85 = arith.constant dense<0.000000e+00> : vector<8x1024xf32>
    %356 = tpu.matmul %355, %9, %cst_85 {dimension_numbers = #tpu.dot_dimension_numbers<[1], [0], [0], [1], [0, 0, 1, 1], [], []>} : vector<8x256xbf16>, vector<256x1024xbf16>, vector<8x1024xf32> -> vector<8x1024xf32>
    %357 = vector.broadcast %11 : vector<1x1024xf32> to vector<8x1024xf32>
    %358 = arith.addf %356, %357 : vector<8x1024xf32>
    %359 = arith.truncf %324 : vector<8x256xf32> to vector<8x256xbf16>
    %cst_86 = arith.constant dense<0.000000e+00> : vector<8x1024xf32>
    %360 = tpu.matmul %359, %10, %cst_86 {dimension_numbers = #tpu.dot_dimension_numbers<[1], [0], [0], [1], [0, 0, 1, 1], [], []>} : vector<8x256xbf16>, vector<256x1024xbf16>, vector<8x1024xf32> -> vector<8x1024xf32>
    %361 = arith.addf %358, %360 : vector<8x1024xf32>
    %362 = vector.extract_strided_slice %361 {offsets = [0, 0], sizes = [8, 256], strides = [1, 1]} : vector<8x1024xf32> to vector<8x256xf32>
    %363 = arith.negf %362 : vector<8x256xf32>
    %364 = math.exp %363 : vector<8x256xf32>
    %cst_87 = arith.constant 1.000000e+00 : f32
    %365 = vector.broadcast %cst_87 : f32 to vector<8x256xf32>
    %366 = arith.addf %365, %364 : vector<8x256xf32>
    %367 = arith.divf %365, %366 : vector<8x256xf32>
    %368 = vector.extract_strided_slice %361 {offsets = [0, 256], sizes = [8, 256], strides = [1, 1]} : vector<8x1024xf32> to vector<8x256xf32>
    %369 = arith.negf %368 : vector<8x256xf32>
    %370 = math.exp %369 : vector<8x256xf32>
    %cst_88 = arith.constant 1.000000e+00 : f32
    %371 = vector.broadcast %cst_88 : f32 to vector<8x256xf32>
    %372 = arith.addf %371, %370 : vector<8x256xf32>
    %373 = arith.divf %371, %372 : vector<8x256xf32>
    %374 = vector.extract_strided_slice %361 {offsets = [0, 512], sizes = [8, 256], strides = [1, 1]} : vector<8x1024xf32> to vector<8x256xf32>
    %375 = math.tanh %374 : vector<8x256xf32>
    %376 = vector.extract_strided_slice %361 {offsets = [0, 768], sizes = [8, 256], strides = [1, 1]} : vector<8x1024xf32> to vector<8x256xf32>
    %377 = arith.negf %376 : vector<8x256xf32>
    %378 = math.exp %377 : vector<8x256xf32>
    %cst_89 = arith.constant 1.000000e+00 : f32
    %379 = vector.broadcast %cst_89 : f32 to vector<8x256xf32>
    %380 = arith.addf %379, %378 : vector<8x256xf32>
    %381 = arith.divf %379, %380 : vector<8x256xf32>
    %382 = arith.mulf %373, %322 : vector<8x256xf32>
    %383 = arith.mulf %367, %375 : vector<8x256xf32>
    %384 = arith.addf %382, %383 : vector<8x256xf32>
    %385 = math.tanh %384 : vector<8x256xf32>
    %386 = arith.mulf %381, %385 : vector<8x256xf32>
    %c40_90 = arith.constant 40 : index
    %c0_91 = arith.constant 0 : index
    %387 = vector.load %arg7[%c40_90, %c0_91] : memref<64x256xf32, #tpu.memory_space<vmem>>, vector<8x256xf32>
    tpu.vector_store %arg7[%c40_90, %c0_91], %386 {strides = array<i32>} : memref<64x256xf32, #tpu.memory_space<vmem>>, vector<8x256xf32>,
    %c48 = arith.constant 48 : index
    %c0_92 = arith.constant 0 : index
    %388 = vector.load %arg8[%c48, %c0_92] : memref<64x1024xf32, #tpu.memory_space<vmem>>, vector<8x1024xf32>
    %389 = arith.truncf %354 : vector<8x256xf32> to vector<8x256xbf16>
    %cst_93 = arith.constant dense<0.000000e+00> : vector<8x1024xf32>
    %390 = tpu.matmul %389, %8, %cst_93 {dimension_numbers = #tpu.dot_dimension_numbers<[1], [0], [0], [1], [0, 0, 1, 1], [], []>} : vector<8x256xbf16>, vector<256x1024xbf16>, vector<8x1024xf32> -> vector<8x1024xf32>
    %391 = arith.addf %388, %390 : vector<8x1024xf32>
    %392 = vector.extract_strided_slice %391 {offsets = [0, 0], sizes = [8, 256], strides = [1, 1]} : vector<8x1024xf32> to vector<8x256xf32>
    %393 = arith.negf %392 : vector<8x256xf32>
    %394 = math.exp %393 : vector<8x256xf32>
    %cst_94 = arith.constant 1.000000e+00 : f32
    %395 = vector.broadcast %cst_94 : f32 to vector<8x256xf32>
    %396 = arith.addf %395, %394 : vector<8x256xf32>
    %397 = arith.divf %395, %396 : vector<8x256xf32>
    %398 = vector.extract_strided_slice %391 {offsets = [0, 256], sizes = [8, 256], strides = [1, 1]} : vector<8x1024xf32> to vector<8x256xf32>
    %399 = arith.negf %398 : vector<8x256xf32>
    %400 = math.exp %399 : vector<8x256xf32>
    %cst_95 = arith.constant 1.000000e+00 : f32
    %401 = vector.broadcast %cst_95 : f32 to vector<8x256xf32>
    %402 = arith.addf %401, %400 : vector<8x256xf32>
    %403 = arith.divf %401, %402 : vector<8x256xf32>
    %404 = vector.extract_strided_slice %391 {offsets = [0, 512], sizes = [8, 256], strides = [1, 1]} : vector<8x1024xf32> to vector<8x256xf32>
    %405 = math.tanh %404 : vector<8x256xf32>
    %406 = vector.extract_strided_slice %391 {offsets = [0, 768], sizes = [8, 256], strides = [1, 1]} : vector<8x1024xf32> to vector<8x256xf32>
    %407 = arith.negf %406 : vector<8x256xf32>
    %408 = math.exp %407 : vector<8x256xf32>
    %cst_96 = arith.constant 1.000000e+00 : f32
    %409 = vector.broadcast %cst_96 : f32 to vector<8x256xf32>
    %410 = arith.addf %409, %408 : vector<8x256xf32>
    %411 = arith.divf %409, %410 : vector<8x256xf32>
    %412 = arith.mulf %403, %352 : vector<8x256xf32>
    %413 = arith.mulf %397, %405 : vector<8x256xf32>
    %414 = arith.addf %412, %413 : vector<8x256xf32>
    %415 = math.tanh %414 : vector<8x256xf32>
    %416 = arith.mulf %411, %415 : vector<8x256xf32>
    %417 = arith.truncf %416 : vector<8x256xf32> to vector<8x256xbf16>
    %cst_97 = arith.constant dense<0.000000e+00> : vector<8x1024xf32>
    %418 = tpu.matmul %417, %9, %cst_97 {dimension_numbers = #tpu.dot_dimension_numbers<[1], [0], [0], [1], [0, 0, 1, 1], [], []>} : vector<8x256xbf16>, vector<256x1024xbf16>, vector<8x1024xf32> -> vector<8x1024xf32>
    %419 = vector.broadcast %11 : vector<1x1024xf32> to vector<8x1024xf32>
    %420 = arith.addf %418, %419 : vector<8x1024xf32>
    %421 = arith.truncf %386 : vector<8x256xf32> to vector<8x256xbf16>
    %cst_98 = arith.constant dense<0.000000e+00> : vector<8x1024xf32>
    %422 = tpu.matmul %421, %10, %cst_98 {dimension_numbers = #tpu.dot_dimension_numbers<[1], [0], [0], [1], [0, 0, 1, 1], [], []>} : vector<8x256xbf16>, vector<256x1024xbf16>, vector<8x1024xf32> -> vector<8x1024xf32>
    %423 = arith.addf %420, %422 : vector<8x1024xf32>
    %424 = vector.extract_strided_slice %423 {offsets = [0, 0], sizes = [8, 256], strides = [1, 1]} : vector<8x1024xf32> to vector<8x256xf32>
    %425 = arith.negf %424 : vector<8x256xf32>
    %426 = math.exp %425 : vector<8x256xf32>
    %cst_99 = arith.constant 1.000000e+00 : f32
    %427 = vector.broadcast %cst_99 : f32 to vector<8x256xf32>
    %428 = arith.addf %427, %426 : vector<8x256xf32>
    %429 = arith.divf %427, %428 : vector<8x256xf32>
    %430 = vector.extract_strided_slice %423 {offsets = [0, 256], sizes = [8, 256], strides = [1, 1]} : vector<8x1024xf32> to vector<8x256xf32>
    %431 = arith.negf %430 : vector<8x256xf32>
    %432 = math.exp %431 : vector<8x256xf32>
    %cst_100 = arith.constant 1.000000e+00 : f32
    %433 = vector.broadcast %cst_100 : f32 to vector<8x256xf32>
    %434 = arith.addf %433, %432 : vector<8x256xf32>
    %435 = arith.divf %433, %434 : vector<8x256xf32>
    %436 = vector.extract_strided_slice %423 {offsets = [0, 512], sizes = [8, 256], strides = [1, 1]} : vector<8x1024xf32> to vector<8x256xf32>
    %437 = math.tanh %436 : vector<8x256xf32>
    %438 = vector.extract_strided_slice %423 {offsets = [0, 768], sizes = [8, 256], strides = [1, 1]} : vector<8x1024xf32> to vector<8x256xf32>
    %439 = arith.negf %438 : vector<8x256xf32>
    %440 = math.exp %439 : vector<8x256xf32>
    %cst_101 = arith.constant 1.000000e+00 : f32
    %441 = vector.broadcast %cst_101 : f32 to vector<8x256xf32>
    %442 = arith.addf %441, %440 : vector<8x256xf32>
    %443 = arith.divf %441, %442 : vector<8x256xf32>
    %444 = arith.mulf %435, %384 : vector<8x256xf32>
    %445 = arith.mulf %429, %437 : vector<8x256xf32>
    %446 = arith.addf %444, %445 : vector<8x256xf32>
    %447 = math.tanh %446 : vector<8x256xf32>
    %448 = arith.mulf %443, %447 : vector<8x256xf32>
    %c48_102 = arith.constant 48 : index
    %c0_103 = arith.constant 0 : index
    %449 = vector.load %arg7[%c48_102, %c0_103] : memref<64x256xf32, #tpu.memory_space<vmem>>, vector<8x256xf32>
    tpu.vector_store %arg7[%c48_102, %c0_103], %448 {strides = array<i32>} : memref<64x256xf32, #tpu.memory_space<vmem>>, vector<8x256xf32>,
    %c56 = arith.constant 56 : index
    %c0_104 = arith.constant 0 : index
    %450 = vector.load %arg8[%c56, %c0_104] : memref<64x1024xf32, #tpu.memory_space<vmem>>, vector<8x1024xf32>
    %451 = arith.truncf %416 : vector<8x256xf32> to vector<8x256xbf16>
    %cst_105 = arith.constant dense<0.000000e+00> : vector<8x1024xf32>
    %452 = tpu.matmul %451, %8, %cst_105 {dimension_numbers = #tpu.dot_dimension_numbers<[1], [0], [0], [1], [0, 0, 1, 1], [], []>} : vector<8x256xbf16>, vector<256x1024xbf16>, vector<8x1024xf32> -> vector<8x1024xf32>
    %453 = arith.addf %450, %452 : vector<8x1024xf32>
    %454 = vector.extract_strided_slice %453 {offsets = [0, 0], sizes = [8, 256], strides = [1, 1]} : vector<8x1024xf32> to vector<8x256xf32>
    %455 = arith.negf %454 : vector<8x256xf32>
    %456 = math.exp %455 : vector<8x256xf32>
    %cst_106 = arith.constant 1.000000e+00 : f32
    %457 = vector.broadcast %cst_106 : f32 to vector<8x256xf32>
    %458 = arith.addf %457, %456 : vector<8x256xf32>
    %459 = arith.divf %457, %458 : vector<8x256xf32>
    %460 = vector.extract_strided_slice %453 {offsets = [0, 256], sizes = [8, 256], strides = [1, 1]} : vector<8x1024xf32> to vector<8x256xf32>
    %461 = arith.negf %460 : vector<8x256xf32>
    %462 = math.exp %461 : vector<8x256xf32>
    %cst_107 = arith.constant 1.000000e+00 : f32
    %463 = vector.broadcast %cst_107 : f32 to vector<8x256xf32>
    %464 = arith.addf %463, %462 : vector<8x256xf32>
    %465 = arith.divf %463, %464 : vector<8x256xf32>
    %466 = vector.extract_strided_slice %453 {offsets = [0, 512], sizes = [8, 256], strides = [1, 1]} : vector<8x1024xf32> to vector<8x256xf32>
    %467 = math.tanh %466 : vector<8x256xf32>
    %468 = vector.extract_strided_slice %453 {offsets = [0, 768], sizes = [8, 256], strides = [1, 1]} : vector<8x1024xf32> to vector<8x256xf32>
    %469 = arith.negf %468 : vector<8x256xf32>
    %470 = math.exp %469 : vector<8x256xf32>
    %cst_108 = arith.constant 1.000000e+00 : f32
    %471 = vector.broadcast %cst_108 : f32 to vector<8x256xf32>
    %472 = arith.addf %471, %470 : vector<8x256xf32>
    %473 = arith.divf %471, %472 : vector<8x256xf32>
    %474 = arith.mulf %465, %414 : vector<8x256xf32>
    %475 = arith.mulf %459, %467 : vector<8x256xf32>
    %476 = arith.addf %474, %475 : vector<8x256xf32>
    %477 = math.tanh %476 : vector<8x256xf32>
    %478 = arith.mulf %473, %477 : vector<8x256xf32>
    %479 = arith.truncf %478 : vector<8x256xf32> to vector<8x256xbf16>
    %cst_109 = arith.constant dense<0.000000e+00> : vector<8x1024xf32>
    %480 = tpu.matmul %479, %9, %cst_109 {dimension_numbers = #tpu.dot_dimension_numbers<[1], [0], [0], [1], [0, 0, 1, 1], [], []>} : vector<8x256xbf16>, vector<256x1024xbf16>, vector<8x1024xf32> -> vector<8x1024xf32>
    %481 = vector.broadcast %11 : vector<1x1024xf32> to vector<8x1024xf32>
    %482 = arith.addf %480, %481 : vector<8x1024xf32>
    %483 = arith.truncf %448 : vector<8x256xf32> to vector<8x256xbf16>
    %cst_110 = arith.constant dense<0.000000e+00> : vector<8x1024xf32>
    %484 = tpu.matmul %483, %10, %cst_110 {dimension_numbers = #tpu.dot_dimension_numbers<[1], [0], [0], [1], [0, 0, 1, 1], [], []>} : vector<8x256xbf16>, vector<256x1024xbf16>, vector<8x1024xf32> -> vector<8x1024xf32>
    %485 = arith.addf %482, %484 : vector<8x1024xf32>
    %486 = vector.extract_strided_slice %485 {offsets = [0, 0], sizes = [8, 256], strides = [1, 1]} : vector<8x1024xf32> to vector<8x256xf32>
    %487 = arith.negf %486 : vector<8x256xf32>
    %488 = math.exp %487 : vector<8x256xf32>
    %cst_111 = arith.constant 1.000000e+00 : f32
    %489 = vector.broadcast %cst_111 : f32 to vector<8x256xf32>
    %490 = arith.addf %489, %488 : vector<8x256xf32>
    %491 = arith.divf %489, %490 : vector<8x256xf32>
    %492 = vector.extract_strided_slice %485 {offsets = [0, 256], sizes = [8, 256], strides = [1, 1]} : vector<8x1024xf32> to vector<8x256xf32>
    %493 = arith.negf %492 : vector<8x256xf32>
    %494 = math.exp %493 : vector<8x256xf32>
    %cst_112 = arith.constant 1.000000e+00 : f32
    %495 = vector.broadcast %cst_112 : f32 to vector<8x256xf32>
    %496 = arith.addf %495, %494 : vector<8x256xf32>
    %497 = arith.divf %495, %496 : vector<8x256xf32>
    %498 = vector.extract_strided_slice %485 {offsets = [0, 512], sizes = [8, 256], strides = [1, 1]} : vector<8x1024xf32> to vector<8x256xf32>
    %499 = math.tanh %498 : vector<8x256xf32>
    %500 = vector.extract_strided_slice %485 {offsets = [0, 768], sizes = [8, 256], strides = [1, 1]} : vector<8x1024xf32> to vector<8x256xf32>
    %501 = arith.negf %500 : vector<8x256xf32>
    %502 = math.exp %501 : vector<8x256xf32>
    %cst_113 = arith.constant 1.000000e+00 : f32
    %503 = vector.broadcast %cst_113 : f32 to vector<8x256xf32>
    %504 = arith.addf %503, %502 : vector<8x256xf32>
    %505 = arith.divf %503, %504 : vector<8x256xf32>
    %506 = arith.mulf %497, %446 : vector<8x256xf32>
    %507 = arith.mulf %491, %499 : vector<8x256xf32>
    %508 = arith.addf %506, %507 : vector<8x256xf32>
    %509 = math.tanh %508 : vector<8x256xf32>
    %510 = arith.mulf %505, %509 : vector<8x256xf32>
    %c56_114 = arith.constant 56 : index
    %c0_115 = arith.constant 0 : index
    %511 = vector.load %arg7[%c56_114, %c0_115] : memref<64x256xf32, #tpu.memory_space<vmem>>, vector<8x256xf32>
    tpu.vector_store %arg7[%c56_114, %c0_115], %510 {strides = array<i32>} : memref<64x256xf32, #tpu.memory_space<vmem>>, vector<8x256xf32>,
    return
  }
}

</mosaic_0001>

<llo_original>
// kernel: improved_lstm_forward.4
$region0: #{improved_lstm_forward.4}
  #allocation0 [shape = 'u32[]', space=smem, size = 0x4, offset = 0x4, fixed_abs, tag = 'smem constant byte address 0x4 - core index']
  #allocation1 [shape = 'u32[144,128]{1,0:T(1,128)}', space=vmem, size = 0x12000, scoped, tag = 'internal scratch']
  #allocation2 [shape = 'f32[32,512]{1,0:T(8,128)}', space=vmem, size = 0x10000, scoped, tag = 'scratch operand']
  %s0 = inlined_call_operand.vmem [shape: f32[32,8], index: 0, kind: input, shape index: {}]
  %s1 = inlined_call_operand.hbm [shape: bf16[8,512], index: 1, kind: input, shape index: {}]
  %s2 = inlined_call_operand.vmem [shape: bf16[128,512], index: 2, kind: input, shape index: {}]
  %s3 = inlined_call_operand.vmem [shape: f32[1,512], index: 3, kind: input, shape index: {}]
  %s4 = inlined_call_operand.vmem [shape: f32[32,128], index: 4, kind: output, shape index: {}]
  %s5 = sld [smem:[#allocation0]]
  $region30: #{improved_lstm_forward.4} parent=0
    _
  %s7 = ssub.s32 1, %s5
  %s8 = scalar_select 0, %s7, %s5
  $region1: #{improved_lstm_forward.4} parent=0
    #allocation3 [shape = 'u8[8192]{0}', space=vmem, size = 0x2000, scoped, tag = 'input window, operand 1, single buffered']
    #allocation4 [shape = 's32[1]{0}', space=sflag, size = 0x4, scoped, tag = 'scoped memory for improved_lstm_forward.4']
    %9 = vsyncpa [#allocation4], 0
    // Predicated region
    $region2: #{improved_lstm_forward.4} parent=1 // pred_check
      _
    $region3: #{improved_lstm_forward.4} parent=1 // pred_check_branch
      %11 = sbr.rel (0) target = $region5
    $region4: #{improved_lstm_forward.4} parent=1 // pred_region
      _
    $region5: #{improved_lstm_forward.4} parent=1 // pred_fallthru
      _
    // Predicated region
    $region6: #{improved_lstm_forward.4} parent=1 // pred_check
      _
    $region7: #{improved_lstm_forward.4} parent=1 // pred_check_branch
      %13 = sbr.rel (0) target = $region9
    $region8: #{improved_lstm_forward.4} parent=1 // pred_region
      %s15 = ssub.s32 256, 256
      %16 = vsyncadd [#allocation4], %s15
      %s18 = sshll.u32 [#allocation3], 4
      %s19 = int_to_ptr.vmem [resolvable:$true] %s18
      %21 = dma.hbm_to_vmem [thread:$0]  %s1, 256, %s19, [#allocation4]
    $region9: #{improved_lstm_forward.4} parent=1 // pred_fallthru
      _
    // Predicated region
    $region10: #{improved_lstm_forward.4} parent=1 // pred_check
      _
    $region11: #{improved_lstm_forward.4} parent=1 // pred_check_branch
      %23 = sbr.rel (0) target = $region13
    $region12: #{improved_lstm_forward.4} parent=1 // pred_region
      _
    $region13: #{improved_lstm_forward.4} parent=1 // pred_fallthru
      _
    // Predicated region
    $region14: #{improved_lstm_forward.4} parent=1 // pred_check
      _
    $region15: #{improved_lstm_forward.4} parent=1 // pred_check_branch
      %25 = sbr.rel (0) target = $region17
    $region16: #{improved_lstm_forward.4} parent=1 // pred_region
      _
    $region17: #{improved_lstm_forward.4} parent=1 // pred_fallthru
      _
    // Predicated region
    $region18: #{improved_lstm_forward.4} parent=1 // pred_check
      _
    $region19: #{improved_lstm_forward.4} parent=1 // pred_check_branch
      %27 = sbr.rel (0) target = $region21
    $region20: #{improved_lstm_forward.4} parent=1 // pred_region
      %28 = dma.done [#allocation4], 256
    $region21: #{improved_lstm_forward.4} parent=1 // pred_fallthru
      _
    %v30 = vld [vmem:[%s0] sm:$0xff]
    %v31 = vld [vmem:[%s0 + $0x8] sm:$0xff]
    %v32 = vld [vmem:[%s0 + $0x10] sm:$0xff]
    %v33 = vld [vmem:[%s0 + $0x18] sm:$0xff]
    %v34 = vpack.c.bf16 %v31, %v30
    %v35 = vpack.c.bf16 %v33, %v32
    %v36 = vld [vmem:[#allocation3] sm:$0xff]
    %v37 = vld [vmem:[#allocation3 + $0x8] sm:$0xff]
    %v38 = vld [vmem:[%s3] sm:$0xf]
    %v40 = vlaneseq
    %v41 = vshrl.u32 %v40, 7
    %v42 = vsub.s32 0, %v41
    %v43 = vrot.slane %v38, %v42
    %v44 = vlaneseq
    %v45 = vshrl.u32 %v44, 7
    %v46 = vsub.s32 1, %v45
    %v47 = vrot.slane %v38, %v46
    %v48 = vlaneseq
    %v49 = vshrl.u32 %v48, 7
    %v50 = vsub.s32 2, %v49
    %v51 = vrot.slane %v38, %v50
    %v52 = vlaneseq
    %v53 = vshrl.u32 %v52, 7
    %v54 = vsub.s32 3, %v53
    %v55 = vrot.slane %v38, %v54
    %v62 = vunpack.c.l.b16 %v36
    %v63 = vunpack.c.h.b16 %v36
    %v64 = vunpack.c.l.b16 %v37
    %v65 = vunpack.c.h.b16 %v37
    %v66 = vpack.c.b16 %v62, %v62
    %v67 = vpack.c.b16 %v63, %v63
    %v68 = vpack.c.b16 %v64, %v64
    %v69 = vpack.c.b16 %v65, %v65
    %vm70 = vcmask 64512
    %v72 = vsel %vm70, %v34, 0
    %v75 = vsel %vm70, %v35, 0
    %vm77 = vcmask 1043456
    %v79 = vsel %vm77, %v66, 0
    %v82 = vsel %vm77, %v67, 0
    %v85 = vsel %vm77, %v68, 0
    %v88 = vsel %vm77, %v69, 0
    %90 = vmatprep.subr.bf16.mxu0 0
    %91 = vmatpush1.bf16.msra.mxu0 0
    %92 = vmatprep.subr.bf16.mxu0 0
    %93 = vmatpush1.bf16.msra.mxu0 0
    %94 = vmatprep.subr.bf16.mxu0 0
    %95 = vmatpush1.bf16.msra.mxu0 0
    %96 = vmatprep.subr.bf16.mxu0 0
    %97 = vmatpush1.bf16.msra.mxu0 0
    %98 = vmatprep.subr.bf16.mxu0 0
    %99 = vmatpush1.bf16.msra.mxu0 0
    %100 = vmatprep.subr.bf16.mxu0 0
    %101 = vmatpush1.bf16.msra.mxu0 0
    %102 = vmatprep.subr.bf16.mxu0 0
    %103 = vmatpush1.bf16.msra.mxu0 0
    %104 = vmatprep.subr.bf16.mxu0 %v82
    %105 = vmatpush1.bf16.msra.mxu0 %v79
    %106 = vmatprep.subr.bf16.mxu0 0
    %107 = vmatpush2.bf16.msra.mxu0 0
    %108 = vmatprep.subr.bf16.mxu0 0
    %109 = vmatpush2.bf16.msra.mxu0 0
    %110 = vmatprep.subr.bf16.mxu0 0
    %111 = vmatpush2.bf16.msra.mxu0 0
    %112 = vmatprep.subr.bf16.mxu0 0
    %113 = vmatpush2.bf16.msra.mxu0 0
    %114 = vmatprep.subr.bf16.mxu0 0
    %115 = vmatpush2.bf16.msra.mxu0 0
    %116 = vmatprep.subr.bf16.mxu0 0
    %117 = vmatpush2.bf16.msra.mxu0 0
    %118 = vmatprep.subr.bf16.mxu0 0
    %119 = vmatpush2.bf16.msra.mxu0 0
    %120 = vmatprep.subr.bf16.mxu0 0
    %121 = vmatpush2.bf16.msra.mxu0 0
    %122 = vmatprep.mubr.bf16.mxu0 0
    %123 = vmatmul.mubr.bf16.gmra.mxu0 %v72
    %v124 = vpop.f32.mrf.mxu0
    %v125 = vadd.f32 %v43, %v124
    %v126 = vpop.f32.mrf.mxu0
    %v127 = vadd.f32 %v47, %v126
    %v128 = vpop.f32.mrf.mxu0
    %v129 = vadd.f32 %v43, %v128
    %v130 = vpop.f32.mrf.mxu0
    %v131 = vadd.f32 %v47, %v130
    %132 = vmatprep.mubr.bf16.mxu0 0
    %133 = vmatmul.mubr.bf16.gmra.mxu0 %v75
    %v134 = vpop.f32.mrf.mxu0
    %v135 = vadd.f32 %v43, %v134
    %v136 = vpop.f32.mrf.mxu0
    %v137 = vadd.f32 %v47, %v136
    %v138 = vpop.f32.mrf.mxu0
    %v139 = vadd.f32 %v43, %v138
    %v140 = vpop.f32.mrf.mxu0
    %v141 = vadd.f32 %v47, %v140
    %142 = vdwg.mxu0
    %143 = vmatprep.subr.bf16.mxu0 0
    %144 = vmatpush1.bf16.msra.mxu0 0
    %145 = vmatprep.subr.bf16.mxu0 0
    %146 = vmatpush1.bf16.msra.mxu0 0
    %147 = vmatprep.subr.bf16.mxu0 0
    %148 = vmatpush1.bf16.msra.mxu0 0
    %149 = vmatprep.subr.bf16.mxu0 0
    %150 = vmatpush1.bf16.msra.mxu0 0
    %151 = vmatprep.subr.bf16.mxu0 0
    %152 = vmatpush1.bf16.msra.mxu0 0
    %153 = vmatprep.subr.bf16.mxu0 0
    %154 = vmatpush1.bf16.msra.mxu0 0
    %155 = vmatprep.subr.bf16.mxu0 0
    %156 = vmatpush1.bf16.msra.mxu0 0
    %157 = vmatprep.subr.bf16.mxu0 %v88
    %158 = vmatpush1.bf16.msra.mxu0 %v85
    %159 = vmatprep.subr.bf16.mxu0 0
    %160 = vmatpush2.bf16.msra.mxu0 0
    %161 = vmatprep.subr.bf16.mxu0 0
    %162 = vmatpush2.bf16.msra.mxu0 0
    %163 = vmatprep.subr.bf16.mxu0 0
    %164 = vmatpush2.bf16.msra.mxu0 0
    %165 = vmatprep.subr.bf16.mxu0 0
    %166 = vmatpush2.bf16.msra.mxu0 0
    %167 = vmatprep.subr.bf16.mxu0 0
    %168 = vmatpush2.bf16.msra.mxu0 0
    %169 = vmatprep.subr.bf16.mxu0 0
    %170 = vmatpush2.bf16.msra.mxu0 0
    %171 = vmatprep.subr.bf16.mxu0 0
    %172 = vmatpush2.bf16.msra.mxu0 0
    %173 = vmatprep.subr.bf16.mxu0 0
    %174 = vmatpush2.bf16.msra.mxu0 0
    %175 = vmatprep.mubr.bf16.mxu0 0
    %176 = vmatmul.mubr.bf16.gmra.mxu0 %v72
    %v177 = vpop.f32.mrf.mxu0
    %v178 = vadd.f32 %v51, %v177
    %v179 = vpop.f32.mrf.mxu0
    %v180 = vadd.f32 %v55, %v179
    %v181 = vpop.f32.mrf.mxu0
    %v182 = vadd.f32 %v51, %v181
    %v183 = vpop.f32.mrf.mxu0
    %v184 = vadd.f32 %v55, %v183
    %185 = vmatprep.mubr.bf16.mxu0 0
    %186 = vmatmul.mubr.bf16.gmra.mxu0 %v75
    %v187 = vpop.f32.mrf.mxu0
    %v188 = vadd.f32 %v51, %v187
    %v189 = vpop.f32.mrf.mxu0
    %v190 = vadd.f32 %v55, %v189
    %v191 = vpop.f32.mrf.mxu0
    %v192 = vadd.f32 %v51, %v191
    %v193 = vpop.f32.mrf.mxu0
    %v194 = vadd.f32 %v55, %v193
    %195 = vdwg.mxu0
    %196 = vst [vmem:[#allocation2] sm:$0xff] %v125
    %197 = vst [vmem:[#allocation2 + $0x8] sm:$0xff] %v127
    %198 = vst [vmem:[#allocation2 + $0x10] sm:$0xff] %v178
    %199 = vst [vmem:[#allocation2 + $0x18] sm:$0xff] %v180
    %200 = vst [vmem:[#allocation2 + $0x20] sm:$0xff] %v129
    %201 = vst [vmem:[#allocation2 + $0x28] sm:$0xff] %v131
    %202 = vst [vmem:[#allocation2 + $0x30] sm:$0xff] %v182
    %203 = vst [vmem:[#allocation2 + $0x38] sm:$0xff] %v184
    %204 = vst [vmem:[#allocation2 + $0x40] sm:$0xff] %v135
    %205 = vst [vmem:[#allocation2 + $0x48] sm:$0xff] %v137
    %206 = vst [vmem:[#allocation2 + $0x50] sm:$0xff] %v188
    %207 = vst [vmem:[#allocation2 + $0x58] sm:$0xff] %v190
    %208 = vst [vmem:[#allocation2 + $0x60] sm:$0xff] %v139
    %209 = vst [vmem:[#allocation2 + $0x68] sm:$0xff] %v141
    %210 = vst [vmem:[#allocation2 + $0x70] sm:$0xff] %v192
    %211 = vst [vmem:[#allocation2 + $0x78] sm:$0xff] %v194
    %v212 = vld [vmem:[%s2] sm:$0xff]
    %v213 = vld [vmem:[%s2 + $0x8] sm:$0xff]
    %v214 = vld [vmem:[%s2 + $0x10] sm:$0xff]
    %v215 = vld [vmem:[%s2 + $0x18] sm:$0xff]
    %v216 = vld [vmem:[%s2 + $0x20] sm:$0xff]
    %v217 = vld [vmem:[%s2 + $0x28] sm:$0xff]
    %v218 = vld [vmem:[%s2 + $0x30] sm:$0xff]
    %v219 = vld [vmem:[%s2 + $0x38] sm:$0xff]
    %v220 = vld [vmem:[%s2 + $0x40] sm:$0xff]
    %v221 = vld [vmem:[%s2 + $0x48] sm:$0xff]
    %v222 = vld [vmem:[%s2 + $0x50] sm:$0xff]
    %v223 = vld [vmem:[%s2 + $0x58] sm:$0xff]
    %v224 = vld [vmem:[%s2 + $0x60] sm:$0xff]
    %v225 = vld [vmem:[%s2 + $0x68] sm:$0xff]
    %v226 = vld [vmem:[%s2 + $0x70] sm:$0xff]
    %v227 = vld [vmem:[%s2 + $0x78] sm:$0xff]
    %v228 = vld [vmem:[%s2 + $0x80] sm:$0xff]
    %v229 = vld [vmem:[%s2 + $0x88] sm:$0xff]
    %v230 = vld [vmem:[%s2 + $0x90] sm:$0xff]
    %v231 = vld [vmem:[%s2 + $0x98] sm:$0xff]
    %v232 = vld [vmem:[%s2 + $0xa0] sm:$0xff]
    %v233 = vld [vmem:[%s2 + $0xa8] sm:$0xff]
    %v234 = vld [vmem:[%s2 + $0xb0] sm:$0xff]
    %v235 = vld [vmem:[%s2 + $0xb8] sm:$0xff]
    %v236 = vld [vmem:[%s2 + $0xc0] sm:$0xff]
    %v237 = vld [vmem:[%s2 + $0xc8] sm:$0xff]
    %v238 = vld [vmem:[%s2 + $0xd0] sm:$0xff]
    %v239 = vld [vmem:[%s2 + $0xd8] sm:$0xff]
    %v240 = vld [vmem:[%s2 + $0xe0] sm:$0xff]
    %v241 = vld [vmem:[%s2 + $0xe8] sm:$0xff]
    %v242 = vld [vmem:[%s2 + $0xf0] sm:$0xff]
    %v243 = vld [vmem:[%s2 + $0xf8] sm:$0xff]
    %v244 = vld [vmem:[#allocation2] sm:$0xff]
    %v245 = vld [vmem:[#allocation2 + $0x8] sm:$0xff]
    %v246 = vld [vmem:[#allocation2 + $0x10] sm:$0xff]
    %v247 = vld [vmem:[#allocation2 + $0x18] sm:$0xff]
    %v280 = vunpack.c.l.b16 %v212
    %v281 = vunpack.c.h.b16 %v212
    %v282 = vunpack.c.l.b16 %v213
    %v283 = vunpack.c.h.b16 %v213
    %v284 = vunpack.c.l.b16 %v214
    %v285 = vunpack.c.h.b16 %v214
    %v286 = vunpack.c.l.b16 %v215
    %v287 = vunpack.c.h.b16 %v215
    %v288 = vunpack.c.l.b16 %v216
    %v289 = vunpack.c.h.b16 %v216
    %v290 = vunpack.c.l.b16 %v217
    %v291 = vunpack.c.h.b16 %v217
    %v292 = vunpack.c.l.b16 %v218
    %v293 = vunpack.c.h.b16 %v218
    %v294 = vunpack.c.l.b16 %v219
    %v295 = vunpack.c.h.b16 %v219
    %v296 = vunpack.c.l.b16 %v220
    %v297 = vunpack.c.h.b16 %v220
    %v298 = vunpack.c.l.b16 %v221
    %v299 = vunpack.c.h.b16 %v221
    %v300 = vunpack.c.l.b16 %v222
    %v301 = vunpack.c.h.b16 %v222
    %v302 = vunpack.c.l.b16 %v223
    %v303 = vunpack.c.h.b16 %v223
    %v304 = vunpack.c.l.b16 %v224
    %v305 = vunpack.c.h.b16 %v224
    %v306 = vunpack.c.l.b16 %v225
    %v307 = vunpack.c.h.b16 %v225
    %v308 = vunpack.c.l.b16 %v226
    %v309 = vunpack.c.h.b16 %v226
    %v310 = vunpack.c.l.b16 %v227
    %v311 = vunpack.c.h.b16 %v227
    %v312 = vunpack.c.l.b16 %v228
    %v313 = vunpack.c.h.b16 %v228
    %v314 = vunpack.c.l.b16 %v229
    %v315 = vunpack.c.h.b16 %v229
    %v316 = vunpack.c.l.b16 %v230
    %v317 = vunpack.c.h.b16 %v230
    %v318 = vunpack.c.l.b16 %v231
    %v319 = vunpack.c.h.b16 %v231
    %v320 = vunpack.c.l.b16 %v232
    %v321 = vunpack.c.h.b16 %v232
    %v322 = vunpack.c.l.b16 %v233
    %v323 = vunpack.c.h.b16 %v233
    %v324 = vunpack.c.l.b16 %v234
    %v325 = vunpack.c.h.b16 %v234
    %v326 = vunpack.c.l.b16 %v235
    %v327 = vunpack.c.h.b16 %v235
    %v328 = vunpack.c.l.b16 %v236
    %v329 = vunpack.c.h.b16 %v236
    %v330 = vunpack.c.l.b16 %v237
    %v331 = vunpack.c.h.b16 %v237
    %v332 = vunpack.c.l.b16 %v238
    %v333 = vunpack.c.h.b16 %v238
    %v334 = vunpack.c.l.b16 %v239
    %v335 = vunpack.c.h.b16 %v239
    %v336 = vunpack.c.l.b16 %v240
    %v337 = vunpack.c.h.b16 %v240
    %v338 = vunpack.c.l.b16 %v241
    %v339 = vunpack.c.h.b16 %v241
    %v340 = vunpack.c.l.b16 %v242
    %v341 = vunpack.c.h.b16 %v242
    %v342 = vunpack.c.l.b16 %v243
    %v343 = vunpack.c.h.b16 %v243
    %v344 = vpack.c.b16 %v284, %v280
    %v345 = vpack.c.b16 %v285, %v281
    %v346 = vpack.c.b16 %v286, %v282
    %v347 = vpack.c.b16 %v287, %v283
    %v348 = vpack.c.b16 %v292, %v288
    %v349 = vpack.c.b16 %v293, %v289
    %v350 = vpack.c.b16 %v294, %v290
    %v351 = vpack.c.b16 %v295, %v291
    %v352 = vpack.c.b16 %v300, %v296
    %v353 = vpack.c.b16 %v301, %v297
    %v354 = vpack.c.b16 %v302, %v298
    %v355 = vpack.c.b16 %v303, %v299
    %v356 = vpack.c.b16 %v308, %v304
    %v357 = vpack.c.b16 %v309, %v305
    %v358 = vpack.c.b16 %v310, %v306
    %v359 = vpack.c.b16 %v311, %v307
    %v360 = vpack.c.b16 %v316, %v312
    %v361 = vpack.c.b16 %v317, %v313
    %v362 = vpack.c.b16 %v318, %v314
    %v363 = vpack.c.b16 %v319, %v315
    %v364 = vpack.c.b16 %v324, %v320
    %v365 = vpack.c.b16 %v325, %v321
    %v366 = vpack.c.b16 %v326, %v322
    %v367 = vpack.c.b16 %v327, %v323
    %v368 = vpack.c.b16 %v332, %v328
    %v369 = vpack.c.b16 %v333, %v329
    %v370 = vpack.c.b16 %v334, %v330
    %v371 = vpack.c.b16 %v335, %v331
    %v372 = vpack.c.b16 %v340, %v336
    %v373 = vpack.c.b16 %v341, %v337
    %v374 = vpack.c.b16 %v342, %v338
    %v375 = vpack.c.b16 %v343, %v339
    %408 = vmatprep.subr.bf16.mxu0 %v373
    %409 = vmatpush1.bf16.msra.mxu0 %v372
    %410 = vmatprep.subr.bf16.mxu0 %v369
    %411 = vmatpush1.bf16.msra.mxu0 %v368
    %412 = vmatprep.subr.bf16.mxu0 %v365
    %413 = vmatpush1.bf16.msra.mxu0 %v364
    %414 = vmatprep.subr.bf16.mxu0 %v361
    %415 = vmatpush1.bf16.msra.mxu0 %v360
    %416 = vmatprep.subr.bf16.mxu0 %v357
    %417 = vmatpush1.bf16.msra.mxu0 %v356
    %418 = vmatprep.subr.bf16.mxu0 %v353
    %419 = vmatpush1.bf16.msra.mxu0 %v352
    %420 = vmatprep.subr.bf16.mxu0 %v349
    %421 = vmatpush1.bf16.msra.mxu0 %v348
    %422 = vmatprep.subr.bf16.mxu0 %v345
    %423 = vmatpush1.bf16.msra.mxu0 %v344
    %424 = vmatprep.subr.bf16.mxu0 0
    %425 = vmatpush2.bf16.msra.mxu0 0
    %426 = vmatprep.subr.bf16.mxu0 0
    %427 = vmatpush2.bf16.msra.mxu0 0
    %428 = vmatprep.subr.bf16.mxu0 0
    %429 = vmatpush2.bf16.msra.mxu0 0
    %430 = vmatprep.subr.bf16.mxu0 0
    %431 = vmatpush2.bf16.msra.mxu0 0
    %432 = vmatprep.subr.bf16.mxu0 0
    %433 = vmatpush2.bf16.msra.mxu0 0
    %434 = vmatprep.subr.bf16.mxu0 0
    %435 = vmatpush2.bf16.msra.mxu0 0
    %436 = vmatprep.subr.bf16.mxu0 0
    %437 = vmatpush2.bf16.msra.mxu0 0
    %438 = vmatprep.subr.bf16.mxu0 0
    %439 = vmatpush2.bf16.msra.mxu0 0
    %440 = vmatprep.mubr.bf16.mxu0 0
    %441 = vmatmul.mubr.bf16.gmra.mxu0 0
    %v442 = vpop.f32.mrf.mxu0
    %v443 = vadd.f32 0.0, %v442
    %v444 = vpop.f32.mrf.mxu0
    %v445 = vadd.f32 0.0, %v444
    %v446 = vpop.f32.mrf.mxu0
    %v447 = vpop.f32.mrf.mxu0
    %448 = vdwg.mxu0
    %449 = vmatprep.subr.bf16.mxu0 %v375
    %450 = vmatpush1.bf16.msra.mxu0 %v374
    %451 = vmatprep.subr.bf16.mxu0 %v371
    %452 = vmatpush1.bf16.msra.mxu0 %v370
    %453 = vmatprep.subr.bf16.mxu0 %v367
    %454 = vmatpush1.bf16.msra.mxu0 %v366
    %455 = vmatprep.subr.bf16.mxu0 %v363
    %456 = vmatpush1.bf16.msra.mxu0 %v362
    %457 = vmatprep.subr.bf16.mxu0 %v359
    %458 = vmatpush1.bf16.msra.mxu0 %v358
    %459 = vmatprep.subr.bf16.mxu0 %v355
    %460 = vmatpush1.bf16.msra.mxu0 %v354
    %461 = vmatprep.subr.bf16.mxu0 %v351
    %462 = vmatpush1.bf16.msra.mxu0 %v350
    %463 = vmatprep.subr.bf16.mxu0 %v347
    %464 = vmatpush1.bf16.msra.mxu0 %v346
    %465 = vmatprep.subr.bf16.mxu0 0
    %466 = vmatpush2.bf16.msra.mxu0 0
    %467 = vmatprep.subr.bf16.mxu0 0
    %468 = vmatpush2.bf16.msra.mxu0 0
    %469 = vmatprep.subr.bf16.mxu0 0
    %470 = vmatpush2.bf16.msra.mxu0 0
    %471 = vmatprep.subr.bf16.mxu0 0
    %472 = vmatpush2.bf16.msra.mxu0 0
    %473 = vmatprep.subr.bf16.mxu0 0
    %474 = vmatpush2.bf16.msra.mxu0 0
    %475 = vmatprep.subr.bf16.mxu0 0
    %476 = vmatpush2.bf16.msra.mxu0 0
    %477 = vmatprep.subr.bf16.mxu0 0
    %478 = vmatpush2.bf16.msra.mxu0 0
    %479 = vmatprep.subr.bf16.mxu0 0
    %480 = vmatpush2.bf16.msra.mxu0 0
    %481 = vmatprep.mubr.bf16.mxu0 0
    %482 = vmatmul.mubr.bf16.gmra.mxu0 0
    %v483 = vpop.f32.mrf.mxu0
    %v484 = vadd.f32 0.0, %v483
    %v485 = vpop.f32.mrf.mxu0
    %v486 = vadd.f32 0.0, %v485
    %v487 = vpop.f32.mrf.mxu0
    %v488 = vpop.f32.mrf.mxu0
    %489 = vdwg.mxu0
    %v490 = vadd.f32 %v244, %v443
    %v491 = vadd.f32 %v245, %v445
    %v492 = vadd.f32 %v246, %v484
    %v493 = vadd.f32 %v247, %v486
    %v494 = vxor.u32 %v490, 2147483648
    %v495 = vmul.f32 %v494, 1.442695
    %v496 = vpow.pop %v495
    %v497 = vadd.f32 %v496, 1.0
    %v498 = vrcp.pop %v497
    %v499 = vmul.f32 1.0, %v498
    %v500 = vxor.u32 %v491, 2147483648
    %v501 = vmul.f32 %v500, 1.442695
    %v502 = vpow.pop %v501
    %v503 = vadd.f32 %v502, 1.0
    %v504 = vrcp.pop %v503
    %v505 = vmul.f32 1.0, %v504
    %v506 = vtanh.pop %v492
    %v507 = vxor.u32 %v493, 2147483648
    %v508 = vmul.f32 %v507, 1.442695
    %v509 = vpow.pop %v508
    %v510 = vadd.f32 %v509, 1.0
    %v511 = vrcp.pop %v510
    %v512 = vmul.f32 1.0, %v511
    %v513 = vmul.f32 %v505, 0.0
    %v514 = vmul.f32 %v499, %v506
    %v515 = vadd.f32 %v513, %v514
    %v516 = vtanh.pop %v515
    %v517 = vmul.f32 %v512, %v516
    %518 = vst [vmem:[%s4] sm:$0xff] %v517
    %v519 = vld [vmem:[#allocation2 + $0x20] sm:$0xff]
    %v520 = vld [vmem:[#allocation2 + $0x28] sm:$0xff]
    %v521 = vld [vmem:[#allocation2 + $0x30] sm:$0xff]
    %v522 = vld [vmem:[#allocation2 + $0x38] sm:$0xff]
    %v523 = vpack.c.bf16 %v517, %v517
    %524 = vmatprep.subr.bf16.mxu0 %v373
    %525 = vmatpush1.bf16.msra.mxu0 %v372
    %526 = vmatprep.subr.bf16.mxu0 %v369
    %527 = vmatpush1.bf16.msra.mxu0 %v368
    %528 = vmatprep.subr.bf16.mxu0 %v365
    %529 = vmatpush1.bf16.msra.mxu0 %v364
    %530 = vmatprep.subr.bf16.mxu0 %v361
    %531 = vmatpush1.bf16.msra.mxu0 %v360
    %532 = vmatprep.subr.bf16.mxu0 %v357
    %533 = vmatpush1.bf16.msra.mxu0 %v356
    %534 = vmatprep.subr.bf16.mxu0 %v353
    %535 = vmatpush1.bf16.msra.mxu0 %v352
    %536 = vmatprep.subr.bf16.mxu0 %v349
    %537 = vmatpush1.bf16.msra.mxu0 %v348
    %538 = vmatprep.subr.bf16.mxu0 %v345
    %539 = vmatpush1.bf16.msra.mxu0 %v344
    %540 = vmatprep.subr.bf16.mxu0 0
    %541 = vmatpush2.bf16.msra.mxu0 0
    %542 = vmatprep.subr.bf16.mxu0 0
    %543 = vmatpush2.bf16.msra.mxu0 0
    %544 = vmatprep.subr.bf16.mxu0 0
    %545 = vmatpush2.bf16.msra.mxu0 0
    %546 = vmatprep.subr.bf16.mxu0 0
    %547 = vmatpush2.bf16.msra.mxu0 0
    %548 = vmatprep.subr.bf16.mxu0 0
    %549 = vmatpush2.bf16.msra.mxu0 0
    %550 = vmatprep.subr.bf16.mxu0 0
    %551 = vmatpush2.bf16.msra.mxu0 0
    %552 = vmatprep.subr.bf16.mxu0 0
    %553 = vmatpush2.bf16.msra.mxu0 0
    %554 = vmatprep.subr.bf16.mxu0 0
    %555 = vmatpush2.bf16.msra.mxu0 0
    %556 = vmatprep.mubr.bf16.mxu0 0
    %557 = vmatmul.mubr.bf16.gmra.mxu0 %v523
    %v558 = vpop.f32.mrf.mxu0
    %v559 = vadd.f32 0.0, %v558
    %v560 = vpop.f32.mrf.mxu0
    %v561 = vadd.f32 0.0, %v560
    %v562 = vpop.f32.mrf.mxu0
    %v563 = vpop.f32.mrf.mxu0
    %564 = vdwg.mxu0
    %565 = vmatprep.subr.bf16.mxu0 %v375
    %566 = vmatpush1.bf16.msra.mxu0 %v374
    %567 = vmatprep.subr.bf16.mxu0 %v371
    %568 = vmatpush1.bf16.msra.mxu0 %v370
    %569 = vmatprep.subr.bf16.mxu0 %v367
    %570 = vmatpush1.bf16.msra.mxu0 %v366
    %571 = vmatprep.subr.bf16.mxu0 %v363
    %572 = vmatpush1.bf16.msra.mxu0 %v362
    %573 = vmatprep.subr.bf16.mxu0 %v359
    %574 = vmatpush1.bf16.msra.mxu0 %v358
    %575 = vmatprep.subr.bf16.mxu0 %v355
    %576 = vmatpush1.bf16.msra.mxu0 %v354
    %577 = vmatprep.subr.bf16.mxu0 %v351
    %578 = vmatpush1.bf16.msra.mxu0 %v350
    %579 = vmatprep.subr.bf16.mxu0 %v347
    %580 = vmatpush1.bf16.msra.mxu0 %v346
    %581 = vmatprep.subr.bf16.mxu0 0
    %582 = vmatpush2.bf16.msra.mxu0 0
    %583 = vmatprep.subr.bf16.mxu0 0
    %584 = vmatpush2.bf16.msra.mxu0 0
    %585 = vmatprep.subr.bf16.mxu0 0
    %586 = vmatpush2.bf16.msra.mxu0 0
    %587 = vmatprep.subr.bf16.mxu0 0
    %588 = vmatpush2.bf16.msra.mxu0 0
    %589 = vmatprep.subr.bf16.mxu0 0
    %590 = vmatpush2.bf16.msra.mxu0 0
    %591 = vmatprep.subr.bf16.mxu0 0
    %592 = vmatpush2.bf16.msra.mxu0 0
    %593 = vmatprep.subr.bf16.mxu0 0
    %594 = vmatpush2.bf16.msra.mxu0 0
    %595 = vmatprep.subr.bf16.mxu0 0
    %596 = vmatpush2.bf16.msra.mxu0 0
    %597 = vmatprep.mubr.bf16.mxu0 0
    %598 = vmatmul.mubr.bf16.gmra.mxu0 %v523
    %v599 = vpop.f32.mrf.mxu0
    %v600 = vadd.f32 0.0, %v599
    %v601 = vpop.f32.mrf.mxu0
    %v602 = vadd.f32 0.0, %v601
    %v603 = vpop.f32.mrf.mxu0
    %v604 = vpop.f32.mrf.mxu0
    %605 = vdwg.mxu0
    %v606 = vadd.f32 %v519, %v559
    %v607 = vadd.f32 %v520, %v561
    %v608 = vadd.f32 %v521, %v600
    %v609 = vadd.f32 %v522, %v602
    %v610 = vxor.u32 %v606, 2147483648
    %v611 = vmul.f32 %v610, 1.442695
    %v612 = vpow.pop %v611
    %v613 = vadd.f32 %v612, 1.0
    %v614 = vrcp.pop %v613
    %v615 = vmul.f32 1.0, %v614
    %v616 = vxor.u32 %v607, 2147483648
    %v617 = vmul.f32 %v616, 1.442695
    %v618 = vpow.pop %v617
    %v619 = vadd.f32 %v618, 1.0
    %v620 = vrcp.pop %v619
    %v621 = vmul.f32 1.0, %v620
    %v622 = vtanh.pop %v608
    %v623 = vxor.u32 %v609, 2147483648
    %v624 = vmul.f32 %v623, 1.442695
    %v625 = vpow.pop %v624
    %v626 = vadd.f32 %v625, 1.0
    %v627 = vrcp.pop %v626
    %v628 = vmul.f32 1.0, %v627
    %v629 = vmul.f32 %v621, %v515
    %v630 = vmul.f32 %v615, %v622
    %v631 = vadd.f32 %v629, %v630
    %v632 = vtanh.pop %v631
    %v633 = vmul.f32 %v628, %v632
    %634 = vst [vmem:[%s4 + $0x8] sm:$0xff] %v633
    %v635 = vld [vmem:[#allocation2 + $0x40] sm:$0xff]
    %v636 = vld [vmem:[#allocation2 + $0x48] sm:$0xff]
    %v637 = vld [vmem:[#allocation2 + $0x50] sm:$0xff]
    %v638 = vld [vmem:[#allocation2 + $0x58] sm:$0xff]
    %v639 = vpack.c.bf16 %v633, %v633
    %640 = vmatprep.subr.bf16.mxu0 %v373
    %641 = vmatpush1.bf16.msra.mxu0 %v372
    %642 = vmatprep.subr.bf16.mxu0 %v369
    %643 = vmatpush1.bf16.msra.mxu0 %v368
    %644 = vmatprep.subr.bf16.mxu0 %v365
    %645 = vmatpush1.bf16.msra.mxu0 %v364
    %646 = vmatprep.subr.bf16.mxu0 %v361
    %647 = vmatpush1.bf16.msra.mxu0 %v360
    %648 = vmatprep.subr.bf16.mxu0 %v357
    %649 = vmatpush1.bf16.msra.mxu0 %v356
    %650 = vmatprep.subr.bf16.mxu0 %v353
    %651 = vmatpush1.bf16.msra.mxu0 %v352
    %652 = vmatprep.subr.bf16.mxu0 %v349
    %653 = vmatpush1.bf16.msra.mxu0 %v348
    %654 = vmatprep.subr.bf16.mxu0 %v345
    %655 = vmatpush1.bf16.msra.mxu0 %v344
    %656 = vmatprep.subr.bf16.mxu0 0
    %657 = vmatpush2.bf16.msra.mxu0 0
    %658 = vmatprep.subr.bf16.mxu0 0
    %659 = vmatpush2.bf16.msra.mxu0 0
    %660 = vmatprep.subr.bf16.mxu0 0
    %661 = vmatpush2.bf16.msra.mxu0 0
    %662 = vmatprep.subr.bf16.mxu0 0
    %663 = vmatpush2.bf16.msra.mxu0 0
    %664 = vmatprep.subr.bf16.mxu0 0
    %665 = vmatpush2.bf16.msra.mxu0 0
    %666 = vmatprep.subr.bf16.mxu0 0
    %667 = vmatpush2.bf16.msra.mxu0 0
    %668 = vmatprep.subr.bf16.mxu0 0
    %669 = vmatpush2.bf16.msra.mxu0 0
    %670 = vmatprep.subr.bf16.mxu0 0
    %671 = vmatpush2.bf16.msra.mxu0 0
    %672 = vmatprep.mubr.bf16.mxu0 0
    %673 = vmatmul.mubr.bf16.gmra.mxu0 %v639
    %v674 = vpop.f32.mrf.mxu0
    %v675 = vadd.f32 0.0, %v674
    %v676 = vpop.f32.mrf.mxu0
    %v677 = vadd.f32 0.0, %v676
    %v678 = vpop.f32.mrf.mxu0
    %v679 = vpop.f32.mrf.mxu0
    %680 = vdwg.mxu0
    %681 = vmatprep.subr.bf16.mxu0 %v375
    %682 = vmatpush1.bf16.msra.mxu0 %v374
    %683 = vmatprep.subr.bf16.mxu0 %v371
    %684 = vmatpush1.bf16.msra.mxu0 %v370
    %685 = vmatprep.subr.bf16.mxu0 %v367
    %686 = vmatpush1.bf16.msra.mxu0 %v366
    %687 = vmatprep.subr.bf16.mxu0 %v363
    %688 = vmatpush1.bf16.msra.mxu0 %v362
    %689 = vmatprep.subr.bf16.mxu0 %v359
    %690 = vmatpush1.bf16.msra.mxu0 %v358
    %691 = vmatprep.subr.bf16.mxu0 %v355
    %692 = vmatpush1.bf16.msra.mxu0 %v354
    %693 = vmatprep.subr.bf16.mxu0 %v351
    %694 = vmatpush1.bf16.msra.mxu0 %v350
    %695 = vmatprep.subr.bf16.mxu0 %v347
    %696 = vmatpush1.bf16.msra.mxu0 %v346
    %697 = vmatprep.subr.bf16.mxu0 0
    %698 = vmatpush2.bf16.msra.mxu0 0
    %699 = vmatprep.subr.bf16.mxu0 0
    %700 = vmatpush2.bf16.msra.mxu0 0
    %701 = vmatprep.subr.bf16.mxu0 0
    %702 = vmatpush2.bf16.msra.mxu0 0
    %703 = vmatprep.subr.bf16.mxu0 0
    %704 = vmatpush2.bf16.msra.mxu0 0
    %705 = vmatprep.subr.bf16.mxu0 0
    %706 = vmatpush2.bf16.msra.mxu0 0
    %707 = vmatprep.subr.bf16.mxu0 0
    %708 = vmatpush2.bf16.msra.mxu0 0
    %709 = vmatprep.subr.bf16.mxu0 0
    %710 = vmatpush2.bf16.msra.mxu0 0
    %711 = vmatprep.subr.bf16.mxu0 0
    %712 = vmatpush2.bf16.msra.mxu0 0
    %713 = vmatprep.mubr.bf16.mxu0 0
    %714 = vmatmul.mubr.bf16.gmra.mxu0 %v639
    %v715 = vpop.f32.mrf.mxu0
    %v716 = vadd.f32 0.0, %v715
    %v717 = vpop.f32.mrf.mxu0
    %v718 = vadd.f32 0.0, %v717
    %v719 = vpop.f32.mrf.mxu0
    %v720 = vpop.f32.mrf.mxu0
    %721 = vdwg.mxu0
    %v722 = vadd.f32 %v635, %v675
    %v723 = vadd.f32 %v636, %v677
    %v724 = vadd.f32 %v637, %v716
    %v725 = vadd.f32 %v638, %v718
    %v726 = vxor.u32 %v722, 2147483648
    %v727 = vmul.f32 %v726, 1.442695
    %v728 = vpow.pop %v727
    %v729 = vadd.f32 %v728, 1.0
    %v730 = vrcp.pop %v729
    %v731 = vmul.f32 1.0, %v730
    %v732 = vxor.u32 %v723, 2147483648
    %v733 = vmul.f32 %v732, 1.442695
    %v734 = vpow.pop %v733
    %v735 = vadd.f32 %v734, 1.0
    %v736 = vrcp.pop %v735
    %v737 = vmul.f32 1.0, %v736
    %v738 = vtanh.pop %v724
    %v739 = vxor.u32 %v725, 2147483648
    %v740 = vmul.f32 %v739, 1.442695
    %v741 = vpow.pop %v740
    %v742 = vadd.f32 %v741, 1.0
    %v743 = vrcp.pop %v742
    %v744 = vmul.f32 1.0, %v743
    %v745 = vmul.f32 %v737, %v631
    %v746 = vmul.f32 %v731, %v738
    %v747 = vadd.f32 %v745, %v746
    %v748 = vtanh.pop %v747
    %v749 = vmul.f32 %v744, %v748
    %750 = vst [vmem:[%s4 + $0x10] sm:$0xff] %v749
    %v751 = vld [vmem:[#allocation2 + $0x60] sm:$0xff]
    %v752 = vld [vmem:[#allocation2 + $0x68] sm:$0xff]
    %v753 = vld [vmem:[#allocation2 + $0x70] sm:$0xff]
    %v754 = vld [vmem:[#allocation2 + $0x78] sm:$0xff]
    %v755 = vpack.c.bf16 %v749, %v749
    %756 = vmatprep.subr.bf16.mxu0 %v373
    %757 = vmatpush1.bf16.msra.mxu0 %v372
    %758 = vmatprep.subr.bf16.mxu0 %v369
    %759 = vmatpush1.bf16.msra.mxu0 %v368
    %760 = vmatprep.subr.bf16.mxu0 %v365
    %761 = vmatpush1.bf16.msra.mxu0 %v364
    %762 = vmatprep.subr.bf16.mxu0 %v361
    %763 = vmatpush1.bf16.msra.mxu0 %v360
    %764 = vmatprep.subr.bf16.mxu0 %v357
    %765 = vmatpush1.bf16.msra.mxu0 %v356
    %766 = vmatprep.subr.bf16.mxu0 %v353
    %767 = vmatpush1.bf16.msra.mxu0 %v352
    %768 = vmatprep.subr.bf16.mxu0 %v349
    %769 = vmatpush1.bf16.msra.mxu0 %v348
    %770 = vmatprep.subr.bf16.mxu0 %v345
    %771 = vmatpush1.bf16.msra.mxu0 %v344
    %772 = vmatprep.subr.bf16.mxu0 0
    %773 = vmatpush2.bf16.msra.mxu0 0
    %774 = vmatprep.subr.bf16.mxu0 0
    %775 = vmatpush2.bf16.msra.mxu0 0
    %776 = vmatprep.subr.bf16.mxu0 0
    %777 = vmatpush2.bf16.msra.mxu0 0
    %778 = vmatprep.subr.bf16.mxu0 0
    %779 = vmatpush2.bf16.msra.mxu0 0
    %780 = vmatprep.subr.bf16.mxu0 0
    %781 = vmatpush2.bf16.msra.mxu0 0
    %782 = vmatprep.subr.bf16.mxu0 0
    %783 = vmatpush2.bf16.msra.mxu0 0
    %784 = vmatprep.subr.bf16.mxu0 0
    %785 = vmatpush2.bf16.msra.mxu0 0
    %786 = vmatprep.subr.bf16.mxu0 0
    %787 = vmatpush2.bf16.msra.mxu0 0
    %788 = vmatprep.mubr.bf16.mxu0 0
    %789 = vmatmul.mubr.bf16.gmra.mxu0 %v755
    %v790 = vpop.f32.mrf.mxu0
    %v791 = vadd.f32 0.0, %v790
    %v792 = vpop.f32.mrf.mxu0
    %v793 = vadd.f32 0.0, %v792
    %v794 = vpop.f32.mrf.mxu0
    %v795 = vpop.f32.mrf.mxu0
    %796 = vdwg.mxu0
    %797 = vmatprep.subr.bf16.mxu0 %v375
    %798 = vmatpush1.bf16.msra.mxu0 %v374
    %799 = vmatprep.subr.bf16.mxu0 %v371
    %800 = vmatpush1.bf16.msra.mxu0 %v370
    %801 = vmatprep.subr.bf16.mxu0 %v367
    %802 = vmatpush1.bf16.msra.mxu0 %v366
    %803 = vmatprep.subr.bf16.mxu0 %v363
    %804 = vmatpush1.bf16.msra.mxu0 %v362
    %805 = vmatprep.subr.bf16.mxu0 %v359
    %806 = vmatpush1.bf16.msra.mxu0 %v358
    %807 = vmatprep.subr.bf16.mxu0 %v355
    %808 = vmatpush1.bf16.msra.mxu0 %v354
    %809 = vmatprep.subr.bf16.mxu0 %v351
    %810 = vmatpush1.bf16.msra.mxu0 %v350
    %811 = vmatprep.subr.bf16.mxu0 %v347
    %812 = vmatpush1.bf16.msra.mxu0 %v346
    %813 = vmatprep.subr.bf16.mxu0 0
    %814 = vmatpush2.bf16.msra.mxu0 0
    %815 = vmatprep.subr.bf16.mxu0 0
    %816 = vmatpush2.bf16.msra.mxu0 0
    %817 = vmatprep.subr.bf16.mxu0 0
    %818 = vmatpush2.bf16.msra.mxu0 0
    %819 = vmatprep.subr.bf16.mxu0 0
    %820 = vmatpush2.bf16.msra.mxu0 0
    %821 = vmatprep.subr.bf16.mxu0 0
    %822 = vmatpush2.bf16.msra.mxu0 0
    %823 = vmatprep.subr.bf16.mxu0 0
    %824 = vmatpush2.bf16.msra.mxu0 0
    %825 = vmatprep.subr.bf16.mxu0 0
    %826 = vmatpush2.bf16.msra.mxu0 0
    %827 = vmatprep.subr.bf16.mxu0 0
    %828 = vmatpush2.bf16.msra.mxu0 0
    %829 = vmatprep.mubr.bf16.mxu0 0
    %830 = vmatmul.mubr.bf16.gmra.mxu0 %v755
    %v831 = vpop.f32.mrf.mxu0
    %v832 = vadd.f32 0.0, %v831
    %v833 = vpop.f32.mrf.mxu0
    %v834 = vadd.f32 0.0, %v833
    %v835 = vpop.f32.mrf.mxu0
    %v836 = vpop.f32.mrf.mxu0
    %837 = vdwg.mxu0
    %v838 = vadd.f32 %v751, %v791
    %v839 = vadd.f32 %v752, %v793
    %v840 = vadd.f32 %v753, %v832
    %v841 = vadd.f32 %v754, %v834
    %v842 = vxor.u32 %v838, 2147483648
    %v843 = vmul.f32 %v842, 1.442695
    %v844 = vpow.pop %v843
    %v845 = vadd.f32 %v844, 1.0
    %v846 = vrcp.pop %v845
    %v847 = vmul.f32 1.0, %v846
    %v848 = vxor.u32 %v839, 2147483648
    %v849 = vmul.f32 %v848, 1.442695
    %v850 = vpow.pop %v849
    %v851 = vadd.f32 %v850, 1.0
    %v852 = vrcp.pop %v851
    %v853 = vmul.f32 1.0, %v852
    %v854 = vtanh.pop %v840
    %v855 = vxor.u32 %v841, 2147483648
    %v856 = vmul.f32 %v855, 1.442695
    %v857 = vpow.pop %v856
    %v858 = vadd.f32 %v857, 1.0
    %v859 = vrcp.pop %v858
    %v860 = vmul.f32 1.0, %v859
    %v861 = vmul.f32 %v853, %v747
    %v862 = vmul.f32 %v847, %v854
    %v863 = vadd.f32 %v861, %v862
    %v864 = vtanh.pop %v863
    %v865 = vmul.f32 %v860, %v864
    %866 = vst [vmem:[%s4 + $0x18] sm:$0xff] %v865
    // Predicated region
    $region22: #{improved_lstm_forward.4} parent=1 // pred_check
      _
    $region23: #{improved_lstm_forward.4} parent=1 // pred_check_branch
      %868 = sbr.rel (0) target = $region25
    $region24: #{improved_lstm_forward.4} parent=1 // pred_region
      _
    $region25: #{improved_lstm_forward.4} parent=1 // pred_fallthru
      _
    // Predicated region
    $region26: #{improved_lstm_forward.4} parent=1 // pred_check
      _
    $region27: #{improved_lstm_forward.4} parent=1 // pred_check_branch
      %870 = sbr.rel (0) target = $region29
    $region28: #{improved_lstm_forward.4} parent=1 // pred_region
      _
    $region29: #{improved_lstm_forward.4} parent=1 // pred_fallthru
      _
    %871 = vsyncpa [#allocation4], 1

// kernel: improved_lstm_forward.5
$region0: #{improved_lstm_forward.5}
  #allocation0 [shape = 'u32[]', space=smem, size = 0x4, offset = 0x4, fixed_abs, tag = 'smem constant byte address 0x4 - core index']
  #allocation1 [shape = 'u32[144,128]{1,0:T(1,128)}', space=vmem, size = 0x12000, scoped, tag = 'internal scratch']
  %s0 = inlined_call_operand.vmem [shape: f32[64,256], index: 0, kind: input, shape index: {}]
  %s1 = inlined_call_operand.vmem [shape: f32[64,128], index: 1, kind: input, shape index: {}]
  %s2 = inlined_call_operand.vmem [shape: bf16[256,256], index: 2, kind: input, shape index: {}]
  %s3 = inlined_call_operand.vmem [shape: bf16[128,256], index: 3, kind: input, shape index: {}]
  %s4 = inlined_call_operand.vmem [shape: f32[1,256], index: 4, kind: input, shape index: {}]
  %s5 = inlined_call_operand.vmem [shape: bf16[256,256], index: 5, kind: input, shape index: {}]
  %s6 = inlined_call_operand.vmem [shape: f32[1,256], index: 6, kind: input, shape index: {}]
  %s7 = inlined_call_operand.vmem [shape: bf16[256,256], index: 7, kind: input, shape index: {}]
  %s8 = inlined_call_operand.vmem [shape: f32[1,256], index: 8, kind: input, shape index: {}]
  %s9 = inlined_call_operand.vmem [shape: bf16[256,256], index: 9, kind: input, shape index: {}]
  %s10 = inlined_call_operand.vmem [shape: f32[1,256], index: 10, kind: input, shape index: {}]
  %s11 = inlined_call_operand.vmem [shape: bf16[256,128], index: 11, kind: input, shape index: {}]
  %s12 = inlined_call_operand.vmem [shape: f32[1,128], index: 12, kind: input, shape index: {}]
  %s13 = inlined_call_operand.vmem [shape: f32[1,128], index: 13, kind: input, shape index: {}]
  %s14 = inlined_call_operand.vmem [shape: f32[1,128], index: 14, kind: input, shape index: {}]
  %s15 = inlined_call_operand.vmem [shape: bf16[128,64], index: 15, kind: input, shape index: {}]
  %s16 = inlined_call_operand.vmem [shape: f32[1,64], index: 16, kind: input, shape index: {}]
  %s17 = inlined_call_operand.vmem [shape: bf16[64,16], index: 17, kind: input, shape index: {}]
  %s18 = inlined_call_operand.vmem [shape: f32[1,16], index: 18, kind: input, shape index: {}]
  %s19 = inlined_call_operand.vmem [shape: f32[8,16], index: 19, kind: output, shape index: {}]
  %s20 = sld [smem:[#allocation0]]
  $region86: #{improved_lstm_forward.5} parent=0
    _
  %s22 = ssub.s32 1, %s20
  %s23 = scalar_select 0, %s22, %s20
  // Predicated region
  $region2: #{improved_lstm_forward.5} parent=0 // pred_check
    _
  $region3: #{improved_lstm_forward.5} parent=0 // pred_check_branch
    %25 = sbr.rel (0) target = $region5
  $region4: #{improved_lstm_forward.5} parent=0 // pred_region
    _
  $region5: #{improved_lstm_forward.5} parent=0 // pred_fallthru
    _
  // Predicated region
  $region6: #{improved_lstm_forward.5} parent=0 // pred_check
    _
  $region7: #{improved_lstm_forward.5} parent=0 // pred_check_branch
    %27 = sbr.rel (0) target = $region9
  $region8: #{improved_lstm_forward.5} parent=0 // pred_region
    _
  $region9: #{improved_lstm_forward.5} parent=0 // pred_fallthru
    _
  // Predicated region
  $region10: #{improved_lstm_forward.5} parent=0 // pred_check
    _
  $region11: #{improved_lstm_forward.5} parent=0 // pred_check_branch
    %29 = sbr.rel (0) target = $region13
  $region12: #{improved_lstm_forward.5} parent=0 // pred_region
    _
  $region13: #{improved_lstm_forward.5} parent=0 // pred_fallthru
    _
  // Predicated region
  $region14: #{improved_lstm_forward.5} parent=0 // pred_check
    _
  $region15: #{improved_lstm_forward.5} parent=0 // pred_check_branch
    %31 = sbr.rel (0) target = $region17
  $region16: #{improved_lstm_forward.5} parent=0 // pred_region
    _
  $region17: #{improved_lstm_forward.5} parent=0 // pred_fallthru
    _
  // Predicated region
  $region18: #{improved_lstm_forward.5} parent=0 // pred_check
    _
  $region19: #{improved_lstm_forward.5} parent=0 // pred_check_branch
    %33 = sbr.rel (0) target = $region21
  $region20: #{improved_lstm_forward.5} parent=0 // pred_region
    _
  $region21: #{improved_lstm_forward.5} parent=0 // pred_fallthru
    _
  // Predicated region
  $region22: #{improved_lstm_forward.5} parent=0 // pred_check
    _
  $region23: #{improved_lstm_forward.5} parent=0 // pred_check_branch
    %35 = sbr.rel (0) target = $region25
  $region24: #{improved_lstm_forward.5} parent=0 // pred_region
    _
  $region25: #{improved_lstm_forward.5} parent=0 // pred_fallthru
    _
  // Predicated region
  $region26: #{improved_lstm_forward.5} parent=0 // pred_check
    _
  $region27: #{improved_lstm_forward.5} parent=0 // pred_check_branch
    %37 = sbr.rel (0) target = $region29
  $region28: #{improved_lstm_forward.5} parent=0 // pred_region
    _
  $region29: #{improved_lstm_forward.5} parent=0 // pred_fallthru
    _
  // Predicated region
  $region30: #{improved_lstm_forward.5} parent=0 // pred_check
    _
  $region31: #{improved_lstm_forward.5} parent=0 // pred_check_branch
    %39 = sbr.rel (0) target = $region33
  $region32: #{improved_lstm_forward.5} parent=0 // pred_region
    _
  $region33: #{improved_lstm_forward.5} parent=0 // pred_fallthru
    _
  // Predicated region
  $region34: #{improved_lstm_forward.5} parent=0 // pred_check
    _
  $region35: #{improved_lstm_forward.5} parent=0 // pred_check_branch
    %41 = sbr.rel (0) target = $region37
  $region36: #{improved_lstm_forward.5} parent=0 // pred_region
    _
  $region37: #{improved_lstm_forward.5} parent=0 // pred_fallthru
    _
  // Predicated region
  $region38: #{improved_lstm_forward.5} parent=0 // pred_check
    _
  $region39: #{improved_lstm_forward.5} parent=0 // pred_check_branch
    %43 = sbr.rel (0) target = $region41
  $region40: #{improved_lstm_forward.5} parent=0 // pred_region
    _
  $region41: #{improved_lstm_forward.5} parent=0 // pred_fallthru
    _
  // Predicated region
  $region42: #{improved_lstm_forward.5} parent=0 // pred_check
    _
  $region43: #{improved_lstm_forward.5} parent=0 // pred_check_branch
    %45 = sbr.rel (0) target = $region45
  $region44: #{improved_lstm_forward.5} parent=0 // pred_region
    _
  $region45: #{improved_lstm_forward.5} parent=0 // pred_fallthru
    _
  // Predicated region
  $region46: #{improved_lstm_forward.5} parent=0 // pred_check
    _
  $region47: #{improved_lstm_forward.5} parent=0 // pred_check_branch
    %47 = sbr.rel (0) target = $region49
  $region48: #{improved_lstm_forward.5} parent=0 // pred_region
    _
  $region49: #{improved_lstm_forward.5} parent=0 // pred_fallthru
    _
  // Predicated region
  $region50: #{improved_lstm_forward.5} parent=0 // pred_check
    _
  $region51: #{improved_lstm_forward.5} parent=0 // pred_check_branch
    %49 = sbr.rel (0) target = $region53
  $region52: #{improved_lstm_forward.5} parent=0 // pred_region
    _
  $region53: #{improved_lstm_forward.5} parent=0 // pred_fallthru
    _
  // Predicated region
  $region54: #{improved_lstm_forward.5} parent=0 // pred_check
    _
  $region55: #{improved_lstm_forward.5} parent=0 // pred_check_branch
    %51 = sbr.rel (0) target = $region57
  $region56: #{improved_lstm_forward.5} parent=0 // pred_region
    _
  $region57: #{improved_lstm_forward.5} parent=0 // pred_fallthru
    _
  // Predicated region
  $region58: #{improved_lstm_forward.5} parent=0 // pred_check
    _
  $region59: #{improved_lstm_forward.5} parent=0 // pred_check_branch
    %53 = sbr.rel (0) target = $region61
  $region60: #{improved_lstm_forward.5} parent=0 // pred_region
    _
  $region61: #{improved_lstm_forward.5} parent=0 // pred_fallthru
    _
  // Predicated region
  $region62: #{improved_lstm_forward.5} parent=0 // pred_check
    _
  $region63: #{improved_lstm_forward.5} parent=0 // pred_check_branch
    %55 = sbr.rel (0) target = $region65
  $region64: #{improved_lstm_forward.5} parent=0 // pred_region
    _
  $region65: #{improved_lstm_forward.5} parent=0 // pred_fallthru
    _
  // Predicated region
  $region66: #{improved_lstm_forward.5} parent=0 // pred_check
    _
  $region67: #{improved_lstm_forward.5} parent=0 // pred_check_branch
    %57 = sbr.rel (0) target = $region69
  $region68: #{improved_lstm_forward.5} parent=0 // pred_region
    _
  $region69: #{improved_lstm_forward.5} parent=0 // pred_fallthru
    _
  // Predicated region
  $region70: #{improved_lstm_forward.5} parent=0 // pred_check
    _
  $region71: #{improved_lstm_forward.5} parent=0 // pred_check_branch
    %59 = sbr.rel (0) target = $region73
  $region72: #{improved_lstm_forward.5} parent=0 // pred_region
    _
  $region73: #{improved_lstm_forward.5} parent=0 // pred_fallthru
    _
  // Predicated region
  $region74: #{improved_lstm_forward.5} parent=0 // pred_check
    _
  $region75: #{improved_lstm_forward.5} parent=0 // pred_check_branch
    %61 = sbr.rel (0) target = $region77
  $region76: #{improved_lstm_forward.5} parent=0 // pred_region
    _
  $region77: #{improved_lstm_forward.5} parent=0 // pred_fallthru
    _
  %v63 = vld [vmem:[%s0] sm:$0xff]
  %v64 = vld [vmem:[%s0 + $0x8] sm:$0xff]
  %v65 = vld [vmem:[%s0 + $0x10] sm:$0xff]
  %v66 = vld [vmem:[%s0 + $0x18] sm:$0xff]
  %v67 = vld [vmem:[%s0 + $0x20] sm:$0xff]
  %v68 = vld [vmem:[%s0 + $0x28] sm:$0xff]
  %v69 = vld [vmem:[%s0 + $0x30] sm:$0xff]
  %v70 = vld [vmem:[%s0 + $0x38] sm:$0xff]
  %v71 = vld [vmem:[%s0 + $0x40] sm:$0xff]
  %v72 = vld [vmem:[%s0 + $0x48] sm:$0xff]
  %v73 = vld [vmem:[%s0 + $0x50] sm:$0xff]
  %v74 = vld [vmem:[%s0 + $0x58] sm:$0xff]
  %v75 = vld [vmem:[%s0 + $0x60] sm:$0xff]
  %v76 = vld [vmem:[%s0 + $0x68] sm:$0xff]
  %v77 = vld [vmem:[%s0 + $0x70] sm:$0xff]
  %v78 = vld [vmem:[%s0 + $0x78] sm:$0xff]
  %v79 = vpack.c.bf16 %v65, %v63
  %v80 = vpack.c.bf16 %v66, %v64
  %v81 = vpack.c.bf16 %v69, %v67
  %v82 = vpack.c.bf16 %v70, %v68
  %v83 = vpack.c.bf16 %v73, %v71
  %v84 = vpack.c.bf16 %v74, %v72
  %v85 = vpack.c.bf16 %v77, %v75
  %v86 = vpack.c.bf16 %v78, %v76
  %v87 = vld [vmem:[%s1] sm:$0xff]
  %v88 = vld [vmem:[%s1 + $0x8] sm:$0xff]
  %v89 = vld [vmem:[%s1 + $0x10] sm:$0xff]
  %v90 = vld [vmem:[%s1 + $0x18] sm:$0xff]
  %v91 = vld [vmem:[%s1 + $0x20] sm:$0xff]
  %v92 = vld [vmem:[%s1 + $0x28] sm:$0xff]
  %v93 = vld [vmem:[%s1 + $0x30] sm:$0xff]
  %v94 = vld [vmem:[%s1 + $0x38] sm:$0xff]
  %v95 = vpack.c.bf16 %v88, %v87
  %v96 = vpack.c.bf16 %v90, %v89
  %v97 = vpack.c.bf16 %v92, %v91
  %v98 = vpack.c.bf16 %v94, %v93
  %v99 = vld [vmem:[%s2] sm:$0xff]
  %v100 = vld [vmem:[%s2 + $0x8] sm:$0xff]
  %v101 = vld [vmem:[%s2 + $0x10] sm:$0xff]
  %v102 = vld [vmem:[%s2 + $0x18] sm:$0xff]
  %v103 = vld [vmem:[%s2 + $0x20] sm:$0xff]
  %v104 = vld [vmem:[%s2 + $0x28] sm:$0xff]
  %v105 = vld [vmem:[%s2 + $0x30] sm:$0xff]
  %v106 = vld [vmem:[%s2 + $0x38] sm:$0xff]
  %v107 = vld [vmem:[%s2 + $0x40] sm:$0xff]
  %v108 = vld [vmem:[%s2 + $0x48] sm:$0xff]
  %v109 = vld [vmem:[%s2 + $0x50] sm:$0xff]
  %v110 = vld [vmem:[%s2 + $0x58] sm:$0xff]
  %v111 = vld [vmem:[%s2 + $0x60] sm:$0xff]
  %v112 = vld [vmem:[%s2 + $0x68] sm:$0xff]
  %v113 = vld [vmem:[%s2 + $0x70] sm:$0xff]
  %v114 = vld [vmem:[%s2 + $0x78] sm:$0xff]
  %v115 = vld [vmem:[%s2 + $0x80] sm:$0xff]
  %v116 = vld [vmem:[%s2 + $0x88] sm:$0xff]
  %v117 = vld [vmem:[%s2 + $0x90] sm:$0xff]
  %v118 = vld [vmem:[%s2 + $0x98] sm:$0xff]
  %v119 = vld [vmem:[%s2 + $0xa0] sm:$0xff]
  %v120 = vld [vmem:[%s2 + $0xa8] sm:$0xff]
  %v121 = vld [vmem:[%s2 + $0xb0] sm:$0xff]
  %v122 = vld [vmem:[%s2 + $0xb8] sm:$0xff]
  %v123 = vld [vmem:[%s2 + $0xc0] sm:$0xff]
  %v124 = vld [vmem:[%s2 + $0xc8] sm:$0xff]
  %v125 = vld [vmem:[%s2 + $0xd0] sm:$0xff]
  %v126 = vld [vmem:[%s2 + $0xd8] sm:$0xff]
  %v127 = vld [vmem:[%s2 + $0xe0] sm:$0xff]
  %v128 = vld [vmem:[%s2 + $0xe8] sm:$0xff]
  %v129 = vld [vmem:[%s2 + $0xf0] sm:$0xff]
  %v130 = vld [vmem:[%s2 + $0xf8] sm:$0xff]
  %v131 = vld [vmem:[%s3] sm:$0xff]
  %v132 = vld [vmem:[%s3 + $0x8] sm:$0xff]
  %v133 = vld [vmem:[%s3 + $0x10] sm:$0xff]
  %v134 = vld [vmem:[%s3 + $0x18] sm:$0xff]
  %v135 = vld [vmem:[%s3 + $0x20] sm:$0xff]
  %v136 = vld [vmem:[%s3 + $0x28] sm:$0xff]
  %v137 = vld [vmem:[%s3 + $0x30] sm:$0xff]
  %v138 = vld [vmem:[%s3 + $0x38] sm:$0xff]
  %v139 = vld [vmem:[%s3 + $0x40] sm:$0xff]
  %v140 = vld [vmem:[%s3 + $0x48] sm:$0xff]
  %v141 = vld [vmem:[%s3 + $0x50] sm:$0xff]
  %v142 = vld [vmem:[%s3 + $0x58] sm:$0xff]
  %v143 = vld [vmem:[%s3 + $0x60] sm:$0xff]
  %v144 = vld [vmem:[%s3 + $0x68] sm:$0xff]
  %v145 = vld [vmem:[%s3 + $0x70] sm:$0xff]
  %v146 = vld [vmem:[%s3 + $0x78] sm:$0xff]
  %v163 = vunpack.c.l.b16 %v131
  %v164 = vunpack.c.h.b16 %v131
  %v165 = vunpack.c.l.b16 %v132
  %v166 = vunpack.c.h.b16 %v132
  %v167 = vunpack.c.l.b16 %v133
  %v168 = vunpack.c.h.b16 %v133
  %v169 = vunpack.c.l.b16 %v134
  %v170 = vunpack.c.h.b16 %v134
  %v171 = vunpack.c.l.b16 %v135
  %v172 = vunpack.c.h.b16 %v135
  %v173 = vunpack.c.l.b16 %v136
  %v174 = vunpack.c.h.b16 %v136
  %v175 = vunpack.c.l.b16 %v137
  %v176 = vunpack.c.h.b16 %v137
  %v177 = vunpack.c.l.b16 %v138
  %v178 = vunpack.c.h.b16 %v138
  %v179 = vunpack.c.l.b16 %v139
  %v180 = vunpack.c.h.b16 %v139
  %v181 = vunpack.c.l.b16 %v140
  %v182 = vunpack.c.h.b16 %v140
  %v183 = vunpack.c.l.b16 %v141
  %v184 = vunpack.c.h.b16 %v141
  %v185 = vunpack.c.l.b16 %v142
  %v186 = vunpack.c.h.b16 %v142
  %v187 = vunpack.c.l.b16 %v143
  %v188 = vunpack.c.h.b16 %v143
  %v189 = vunpack.c.l.b16 %v144
  %v190 = vunpack.c.h.b16 %v144
  %v191 = vunpack.c.l.b16 %v145
  %v192 = vunpack.c.h.b16 %v145
  %v193 = vunpack.c.l.b16 %v146
  %v194 = vunpack.c.h.b16 %v146
  %v195 = vpack.c.b16 %v165, %v163
  %v196 = vpack.c.b16 %v166, %v164
  %v197 = vpack.c.b16 %v169, %v167
  %v198 = vpack.c.b16 %v170, %v168
  %v199 = vpack.c.b16 %v173, %v171
  %v200 = vpack.c.b16 %v174, %v172
  %v201 = vpack.c.b16 %v177, %v175
  %v202 = vpack.c.b16 %v178, %v176
  %v203 = vpack.c.b16 %v181, %v179
  %v204 = vpack.c.b16 %v182, %v180
  %v205 = vpack.c.b16 %v185, %v183
  %v206 = vpack.c.b16 %v186, %v184
  %v207 = vpack.c.b16 %v189, %v187
  %v208 = vpack.c.b16 %v190, %v188
  %v209 = vpack.c.b16 %v193, %v191
  %v210 = vpack.c.b16 %v194, %v192
  %227 = vmatprep.subr.bf16.mxu0 %v210
  %228 = vmatpush1.bf16.msra.mxu0 %v209
  %229 = vmatprep.subr.bf16.mxu0 %v208
  %230 = vmatpush1.bf16.msra.mxu0 %v207
  %231 = vmatprep.subr.bf16.mxu0 %v206
  %232 = vmatpush1.bf16.msra.mxu0 %v205
  %233 = vmatprep.subr.bf16.mxu0 %v204
  %234 = vmatpush1.bf16.msra.mxu0 %v203
  %235 = vmatprep.subr.bf16.mxu0 %v202
  %236 = vmatpush1.bf16.msra.mxu0 %v201
  %237 = vmatprep.subr.bf16.mxu0 %v200
  %238 = vmatpush1.bf16.msra.mxu0 %v199
  %239 = vmatprep.subr.bf16.mxu0 %v198
  %240 = vmatpush1.bf16.msra.mxu0 %v197
  %241 = vmatprep.subr.bf16.mxu0 %v196
  %242 = vmatpush1.bf16.msra.mxu0 %v195
  %243 = vmatprep.subr.bf16.mxu0 0
  %244 = vmatpush2.bf16.msra.mxu0 0
  %245 = vmatprep.subr.bf16.mxu0 0
  %246 = vmatpush2.bf16.msra.mxu0 0
  %247 = vmatprep.subr.bf16.mxu0 0
  %248 = vmatpush2.bf16.msra.mxu0 0
  %249 = vmatprep.subr.bf16.mxu0 0
  %250 = vmatpush2.bf16.msra.mxu0 0
  %251 = vmatprep.subr.bf16.mxu0 0
  %252 = vmatpush2.bf16.msra.mxu0 0
  %253 = vmatprep.subr.bf16.mxu0 0
  %254 = vmatpush2.bf16.msra.mxu0 0
  %255 = vmatprep.subr.bf16.mxu0 0
  %256 = vmatpush2.bf16.msra.mxu0 0
  %257 = vmatprep.subr.bf16.mxu0 0
  %258 = vmatpush2.bf16.msra.mxu0 0
  %259 = vmatprep.mubr.bf16.mxu0 0
  %260 = vmatmul.mubr.bf16.gmra.mxu0 %v95
  %v261 = vpop.f32.mrf.mxu0
  %v262 = vadd.f32 0.0, %v261
  %v263 = vpop.f32.mrf.mxu0
  %v264 = vadd.f32 0.0, %v263
  %v265 = vpop.f32.mrf.mxu0
  %v266 = vadd.f32 0.0, %v265
  %v267 = vpop.f32.mrf.mxu0
  %v268 = vadd.f32 0.0, %v267
  %269 = vmatprep.mubr.bf16.mxu0 0
  %270 = vmatmul.mubr.bf16.gmra.mxu0 %v96
  %v271 = vpop.f32.mrf.mxu0
  %v272 = vadd.f32 0.0, %v271
  %v273 = vpop.f32.mrf.mxu0
  %v274 = vadd.f32 0.0, %v273
  %v275 = vpop.f32.mrf.mxu0
  %v276 = vadd.f32 0.0, %v275
  %v277 = vpop.f32.mrf.mxu0
  %v278 = vadd.f32 0.0, %v277
  %279 = vmatprep.mubr.bf16.mxu0 0
  %280 = vmatmul.mubr.bf16.gmra.mxu0 %v97
  %v281 = vpop.f32.mrf.mxu0
  %v282 = vadd.f32 0.0, %v281
  %v283 = vpop.f32.mrf.mxu0
  %v284 = vadd.f32 0.0, %v283
  %v285 = vpop.f32.mrf.mxu0
  %v286 = vadd.f32 0.0, %v285
  %v287 = vpop.f32.mrf.mxu0
  %v288 = vadd.f32 0.0, %v287
  %289 = vmatprep.mubr.bf16.mxu0 0
  %290 = vmatmul.mubr.bf16.gmra.mxu0 %v98
  %v291 = vpop.f32.mrf.mxu0
  %v292 = vadd.f32 0.0, %v291
  %v293 = vpop.f32.mrf.mxu0
  %v294 = vadd.f32 0.0, %v293
  %v295 = vpop.f32.mrf.mxu0
  %v296 = vadd.f32 0.0, %v295
  %v297 = vpop.f32.mrf.mxu0
  %v298 = vadd.f32 0.0, %v297
  %299 = vdwg.mxu0
  %v332 = vunpack.c.l.b16 %v99
  %v333 = vunpack.c.h.b16 %v99
  %v334 = vunpack.c.l.b16 %v100
  %v335 = vunpack.c.h.b16 %v100
  %v336 = vunpack.c.l.b16 %v101
  %v337 = vunpack.c.h.b16 %v101
  %v338 = vunpack.c.l.b16 %v102
  %v339 = vunpack.c.h.b16 %v102
  %v340 = vunpack.c.l.b16 %v103
  %v341 = vunpack.c.h.b16 %v103
  %v342 = vunpack.c.l.b16 %v104
  %v343 = vunpack.c.h.b16 %v104
  %v344 = vunpack.c.l.b16 %v105
  %v345 = vunpack.c.h.b16 %v105
  %v346 = vunpack.c.l.b16 %v106
  %v347 = vunpack.c.h.b16 %v106
  %v348 = vunpack.c.l.b16 %v107
  %v349 = vunpack.c.h.b16 %v107
  %v350 = vunpack.c.l.b16 %v108
  %v351 = vunpack.c.h.b16 %v108
  %v352 = vunpack.c.l.b16 %v109
  %v353 = vunpack.c.h.b16 %v109
  %v354 = vunpack.c.l.b16 %v110
  %v355 = vunpack.c.h.b16 %v110
  %v356 = vunpack.c.l.b16 %v111
  %v357 = vunpack.c.h.b16 %v111
  %v358 = vunpack.c.l.b16 %v112
  %v359 = vunpack.c.h.b16 %v112
  %v360 = vunpack.c.l.b16 %v113
  %v361 = vunpack.c.h.b16 %v113
  %v362 = vunpack.c.l.b16 %v114
  %v363 = vunpack.c.h.b16 %v114
  %v364 = vunpack.c.l.b16 %v115
  %v365 = vunpack.c.h.b16 %v115
  %v366 = vunpack.c.l.b16 %v116
  %v367 = vunpack.c.h.b16 %v116
  %v368 = vunpack.c.l.b16 %v117
  %v369 = vunpack.c.h.b16 %v117
  %v370 = vunpack.c.l.b16 %v118
  %v371 = vunpack.c.h.b16 %v118
  %v372 = vunpack.c.l.b16 %v119
  %v373 = vunpack.c.h.b16 %v119
  %v374 = vunpack.c.l.b16 %v120
  %v375 = vunpack.c.h.b16 %v120
  %v376 = vunpack.c.l.b16 %v121
  %v377 = vunpack.c.h.b16 %v121
  %v378 = vunpack.c.l.b16 %v122
  %v379 = vunpack.c.h.b16 %v122
  %v380 = vunpack.c.l.b16 %v123
  %v381 = vunpack.c.h.b16 %v123
  %v382 = vunpack.c.l.b16 %v124
  %v383 = vunpack.c.h.b16 %v124
  %v384 = vunpack.c.l.b16 %v125
  %v385 = vunpack.c.h.b16 %v125
  %v386 = vunpack.c.l.b16 %v126
  %v387 = vunpack.c.h.b16 %v126
  %v388 = vunpack.c.l.b16 %v127
  %v389 = vunpack.c.h.b16 %v127
  %v390 = vunpack.c.l.b16 %v128
  %v391 = vunpack.c.h.b16 %v128
  %v392 = vunpack.c.l.b16 %v129
  %v393 = vunpack.c.h.b16 %v129
  %v394 = vunpack.c.l.b16 %v130
  %v395 = vunpack.c.h.b16 %v130
  %v396 = vpack.c.b16 %v334, %v332
  %v397 = vpack.c.b16 %v335, %v333
  %v398 = vpack.c.b16 %v338, %v336
  %v399 = vpack.c.b16 %v339, %v337
  %v400 = vpack.c.b16 %v342, %v340
  %v401 = vpack.c.b16 %v343, %v341
  %v402 = vpack.c.b16 %v346, %v344
  %v403 = vpack.c.b16 %v347, %v345
  %v404 = vpack.c.b16 %v350, %v348
  %v405 = vpack.c.b16 %v351, %v349
  %v406 = vpack.c.b16 %v354, %v352
  %v407 = vpack.c.b16 %v355, %v353
  %v408 = vpack.c.b16 %v358, %v356
  %v409 = vpack.c.b16 %v359, %v357
  %v410 = vpack.c.b16 %v362, %v360
  %v411 = vpack.c.b16 %v363, %v361
  %v412 = vpack.c.b16 %v366, %v364
  %v413 = vpack.c.b16 %v367, %v365
  %v414 = vpack.c.b16 %v370, %v368
  %v415 = vpack.c.b16 %v371, %v369
  %v416 = vpack.c.b16 %v374, %v372
  %v417 = vpack.c.b16 %v375, %v373
  %v418 = vpack.c.b16 %v378, %v376
  %v419 = vpack.c.b16 %v379, %v377
  %v420 = vpack.c.b16 %v382, %v380
  %v421 = vpack.c.b16 %v383, %v381
  %v422 = vpack.c.b16 %v386, %v384
  %v423 = vpack.c.b16 %v387, %v385
  %v424 = vpack.c.b16 %v390, %v388
  %v425 = vpack.c.b16 %v391, %v389
  %v426 = vpack.c.b16 %v394, %v392
  %v427 = vpack.c.b16 %v395, %v393
  %460 = vmatprep.subr.bf16.mxu0 %v411
  %461 = vmatpush1.bf16.msra.mxu0 %v410
  %462 = vmatprep.subr.bf16.mxu0 %v409
  %463 = vmatpush1.bf16.msra.mxu0 %v408
  %464 = vmatprep.subr.bf16.mxu0 %v407
  %465 = vmatpush1.bf16.msra.mxu0 %v406
  %466 = vmatprep.subr.bf16.mxu0 %v405
  %467 = vmatpush1.bf16.msra.mxu0 %v404
  %468 = vmatprep.subr.bf16.mxu0 %v403
  %469 = vmatpush1.bf16.msra.mxu0 %v402
  %470 = vmatprep.subr.bf16.mxu0 %v401
  %471 = vmatpush1.bf16.msra.mxu0 %v400
  %472 = vmatprep.subr.bf16.mxu0 %v399
  %473 = vmatpush1.bf16.msra.mxu0 %v398
  %474 = vmatprep.subr.bf16.mxu0 %v397
  %475 = vmatpush1.bf16.msra.mxu0 %v396
  %476 = vmatprep.subr.bf16.mxu0 %v427
  %477 = vmatpush2.bf16.msra.mxu0 %v426
  %478 = vmatprep.subr.bf16.mxu0 %v425
  %479 = vmatpush2.bf16.msra.mxu0 %v424
  %480 = vmatprep.subr.bf16.mxu0 %v423
  %481 = vmatpush2.bf16.msra.mxu0 %v422
  %482 = vmatprep.subr.bf16.mxu0 %v421
  %483 = vmatpush2.bf16.msra.mxu0 %v420
  %484 = vmatprep.subr.bf16.mxu0 %v419
  %485 = vmatpush2.bf16.msra.mxu0 %v418
  %486 = vmatprep.subr.bf16.mxu0 %v417
  %487 = vmatpush2.bf16.msra.mxu0 %v416
  %488 = vmatprep.subr.bf16.mxu0 %v415
  %489 = vmatpush2.bf16.msra.mxu0 %v414
  %490 = vmatprep.subr.bf16.mxu0 %v413
  %491 = vmatpush2.bf16.msra.mxu0 %v412
  %492 = vmatprep.mubr.bf16.mxu0 %v80
  %493 = vmatmul.mubr.bf16.gmra.mxu0 %v79
  %v494 = vpop.f32.mrf.mxu0
  %v495 = vadd.f32 %v262, %v494
  %v496 = vpop.f32.mrf.mxu0
  %v497 = vadd.f32 %v264, %v496
  %v498 = vpop.f32.mrf.mxu0
  %v499 = vadd.f32 %v266, %v498
  %v500 = vpop.f32.mrf.mxu0
  %v501 = vadd.f32 %v268, %v500
  %502 = vmatprep.mubr.bf16.mxu0 %v82
  %503 = vmatmul.mubr.bf16.gmra.mxu0 %v81
  %v504 = vpop.f32.mrf.mxu0
  %v505 = vadd.f32 %v272, %v504
  %v506 = vpop.f32.mrf.mxu0
  %v507 = vadd.f32 %v274, %v506
  %v508 = vpop.f32.mrf.mxu0
  %v509 = vadd.f32 %v276, %v508
  %v510 = vpop.f32.mrf.mxu0
  %v511 = vadd.f32 %v278, %v510
  %512 = vmatprep.mubr.bf16.mxu0 %v84
  %513 = vmatmul.mubr.bf16.gmra.mxu0 %v83
  %v514 = vpop.f32.mrf.mxu0
  %v515 = vadd.f32 %v282, %v514
  %v516 = vpop.f32.mrf.mxu0
  %v517 = vadd.f32 %v284, %v516
  %v518 = vpop.f32.mrf.mxu0
  %v519 = vadd.f32 %v286, %v518
  %v520 = vpop.f32.mrf.mxu0
  %v521 = vadd.f32 %v288, %v520
  %522 = vmatprep.mubr.bf16.mxu0 %v86
  %523 = vmatmul.mubr.bf16.gmra.mxu0 %v85
  %v524 = vpop.f32.mrf.mxu0
  %v525 = vadd.f32 %v292, %v524
  %v526 = vpop.f32.mrf.mxu0
  %v527 = vadd.f32 %v294, %v526
  %v528 = vpop.f32.mrf.mxu0
  %v529 = vadd.f32 %v296, %v528
  %v530 = vpop.f32.mrf.mxu0
  %v531 = vadd.f32 %v298, %v530
  %532 = vdwg.mxu0
  %v533 = vld [vmem:[%s4] sm:$0x3]
  %v535 = vlaneseq
  %v536 = vshrl.u32 %v535, 7
  %v537 = vsub.s32 0, %v536
  %v538 = vrot.slane %v533, %v537
  %v539 = vlaneseq
  %v540 = vshrl.u32 %v539, 7
  %v541 = vsub.s32 1, %v540
  %v542 = vrot.slane %v533, %v541
  %v545 = vadd.f32 %v495, %v538
  %v546 = vadd.f32 %v497, %v542
  %v547 = vadd.f32 %v499, %v538
  %v548 = vadd.f32 %v501, %v542
  %v549 = vadd.f32 %v505, %v538
  %v550 = vadd.f32 %v507, %v542
  %v551 = vadd.f32 %v509, %v538
  %v552 = vadd.f32 %v511, %v542
  %v553 = vadd.f32 %v515, %v538
  %v554 = vadd.f32 %v517, %v542
  %v555 = vadd.f32 %v519, %v538
  %v556 = vadd.f32 %v521, %v542
  %v557 = vadd.f32 %v525, %v538
  %v558 = vadd.f32 %v527, %v542
  %v559 = vadd.f32 %v529, %v538
  %v560 = vadd.f32 %v531, %v542
  %v561 = vpack.c.bf16 %v547, %v545
  %v562 = vpack.c.bf16 %v548, %v546
  %v563 = vpack.c.bf16 %v551, %v549
  %v564 = vpack.c.bf16 %v552, %v550
  %v565 = vpack.c.bf16 %v555, %v553
  %v566 = vpack.c.bf16 %v556, %v554
  %v567 = vpack.c.bf16 %v559, %v557
  %v568 = vpack.c.bf16 %v560, %v558
  %v569 = vld [vmem:[%s5] sm:$0xff]
  %v570 = vld [vmem:[%s5 + $0x8] sm:$0xff]
  %v571 = vld [vmem:[%s5 + $0x10] sm:$0xff]
  %v572 = vld [vmem:[%s5 + $0x18] sm:$0xff]
  %v573 = vld [vmem:[%s5 + $0x20] sm:$0xff]
  %v574 = vld [vmem:[%s5 + $0x28] sm:$0xff]
  %v575 = vld [vmem:[%s5 + $0x30] sm:$0xff]
  %v576 = vld [vmem:[%s5 + $0x38] sm:$0xff]
  %v577 = vld [vmem:[%s5 + $0x40] sm:$0xff]
  %v578 = vld [vmem:[%s5 + $0x48] sm:$0xff]
  %v579 = vld [vmem:[%s5 + $0x50] sm:$0xff]
  %v580 = vld [vmem:[%s5 + $0x58] sm:$0xff]
  %v581 = vld [vmem:[%s5 + $0x60] sm:$0xff]
  %v582 = vld [vmem:[%s5 + $0x68] sm:$0xff]
  %v583 = vld [vmem:[%s5 + $0x70] sm:$0xff]
  %v584 = vld [vmem:[%s5 + $0x78] sm:$0xff]
  %v585 = vld [vmem:[%s5 + $0x80] sm:$0xff]
  %v586 = vld [vmem:[%s5 + $0x88] sm:$0xff]
  %v587 = vld [vmem:[%s5 + $0x90] sm:$0xff]
  %v588 = vld [vmem:[%s5 + $0x98] sm:$0xff]
  %v589 = vld [vmem:[%s5 + $0xa0] sm:$0xff]
  %v590 = vld [vmem:[%s5 + $0xa8] sm:$0xff]
  %v591 = vld [vmem:[%s5 + $0xb0] sm:$0xff]
  %v592 = vld [vmem:[%s5 + $0xb8] sm:$0xff]
  %v593 = vld [vmem:[%s5 + $0xc0] sm:$0xff]
  %v594 = vld [vmem:[%s5 + $0xc8] sm:$0xff]
  %v595 = vld [vmem:[%s5 + $0xd0] sm:$0xff]
  %v596 = vld [vmem:[%s5 + $0xd8] sm:$0xff]
  %v597 = vld [vmem:[%s5 + $0xe0] sm:$0xff]
  %v598 = vld [vmem:[%s5 + $0xe8] sm:$0xff]
  %v599 = vld [vmem:[%s5 + $0xf0] sm:$0xff]
  %v600 = vld [vmem:[%s5 + $0xf8] sm:$0xff]
  %v601 = vld [vmem:[%s6] sm:$0x3]
  %v603 = vlaneseq
  %v604 = vshrl.u32 %v603, 7
  %v605 = vsub.s32 0, %v604
  %v606 = vrot.slane %v601, %v605
  %v607 = vlaneseq
  %v608 = vshrl.u32 %v607, 7
  %v609 = vsub.s32 1, %v608
  %v610 = vrot.slane %v601, %v609
  %v645 = vunpack.c.l.b16 %v569
  %v646 = vunpack.c.h.b16 %v569
  %v647 = vunpack.c.l.b16 %v570
  %v648 = vunpack.c.h.b16 %v570
  %v649 = vunpack.c.l.b16 %v571
  %v650 = vunpack.c.h.b16 %v571
  %v651 = vunpack.c.l.b16 %v572
  %v652 = vunpack.c.h.b16 %v572
  %v653 = vunpack.c.l.b16 %v573
  %v654 = vunpack.c.h.b16 %v573
  %v655 = vunpack.c.l.b16 %v574
  %v656 = vunpack.c.h.b16 %v574
  %v657 = vunpack.c.l.b16 %v575
  %v658 = vunpack.c.h.b16 %v575
  %v659 = vunpack.c.l.b16 %v576
  %v660 = vunpack.c.h.b16 %v576
  %v661 = vunpack.c.l.b16 %v577
  %v662 = vunpack.c.h.b16 %v577
  %v663 = vunpack.c.l.b16 %v578
  %v664 = vunpack.c.h.b16 %v578
  %v665 = vunpack.c.l.b16 %v579
  %v666 = vunpack.c.h.b16 %v579
  %v667 = vunpack.c.l.b16 %v580
  %v668 = vunpack.c.h.b16 %v580
  %v669 = vunpack.c.l.b16 %v581
  %v670 = vunpack.c.h.b16 %v581
  %v671 = vunpack.c.l.b16 %v582
  %v672 = vunpack.c.h.b16 %v582
  %v673 = vunpack.c.l.b16 %v583
  %v674 = vunpack.c.h.b16 %v583
  %v675 = vunpack.c.l.b16 %v584
  %v676 = vunpack.c.h.b16 %v584
  %v677 = vunpack.c.l.b16 %v585
  %v678 = vunpack.c.h.b16 %v585
  %v679 = vunpack.c.l.b16 %v586
  %v680 = vunpack.c.h.b16 %v586
  %v681 = vunpack.c.l.b16 %v587
  %v682 = vunpack.c.h.b16 %v587
  %v683 = vunpack.c.l.b16 %v588
  %v684 = vunpack.c.h.b16 %v588
  %v685 = vunpack.c.l.b16 %v589
  %v686 = vunpack.c.h.b16 %v589
  %v687 = vunpack.c.l.b16 %v590
  %v688 = vunpack.c.h.b16 %v590
  %v689 = vunpack.c.l.b16 %v591
  %v690 = vunpack.c.h.b16 %v591
  %v691 = vunpack.c.l.b16 %v592
  %v692 = vunpack.c.h.b16 %v592
  %v693 = vunpack.c.l.b16 %v593
  %v694 = vunpack.c.h.b16 %v593
  %v695 = vunpack.c.l.b16 %v594
  %v696 = vunpack.c.h.b16 %v594
  %v697 = vunpack.c.l.b16 %v595
  %v698 = vunpack.c.h.b16 %v595
  %v699 = vunpack.c.l.b16 %v596
  %v700 = vunpack.c.h.b16 %v596
  %v701 = vunpack.c.l.b16 %v597
  %v702 = vunpack.c.h.b16 %v597
  %v703 = vunpack.c.l.b16 %v598
  %v704 = vunpack.c.h.b16 %v598
  %v705 = vunpack.c.l.b16 %v599
  %v706 = vunpack.c.h.b16 %v599
  %v707 = vunpack.c.l.b16 %v600
  %v708 = vunpack.c.h.b16 %v600
  %v709 = vpack.c.b16 %v647, %v645
  %v710 = vpack.c.b16 %v648, %v646
  %v711 = vpack.c.b16 %v651, %v649
  %v712 = vpack.c.b16 %v652, %v650
  %v713 = vpack.c.b16 %v655, %v653
  %v714 = vpack.c.b16 %v656, %v654
  %v715 = vpack.c.b16 %v659, %v657
  %v716 = vpack.c.b16 %v660, %v658
  %v717 = vpack.c.b16 %v663, %v661
  %v718 = vpack.c.b16 %v664, %v662
  %v719 = vpack.c.b16 %v667, %v665
  %v720 = vpack.c.b16 %v668, %v666
  %v721 = vpack.c.b16 %v671, %v669
  %v722 = vpack.c.b16 %v672, %v670
  %v723 = vpack.c.b16 %v675, %v673
  %v724 = vpack.c.b16 %v676, %v674
  %v725 = vpack.c.b16 %v679, %v677
  %v726 = vpack.c.b16 %v680, %v678
  %v727 = vpack.c.b16 %v683, %v681
  %v728 = vpack.c.b16 %v684, %v682
  %v729 = vpack.c.b16 %v687, %v685
  %v730 = vpack.c.b16 %v688, %v686
  %v731 = vpack.c.b16 %v691, %v689
  %v732 = vpack.c.b16 %v692, %v690
  %v733 = vpack.c.b16 %v695, %v693
  %v734 = vpack.c.b16 %v696, %v694
  %v735 = vpack.c.b16 %v699, %v697
  %v736 = vpack.c.b16 %v700, %v698
  %v737 = vpack.c.b16 %v703, %v701
  %v738 = vpack.c.b16 %v704, %v702
  %v739 = vpack.c.b16 %v707, %v705
  %v740 = vpack.c.b16 %v708, %v706
  %773 = vmatprep.subr.bf16.mxu0 %v724
  %774 = vmatpush1.bf16.msra.mxu0 %v723
  %775 = vmatprep.subr.bf16.mxu0 %v722
  %776 = vmatpush1.bf16.msra.mxu0 %v721
  %777 = vmatprep.subr.bf16.mxu0 %v720
  %778 = vmatpush1.bf16.msra.mxu0 %v719
  %779 = vmatprep.subr.bf16.mxu0 %v718
  %780 = vmatpush1.bf16.msra.mxu0 %v717
  %781 = vmatprep.subr.bf16.mxu0 %v716
  %782 = vmatpush1.bf16.msra.mxu0 %v715
  %783 = vmatprep.subr.bf16.mxu0 %v714
  %784 = vmatpush1.bf16.msra.mxu0 %v713
  %785 = vmatprep.subr.bf16.mxu0 %v712
  %786 = vmatpush1.bf16.msra.mxu0 %v711
  %787 = vmatprep.subr.bf16.mxu0 %v710
  %788 = vmatpush1.bf16.msra.mxu0 %v709
  %789 = vmatprep.subr.bf16.mxu0 %v740
  %790 = vmatpush2.bf16.msra.mxu0 %v739
  %791 = vmatprep.subr.bf16.mxu0 %v738
  %792 = vmatpush2.bf16.msra.mxu0 %v737
  %793 = vmatprep.subr.bf16.mxu0 %v736
  %794 = vmatpush2.bf16.msra.mxu0 %v735
  %795 = vmatprep.subr.bf16.mxu0 %v734
  %796 = vmatpush2.bf16.msra.mxu0 %v733
  %797 = vmatprep.subr.bf16.mxu0 %v732
  %798 = vmatpush2.bf16.msra.mxu0 %v731
  %799 = vmatprep.subr.bf16.mxu0 %v730
  %800 = vmatpush2.bf16.msra.mxu0 %v729
  %801 = vmatprep.subr.bf16.mxu0 %v728
  %802 = vmatpush2.bf16.msra.mxu0 %v727
  %803 = vmatprep.subr.bf16.mxu0 %v726
  %804 = vmatpush2.bf16.msra.mxu0 %v725
  %805 = vmatprep.mubr.bf16.mxu0 %v562
  %806 = vmatmul.mubr.bf16.gmra.mxu0 %v561
  %v807 = vpop.f32.mrf.mxu0
  %v808 = vadd.f32 %v606, %v807
  %v809 = vpop.f32.mrf.mxu0
  %v810 = vadd.f32 %v610, %v809
  %v811 = vpop.f32.mrf.mxu0
  %v812 = vadd.f32 %v606, %v811
  %v813 = vpop.f32.mrf.mxu0
  %v814 = vadd.f32 %v610, %v813
  %815 = vmatprep.mubr.bf16.mxu0 %v564
  %816 = vmatmul.mubr.bf16.gmra.mxu0 %v563
  %v817 = vpop.f32.mrf.mxu0
  %v818 = vadd.f32 %v606, %v817
  %v819 = vpop.f32.mrf.mxu0
  %v820 = vadd.f32 %v610, %v819
  %v821 = vpop.f32.mrf.mxu0
  %v822 = vadd.f32 %v606, %v821
  %v823 = vpop.f32.mrf.mxu0
  %v824 = vadd.f32 %v610, %v823
  %825 = vmatprep.mubr.bf16.mxu0 %v566
  %826 = vmatmul.mubr.bf16.gmra.mxu0 %v565
  %v827 = vpop.f32.mrf.mxu0
  %v828 = vadd.f32 %v606, %v827
  %v829 = vpop.f32.mrf.mxu0
  %v830 = vadd.f32 %v610, %v829
  %v831 = vpop.f32.mrf.mxu0
  %v832 = vadd.f32 %v606, %v831
  %v833 = vpop.f32.mrf.mxu0
  %v834 = vadd.f32 %v610, %v833
  %835 = vmatprep.mubr.bf16.mxu0 %v568
  %836 = vmatmul.mubr.bf16.gmra.mxu0 %v567
  %v837 = vpop.f32.mrf.mxu0
  %v838 = vadd.f32 %v606, %v837
  %v839 = vpop.f32.mrf.mxu0
  %v840 = vadd.f32 %v610, %v839
  %v841 = vpop.f32.mrf.mxu0
  %v842 = vadd.f32 %v606, %v841
  %v843 = vpop.f32.mrf.mxu0
  %v844 = vadd.f32 %v610, %v843
  %845 = vdwg.mxu0
  %v846 = vld [vmem:[%s7] sm:$0xff]
  %v847 = vld [vmem:[%s7 + $0x8] sm:$0xff]
  %v848 = vld [vmem:[%s7 + $0x10] sm:$0xff]
  %v849 = vld [vmem:[%s7 + $0x18] sm:$0xff]
  %v850 = vld [vmem:[%s7 + $0x20] sm:$0xff]
  %v851 = vld [vmem:[%s7 + $0x28] sm:$0xff]
  %v852 = vld [vmem:[%s7 + $0x30] sm:$0xff]
  %v853 = vld [vmem:[%s7 + $0x38] sm:$0xff]
  %v854 = vld [vmem:[%s7 + $0x40] sm:$0xff]
  %v855 = vld [vmem:[%s7 + $0x48] sm:$0xff]
  %v856 = vld [vmem:[%s7 + $0x50] sm:$0xff]
  %v857 = vld [vmem:[%s7 + $0x58] sm:$0xff]
  %v858 = vld [vmem:[%s7 + $0x60] sm:$0xff]
  %v859 = vld [vmem:[%s7 + $0x68] sm:$0xff]
  %v860 = vld [vmem:[%s7 + $0x70] sm:$0xff]
  %v861 = vld [vmem:[%s7 + $0x78] sm:$0xff]
  %v862 = vld [vmem:[%s7 + $0x80] sm:$0xff]
  %v863 = vld [vmem:[%s7 + $0x88] sm:$0xff]
  %v864 = vld [vmem:[%s7 + $0x90] sm:$0xff]
  %v865 = vld [vmem:[%s7 + $0x98] sm:$0xff]
  %v866 = vld [vmem:[%s7 + $0xa0] sm:$0xff]
  %v867 = vld [vmem:[%s7 + $0xa8] sm:$0xff]
  %v868 = vld [vmem:[%s7 + $0xb0] sm:$0xff]
  %v869 = vld [vmem:[%s7 + $0xb8] sm:$0xff]
  %v870 = vld [vmem:[%s7 + $0xc0] sm:$0xff]
  %v871 = vld [vmem:[%s7 + $0xc8] sm:$0xff]
  %v872 = vld [vmem:[%s7 + $0xd0] sm:$0xff]
  %v873 = vld [vmem:[%s7 + $0xd8] sm:$0xff]
  %v874 = vld [vmem:[%s7 + $0xe0] sm:$0xff]
  %v875 = vld [vmem:[%s7 + $0xe8] sm:$0xff]
  %v876 = vld [vmem:[%s7 + $0xf0] sm:$0xff]
  %v877 = vld [vmem:[%s7 + $0xf8] sm:$0xff]
  %v878 = vld [vmem:[%s8] sm:$0x3]
  %v880 = vlaneseq
  %v881 = vshrl.u32 %v880, 7
  %v882 = vsub.s32 0, %v881
  %v883 = vrot.slane %v878, %v882
  %v884 = vlaneseq
  %v885 = vshrl.u32 %v884, 7
  %v886 = vsub.s32 1, %v885
  %v887 = vrot.slane %v878, %v886
  %v922 = vunpack.c.l.b16 %v846
  %v923 = vunpack.c.h.b16 %v846
  %v924 = vunpack.c.l.b16 %v847
  %v925 = vunpack.c.h.b16 %v847
  %v926 = vunpack.c.l.b16 %v848
  %v927 = vunpack.c.h.b16 %v848
  %v928 = vunpack.c.l.b16 %v849
  %v929 = vunpack.c.h.b16 %v849
  %v930 = vunpack.c.l.b16 %v850
  %v931 = vunpack.c.h.b16 %v850
  %v932 = vunpack.c.l.b16 %v851
  %v933 = vunpack.c.h.b16 %v851
  %v934 = vunpack.c.l.b16 %v852
  %v935 = vunpack.c.h.b16 %v852
  %v936 = vunpack.c.l.b16 %v853
  %v937 = vunpack.c.h.b16 %v853
  %v938 = vunpack.c.l.b16 %v854
  %v939 = vunpack.c.h.b16 %v854
  %v940 = vunpack.c.l.b16 %v855
  %v941 = vunpack.c.h.b16 %v855
  %v942 = vunpack.c.l.b16 %v856
  %v943 = vunpack.c.h.b16 %v856
  %v944 = vunpack.c.l.b16 %v857
  %v945 = vunpack.c.h.b16 %v857
  %v946 = vunpack.c.l.b16 %v858
  %v947 = vunpack.c.h.b16 %v858
  %v948 = vunpack.c.l.b16 %v859
  %v949 = vunpack.c.h.b16 %v859
  %v950 = vunpack.c.l.b16 %v860
  %v951 = vunpack.c.h.b16 %v860
  %v952 = vunpack.c.l.b16 %v861
  %v953 = vunpack.c.h.b16 %v861
  %v954 = vunpack.c.l.b16 %v862
  %v955 = vunpack.c.h.b16 %v862
  %v956 = vunpack.c.l.b16 %v863
  %v957 = vunpack.c.h.b16 %v863
  %v958 = vunpack.c.l.b16 %v864
  %v959 = vunpack.c.h.b16 %v864
  %v960 = vunpack.c.l.b16 %v865
  %v961 = vunpack.c.h.b16 %v865
  %v962 = vunpack.c.l.b16 %v866
  %v963 = vunpack.c.h.b16 %v866
  %v964 = vunpack.c.l.b16 %v867
  %v965 = vunpack.c.h.b16 %v867
  %v966 = vunpack.c.l.b16 %v868
  %v967 = vunpack.c.h.b16 %v868
  %v968 = vunpack.c.l.b16 %v869
  %v969 = vunpack.c.h.b16 %v869
  %v970 = vunpack.c.l.b16 %v870
  %v971 = vunpack.c.h.b16 %v870
  %v972 = vunpack.c.l.b16 %v871
  %v973 = vunpack.c.h.b16 %v871
  %v974 = vunpack.c.l.b16 %v872
  %v975 = vunpack.c.h.b16 %v872
  %v976 = vunpack.c.l.b16 %v873
  %v977 = vunpack.c.h.b16 %v873
  %v978 = vunpack.c.l.b16 %v874
  %v979 = vunpack.c.h.b16 %v874
  %v980 = vunpack.c.l.b16 %v875
  %v981 = vunpack.c.h.b16 %v875
  %v982 = vunpack.c.l.b16 %v876
  %v983 = vunpack.c.h.b16 %v876
  %v984 = vunpack.c.l.b16 %v877
  %v985 = vunpack.c.h.b16 %v877
  %v986 = vpack.c.b16 %v924, %v922
  %v987 = vpack.c.b16 %v925, %v923
  %v988 = vpack.c.b16 %v928, %v926
  %v989 = vpack.c.b16 %v929, %v927
  %v990 = vpack.c.b16 %v932, %v930
  %v991 = vpack.c.b16 %v933, %v931
  %v992 = vpack.c.b16 %v936, %v934
  %v993 = vpack.c.b16 %v937, %v935
  %v994 = vpack.c.b16 %v940, %v938
  %v995 = vpack.c.b16 %v941, %v939
  %v996 = vpack.c.b16 %v944, %v942
  %v997 = vpack.c.b16 %v945, %v943
  %v998 = vpack.c.b16 %v948, %v946
  %v999 = vpack.c.b16 %v949, %v947
  %v1000 = vpack.c.b16 %v952, %v950
  %v1001 = vpack.c.b16 %v953, %v951
  %v1002 = vpack.c.b16 %v956, %v954
  %v1003 = vpack.c.b16 %v957, %v955
  %v1004 = vpack.c.b16 %v960, %v958
  %v1005 = vpack.c.b16 %v961, %v959
  %v1006 = vpack.c.b16 %v964, %v962
  %v1007 = vpack.c.b16 %v965, %v963
  %v1008 = vpack.c.b16 %v968, %v966
  %v1009 = vpack.c.b16 %v969, %v967
  %v1010 = vpack.c.b16 %v972, %v970
  %v1011 = vpack.c.b16 %v973, %v971
  %v1012 = vpack.c.b16 %v976, %v974
  %v1013 = vpack.c.b16 %v977, %v975
  %v1014 = vpack.c.b16 %v980, %v978
  %v1015 = vpack.c.b16 %v981, %v979
  %v1016 = vpack.c.b16 %v984, %v982
  %v1017 = vpack.c.b16 %v985, %v983
  %1050 = vmatprep.subr.bf16.mxu0 %v1001
  %1051 = vmatpush1.bf16.msra.mxu0 %v1000
  %1052 = vmatprep.subr.bf16.mxu0 %v999
  %1053 = vmatpush1.bf16.msra.mxu0 %v998
  %1054 = vmatprep.subr.bf16.mxu0 %v997
  %1055 = vmatpush1.bf16.msra.mxu0 %v996
  %1056 = vmatprep.subr.bf16.mxu0 %v995
  %1057 = vmatpush1.bf16.msra.mxu0 %v994
  %1058 = vmatprep.subr.bf16.mxu0 %v993
  %1059 = vmatpush1.bf16.msra.mxu0 %v992
  %1060 = vmatprep.subr.bf16.mxu0 %v991
  %1061 = vmatpush1.bf16.msra.mxu0 %v990
  %1062 = vmatprep.subr.bf16.mxu0 %v989
  %1063 = vmatpush1.bf16.msra.mxu0 %v988
  %1064 = vmatprep.subr.bf16.mxu0 %v987
  %1065 = vmatpush1.bf16.msra.mxu0 %v986
  %1066 = vmatprep.subr.bf16.mxu0 %v1017
  %1067 = vmatpush2.bf16.msra.mxu0 %v1016
  %1068 = vmatprep.subr.bf16.mxu0 %v1015
  %1069 = vmatpush2.bf16.msra.mxu0 %v1014
  %1070 = vmatprep.subr.bf16.mxu0 %v1013
  %1071 = vmatpush2.bf16.msra.mxu0 %v1012
  %1072 = vmatprep.subr.bf16.mxu0 %v1011
  %1073 = vmatpush2.bf16.msra.mxu0 %v1010
  %1074 = vmatprep.subr.bf16.mxu0 %v1009
  %1075 = vmatpush2.bf16.msra.mxu0 %v1008
  %1076 = vmatprep.subr.bf16.mxu0 %v1007
  %1077 = vmatpush2.bf16.msra.mxu0 %v1006
  %1078 = vmatprep.subr.bf16.mxu0 %v1005
  %1079 = vmatpush2.bf16.msra.mxu0 %v1004
  %1080 = vmatprep.subr.bf16.mxu0 %v1003
  %1081 = vmatpush2.bf16.msra.mxu0 %v1002
  %1082 = vmatprep.mubr.bf16.mxu0 %v562
  %1083 = vmatmul.mubr.bf16.gmra.mxu0 %v561
  %v1084 = vpop.f32.mrf.mxu0
  %v1085 = vadd.f32 %v883, %v1084
  %v1086 = vpop.f32.mrf.mxu0
  %v1087 = vadd.f32 %v887, %v1086
  %v1088 = vpop.f32.mrf.mxu0
  %v1089 = vadd.f32 %v883, %v1088
  %v1090 = vpop.f32.mrf.mxu0
  %v1091 = vadd.f32 %v887, %v1090
  %1092 = vmatprep.mubr.bf16.mxu0 %v564
  %1093 = vmatmul.mubr.bf16.gmra.mxu0 %v563
  %v1094 = vpop.f32.mrf.mxu0
  %v1095 = vadd.f32 %v883, %v1094
  %v1096 = vpop.f32.mrf.mxu0
  %v1097 = vadd.f32 %v887, %v1096
  %v1098 = vpop.f32.mrf.mxu0
  %v1099 = vadd.f32 %v883, %v1098
  %v1100 = vpop.f32.mrf.mxu0
  %v1101 = vadd.f32 %v887, %v1100
  %1102 = vmatprep.mubr.bf16.mxu0 %v566
  %1103 = vmatmul.mubr.bf16.gmra.mxu0 %v565
  %v1104 = vpop.f32.mrf.mxu0
  %v1105 = vadd.f32 %v883, %v1104
  %v1106 = vpop.f32.mrf.mxu0
  %v1107 = vadd.f32 %v887, %v1106
  %v1108 = vpop.f32.mrf.mxu0
  %v1109 = vadd.f32 %v883, %v1108
  %v1110 = vpop.f32.mrf.mxu0
  %v1111 = vadd.f32 %v887, %v1110
  %1112 = vmatprep.mubr.bf16.mxu0 %v568
  %1113 = vmatmul.mubr.bf16.gmra.mxu0 %v567
  %v1114 = vpop.f32.mrf.mxu0
  %v1115 = vadd.f32 %v883, %v1114
  %v1116 = vpop.f32.mrf.mxu0
  %v1117 = vadd.f32 %v887, %v1116
  %v1118 = vpop.f32.mrf.mxu0
  %v1119 = vadd.f32 %v883, %v1118
  %v1120 = vpop.f32.mrf.mxu0
  %v1121 = vadd.f32 %v887, %v1120
  %1122 = vdwg.mxu0
  %v1123 = vld [vmem:[%s9] sm:$0xff]
  %v1124 = vld [vmem:[%s9 + $0x8] sm:$0xff]
  %v1125 = vld [vmem:[%s9 + $0x10] sm:$0xff]
  %v1126 = vld [vmem:[%s9 + $0x18] sm:$0xff]
  %v1127 = vld [vmem:[%s9 + $0x20] sm:$0xff]
  %v1128 = vld [vmem:[%s9 + $0x28] sm:$0xff]
  %v1129 = vld [vmem:[%s9 + $0x30] sm:$0xff]
  %v1130 = vld [vmem:[%s9 + $0x38] sm:$0xff]
  %v1131 = vld [vmem:[%s9 + $0x40] sm:$0xff]
  %v1132 = vld [vmem:[%s9 + $0x48] sm:$0xff]
  %v1133 = vld [vmem:[%s9 + $0x50] sm:$0xff]
  %v1134 = vld [vmem:[%s9 + $0x58] sm:$0xff]
  %v1135 = vld [vmem:[%s9 + $0x60] sm:$0xff]
  %v1136 = vld [vmem:[%s9 + $0x68] sm:$0xff]
  %v1137 = vld [vmem:[%s9 + $0x70] sm:$0xff]
  %v1138 = vld [vmem:[%s9 + $0x78] sm:$0xff]
  %v1139 = vld [vmem:[%s9 + $0x80] sm:$0xff]
  %v1140 = vld [vmem:[%s9 + $0x88] sm:$0xff]
  %v1141 = vld [vmem:[%s9 + $0x90] sm:$0xff]
  %v1142 = vld [vmem:[%s9 + $0x98] sm:$0xff]
  %v1143 = vld [vmem:[%s9 + $0xa0] sm:$0xff]
  %v1144 = vld [vmem:[%s9 + $0xa8] sm:$0xff]
  %v1145 = vld [vmem:[%s9 + $0xb0] sm:$0xff]
  %v1146 = vld [vmem:[%s9 + $0xb8] sm:$0xff]
  %v1147 = vld [vmem:[%s9 + $0xc0] sm:$0xff]
  %v1148 = vld [vmem:[%s9 + $0xc8] sm:$0xff]
  %v1149 = vld [vmem:[%s9 + $0xd0] sm:$0xff]
  %v1150 = vld [vmem:[%s9 + $0xd8] sm:$0xff]
  %v1151 = vld [vmem:[%s9 + $0xe0] sm:$0xff]
  %v1152 = vld [vmem:[%s9 + $0xe8] sm:$0xff]
  %v1153 = vld [vmem:[%s9 + $0xf0] sm:$0xff]
  %v1154 = vld [vmem:[%s9 + $0xf8] sm:$0xff]
  %v1155 = vld [vmem:[%s10] sm:$0x3]
  %v1157 = vlaneseq
  %v1158 = vshrl.u32 %v1157, 7
  %v1159 = vsub.s32 0, %v1158
  %v1160 = vrot.slane %v1155, %v1159
  %v1161 = vlaneseq
  %v1162 = vshrl.u32 %v1161, 7
  %v1163 = vsub.s32 1, %v1162
  %v1164 = vrot.slane %v1155, %v1163
  %v1199 = vunpack.c.l.b16 %v1123
  %v1200 = vunpack.c.h.b16 %v1123
  %v1201 = vunpack.c.l.b16 %v1124
  %v1202 = vunpack.c.h.b16 %v1124
  %v1203 = vunpack.c.l.b16 %v1125
  %v1204 = vunpack.c.h.b16 %v1125
  %v1205 = vunpack.c.l.b16 %v1126
  %v1206 = vunpack.c.h.b16 %v1126
  %v1207 = vunpack.c.l.b16 %v1127
  %v1208 = vunpack.c.h.b16 %v1127
  %v1209 = vunpack.c.l.b16 %v1128
  %v1210 = vunpack.c.h.b16 %v1128
  %v1211 = vunpack.c.l.b16 %v1129
  %v1212 = vunpack.c.h.b16 %v1129
  %v1213 = vunpack.c.l.b16 %v1130
  %v1214 = vunpack.c.h.b16 %v1130
  %v1215 = vunpack.c.l.b16 %v1131
  %v1216 = vunpack.c.h.b16 %v1131
  %v1217 = vunpack.c.l.b16 %v1132
  %v1218 = vunpack.c.h.b16 %v1132
  %v1219 = vunpack.c.l.b16 %v1133
  %v1220 = vunpack.c.h.b16 %v1133
  %v1221 = vunpack.c.l.b16 %v1134
  %v1222 = vunpack.c.h.b16 %v1134
  %v1223 = vunpack.c.l.b16 %v1135
  %v1224 = vunpack.c.h.b16 %v1135
  %v1225 = vunpack.c.l.b16 %v1136
  %v1226 = vunpack.c.h.b16 %v1136
  %v1227 = vunpack.c.l.b16 %v1137
  %v1228 = vunpack.c.h.b16 %v1137
  %v1229 = vunpack.c.l.b16 %v1138
  %v1230 = vunpack.c.h.b16 %v1138
  %v1231 = vunpack.c.l.b16 %v1139
  %v1232 = vunpack.c.h.b16 %v1139
  %v1233 = vunpack.c.l.b16 %v1140
  %v1234 = vunpack.c.h.b16 %v1140
  %v1235 = vunpack.c.l.b16 %v1141
  %v1236 = vunpack.c.h.b16 %v1141
  %v1237 = vunpack.c.l.b16 %v1142
  %v1238 = vunpack.c.h.b16 %v1142
  %v1239 = vunpack.c.l.b16 %v1143
  %v1240 = vunpack.c.h.b16 %v1143
  %v1241 = vunpack.c.l.b16 %v1144
  %v1242 = vunpack.c.h.b16 %v1144
  %v1243 = vunpack.c.l.b16 %v1145
  %v1244 = vunpack.c.h.b16 %v1145
  %v1245 = vunpack.c.l.b16 %v1146
  %v1246 = vunpack.c.h.b16 %v1146
  %v1247 = vunpack.c.l.b16 %v1147
  %v1248 = vunpack.c.h.b16 %v1147
  %v1249 = vunpack.c.l.b16 %v1148
  %v1250 = vunpack.c.h.b16 %v1148
  %v1251 = vunpack.c.l.b16 %v1149
  %v1252 = vunpack.c.h.b16 %v1149
  %v1253 = vunpack.c.l.b16 %v1150
  %v1254 = vunpack.c.h.b16 %v1150
  %v1255 = vunpack.c.l.b16 %v1151
  %v1256 = vunpack.c.h.b16 %v1151
  %v1257 = vunpack.c.l.b16 %v1152
  %v1258 = vunpack.c.h.b16 %v1152
  %v1259 = vunpack.c.l.b16 %v1153
  %v1260 = vunpack.c.h.b16 %v1153
  %v1261 = vunpack.c.l.b16 %v1154
  %v1262 = vunpack.c.h.b16 %v1154
  %v1263 = vpack.c.b16 %v1201, %v1199
  %v1264 = vpack.c.b16 %v1202, %v1200
  %v1265 = vpack.c.b16 %v1205, %v1203
  %v1266 = vpack.c.b16 %v1206, %v1204
  %v1267 = vpack.c.b16 %v1209, %v1207
  %v1268 = vpack.c.b16 %v1210, %v1208
  %v1269 = vpack.c.b16 %v1213, %v1211
  %v1270 = vpack.c.b16 %v1214, %v1212
  %v1271 = vpack.c.b16 %v1217, %v1215
  %v1272 = vpack.c.b16 %v1218, %v1216
  %v1273 = vpack.c.b16 %v1221, %v1219
  %v1274 = vpack.c.b16 %v1222, %v1220
  %v1275 = vpack.c.b16 %v1225, %v1223
  %v1276 = vpack.c.b16 %v1226, %v1224
  %v1277 = vpack.c.b16 %v1229, %v1227
  %v1278 = vpack.c.b16 %v1230, %v1228
  %v1279 = vpack.c.b16 %v1233, %v1231
  %v1280 = vpack.c.b16 %v1234, %v1232
  %v1281 = vpack.c.b16 %v1237, %v1235
  %v1282 = vpack.c.b16 %v1238, %v1236
  %v1283 = vpack.c.b16 %v1241, %v1239
  %v1284 = vpack.c.b16 %v1242, %v1240
  %v1285 = vpack.c.b16 %v1245, %v1243
  %v1286 = vpack.c.b16 %v1246, %v1244
  %v1287 = vpack.c.b16 %v1249, %v1247
  %v1288 = vpack.c.b16 %v1250, %v1248
  %v1289 = vpack.c.b16 %v1253, %v1251
  %v1290 = vpack.c.b16 %v1254, %v1252
  %v1291 = vpack.c.b16 %v1257, %v1255
  %v1292 = vpack.c.b16 %v1258, %v1256
  %v1293 = vpack.c.b16 %v1261, %v1259
  %v1294 = vpack.c.b16 %v1262, %v1260
  %1327 = vmatprep.subr.bf16.mxu0 %v1278
  %1328 = vmatpush1.bf16.msra.mxu0 %v1277
  %1329 = vmatprep.subr.bf16.mxu0 %v1276
  %1330 = vmatpush1.bf16.msra.mxu0 %v1275
  %1331 = vmatprep.subr.bf16.mxu0 %v1274
  %1332 = vmatpush1.bf16.msra.mxu0 %v1273
  %1333 = vmatprep.subr.bf16.mxu0 %v1272
  %1334 = vmatpush1.bf16.msra.mxu0 %v1271
  %1335 = vmatprep.subr.bf16.mxu0 %v1270
  %1336 = vmatpush1.bf16.msra.mxu0 %v1269
  %1337 = vmatprep.subr.bf16.mxu0 %v1268
  %1338 = vmatpush1.bf16.msra.mxu0 %v1267
  %1339 = vmatprep.subr.bf16.mxu0 %v1266
  %1340 = vmatpush1.bf16.msra.mxu0 %v1265
  %1341 = vmatprep.subr.bf16.mxu0 %v1264
  %1342 = vmatpush1.bf16.msra.mxu0 %v1263
  %1343 = vmatprep.subr.bf16.mxu0 %v1294
  %1344 = vmatpush2.bf16.msra.mxu0 %v1293
  %1345 = vmatprep.subr.bf16.mxu0 %v1292
  %1346 = vmatpush2.bf16.msra.mxu0 %v1291
  %1347 = vmatprep.subr.bf16.mxu0 %v1290
  %1348 = vmatpush2.bf16.msra.mxu0 %v1289
  %1349 = vmatprep.subr.bf16.mxu0 %v1288
  %1350 = vmatpush2.bf16.msra.mxu0 %v1287
  %1351 = vmatprep.subr.bf16.mxu0 %v1286
  %1352 = vmatpush2.bf16.msra.mxu0 %v1285
  %1353 = vmatprep.subr.bf16.mxu0 %v1284
  %1354 = vmatpush2.bf16.msra.mxu0 %v1283
  %1355 = vmatprep.subr.bf16.mxu0 %v1282
  %1356 = vmatpush2.bf16.msra.mxu0 %v1281
  %1357 = vmatprep.subr.bf16.mxu0 %v1280
  %1358 = vmatpush2.bf16.msra.mxu0 %v1279
  %1359 = vmatprep.mubr.bf16.mxu0 %v562
  %1360 = vmatmul.mubr.bf16.gmra.mxu0 %v561
  %v1361 = vpop.f32.mrf.mxu0
  %v1362 = vadd.f32 %v1160, %v1361
  %v1363 = vpop.f32.mrf.mxu0
  %v1364 = vadd.f32 %v1164, %v1363
  %v1365 = vpop.f32.mrf.mxu0
  %v1366 = vadd.f32 %v1160, %v1365
  %v1367 = vpop.f32.mrf.mxu0
  %v1368 = vadd.f32 %v1164, %v1367
  %1369 = vmatprep.mubr.bf16.mxu0 %v564
  %1370 = vmatmul.mubr.bf16.gmra.mxu0 %v563
  %v1371 = vpop.f32.mrf.mxu0
  %v1372 = vadd.f32 %v1160, %v1371
  %v1373 = vpop.f32.mrf.mxu0
  %v1374 = vadd.f32 %v1164, %v1373
  %v1375 = vpop.f32.mrf.mxu0
  %v1376 = vadd.f32 %v1160, %v1375
  %v1377 = vpop.f32.mrf.mxu0
  %v1378 = vadd.f32 %v1164, %v1377
  %1379 = vmatprep.mubr.bf16.mxu0 %v566
  %1380 = vmatmul.mubr.bf16.gmra.mxu0 %v565
  %v1381 = vpop.f32.mrf.mxu0
  %v1382 = vadd.f32 %v1160, %v1381
  %v1383 = vpop.f32.mrf.mxu0
  %v1384 = vadd.f32 %v1164, %v1383
  %v1385 = vpop.f32.mrf.mxu0
  %v1386 = vadd.f32 %v1160, %v1385
  %v1387 = vpop.f32.mrf.mxu0
  %v1388 = vadd.f32 %v1164, %v1387
  %1389 = vmatprep.mubr.bf16.mxu0 %v568
  %1390 = vmatmul.mubr.bf16.gmra.mxu0 %v567
  %v1391 = vpop.f32.mrf.mxu0
  %v1392 = vadd.f32 %v1160, %v1391
  %v1393 = vpop.f32.mrf.mxu0
  %v1394 = vadd.f32 %v1164, %v1393
  %v1395 = vpop.f32.mrf.mxu0
  %v1396 = vadd.f32 %v1160, %v1395
  %v1397 = vpop.f32.mrf.mxu0
  %v1398 = vadd.f32 %v1164, %v1397
  %1399 = vdwg.mxu0
  %v1400 = vpack.c.bf16 %v812, %v808
  %v1401 = vpack.c.bf16 %v814, %v810
  %v1402 = vpack.c.bf16 %v822, %v818
  %v1403 = vpack.c.bf16 %v824, %v820
  %v1404 = vpack.c.bf16 %v832, %v828
  %v1405 = vpack.c.bf16 %v834, %v830
  %v1406 = vpack.c.bf16 %v842, %v838
  %v1407 = vpack.c.bf16 %v844, %v840
  %v1408 = vpack.c.bf16 %v1089, %v1085
  %v1409 = vpack.c.bf16 %v1091, %v1087
  %v1410 = vpack.c.bf16 %v1099, %v1095
  %v1411 = vpack.c.bf16 %v1101, %v1097
  %v1412 = vpack.c.bf16 %v1109, %v1105
  %v1413 = vpack.c.bf16 %v1111, %v1107
  %v1414 = vpack.c.bf16 %v1119, %v1115
  %v1415 = vpack.c.bf16 %v1121, %v1117
  %1416 = vmatprep.subr.bf16.mxu0 0
  %1417 = vmatpush1.bf16.xpose.msra.mxu0 0
  %1418 = vmatprep.subr.bf16.mxu0 0
  %1419 = vmatpush1.bf16.xpose.msra.mxu0 0
  %1420 = vmatprep.subr.bf16.mxu0 0
  %1421 = vmatpush1.bf16.xpose.msra.mxu0 0
  %1422 = vmatprep.subr.bf16.mxu0 0
  %1423 = vmatpush1.bf16.xpose.msra.mxu0 0
  %1424 = vmatprep.subr.bf16.mxu0 %v1415
  %1425 = vmatpush1.bf16.xpose.msra.mxu0 %v1414
  %1426 = vmatprep.subr.bf16.mxu0 %v1413
  %1427 = vmatpush1.bf16.xpose.msra.mxu0 %v1412
  %1428 = vmatprep.subr.bf16.mxu0 %v1411
  %1429 = vmatpush1.bf16.xpose.msra.mxu0 %v1410
  %1430 = vmatprep.subr.bf16.mxu0 %v1409
  %1431 = vmatpush1.bf16.xpose.msra.mxu0 %v1408
  %1432 = vmatprep.subr.bf16.mxu0 0
  %1433 = vmatpush2.bf16.xpose.msra.mxu0 0
  %1434 = vmatprep.subr.bf16.mxu0 0
  %1435 = vmatpush2.bf16.xpose.msra.mxu0 0
  %1436 = vmatprep.subr.bf16.mxu0 0
  %1437 = vmatpush2.bf16.xpose.msra.mxu0 0
  %1438 = vmatprep.subr.bf16.mxu0 0
  %1439 = vmatpush2.bf16.xpose.msra.mxu0 0
  %1440 = vmatprep.subr.bf16.mxu0 0
  %1441 = vmatpush2.bf16.xpose.msra.mxu0 0
  %1442 = vmatprep.subr.bf16.mxu0 0
  %1443 = vmatpush2.bf16.xpose.msra.mxu0 0
  %1444 = vmatprep.subr.bf16.mxu0 0
  %1445 = vmatpush2.bf16.xpose.msra.mxu0 0
  %1446 = vmatprep.subr.bf16.mxu0 0
  %1447 = vmatpush2.bf16.xpose.msra.mxu0 0
  %1448 = vmatprep.mubr.bf16.mxu0 %v1401
  %1449 = vmatmul.mubr.bf16.gmra.mxu0 %v1400
  %v1450 = vpop.f32.mrf.mxu0
  %v1451 = vadd.f32 0.0, %v1450
  %v1452 = vpop.f32.mrf.mxu0
  %v1453 = vpop.f32.mrf.mxu0
  %v1454 = vadd.f32 0.0, %v1453
  %v1455 = vpop.f32.mrf.mxu0
  %1456 = vmatprep.mubr.bf16.mxu0 %v1403
  %1457 = vmatmul.mubr.bf16.gmra.mxu0 %v1402
  %v1458 = vpop.f32.mrf.mxu0
  %v1459 = vadd.f32 0.0, %v1458
  %v1460 = vpop.f32.mrf.mxu0
  %v1461 = vpop.f32.mrf.mxu0
  %v1462 = vadd.f32 0.0, %v1461
  %v1463 = vpop.f32.mrf.mxu0
  %1464 = vmatprep.mubr.bf16.mxu0 %v1405
  %1465 = vmatmul.mubr.bf16.gmra.mxu0 %v1404
  %v1466 = vpop.f32.mrf.mxu0
  %v1467 = vadd.f32 0.0, %v1466
  %v1468 = vpop.f32.mrf.mxu0
  %v1469 = vpop.f32.mrf.mxu0
  %v1470 = vadd.f32 0.0, %v1469
  %v1471 = vpop.f32.mrf.mxu0
  %1472 = vmatprep.mubr.bf16.mxu0 %v1407
  %1473 = vmatmul.mubr.bf16.gmra.mxu0 %v1406
  %v1474 = vpop.f32.mrf.mxu0
  %v1475 = vadd.f32 0.0, %v1474
  %v1476 = vpop.f32.mrf.mxu0
  %v1477 = vpop.f32.mrf.mxu0
  %v1478 = vadd.f32 0.0, %v1477
  %v1479 = vpop.f32.mrf.mxu0
  %1480 = vdwg.mxu0
  %v1481 = vmul.f32 %v1451, 0.0625
  %v1482 = vmul.f32 %v1454, 0.0625
  %v1483 = vmul.f32 %v1459, 0.0625
  %v1484 = vmul.f32 %v1462, 0.0625
  %v1485 = vmul.f32 %v1467, 0.0625
  %v1486 = vmul.f32 %v1470, 0.0625
  %v1487 = vmul.f32 %v1475, 0.0625
  %v1488 = vmul.f32 %v1478, 0.0625
  %v1489 = vlaneseq
  %v1490 = vshrl.u32 %v1489, 7
  %v1491 = vadd.s32 %v1490, 8
  %v1492 = vadd.s32 %v1490, 16
  %v1493 = vadd.s32 %v1490, 24
  %v1494 = vadd.s32 %v1490, 32
  %v1495 = vadd.s32 %v1490, 40
  %v1496 = vadd.s32 %v1490, 48
  %v1497 = vadd.s32 %v1490, 56
  %v1498 = vlaneseq
  %v1499 = vand.u32 %v1498, 127
  %vm1500 = vcmp.lt.s32.totalorder %v1490, 0
  %v1501 = vsub.s32 0, %v1490
  %v1502 = vsel %vm1500, %v1501, %v1490
  %v1503 = vshrl.u32 %v1502, 3
  %v1504 = vand.u32 %v1502, 7
  %v1505 = vsub.s32 0, %v1504
  %v1506 = vsel %vm1500, %v1505, %v1504
  %vm1507 = vcmp.lt.s32.totalorder %v1491, 0
  %v1508 = vsub.s32 0, %v1491
  %v1509 = vsel %vm1507, %v1508, %v1491
  %v1510 = vshrl.u32 %v1509, 3
  %v1511 = vand.u32 %v1509, 7
  %v1512 = vsub.s32 0, %v1511
  %v1513 = vsel %vm1507, %v1512, %v1511
  %vm1514 = vcmp.lt.s32.totalorder %v1492, 0
  %v1515 = vsub.s32 0, %v1492
  %v1516 = vsel %vm1514, %v1515, %v1492
  %v1517 = vshrl.u32 %v1516, 3
  %v1518 = vand.u32 %v1516, 7
  %v1519 = vsub.s32 0, %v1518
  %v1520 = vsel %vm1514, %v1519, %v1518
  %vm1521 = vcmp.lt.s32.totalorder %v1493, 0
  %v1522 = vsub.s32 0, %v1493
  %v1523 = vsel %vm1521, %v1522, %v1493
  %v1524 = vshrl.u32 %v1523, 3
  %v1525 = vand.u32 %v1523, 7
  %v1526 = vsub.s32 0, %v1525
  %v1527 = vsel %vm1521, %v1526, %v1525
  %vm1528 = vcmp.lt.s32.totalorder %v1494, 0
  %v1529 = vsub.s32 0, %v1494
  %v1530 = vsel %vm1528, %v1529, %v1494
  %v1531 = vshrl.u32 %v1530, 3
  %v1532 = vand.u32 %v1530, 7
  %v1533 = vsub.s32 0, %v1532
  %v1534 = vsel %vm1528, %v1533, %v1532
  %vm1535 = vcmp.lt.s32.totalorder %v1495, 0
  %v1536 = vsub.s32 0, %v1495
  %v1537 = vsel %vm1535, %v1536, %v1495
  %v1538 = vshrl.u32 %v1537, 3
  %v1539 = vand.u32 %v1537, 7
  %v1540 = vsub.s32 0, %v1539
  %v1541 = vsel %vm1535, %v1540, %v1539
  %vm1542 = vcmp.lt.s32.totalorder %v1496, 0
  %v1543 = vsub.s32 0, %v1496
  %v1544 = vsel %vm1542, %v1543, %v1496
  %v1545 = vshrl.u32 %v1544, 3
  %v1546 = vand.u32 %v1544, 7
  %v1547 = vsub.s32 0, %v1546
  %v1548 = vsel %vm1542, %v1547, %v1546
  %vm1549 = vcmp.lt.s32.totalorder %v1497, 0
  %v1550 = vsub.s32 0, %v1497
  %v1551 = vsel %vm1549, %v1550, %v1497
  %v1552 = vshrl.u32 %v1551, 3
  %v1553 = vand.u32 %v1551, 7
  %v1554 = vsub.s32 0, %v1553
  %v1555 = vsel %vm1549, %v1554, %v1553
  %vm1556 = vcmp.ne.s32.totalorder %v1506, 0
  %vm1557 = vcmp.ne.s32.totalorder %v1513, 0
  %vm1558 = vcmp.ne.s32.totalorder %v1520, 0
  %vm1559 = vcmp.ne.s32.totalorder %v1527, 0
  %vm1560 = vcmp.ne.s32.totalorder %v1534, 0
  %vm1561 = vcmp.ne.s32.totalorder %v1541, 0
  %vm1562 = vcmp.ne.s32.totalorder %v1548, 0
  %vm1563 = vcmp.ne.s32.totalorder %v1555, 0
  %vm1564 = vcmp.lt.s32.totalorder %v1506, 0
  %vm1565 = vcmp.lt.s32.totalorder %v1513, 0
  %vm1566 = vcmp.lt.s32.totalorder %v1520, 0
  %vm1567 = vcmp.lt.s32.totalorder %v1527, 0
  %vm1568 = vcmp.lt.s32.totalorder %v1534, 0
  %vm1569 = vcmp.lt.s32.totalorder %v1541, 0
  %vm1570 = vcmp.lt.s32.totalorder %v1548, 0
  %vm1571 = vcmp.lt.s32.totalorder %v1555, 0
  %vm1572 = vmand %vm1564, %vm1556
  %vm1573 = vmand %vm1565, %vm1557
  %vm1574 = vmand %vm1566, %vm1558
  %vm1575 = vmand %vm1567, %vm1559
  %vm1576 = vmand %vm1568, %vm1560
  %vm1577 = vmand %vm1569, %vm1561
  %vm1578 = vmand %vm1570, %vm1562
  %vm1579 = vmand %vm1571, %vm1563
  %v1580 = vadd.s32 %v1506, 8
  %v1581 = vadd.s32 %v1513, 8
  %v1582 = vadd.s32 %v1520, 8
  %v1583 = vadd.s32 %v1527, 8
  %v1584 = vadd.s32 %v1534, 8
  %v1585 = vadd.s32 %v1541, 8
  %v1586 = vadd.s32 %v1548, 8
  %v1587 = vadd.s32 %v1555, 8
  %v1588 = vsel %vm1572, %v1580, %v1506
  %v1589 = vsel %vm1573, %v1581, %v1513
  %v1590 = vsel %vm1574, %v1582, %v1520
  %v1591 = vsel %vm1575, %v1583, %v1527
  %v1592 = vsel %vm1576, %v1584, %v1534
  %v1593 = vsel %vm1577, %v1585, %v1541
  %v1594 = vsel %vm1578, %v1586, %v1548
  %v1595 = vsel %vm1579, %v1587, %v1555
  %vm1596 = vcmp.lt.s32.totalorder %v1499, 0
  %v1597 = vsub.s32 0, %v1499
  %v1598 = vsel %vm1596, %v1597, %v1499
  %v1599 = vshrl.u32 %v1598, 3
  %v1600 = vand.u32 %v1598, 7
  %v1601 = vsub.s32 0, %v1600
  %v1602 = vsel %vm1596, %v1601, %v1600
  %vm1603 = vcmp.ne.s32.totalorder %v1602, 0
  %vm1604 = vcmp.lt.s32.totalorder %v1602, 0
  %vm1605 = vmand %vm1604, %vm1603
  %v1606 = vadd.s32 %v1602, 8
  %v1607 = vsel %vm1605, %v1606, %v1602
  %vm1608 = vcmp.eq.s32.totalorder %v1588, %v1607
  %vm1609 = vcmp.eq.s32.totalorder %v1589, %v1607
  %vm1610 = vcmp.eq.s32.totalorder %v1590, %v1607
  %vm1611 = vcmp.eq.s32.totalorder %v1591, %v1607
  %vm1612 = vcmp.eq.s32.totalorder %v1592, %v1607
  %vm1613 = vcmp.eq.s32.totalorder %v1593, %v1607
  %vm1614 = vcmp.eq.s32.totalorder %v1594, %v1607
  %vm1615 = vcmp.eq.s32.totalorder %v1595, %v1607
  %v1616 = vsel %vm1608, %v1481, -1e+30
  %v1617 = vsel %vm1609, %v1482, -1e+30
  %v1618 = vsel %vm1610, %v1483, -1e+30
  %v1619 = vsel %vm1611, %v1484, -1e+30
  %v1620 = vsel %vm1612, %v1485, -1e+30
  %v1621 = vsel %vm1613, %v1486, -1e+30
  %v1622 = vsel %vm1614, %v1487, -1e+30
  %v1623 = vsel %vm1615, %v1488, -1e+30
  %vm1624 = vcmask 523264
  %v1625 = vsel %vm1624, %v1616, -inf
  %v1626 = vsel %vm1624, %v1617, -inf
  %v1627 = vsel %vm1624, %v1618, -inf
  %v1628 = vsel %vm1624, %v1619, -inf
  %v1629 = vsel %vm1624, %v1620, -inf
  %v1630 = vmax.f32 %v1625, %v1629
  %v1631 = vsel %vm1624, %v1621, -inf
  %v1632 = vmax.f32 %v1626, %v1631
  %v1633 = vsel %vm1624, %v1622, -inf
  %v1634 = vmax.f32 %v1627, %v1633
  %v1635 = vsel %vm1624, %v1623, -inf
  %v1636 = vmax.f32 %v1628, %v1635
  %v1637 = vmax.f32 %v1630, %v1632
  %v1638 = vmax.f32 %v1634, %v1636
  %v1639 = vmax.f32 %v1637, %v1638
  %v1640 = vrot.slane %v1639, 4
  %v1641 = vmax.f32 %v1639, %v1640
  %v1642 = vrot.slane %v1641, 2
  %v1643 = vmax.f32 %v1641, %v1642
  %v1644 = vrot.slane %v1643, 1
  %v1645 = vmax.f32 %v1643, %v1644
  %v1646 = vsub.f32 %v1616, %v1645
  %v1647 = vsub.f32 %v1617, %v1645
  %v1648 = vsub.f32 %v1618, %v1645
  %v1649 = vsub.f32 %v1619, %v1645
  %v1650 = vsub.f32 %v1620, %v1645
  %v1651 = vsub.f32 %v1621, %v1645
  %v1652 = vsub.f32 %v1622, %v1645
  %v1653 = vsub.f32 %v1623, %v1645
  %v1654 = vmul.f32 %v1646, 1.442695
  %v1655 = vpow.pop %v1654
  %v1656 = vmul.f32 %v1647, 1.442695
  %v1657 = vpow.pop %v1656
  %v1658 = vmul.f32 %v1648, 1.442695
  %v1659 = vpow.pop %v1658
  %v1660 = vmul.f32 %v1649, 1.442695
  %v1661 = vpow.pop %v1660
  %v1662 = vmul.f32 %v1650, 1.442695
  %v1663 = vpow.pop %v1662
  %v1664 = vmul.f32 %v1651, 1.442695
  %v1665 = vpow.pop %v1664
  %v1666 = vmul.f32 %v1652, 1.442695
  %v1667 = vpow.pop %v1666
  %v1668 = vmul.f32 %v1653, 1.442695
  %v1669 = vpow.pop %v1668
  %v1670 = vsel %vm1624, %v1655, 0.0
  %v1671 = vsel %vm1624, %v1657, 0.0
  %v1672 = vadd.f32 %v1670, %v1671
  %v1673 = vsel %vm1624, %v1659, 0.0
  %v1674 = vadd.f32 %v1672, %v1673
  %v1675 = vsel %vm1624, %v1661, 0.0
  %v1676 = vadd.f32 %v1674, %v1675
  %v1677 = vsel %vm1624, %v1663, 0.0
  %v1678 = vadd.f32 %v1676, %v1677
  %v1679 = vsel %vm1624, %v1665, 0.0
  %v1680 = vadd.f32 %v1678, %v1679
  %v1681 = vsel %vm1624, %v1667, 0.0
  %v1682 = vadd.f32 %v1680, %v1681
  %v1683 = vsel %vm1624, %v1669, 0.0
  %v1684 = vadd.f32 %v1682, %v1683
  %v1685 = vrot.slane %v1684, 4
  %v1686 = vadd.f32 %v1684, %v1685
  %v1687 = vrot.slane %v1686, 2
  %v1688 = vadd.f32 %v1686, %v1687
  %v1689 = vrot.slane %v1688, 1
  %v1690 = vadd.f32 %v1688, %v1689
  %v1691 = vrcp.pop %v1690
  %v1692 = vmul.f32 %v1669, %v1691
  %v1693 = vpack.c.bf16 %v1692, %v1692
  %v1694 = vpack.c.bf16 %v1366, %v1362
  %v1695 = vpack.c.bf16 %v1368, %v1364
  %v1696 = vpack.c.bf16 %v1376, %v1372
  %v1697 = vpack.c.bf16 %v1378, %v1374
  %v1698 = vpack.c.bf16 %v1386, %v1382
  %v1699 = vpack.c.bf16 %v1388, %v1384
  %v1700 = vpack.c.bf16 %v1396, %v1392
  %v1701 = vpack.c.bf16 %v1398, %v1394
  %v1703 = vsel %vm1624, %v1693, 0
  %1705 = vmatprep.subr.bf16.mxu0 0
  %1706 = vmatpush1.bf16.msra.mxu0 0
  %1707 = vmatprep.subr.bf16.mxu0 0
  %1708 = vmatpush1.bf16.msra.mxu0 0
  %1709 = vmatprep.subr.bf16.mxu0 0
  %1710 = vmatpush1.bf16.msra.mxu0 0
  %1711 = vmatprep.subr.bf16.mxu0 0
  %1712 = vmatpush1.bf16.msra.mxu0 0
  %1713 = vmatprep.subr.bf16.mxu0 %v1701
  %1714 = vmatpush1.bf16.msra.mxu0 %v1700
  %1715 = vmatprep.subr.bf16.mxu0 %v1699
  %1716 = vmatpush1.bf16.msra.mxu0 %v1698
  %1717 = vmatprep.subr.bf16.mxu0 %v1697
  %1718 = vmatpush1.bf16.msra.mxu0 %v1696
  %1719 = vmatprep.subr.bf16.mxu0 %v1695
  %1720 = vmatpush1.bf16.msra.mxu0 %v1694
  %1721 = vmatprep.subr.bf16.mxu0 0
  %1722 = vmatpush2.bf16.msra.mxu0 0
  %1723 = vmatprep.subr.bf16.mxu0 0
  %1724 = vmatpush2.bf16.msra.mxu0 0
  %1725 = vmatprep.subr.bf16.mxu0 0
  %1726 = vmatpush2.bf16.msra.mxu0 0
  %1727 = vmatprep.subr.bf16.mxu0 0
  %1728 = vmatpush2.bf16.msra.mxu0 0
  %1729 = vmatprep.subr.bf16.mxu0 0
  %1730 = vmatpush2.bf16.msra.mxu0 0
  %1731 = vmatprep.subr.bf16.mxu0 0
  %1732 = vmatpush2.bf16.msra.mxu0 0
  %1733 = vmatprep.subr.bf16.mxu0 0
  %1734 = vmatpush2.bf16.msra.mxu0 0
  %1735 = vmatprep.subr.bf16.mxu0 0
  %1736 = vmatpush2.bf16.msra.mxu0 0
  %1737 = vmatprep.mubr.bf16.mxu0 0
  %1738 = vmatmul.mubr.bf16.gmra.mxu0 %v1703
  %v1739 = vpop.f32.mrf.mxu0
  %v1740 = vadd.f32 0.0, %v1739
  %v1741 = vpop.f32.mrf.mxu0
  %v1742 = vadd.f32 0.0, %v1741
  %v1743 = vpop.f32.mrf.mxu0
  %v1744 = vpop.f32.mrf.mxu0
  %1745 = vdwg.mxu0
  %v1746 = vpack.c.bf16 %v1740, %v1740
  %v1747 = vpack.c.bf16 %v1742, %v1742
  %v1748 = vld [vmem:[%s11] sm:$0xf]
  %v1749 = vld [vmem:[%s11 + $0x4] sm:$0xf]
  %v1750 = vld [vmem:[%s11 + $0x8] sm:$0xf]
  %v1751 = vld [vmem:[%s11 + $0xc] sm:$0xf]
  %v1752 = vld [vmem:[%s11 + $0x10] sm:$0xf]
  %v1753 = vld [vmem:[%s11 + $0x14] sm:$0xf]
  %v1754 = vld [vmem:[%s11 + $0x18] sm:$0xf]
  %v1755 = vld [vmem:[%s11 + $0x1c] sm:$0xf]
  %v1756 = vld [vmem:[%s11 + $0x20] sm:$0xf]
  %v1757 = vld [vmem:[%s11 + $0x24] sm:$0xf]
  %v1758 = vld [vmem:[%s11 + $0x28] sm:$0xf]
  %v1759 = vld [vmem:[%s11 + $0x2c] sm:$0xf]
  %v1760 = vld [vmem:[%s11 + $0x30] sm:$0xf]
  %v1761 = vld [vmem:[%s11 + $0x34] sm:$0xf]
  %v1762 = vld [vmem:[%s11 + $0x38] sm:$0xf]
  %v1763 = vld [vmem:[%s11 + $0x3c] sm:$0xf]
  %v1764 = vld [vmem:[%s11 + $0x40] sm:$0xf]
  %v1765 = vld [vmem:[%s11 + $0x44] sm:$0xf]
  %v1766 = vld [vmem:[%s11 + $0x48] sm:$0xf]
  %v1767 = vld [vmem:[%s11 + $0x4c] sm:$0xf]
  %v1768 = vld [vmem:[%s11 + $0x50] sm:$0xf]
  %v1769 = vld [vmem:[%s11 + $0x54] sm:$0xf]
  %v1770 = vld [vmem:[%s11 + $0x58] sm:$0xf]
  %v1771 = vld [vmem:[%s11 + $0x5c] sm:$0xf]
  %v1772 = vld [vmem:[%s11 + $0x60] sm:$0xf]
  %v1773 = vld [vmem:[%s11 + $0x64] sm:$0xf]
  %v1774 = vld [vmem:[%s11 + $0x68] sm:$0xf]
  %v1775 = vld [vmem:[%s11 + $0x6c] sm:$0xf]
  %v1776 = vld [vmem:[%s11 + $0x70] sm:$0xf]
  %v1777 = vld [vmem:[%s11 + $0x74] sm:$0xf]
  %v1778 = vld [vmem:[%s11 + $0x78] sm:$0xf]
  %v1779 = vld [vmem:[%s11 + $0x7c] sm:$0xf]
  %v1780 = vld [vmem:[%s12] sm:$0x1]
  %v1782 = vlaneseq
  %v1783 = vshrl.u32 %v1782, 7
  %v1784 = vsub.s32 0, %v1783
  %v1785 = vrot.slane %v1780, %v1784
  %v1819 = vunpack.c.l.b16 %v1748
  %v1820 = vunpack.c.l.b16 %v1749
  %v1821 = vunpack.c.l.b16 %v1750
  %v1822 = vunpack.c.l.b16 %v1751
  %v1823 = vunpack.c.l.b16 %v1752
  %v1824 = vunpack.c.l.b16 %v1753
  %v1825 = vunpack.c.l.b16 %v1754
  %v1826 = vunpack.c.l.b16 %v1755
  %v1827 = vunpack.c.l.b16 %v1756
  %v1828 = vunpack.c.l.b16 %v1757
  %v1829 = vunpack.c.l.b16 %v1758
  %v1830 = vunpack.c.l.b16 %v1759
  %v1831 = vunpack.c.l.b16 %v1760
  %v1832 = vunpack.c.l.b16 %v1761
  %v1833 = vunpack.c.l.b16 %v1762
  %v1834 = vunpack.c.l.b16 %v1763
  %v1835 = vunpack.c.l.b16 %v1764
  %v1836 = vunpack.c.l.b16 %v1765
  %v1837 = vunpack.c.l.b16 %v1766
  %v1838 = vunpack.c.l.b16 %v1767
  %v1839 = vunpack.c.l.b16 %v1768
  %v1840 = vunpack.c.l.b16 %v1769
  %v1841 = vunpack.c.l.b16 %v1770
  %v1842 = vunpack.c.l.b16 %v1771
  %v1843 = vunpack.c.l.b16 %v1772
  %v1844 = vunpack.c.l.b16 %v1773
  %v1845 = vunpack.c.l.b16 %v1774
  %v1846 = vunpack.c.l.b16 %v1775
  %v1847 = vunpack.c.l.b16 %v1776
  %v1848 = vunpack.c.l.b16 %v1777
  %v1849 = vunpack.c.l.b16 %v1778
  %v1850 = vunpack.c.l.b16 %v1779
  %v1851 = vpack.c.b16 %v1820, %v1819
  %v1852 = vpack.c.b16 %v1822, %v1821
  %v1853 = vpack.c.b16 %v1824, %v1823
  %v1854 = vpack.c.b16 %v1826, %v1825
  %v1855 = vpack.c.b16 %v1828, %v1827
  %v1856 = vpack.c.b16 %v1830, %v1829
  %v1857 = vpack.c.b16 %v1832, %v1831
  %v1858 = vpack.c.b16 %v1834, %v1833
  %v1859 = vpack.c.b16 %v1836, %v1835
  %v1860 = vpack.c.b16 %v1838, %v1837
  %v1861 = vpack.c.b16 %v1840, %v1839
  %v1862 = vpack.c.b16 %v1842, %v1841
  %v1863 = vpack.c.b16 %v1844, %v1843
  %v1864 = vpack.c.b16 %v1846, %v1845
  %v1865 = vpack.c.b16 %v1848, %v1847
  %v1866 = vpack.c.b16 %v1850, %v1849
  %1883 = vmatprep.subr.bf16.mxu0 0
  %1884 = vmatpush1.bf16.msra.mxu0 %v1858
  %1885 = vmatprep.subr.bf16.mxu0 0
  %1886 = vmatpush1.bf16.msra.mxu0 %v1857
  %1887 = vmatprep.subr.bf16.mxu0 0
  %1888 = vmatpush1.bf16.msra.mxu0 %v1856
  %1889 = vmatprep.subr.bf16.mxu0 0
  %1890 = vmatpush1.bf16.msra.mxu0 %v1855
  %1891 = vmatprep.subr.bf16.mxu0 0
  %1892 = vmatpush1.bf16.msra.mxu0 %v1854
  %1893 = vmatprep.subr.bf16.mxu0 0
  %1894 = vmatpush1.bf16.msra.mxu0 %v1853
  %1895 = vmatprep.subr.bf16.mxu0 0
  %1896 = vmatpush1.bf16.msra.mxu0 %v1852
  %1897 = vmatprep.subr.bf16.mxu0 0
  %1898 = vmatpush1.bf16.msra.mxu0 %v1851
  %1899 = vmatprep.subr.bf16.mxu0 0
  %1900 = vmatpush2.bf16.msra.mxu0 %v1866
  %1901 = vmatprep.subr.bf16.mxu0 0
  %1902 = vmatpush2.bf16.msra.mxu0 %v1865
  %1903 = vmatprep.subr.bf16.mxu0 0
  %1904 = vmatpush2.bf16.msra.mxu0 %v1864
  %1905 = vmatprep.subr.bf16.mxu0 0
  %1906 = vmatpush2.bf16.msra.mxu0 %v1863
  %1907 = vmatprep.subr.bf16.mxu0 0
  %1908 = vmatpush2.bf16.msra.mxu0 %v1862
  %1909 = vmatprep.subr.bf16.mxu0 0
  %1910 = vmatpush2.bf16.msra.mxu0 %v1861
  %1911 = vmatprep.subr.bf16.mxu0 0
  %1912 = vmatpush2.bf16.msra.mxu0 %v1860
  %1913 = vmatprep.subr.bf16.mxu0 0
  %1914 = vmatpush2.bf16.msra.mxu0 %v1859
  %1915 = vmatprep.mubr.bf16.mxu0 %v1747
  %1916 = vmatmul.mubr.bf16.gmra.mxu0 %v1746
  %v1917 = vpop.f32.mrf.mxu0
  %v1918 = vadd.f32 %v1785, %v1917
  %v1919 = vpop.f32.mrf.mxu0
  %v1920 = vpop.f32.mrf.mxu0
  %v1921 = vpop.f32.mrf.mxu0
  %1922 = vdwg.mxu0
  %1923 = vadd.xlane.f32.xlu0 %v1918
  %v1924 = vpop.xlane.xlu0 %1923
  %v1925 = vrcp.pop 128.0
  %v1926 = vmul.f32 %v1924, %v1925
  %v1927 = vsub.f32 %v1918, %v1926
  %v1928 = vmul.f32 %v1927, %v1927
  %1929 = vadd.xlane.f32.xlu0 %v1928
  %v1930 = vpop.xlane.xlu0 %1929
  %v1931 = vmul.f32 %v1930, %v1925
  %v1932 = vadd.f32 %v1931, 1e-05
  %v1933 = vrsqrt.pop %v1932
  %v1934 = vmul.f32 %v1927, %v1933
  %v1935 = vld [vmem:[%s13] sm:$0x1]
  %v1937 = vlaneseq
  %v1938 = vshrl.u32 %v1937, 7
  %v1939 = vsub.s32 0, %v1938
  %v1940 = vrot.slane %v1935, %v1939
  %v1942 = vmul.f32 %v1934, %v1940
  %v1943 = vld [vmem:[%s14] sm:$0x1]
  %v1945 = vlaneseq
  %v1946 = vshrl.u32 %v1945, 7
  %v1947 = vsub.s32 0, %v1946
  %v1948 = vrot.slane %v1943, %v1947
  %v1950 = vadd.f32 %v1942, %v1948
  %v1951 = vmax.f32 %v1950, 0.0
  %v1952 = vpack.c.bf16 %v1951, %v1951
  %v1953 = vld [vmem:[%s15] sm:$0xf]
  %v1954 = vld [vmem:[%s15 + $0x4] sm:$0xf]
  %v1955 = vld [vmem:[%s15 + $0x8] sm:$0xf]
  %v1956 = vld [vmem:[%s15 + $0xc] sm:$0xf]
  %v1957 = vld [vmem:[%s15 + $0x10] sm:$0xf]
  %v1958 = vld [vmem:[%s15 + $0x14] sm:$0xf]
  %v1959 = vld [vmem:[%s15 + $0x18] sm:$0xf]
  %v1960 = vld [vmem:[%s15 + $0x1c] sm:$0xf]
  %v1961 = vld [vmem:[%s15 + $0x20] sm:$0xf]
  %v1962 = vld [vmem:[%s15 + $0x24] sm:$0xf]
  %v1963 = vld [vmem:[%s15 + $0x28] sm:$0xf]
  %v1964 = vld [vmem:[%s15 + $0x2c] sm:$0xf]
  %v1965 = vld [vmem:[%s15 + $0x30] sm:$0xf]
  %v1966 = vld [vmem:[%s15 + $0x34] sm:$0xf]
  %v1967 = vld [vmem:[%s15 + $0x38] sm:$0xf]
  %v1968 = vld [vmem:[%s15 + $0x3c] sm:$0xf]
  %v1969 = vld [vmem:[%s16] sm:$0x1]
  %v1971 = vlaneseq
  %v1972 = vshrl.u32 %v1971, 7
  %v1973 = vsub.s32 0, %v1972
  %v1974 = vrot.slane %v1969, %v1973
  %v1992 = vunpack.c.l.b16 %v1953
  %v1993 = vunpack.c.l.b16 %v1954
  %v1994 = vunpack.c.l.b16 %v1955
  %v1995 = vunpack.c.l.b16 %v1956
  %v1996 = vunpack.c.l.b16 %v1957
  %v1997 = vunpack.c.l.b16 %v1958
  %v1998 = vunpack.c.l.b16 %v1959
  %v1999 = vunpack.c.l.b16 %v1960
  %v2000 = vunpack.c.l.b16 %v1961
  %v2001 = vunpack.c.l.b16 %v1962
  %v2002 = vunpack.c.l.b16 %v1963
  %v2003 = vunpack.c.l.b16 %v1964
  %v2004 = vunpack.c.l.b16 %v1965
  %v2005 = vunpack.c.l.b16 %v1966
  %v2006 = vunpack.c.l.b16 %v1967
  %v2007 = vunpack.c.l.b16 %v1968
  %v2008 = vpack.c.b16 %v1993, %v1992
  %v2009 = vpack.c.b16 %v1995, %v1994
  %v2010 = vpack.c.b16 %v1997, %v1996
  %v2011 = vpack.c.b16 %v1999, %v1998
  %v2012 = vpack.c.b16 %v2001, %v2000
  %v2013 = vpack.c.b16 %v2003, %v2002
  %v2014 = vpack.c.b16 %v2005, %v2004
  %v2015 = vpack.c.b16 %v2007, %v2006
  %2024 = vmatprep.subr.bf16.mxu0 0
  %2025 = vmatpush1.bf16.msra.mxu0 %v2015
  %2026 = vmatprep.subr.bf16.mxu0 0
  %2027 = vmatpush1.bf16.msra.mxu0 %v2014
  %2028 = vmatprep.subr.bf16.mxu0 0
  %2029 = vmatpush1.bf16.msra.mxu0 %v2013
  %2030 = vmatprep.subr.bf16.mxu0 0
  %2031 = vmatpush1.bf16.msra.mxu0 %v2012
  %2032 = vmatprep.subr.bf16.mxu0 0
  %2033 = vmatpush1.bf16.msra.mxu0 %v2011
  %2034 = vmatprep.subr.bf16.mxu0 0
  %2035 = vmatpush1.bf16.msra.mxu0 %v2010
  %2036 = vmatprep.subr.bf16.mxu0 0
  %2037 = vmatpush1.bf16.msra.mxu0 %v2009
  %2038 = vmatprep.subr.bf16.mxu0 0
  %2039 = vmatpush1.bf16.msra.mxu0 %v2008
  %2040 = vmatprep.subr.bf16.mxu0 0
  %2041 = vmatpush2.bf16.msra.mxu0 0
  %2042 = vmatprep.subr.bf16.mxu0 0
  %2043 = vmatpush2.bf16.msra.mxu0 0
  %2044 = vmatprep.subr.bf16.mxu0 0
  %2045 = vmatpush2.bf16.msra.mxu0 0
  %2046 = vmatprep.subr.bf16.mxu0 0
  %2047 = vmatpush2.bf16.msra.mxu0 0
  %2048 = vmatprep.subr.bf16.mxu0 0
  %2049 = vmatpush2.bf16.msra.mxu0 0
  %2050 = vmatprep.subr.bf16.mxu0 0
  %2051 = vmatpush2.bf16.msra.mxu0 0
  %2052 = vmatprep.subr.bf16.mxu0 0
  %2053 = vmatpush2.bf16.msra.mxu0 0
  %2054 = vmatprep.subr.bf16.mxu0 0
  %2055 = vmatpush2.bf16.msra.mxu0 0
  %2056 = vmatprep.mubr.bf16.mxu0 0
  %2057 = vmatmul.mubr.bf16.gmra.mxu0 %v1952
  %v2058 = vpop.f32.mrf.mxu0
  %v2059 = vadd.f32 %v1974, %v2058
  %v2060 = vpop.f32.mrf.mxu0
  %v2061 = vpop.f32.mrf.mxu0
  %v2062 = vpop.f32.mrf.mxu0
  %2063 = vdwg.mxu0
  %v2064 = vmax.f32 %v2059, 0.0
  %v2065 = vpack.c.bf16 %v2064, %v2064
  %v2066 = vld [vmem:[%s17] sm:$0xf]
  %v2067 = vld [vmem:[%s17 + $0x4] sm:$0xf]
  %v2068 = vld [vmem:[%s17 + $0x8] sm:$0xf]
  %v2069 = vld [vmem:[%s17 + $0xc] sm:$0xf]
  %v2070 = vld [vmem:[%s17 + $0x10] sm:$0xf]
  %v2071 = vld [vmem:[%s17 + $0x14] sm:$0xf]
  %v2072 = vld [vmem:[%s17 + $0x18] sm:$0xf]
  %v2073 = vld [vmem:[%s17 + $0x1c] sm:$0xf]
  %v2074 = vld [vmem:[%s18] sm:$0x1]
  %v2076 = vlaneseq
  %v2077 = vshrl.u32 %v2076, 7
  %v2078 = vsub.s32 0, %v2077
  %v2079 = vrot.slane %v2074, %v2078
  %v2089 = vunpack.c.l.b16 %v2066
  %v2090 = vunpack.c.l.b16 %v2067
  %v2091 = vunpack.c.l.b16 %v2068
  %v2092 = vunpack.c.l.b16 %v2069
  %v2093 = vunpack.c.l.b16 %v2070
  %v2094 = vunpack.c.l.b16 %v2071
  %v2095 = vunpack.c.l.b16 %v2072
  %v2096 = vunpack.c.l.b16 %v2073
  %v2097 = vpack.c.b16 %v2090, %v2089
  %v2098 = vpack.c.b16 %v2092, %v2091
  %v2099 = vpack.c.b16 %v2094, %v2093
  %v2100 = vpack.c.b16 %v2096, %v2095
  %v2106 = vsel %vm1624, %v2065, 0
  %2108 = vmatprep.subr.bf16.mxu0 0
  %2109 = vmatpush1.bf16.msra.mxu0 0
  %2110 = vmatprep.subr.bf16.mxu0 0
  %2111 = vmatpush1.bf16.msra.mxu0 0
  %2112 = vmatprep.subr.bf16.mxu0 0
  %2113 = vmatpush1.bf16.msra.mxu0 0
  %2114 = vmatprep.subr.bf16.mxu0 0
  %2115 = vmatpush1.bf16.msra.mxu0 0
  %2116 = vmatprep.subr.bf16.mxu0 0
  %2117 = vmatpush1.bf16.msra.mxu0 %v2100
  %2118 = vmatprep.subr.bf16.mxu0 0
  %2119 = vmatpush1.bf16.msra.mxu0 %v2099
  %2120 = vmatprep.subr.bf16.mxu0 0
  %2121 = vmatpush1.bf16.msra.mxu0 %v2098
  %2122 = vmatprep.subr.bf16.mxu0 0
  %2123 = vmatpush1.bf16.msra.mxu0 %v2097
  %2124 = vmatprep.subr.bf16.mxu0 0
  %2125 = vmatpush2.bf16.msra.mxu0 0
  %2126 = vmatprep.subr.bf16.mxu0 0
  %2127 = vmatpush2.bf16.msra.mxu0 0
  %2128 = vmatprep.subr.bf16.mxu0 0
  %2129 = vmatpush2.bf16.msra.mxu0 0
  %2130 = vmatprep.subr.bf16.mxu0 0
  %2131 = vmatpush2.bf16.msra.mxu0 0
  %2132 = vmatprep.subr.bf16.mxu0 0
  %2133 = vmatpush2.bf16.msra.mxu0 0
  %2134 = vmatprep.subr.bf16.mxu0 0
  %2135 = vmatpush2.bf16.msra.mxu0 0
  %2136 = vmatprep.subr.bf16.mxu0 0
  %2137 = vmatpush2.bf16.msra.mxu0 0
  %2138 = vmatprep.subr.bf16.mxu0 0
  %2139 = vmatpush2.bf16.msra.mxu0 0
  %2140 = vmatprep.mubr.bf16.mxu0 0
  %2141 = vmatmul.mubr.bf16.gmra.mxu0 %v2106
  %v2142 = vpop.f32.mrf.mxu0
  %v2143 = vadd.f32 %v2079, %v2142
  %v2144 = vpop.f32.mrf.mxu0
  %v2145 = vpop.f32.mrf.mxu0
  %v2146 = vpop.f32.mrf.mxu0
  %2147 = vdwg.mxu0
  %vm2148 = vcmask 130048
  %2149 = vst.msk [vmem:[%s19] sm:$0xff] %vm2148, %v2143
  // Predicated region
  $region78: #{improved_lstm_forward.5} parent=0 // pred_check
    _
  $region79: #{improved_lstm_forward.5} parent=0 // pred_check_branch
    %2151 = sbr.rel (0) target = $region81
  $region80: #{improved_lstm_forward.5} parent=0 // pred_region
    _
  $region81: #{improved_lstm_forward.5} parent=0 // pred_fallthru
    _
  // Predicated region
  $region82: #{improved_lstm_forward.5} parent=0 // pred_check
    _
  $region83: #{improved_lstm_forward.5} parent=0 // pred_check_branch
    %2153 = sbr.rel (0) target = $region85
  $region84: #{improved_lstm_forward.5} parent=0 // pred_region
    _
  $region85: #{improved_lstm_forward.5} parent=0 // pred_fallthru
    _

// kernel: improved_lstm_forward.3
$region0: #{improved_lstm_forward.3}
  #allocation0 [shape = 'u32[]', space=smem, size = 0x4, offset = 0x4, fixed_abs, tag = 'smem constant byte address 0x4 - core index']
  #allocation1 [shape = 'u32[144,128]{1,0:T(1,128)}', space=vmem, size = 0x12000, scoped, tag = 'internal scratch']
  #allocation2 [shape = 'f32[64,1024]{1,0:T(8,128)}', space=vmem, size = 0x40000, scoped, tag = 'scratch operand']
  %s0 = inlined_call_operand.vmem [shape: f32[64,8], index: 0, kind: input, shape index: {}]
  %s1 = inlined_call_operand.vmem [shape: bf16[8,1024], index: 1, kind: input, shape index: {}]
  %s2 = inlined_call_operand.vmem [shape: bf16[256,1024], index: 2, kind: input, shape index: {}]
  %s3 = inlined_call_operand.vmem [shape: f32[1,1024], index: 3, kind: input, shape index: {}]
  %s4 = inlined_call_operand.hbm [shape: bf16[256,1024], index: 4, kind: input, shape index: {}]
  %s5 = inlined_call_operand.hbm [shape: bf16[256,1024], index: 5, kind: input, shape index: {}]
  %s6 = inlined_call_operand.vmem [shape: f32[1,1024], index: 6, kind: input, shape index: {}]
  %s7 = inlined_call_operand.vmem [shape: f32[64,256], index: 7, kind: output, shape index: {}]
  %s8 = sld [smem:[#allocation0]]
  $region46: #{improved_lstm_forward.3} parent=0
    _
  %s10 = ssub.s32 1, %s8
  %s11 = scalar_select 0, %s10, %s8
  $region1: #{improved_lstm_forward.3} parent=0
    #allocation3 [shape = 'u8[524288]{0}', space=vmem, size = 0x80000, scoped, tag = 'input window, operand 4, single buffered']
    #allocation4 [shape = 's32[1]{0}', space=sflag, size = 0x4, scoped, tag = 'scoped memory for improved_lstm_forward.3']
    #allocation5 [shape = 'u8[524288]{0}', space=vmem, size = 0x80000, scoped, tag = 'input window, operand 5, single buffered']
    #allocation6 [shape = 's32[1]{0}', space=sflag, size = 0x4, scoped, tag = 'scoped memory for improved_lstm_forward.3']
    %12 = vsyncpa [#allocation4], 0
    %13 = vsyncpa [#allocation6], 0
    // Predicated region
    $region2: #{improved_lstm_forward.3} parent=1 // pred_check
      _
    $region3: #{improved_lstm_forward.3} parent=1 // pred_check_branch
      %15 = sbr.rel (0) target = $region5
    $region4: #{improved_lstm_forward.3} parent=1 // pred_region
      _
    $region5: #{improved_lstm_forward.3} parent=1 // pred_fallthru
      _
    // Predicated region
    $region6: #{improved_lstm_forward.3} parent=1 // pred_check
      _
    $region7: #{improved_lstm_forward.3} parent=1 // pred_check_branch
      %17 = sbr.rel (0) target = $region9
    $region8: #{improved_lstm_forward.3} parent=1 // pred_region
      _
    $region9: #{improved_lstm_forward.3} parent=1 // pred_fallthru
      _
    // Predicated region
    $region10: #{improved_lstm_forward.3} parent=1 // pred_check
      _
    $region11: #{improved_lstm_forward.3} parent=1 // pred_check_branch
      %19 = sbr.rel (0) target = $region13
    $region12: #{improved_lstm_forward.3} parent=1 // pred_region
      _
    $region13: #{improved_lstm_forward.3} parent=1 // pred_fallthru
      _
    // Predicated region
    $region14: #{improved_lstm_forward.3} parent=1 // pred_check
      _
    $region15: #{improved_lstm_forward.3} parent=1 // pred_check_branch
      %21 = sbr.rel (0) target = $region17
    $region16: #{improved_lstm_forward.3} parent=1 // pred_region
      _
    $region17: #{improved_lstm_forward.3} parent=1 // pred_fallthru
      _
    // Predicated region
    $region18: #{improved_lstm_forward.3} parent=1 // pred_check
      _
    $region19: #{improved_lstm_forward.3} parent=1 // pred_check_branch
      %23 = sbr.rel (0) target = $region21
    $region20: #{improved_lstm_forward.3} parent=1 // pred_region
      %s25 = ssub.s32 16384, 16384
      %26 = vsyncadd [#allocation4], %s25
      %s27 = sshll.u32 [#allocation3], 4
      %s28 = int_to_ptr.vmem [resolvable:$true] %s27
      %33 = dma.hbm_to_vmem [thread:$0]  %s4, 16384, %s28, [#allocation4], 512, 512, 32
    $region21: #{improved_lstm_forward.3} parent=1 // pred_fallthru
      _
    // Predicated region
    $region22: #{improved_lstm_forward.3} parent=1 // pred_check
      _
    $region23: #{improved_lstm_forward.3} parent=1 // pred_check_branch
      %35 = sbr.rel (0) target = $region25
    $region24: #{improved_lstm_forward.3} parent=1 // pred_region
      %s37 = ssub.s32 16384, 16384
      %38 = vsyncadd [#allocation6], %s37
      %s39 = sshll.u32 [#allocation5], 4
      %s40 = int_to_ptr.vmem [resolvable:$true] %s39
      %45 = dma.hbm_to_vmem [thread:$0]  %s5, 16384, %s40, [#allocation6], 512, 512, 32
    $region25: #{improved_lstm_forward.3} parent=1 // pred_fallthru
      _
    // Predicated region
    $region26: #{improved_lstm_forward.3} parent=1 // pred_check
      _
    $region27: #{improved_lstm_forward.3} parent=1 // pred_check_branch
      %47 = sbr.rel (0) target = $region29
    $region28: #{improved_lstm_forward.3} parent=1 // pred_region
      _
    $region29: #{improved_lstm_forward.3} parent=1 // pred_fallthru
      _
    // Predicated region
    $region30: #{improved_lstm_forward.3} parent=1 // pred_check
      _
    $region31: #{improved_lstm_forward.3} parent=1 // pred_check_branch
      %49 = sbr.rel (0) target = $region33
    $region32: #{improved_lstm_forward.3} parent=1 // pred_region
      %50 = dma.done [#allocation4], 16384
    $region33: #{improved_lstm_forward.3} parent=1 // pred_fallthru
      _
    // Predicated region
    $region34: #{improved_lstm_forward.3} parent=1 // pred_check
      _
    $region35: #{improved_lstm_forward.3} parent=1 // pred_check_branch
      %52 = sbr.rel (0) target = $region37
    $region36: #{improved_lstm_forward.3} parent=1 // pred_region
      %53 = dma.done [#allocation6], 16384
    $region37: #{improved_lstm_forward.3} parent=1 // pred_fallthru
      _
    %v55 = vld [vmem:[%s0] sm:$0xff]
    %v56 = vld [vmem:[%s0 + $0x8] sm:$0xff]
    %v57 = vld [vmem:[%s0 + $0x10] sm:$0xff]
    %v58 = vld [vmem:[%s0 + $0x18] sm:$0xff]
    %v59 = vld [vmem:[%s0 + $0x20] sm:$0xff]
    %v60 = vld [vmem:[%s0 + $0x28] sm:$0xff]
    %v61 = vld [vmem:[%s0 + $0x30] sm:$0xff]
    %v62 = vld [vmem:[%s0 + $0x38] sm:$0xff]
    %v63 = vpack.c.bf16 %v56, %v55
    %v64 = vpack.c.bf16 %v58, %v57
    %v65 = vpack.c.bf16 %v60, %v59
    %v66 = vpack.c.bf16 %v62, %v61
    %v67 = vld [vmem:[%s1] sm:$0xff]
    %v68 = vld [vmem:[%s1 + $0x8] sm:$0xff]
    %v69 = vld [vmem:[%s1 + $0x10] sm:$0xff]
    %v70 = vld [vmem:[%s1 + $0x18] sm:$0xff]
    %v71 = vld [vmem:[%s3] sm:$0xff]
    %v73 = vlaneseq
    %v74 = vshrl.u32 %v73, 7
    %v75 = vsub.s32 0, %v74
    %v76 = vrot.slane %v71, %v75
    %v77 = vlaneseq
    %v78 = vshrl.u32 %v77, 7
    %v79 = vsub.s32 1, %v78
    %v80 = vrot.slane %v71, %v79
    %v81 = vlaneseq
    %v82 = vshrl.u32 %v81, 7
    %v83 = vsub.s32 2, %v82
    %v84 = vrot.slane %v71, %v83
    %v85 = vlaneseq
    %v86 = vshrl.u32 %v85, 7
    %v87 = vsub.s32 3, %v86
    %v88 = vrot.slane %v71, %v87
    %v89 = vlaneseq
    %v90 = vshrl.u32 %v89, 7
    %v91 = vsub.s32 4, %v90
    %v92 = vrot.slane %v71, %v91
    %v93 = vlaneseq
    %v94 = vshrl.u32 %v93, 7
    %v95 = vsub.s32 5, %v94
    %v96 = vrot.slane %v71, %v95
    %v97 = vlaneseq
    %v98 = vshrl.u32 %v97, 7
    %v99 = vsub.s32 6, %v98
    %v100 = vrot.slane %v71, %v99
    %v101 = vlaneseq
    %v102 = vshrl.u32 %v101, 7
    %v103 = vsub.s32 7, %v102
    %v104 = vrot.slane %v71, %v103
    %v117 = vunpack.c.l.b16 %v67
    %v118 = vunpack.c.h.b16 %v67
    %v119 = vunpack.c.l.b16 %v68
    %v120 = vunpack.c.h.b16 %v68
    %v121 = vunpack.c.l.b16 %v69
    %v122 = vunpack.c.h.b16 %v69
    %v123 = vunpack.c.l.b16 %v70
    %v124 = vunpack.c.h.b16 %v70
    %v125 = vpack.c.b16 %v117, %v117
    %v126 = vpack.c.b16 %v118, %v118
    %v127 = vpack.c.b16 %v119, %v119
    %v128 = vpack.c.b16 %v120, %v120
    %v129 = vpack.c.b16 %v121, %v121
    %v130 = vpack.c.b16 %v122, %v122
    %v131 = vpack.c.b16 %v123, %v123
    %v132 = vpack.c.b16 %v124, %v124
    %vm133 = vcmask 64512
    %v135 = vsel %vm133, %v63, 0
    %v138 = vsel %vm133, %v64, 0
    %v141 = vsel %vm133, %v65, 0
    %v144 = vsel %vm133, %v66, 0
    %vm146 = vcmask 1043456
    %v148 = vsel %vm146, %v125, 0
    %v151 = vsel %vm146, %v126, 0
    %v154 = vsel %vm146, %v127, 0
    %v157 = vsel %vm146, %v128, 0
    %v160 = vsel %vm146, %v129, 0
    %v163 = vsel %vm146, %v130, 0
    %v166 = vsel %vm146, %v131, 0
    %v169 = vsel %vm146, %v132, 0
    %171 = vmatprep.subr.bf16.mxu0 0
    %172 = vmatpush1.bf16.msra.mxu0 0
    %173 = vmatprep.subr.bf16.mxu0 0
    %174 = vmatpush1.bf16.msra.mxu0 0
    %175 = vmatprep.subr.bf16.mxu0 0
    %176 = vmatpush1.bf16.msra.mxu0 0
    %177 = vmatprep.subr.bf16.mxu0 0
    %178 = vmatpush1.bf16.msra.mxu0 0
    %179 = vmatprep.subr.bf16.mxu0 0
    %180 = vmatpush1.bf16.msra.mxu0 0
    %181 = vmatprep.subr.bf16.mxu0 0
    %182 = vmatpush1.bf16.msra.mxu0 0
    %183 = vmatprep.subr.bf16.mxu0 0
    %184 = vmatpush1.bf16.msra.mxu0 0
    %185 = vmatprep.subr.bf16.mxu0 %v151
    %186 = vmatpush1.bf16.msra.mxu0 %v148
    %187 = vmatprep.subr.bf16.mxu0 0
    %188 = vmatpush2.bf16.msra.mxu0 0
    %189 = vmatprep.subr.bf16.mxu0 0
    %190 = vmatpush2.bf16.msra.mxu0 0
    %191 = vmatprep.subr.bf16.mxu0 0
    %192 = vmatpush2.bf16.msra.mxu0 0
    %193 = vmatprep.subr.bf16.mxu0 0
    %194 = vmatpush2.bf16.msra.mxu0 0
    %195 = vmatprep.subr.bf16.mxu0 0
    %196 = vmatpush2.bf16.msra.mxu0 0
    %197 = vmatprep.subr.bf16.mxu0 0
    %198 = vmatpush2.bf16.msra.mxu0 0
    %199 = vmatprep.subr.bf16.mxu0 0
    %200 = vmatpush2.bf16.msra.mxu0 0
    %201 = vmatprep.subr.bf16.mxu0 0
    %202 = vmatpush2.bf16.msra.mxu0 0
    %203 = vmatprep.mubr.bf16.mxu0 0
    %204 = vmatmul.mubr.bf16.gmra.mxu0 %v135
    %v205 = vpop.f32.mrf.mxu0
    %v206 = vadd.f32 %v76, %v205
    %v207 = vpop.f32.mrf.mxu0
    %v208 = vadd.f32 %v80, %v207
    %v209 = vpop.f32.mrf.mxu0
    %v210 = vadd.f32 %v76, %v209
    %v211 = vpop.f32.mrf.mxu0
    %v212 = vadd.f32 %v80, %v211
    %213 = vmatprep.mubr.bf16.mxu0 0
    %214 = vmatmul.mubr.bf16.gmra.mxu0 %v138
    %v215 = vpop.f32.mrf.mxu0
    %v216 = vadd.f32 %v76, %v215
    %v217 = vpop.f32.mrf.mxu0
    %v218 = vadd.f32 %v80, %v217
    %v219 = vpop.f32.mrf.mxu0
    %v220 = vadd.f32 %v76, %v219
    %v221 = vpop.f32.mrf.mxu0
    %v222 = vadd.f32 %v80, %v221
    %223 = vmatprep.mubr.bf16.mxu0 0
    %224 = vmatmul.mubr.bf16.gmra.mxu0 %v141
    %v225 = vpop.f32.mrf.mxu0
    %v226 = vadd.f32 %v76, %v225
    %v227 = vpop.f32.mrf.mxu0
    %v228 = vadd.f32 %v80, %v227
    %v229 = vpop.f32.mrf.mxu0
    %v230 = vadd.f32 %v76, %v229
    %v231 = vpop.f32.mrf.mxu0
    %v232 = vadd.f32 %v80, %v231
    %233 = vmatprep.mubr.bf16.mxu0 0
    %234 = vmatmul.mubr.bf16.gmra.mxu0 %v144
    %v235 = vpop.f32.mrf.mxu0
    %v236 = vadd.f32 %v76, %v235
    %v237 = vpop.f32.mrf.mxu0
    %v238 = vadd.f32 %v80, %v237
    %v239 = vpop.f32.mrf.mxu0
    %v240 = vadd.f32 %v76, %v239
    %v241 = vpop.f32.mrf.mxu0
    %v242 = vadd.f32 %v80, %v241
    %243 = vdwg.mxu0
    %244 = vmatprep.subr.bf16.mxu0 0
    %245 = vmatpush1.bf16.msra.mxu0 0
    %246 = vmatprep.subr.bf16.mxu0 0
    %247 = vmatpush1.bf16.msra.mxu0 0
    %248 = vmatprep.subr.bf16.mxu0 0
    %249 = vmatpush1.bf16.msra.mxu0 0
    %250 = vmatprep.subr.bf16.mxu0 0
    %251 = vmatpush1.bf16.msra.mxu0 0
    %252 = vmatprep.subr.bf16.mxu0 0
    %253 = vmatpush1.bf16.msra.mxu0 0
    %254 = vmatprep.subr.bf16.mxu0 0
    %255 = vmatpush1.bf16.msra.mxu0 0
    %256 = vmatprep.subr.bf16.mxu0 0
    %257 = vmatpush1.bf16.msra.mxu0 0
    %258 = vmatprep.subr.bf16.mxu0 %v157
    %259 = vmatpush1.bf16.msra.mxu0 %v154
    %260 = vmatprep.subr.bf16.mxu0 0
    %261 = vmatpush2.bf16.msra.mxu0 0
    %262 = vmatprep.subr.bf16.mxu0 0
    %263 = vmatpush2.bf16.msra.mxu0 0
    %264 = vmatprep.subr.bf16.mxu0 0
    %265 = vmatpush2.bf16.msra.mxu0 0
    %266 = vmatprep.subr.bf16.mxu0 0
    %267 = vmatpush2.bf16.msra.mxu0 0
    %268 = vmatprep.subr.bf16.mxu0 0
    %269 = vmatpush2.bf16.msra.mxu0 0
    %270 = vmatprep.subr.bf16.mxu0 0
    %271 = vmatpush2.bf16.msra.mxu0 0
    %272 = vmatprep.subr.bf16.mxu0 0
    %273 = vmatpush2.bf16.msra.mxu0 0
    %274 = vmatprep.subr.bf16.mxu0 0
    %275 = vmatpush2.bf16.msra.mxu0 0
    %276 = vmatprep.mubr.bf16.mxu0 0
    %277 = vmatmul.mubr.bf16.gmra.mxu0 %v135
    %v278 = vpop.f32.mrf.mxu0
    %v279 = vadd.f32 %v84, %v278
    %v280 = vpop.f32.mrf.mxu0
    %v281 = vadd.f32 %v88, %v280
    %v282 = vpop.f32.mrf.mxu0
    %v283 = vadd.f32 %v84, %v282
    %v284 = vpop.f32.mrf.mxu0
    %v285 = vadd.f32 %v88, %v284
    %286 = vmatprep.mubr.bf16.mxu0 0
    %287 = vmatmul.mubr.bf16.gmra.mxu0 %v138
    %v288 = vpop.f32.mrf.mxu0
    %v289 = vadd.f32 %v84, %v288
    %v290 = vpop.f32.mrf.mxu0
    %v291 = vadd.f32 %v88, %v290
    %v292 = vpop.f32.mrf.mxu0
    %v293 = vadd.f32 %v84, %v292
    %v294 = vpop.f32.mrf.mxu0
    %v295 = vadd.f32 %v88, %v294
    %296 = vmatprep.mubr.bf16.mxu0 0
    %297 = vmatmul.mubr.bf16.gmra.mxu0 %v141
    %v298 = vpop.f32.mrf.mxu0
    %v299 = vadd.f32 %v84, %v298
    %v300 = vpop.f32.mrf.mxu0
    %v301 = vadd.f32 %v88, %v300
    %v302 = vpop.f32.mrf.mxu0
    %v303 = vadd.f32 %v84, %v302
    %v304 = vpop.f32.mrf.mxu0
    %v305 = vadd.f32 %v88, %v304
    %306 = vmatprep.mubr.bf16.mxu0 0
    %307 = vmatmul.mubr.bf16.gmra.mxu0 %v144
    %v308 = vpop.f32.mrf.mxu0
    %v309 = vadd.f32 %v84, %v308
    %v310 = vpop.f32.mrf.mxu0
    %v311 = vadd.f32 %v88, %v310
    %v312 = vpop.f32.mrf.mxu0
    %v313 = vadd.f32 %v84, %v312
    %v314 = vpop.f32.mrf.mxu0
    %v315 = vadd.f32 %v88, %v314
    %316 = vdwg.mxu0
    %317 = vmatprep.subr.bf16.mxu0 0
    %318 = vmatpush1.bf16.msra.mxu0 0
    %319 = vmatprep.subr.bf16.mxu0 0
    %320 = vmatpush1.bf16.msra.mxu0 0
    %321 = vmatprep.subr.bf16.mxu0 0
    %322 = vmatpush1.bf16.msra.mxu0 0
    %323 = vmatprep.subr.bf16.mxu0 0
    %324 = vmatpush1.bf16.msra.mxu0 0
    %325 = vmatprep.subr.bf16.mxu0 0
    %326 = vmatpush1.bf16.msra.mxu0 0
    %327 = vmatprep.subr.bf16.mxu0 0
    %328 = vmatpush1.bf16.msra.mxu0 0
    %329 = vmatprep.subr.bf16.mxu0 0
    %330 = vmatpush1.bf16.msra.mxu0 0
    %331 = vmatprep.subr.bf16.mxu0 %v163
    %332 = vmatpush1.bf16.msra.mxu0 %v160
    %333 = vmatprep.subr.bf16.mxu0 0
    %334 = vmatpush2.bf16.msra.mxu0 0
    %335 = vmatprep.subr.bf16.mxu0 0
    %336 = vmatpush2.bf16.msra.mxu0 0
    %337 = vmatprep.subr.bf16.mxu0 0
    %338 = vmatpush2.bf16.msra.mxu0 0
    %339 = vmatprep.subr.bf16.mxu0 0
    %340 = vmatpush2.bf16.msra.mxu0 0
    %341 = vmatprep.subr.bf16.mxu0 0
    %342 = vmatpush2.bf16.msra.mxu0 0
    %343 = vmatprep.subr.bf16.mxu0 0
    %344 = vmatpush2.bf16.msra.mxu0 0
    %345 = vmatprep.subr.bf16.mxu0 0
    %346 = vmatpush2.bf16.msra.mxu0 0
    %347 = vmatprep.subr.bf16.mxu0 0
    %348 = vmatpush2.bf16.msra.mxu0 0
    %349 = vmatprep.mubr.bf16.mxu0 0
    %350 = vmatmul.mubr.bf16.gmra.mxu0 %v135
    %v351 = vpop.f32.mrf.mxu0
    %v352 = vadd.f32 %v92, %v351
    %v353 = vpop.f32.mrf.mxu0
    %v354 = vadd.f32 %v96, %v353
    %v355 = vpop.f32.mrf.mxu0
    %v356 = vadd.f32 %v92, %v355
    %v357 = vpop.f32.mrf.mxu0
    %v358 = vadd.f32 %v96, %v357
    %359 = vmatprep.mubr.bf16.mxu0 0
    %360 = vmatmul.mubr.bf16.gmra.mxu0 %v138
    %v361 = vpop.f32.mrf.mxu0
    %v362 = vadd.f32 %v92, %v361
    %v363 = vpop.f32.mrf.mxu0
    %v364 = vadd.f32 %v96, %v363
    %v365 = vpop.f32.mrf.mxu0
    %v366 = vadd.f32 %v92, %v365
    %v367 = vpop.f32.mrf.mxu0
    %v368 = vadd.f32 %v96, %v367
    %369 = vmatprep.mubr.bf16.mxu0 0
    %370 = vmatmul.mubr.bf16.gmra.mxu0 %v141
    %v371 = vpop.f32.mrf.mxu0
    %v372 = vadd.f32 %v92, %v371
    %v373 = vpop.f32.mrf.mxu0
    %v374 = vadd.f32 %v96, %v373
    %v375 = vpop.f32.mrf.mxu0
    %v376 = vadd.f32 %v92, %v375
    %v377 = vpop.f32.mrf.mxu0
    %v378 = vadd.f32 %v96, %v377
    %379 = vmatprep.mubr.bf16.mxu0 0
    %380 = vmatmul.mubr.bf16.gmra.mxu0 %v144
    %v381 = vpop.f32.mrf.mxu0
    %v382 = vadd.f32 %v92, %v381
    %v383 = vpop.f32.mrf.mxu0
    %v384 = vadd.f32 %v96, %v383
    %v385 = vpop.f32.mrf.mxu0
    %v386 = vadd.f32 %v92, %v385
    %v387 = vpop.f32.mrf.mxu0
    %v388 = vadd.f32 %v96, %v387
    %389 = vdwg.mxu0
    %390 = vmatprep.subr.bf16.mxu0 0
    %391 = vmatpush1.bf16.msra.mxu0 0
    %392 = vmatprep.subr.bf16.mxu0 0
    %393 = vmatpush1.bf16.msra.mxu0 0
    %394 = vmatprep.subr.bf16.mxu0 0
    %395 = vmatpush1.bf16.msra.mxu0 0
    %396 = vmatprep.subr.bf16.mxu0 0
    %397 = vmatpush1.bf16.msra.mxu0 0
    %398 = vmatprep.subr.bf16.mxu0 0
    %399 = vmatpush1.bf16.msra.mxu0 0
    %400 = vmatprep.subr.bf16.mxu0 0
    %401 = vmatpush1.bf16.msra.mxu0 0
    %402 = vmatprep.subr.bf16.mxu0 0
    %403 = vmatpush1.bf16.msra.mxu0 0
    %404 = vmatprep.subr.bf16.mxu0 %v169
    %405 = vmatpush1.bf16.msra.mxu0 %v166
    %406 = vmatprep.subr.bf16.mxu0 0
    %407 = vmatpush2.bf16.msra.mxu0 0
    %408 = vmatprep.subr.bf16.mxu0 0
    %409 = vmatpush2.bf16.msra.mxu0 0
    %410 = vmatprep.subr.bf16.mxu0 0
    %411 = vmatpush2.bf16.msra.mxu0 0
    %412 = vmatprep.subr.bf16.mxu0 0
    %413 = vmatpush2.bf16.msra.mxu0 0
    %414 = vmatprep.subr.bf16.mxu0 0
    %415 = vmatpush2.bf16.msra.mxu0 0
    %416 = vmatprep.subr.bf16.mxu0 0
    %417 = vmatpush2.bf16.msra.mxu0 0
    %418 = vmatprep.subr.bf16.mxu0 0
    %419 = vmatpush2.bf16.msra.mxu0 0
    %420 = vmatprep.subr.bf16.mxu0 0
    %421 = vmatpush2.bf16.msra.mxu0 0
    %422 = vmatprep.mubr.bf16.mxu0 0
    %423 = vmatmul.mubr.bf16.gmra.mxu0 %v135
    %v424 = vpop.f32.mrf.mxu0
    %v425 = vadd.f32 %v100, %v424
    %v426 = vpop.f32.mrf.mxu0
    %v427 = vadd.f32 %v104, %v426
    %v428 = vpop.f32.mrf.mxu0
    %v429 = vadd.f32 %v100, %v428
    %v430 = vpop.f32.mrf.mxu0
    %v431 = vadd.f32 %v104, %v430
    %432 = vmatprep.mubr.bf16.mxu0 0
    %433 = vmatmul.mubr.bf16.gmra.mxu0 %v138
    %v434 = vpop.f32.mrf.mxu0
    %v435 = vadd.f32 %v100, %v434
    %v436 = vpop.f32.mrf.mxu0
    %v437 = vadd.f32 %v104, %v436
    %v438 = vpop.f32.mrf.mxu0
    %v439 = vadd.f32 %v100, %v438
    %v440 = vpop.f32.mrf.mxu0
    %v441 = vadd.f32 %v104, %v440
    %442 = vmatprep.mubr.bf16.mxu0 0
    %443 = vmatmul.mubr.bf16.gmra.mxu0 %v141
    %v444 = vpop.f32.mrf.mxu0
    %v445 = vadd.f32 %v100, %v444
    %v446 = vpop.f32.mrf.mxu0
    %v447 = vadd.f32 %v104, %v446
    %v448 = vpop.f32.mrf.mxu0
    %v449 = vadd.f32 %v100, %v448
    %v450 = vpop.f32.mrf.mxu0
    %v451 = vadd.f32 %v104, %v450
    %452 = vmatprep.mubr.bf16.mxu0 0
    %453 = vmatmul.mubr.bf16.gmra.mxu0 %v144
    %v454 = vpop.f32.mrf.mxu0
    %v455 = vadd.f32 %v100, %v454
    %v456 = vpop.f32.mrf.mxu0
    %v457 = vadd.f32 %v104, %v456
    %v458 = vpop.f32.mrf.mxu0
    %v459 = vadd.f32 %v100, %v458
    %v460 = vpop.f32.mrf.mxu0
    %v461 = vadd.f32 %v104, %v460
    %462 = vdwg.mxu0
    %463 = vst [vmem:[#allocation2] sm:$0xff] %v206
    %464 = vst [vmem:[#allocation2 + $0x8] sm:$0xff] %v208
    %465 = vst [vmem:[#allocation2 + $0x10] sm:$0xff] %v279
    %466 = vst [vmem:[#allocation2 + $0x18] sm:$0xff] %v281
    %467 = vst [vmem:[#allocation2 + $0x20] sm:$0xff] %v352
    %468 = vst [vmem:[#allocation2 + $0x28] sm:$0xff] %v354
    %469 = vst [vmem:[#allocation2 + $0x30] sm:$0xff] %v425
    %470 = vst [vmem:[#allocation2 + $0x38] sm:$0xff] %v427
    %471 = vst [vmem:[#allocation2 + $0x40] sm:$0xff] %v210
    %472 = vst [vmem:[#allocation2 + $0x48] sm:$0xff] %v212
    %473 = vst [vmem:[#allocation2 + $0x50] sm:$0xff] %v283
    %474 = vst [vmem:[#allocation2 + $0x58] sm:$0xff] %v285
    %475 = vst [vmem:[#allocation2 + $0x60] sm:$0xff] %v356
    %476 = vst [vmem:[#allocation2 + $0x68] sm:$0xff] %v358
    %477 = vst [vmem:[#allocation2 + $0x70] sm:$0xff] %v429
    %478 = vst [vmem:[#allocation2 + $0x78] sm:$0xff] %v431
    %479 = vst [vmem:[#allocation2 + $0x80] sm:$0xff] %v216
    %480 = vst [vmem:[#allocation2 + $0x88] sm:$0xff] %v218
    %481 = vst [vmem:[#allocation2 + $0x90] sm:$0xff] %v289
    %482 = vst [vmem:[#allocation2 + $0x98] sm:$0xff] %v291
    %483 = vst [vmem:[#allocation2 + $0xa0] sm:$0xff] %v362
    %484 = vst [vmem:[#allocation2 + $0xa8] sm:$0xff] %v364
    %485 = vst [vmem:[#allocation2 + $0xb0] sm:$0xff] %v435
    %486 = vst [vmem:[#allocation2 + $0xb8] sm:$0xff] %v437
    %487 = vst [vmem:[#allocation2 + $0xc0] sm:$0xff] %v220
    %488 = vst [vmem:[#allocation2 + $0xc8] sm:$0xff] %v222
    %489 = vst [vmem:[#allocation2 + $0xd0] sm:$0xff] %v293
    %490 = vst [vmem:[#allocation2 + $0xd8] sm:$0xff] %v295
    %491 = vst [vmem:[#allocation2 + $0xe0] sm:$0xff] %v366
    %492 = vst [vmem:[#allocation2 + $0xe8] sm:$0xff] %v368
    %493 = vst [vmem:[#allocation2 + $0xf0] sm:$0xff] %v439
    %494 = vst [vmem:[#allocation2 + $0xf8] sm:$0xff] %v441
    %495 = vst [vmem:[#allocation2 + $0x100] sm:$0xff] %v226
    %496 = vst [vmem:[#allocation2 + $0x108] sm:$0xff] %v228
    %497 = vst [vmem:[#allocation2 + $0x110] sm:$0xff] %v299
    %498 = vst [vmem:[#allocation2 + $0x118] sm:$0xff] %v301
    %499 = vst [vmem:[#allocation2 + $0x120] sm:$0xff] %v372
    %500 = vst [vmem:[#allocation2 + $0x128] sm:$0xff] %v374
    %501 = vst [vmem:[#allocation2 + $0x130] sm:$0xff] %v445
    %502 = vst [vmem:[#allocation2 + $0x138] sm:$0xff] %v447
    %503 = vst [vmem:[#allocation2 + $0x140] sm:$0xff] %v230
    %504 = vst [vmem:[#allocation2 + $0x148] sm:$0xff] %v232
    %505 = vst [vmem:[#allocation2 + $0x150] sm:$0xff] %v303
    %506 = vst [vmem:[#allocation2 + $0x158] sm:$0xff] %v305
    %507 = vst [vmem:[#allocation2 + $0x160] sm:$0xff] %v376
    %508 = vst [vmem:[#allocation2 + $0x168] sm:$0xff] %v378
    %509 = vst [vmem:[#allocation2 + $0x170] sm:$0xff] %v449
    %510 = vst [vmem:[#allocation2 + $0x178] sm:$0xff] %v451
    %511 = vst [vmem:[#allocation2 + $0x180] sm:$0xff] %v236
    %512 = vst [vmem:[#allocation2 + $0x188] sm:$0xff] %v238
    %513 = vst [vmem:[#allocation2 + $0x190] sm:$0xff] %v309
    %514 = vst [vmem:[#allocation2 + $0x198] sm:$0xff] %v311
    %515 = vst [vmem:[#allocation2 + $0x1a0] sm:$0xff] %v382
    %516 = vst [vmem:[#allocation2 + $0x1a8] sm:$0xff] %v384
    %517 = vst [vmem:[#allocation2 + $0x1b0] sm:$0xff] %v455
    %518 = vst [vmem:[#allocation2 + $0x1b8] sm:$0xff] %v457
    %519 = vst [vmem:[#allocation2 + $0x1c0] sm:$0xff] %v240
    %520 = vst [vmem:[#allocation2 + $0x1c8] sm:$0xff] %v242
    %521 = vst [vmem:[#allocation2 + $0x1d0] sm:$0xff] %v313
    %522 = vst [vmem:[#allocation2 + $0x1d8] sm:$0xff] %v315
    %523 = vst [vmem:[#allocation2 + $0x1e0] sm:$0xff] %v386
    %524 = vst [vmem:[#allocation2 + $0x1e8] sm:$0xff] %v388
    %525 = vst [vmem:[#allocation2 + $0x1f0] sm:$0xff] %v459
    %526 = vst [vmem:[#allocation2 + $0x1f8] sm:$0xff] %v461
    %v527 = vld [vmem:[%s2] sm:$0xff]
    %v528 = vld [vmem:[%s2 + $0x8] sm:$0xff]
    %v529 = vld [vmem:[%s2 + $0x10] sm:$0xff]
    %v530 = vld [vmem:[%s2 + $0x18] sm:$0xff]
    %v531 = vld [vmem:[%s2 + $0x20] sm:$0xff]
    %v532 = vld [vmem:[%s2 + $0x28] sm:$0xff]
    %v533 = vld [vmem:[%s2 + $0x30] sm:$0xff]
    %v534 = vld [vmem:[%s2 + $0x38] sm:$0xff]
    %v535 = vld [vmem:[%s2 + $0x40] sm:$0xff]
    %v536 = vld [vmem:[%s2 + $0x48] sm:$0xff]
    %v537 = vld [vmem:[%s2 + $0x50] sm:$0xff]
    %v538 = vld [vmem:[%s2 + $0x58] sm:$0xff]
    %v539 = vld [vmem:[%s2 + $0x60] sm:$0xff]
    %v540 = vld [vmem:[%s2 + $0x68] sm:$0xff]
    %v541 = vld [vmem:[%s2 + $0x70] sm:$0xff]
    %v542 = vld [vmem:[%s2 + $0x78] sm:$0xff]
    %v543 = vld [vmem:[%s2 + $0x80] sm:$0xff]
    %v544 = vld [vmem:[%s2 + $0x88] sm:$0xff]
    %v545 = vld [vmem:[%s2 + $0x90] sm:$0xff]
    %v546 = vld [vmem:[%s2 + $0x98] sm:$0xff]
    %v547 = vld [vmem:[%s2 + $0xa0] sm:$0xff]
    %v548 = vld [vmem:[%s2 + $0xa8] sm:$0xff]
    %v549 = vld [vmem:[%s2 + $0xb0] sm:$0xff]
    %v550 = vld [vmem:[%s2 + $0xb8] sm:$0xff]
    %v551 = vld [vmem:[%s2 + $0xc0] sm:$0xff]
    %v552 = vld [vmem:[%s2 + $0xc8] sm:$0xff]
    %v553 = vld [vmem:[%s2 + $0xd0] sm:$0xff]
    %v554 = vld [vmem:[%s2 + $0xd8] sm:$0xff]
    %v555 = vld [vmem:[%s2 + $0xe0] sm:$0xff]
    %v556 = vld [vmem:[%s2 + $0xe8] sm:$0xff]
    %v557 = vld [vmem:[%s2 + $0xf0] sm:$0xff]
    %v558 = vld [vmem:[%s2 + $0xf8] sm:$0xff]
    %v559 = vld [vmem:[%s2 + $0x100] sm:$0xff]
    %v560 = vld [vmem:[%s2 + $0x108] sm:$0xff]
    %v561 = vld [vmem:[%s2 + $0x110] sm:$0xff]
    %v562 = vld [vmem:[%s2 + $0x118] sm:$0xff]
    %v563 = vld [vmem:[%s2 + $0x120] sm:$0xff]
    %v564 = vld [vmem:[%s2 + $0x128] sm:$0xff]
    %v565 = vld [vmem:[%s2 + $0x130] sm:$0xff]
    %v566 = vld [vmem:[%s2 + $0x138] sm:$0xff]
    %v567 = vld [vmem:[%s2 + $0x140] sm:$0xff]
    %v568 = vld [vmem:[%s2 + $0x148] sm:$0xff]
    %v569 = vld [vmem:[%s2 + $0x150] sm:$0xff]
    %v570 = vld [vmem:[%s2 + $0x158] sm:$0xff]
    %v571 = vld [vmem:[%s2 + $0x160] sm:$0xff]
    %v572 = vld [vmem:[%s2 + $0x168] sm:$0xff]
    %v573 = vld [vmem:[%s2 + $0x170] sm:$0xff]
    %v574 = vld [vmem:[%s2 + $0x178] sm:$0xff]
    %v575 = vld [vmem:[%s2 + $0x180] sm:$0xff]
    %v576 = vld [vmem:[%s2 + $0x188] sm:$0xff]
    %v577 = vld [vmem:[%s2 + $0x190] sm:$0xff]
    %v578 = vld [vmem:[%s2 + $0x198] sm:$0xff]
    %v579 = vld [vmem:[%s2 + $0x1a0] sm:$0xff]
    %v580 = vld [vmem:[%s2 + $0x1a8] sm:$0xff]
    %v581 = vld [vmem:[%s2 + $0x1b0] sm:$0xff]
    %v582 = vld [vmem:[%s2 + $0x1b8] sm:$0xff]
    %v583 = vld [vmem:[%s2 + $0x1c0] sm:$0xff]
    %v584 = vld [vmem:[%s2 + $0x1c8] sm:$0xff]
    %v585 = vld [vmem:[%s2 + $0x1d0] sm:$0xff]
    %v586 = vld [vmem:[%s2 + $0x1d8] sm:$0xff]
    %v587 = vld [vmem:[%s2 + $0x1e0] sm:$0xff]
    %v588 = vld [vmem:[%s2 + $0x1e8] sm:$0xff]
    %v589 = vld [vmem:[%s2 + $0x1f0] sm:$0xff]
    %v590 = vld [vmem:[%s2 + $0x1f8] sm:$0xff]
    %v591 = vld [vmem:[%s2 + $0x200] sm:$0xff]
    %v592 = vld [vmem:[%s2 + $0x208] sm:$0xff]
    %v593 = vld [vmem:[%s2 + $0x210] sm:$0xff]
    %v594 = vld [vmem:[%s2 + $0x218] sm:$0xff]
    %v595 = vld [vmem:[%s2 + $0x220] sm:$0xff]
    %v596 = vld [vmem:[%s2 + $0x228] sm:$0xff]
    %v597 = vld [vmem:[%s2 + $0x230] sm:$0xff]
    %v598 = vld [vmem:[%s2 + $0x238] sm:$0xff]
    %v599 = vld [vmem:[%s2 + $0x240] sm:$0xff]
    %v600 = vld [vmem:[%s2 + $0x248] sm:$0xff]
    %v601 = vld [vmem:[%s2 + $0x250] sm:$0xff]
    %v602 = vld [vmem:[%s2 + $0x258] sm:$0xff]
    %v603 = vld [vmem:[%s2 + $0x260] sm:$0xff]
    %v604 = vld [vmem:[%s2 + $0x268] sm:$0xff]
    %v605 = vld [vmem:[%s2 + $0x270] sm:$0xff]
    %v606 = vld [vmem:[%s2 + $0x278] sm:$0xff]
    %v607 = vld [vmem:[%s2 + $0x280] sm:$0xff]
    %v608 = vld [vmem:[%s2 + $0x288] sm:$0xff]
    %v609 = vld [vmem:[%s2 + $0x290] sm:$0xff]
    %v610 = vld [vmem:[%s2 + $0x298] sm:$0xff]
    %v611 = vld [vmem:[%s2 + $0x2a0] sm:$0xff]
    %v612 = vld [vmem:[%s2 + $0x2a8] sm:$0xff]
    %v613 = vld [vmem:[%s2 + $0x2b0] sm:$0xff]
    %v614 = vld [vmem:[%s2 + $0x2b8] sm:$0xff]
    %v615 = vld [vmem:[%s2 + $0x2c0] sm:$0xff]
    %v616 = vld [vmem:[%s2 + $0x2c8] sm:$0xff]
    %v617 = vld [vmem:[%s2 + $0x2d0] sm:$0xff]
    %v618 = vld [vmem:[%s2 + $0x2d8] sm:$0xff]
    %v619 = vld [vmem:[%s2 + $0x2e0] sm:$0xff]
    %v620 = vld [vmem:[%s2 + $0x2e8] sm:$0xff]
    %v621 = vld [vmem:[%s2 + $0x2f0] sm:$0xff]
    %v622 = vld [vmem:[%s2 + $0x2f8] sm:$0xff]
    %v623 = vld [vmem:[%s2 + $0x300] sm:$0xff]
    %v624 = vld [vmem:[%s2 + $0x308] sm:$0xff]
    %v625 = vld [vmem:[%s2 + $0x310] sm:$0xff]
    %v626 = vld [vmem:[%s2 + $0x318] sm:$0xff]
    %v627 = vld [vmem:[%s2 + $0x320] sm:$0xff]
    %v628 = vld [vmem:[%s2 + $0x328] sm:$0xff]
    %v629 = vld [vmem:[%s2 + $0x330] sm:$0xff]
    %v630 = vld [vmem:[%s2 + $0x338] sm:$0xff]
    %v631 = vld [vmem:[%s2 + $0x340] sm:$0xff]
    %v632 = vld [vmem:[%s2 + $0x348] sm:$0xff]
    %v633 = vld [vmem:[%s2 + $0x350] sm:$0xff]
    %v634 = vld [vmem:[%s2 + $0x358] sm:$0xff]
    %v635 = vld [vmem:[%s2 + $0x360] sm:$0xff]
    %v636 = vld [vmem:[%s2 + $0x368] sm:$0xff]
    %v637 = vld [vmem:[%s2 + $0x370] sm:$0xff]
    %v638 = vld [vmem:[%s2 + $0x378] sm:$0xff]
    %v639 = vld [vmem:[%s2 + $0x380] sm:$0xff]
    %v640 = vld [vmem:[%s2 + $0x388] sm:$0xff]
    %v641 = vld [vmem:[%s2 + $0x390] sm:$0xff]
    %v642 = vld [vmem:[%s2 + $0x398] sm:$0xff]
    %v643 = vld [vmem:[%s2 + $0x3a0] sm:$0xff]
    %v644 = vld [vmem:[%s2 + $0x3a8] sm:$0xff]
    %v645 = vld [vmem:[%s2 + $0x3b0] sm:$0xff]
    %v646 = vld [vmem:[%s2 + $0x3b8] sm:$0xff]
    %v647 = vld [vmem:[%s2 + $0x3c0] sm:$0xff]
    %v648 = vld [vmem:[%s2 + $0x3c8] sm:$0xff]
    %v649 = vld [vmem:[%s2 + $0x3d0] sm:$0xff]
    %v650 = vld [vmem:[%s2 + $0x3d8] sm:$0xff]
    %v651 = vld [vmem:[%s2 + $0x3e0] sm:$0xff]
    %v652 = vld [vmem:[%s2 + $0x3e8] sm:$0xff]
    %v653 = vld [vmem:[%s2 + $0x3f0] sm:$0xff]
    %v654 = vld [vmem:[%s2 + $0x3f8] sm:$0xff]
    %v655 = vld [vmem:[#allocation3] sm:$0xff]
    %v656 = vld [vmem:[#allocation3 + $0x8] sm:$0xff]
    %v657 = vld [vmem:[#allocation3 + $0x10] sm:$0xff]
    %v658 = vld [vmem:[#allocation3 + $0x18] sm:$0xff]
    %v659 = vld [vmem:[#allocation3 + $0x20] sm:$0xff]
    %v660 = vld [vmem:[#allocation3 + $0x28] sm:$0xff]
    %v661 = vld [vmem:[#allocation3 + $0x30] sm:$0xff]
    %v662 = vld [vmem:[#allocation3 + $0x38] sm:$0xff]
    %v663 = vld [vmem:[#allocation3 + $0x40] sm:$0xff]
    %v664 = vld [vmem:[#allocation3 + $0x48] sm:$0xff]
    %v665 = vld [vmem:[#allocation3 + $0x50] sm:$0xff]
    %v666 = vld [vmem:[#allocation3 + $0x58] sm:$0xff]
    %v667 = vld [vmem:[#allocation3 + $0x60] sm:$0xff]
    %v668 = vld [vmem:[#allocation3 + $0x68] sm:$0xff]
    %v669 = vld [vmem:[#allocation3 + $0x70] sm:$0xff]
    %v670 = vld [vmem:[#allocation3 + $0x78] sm:$0xff]
    %v671 = vld [vmem:[#allocation3 + $0x80] sm:$0xff]
    %v672 = vld [vmem:[#allocation3 + $0x88] sm:$0xff]
    %v673 = vld [vmem:[#allocation3 + $0x90] sm:$0xff]
    %v674 = vld [vmem:[#allocation3 + $0x98] sm:$0xff]
    %v675 = vld [vmem:[#allocation3 + $0xa0] sm:$0xff]
    %v676 = vld [vmem:[#allocation3 + $0xa8] sm:$0xff]
    %v677 = vld [vmem:[#allocation3 + $0xb0] sm:$0xff]
    %v678 = vld [vmem:[#allocation3 + $0xb8] sm:$0xff]
    %v679 = vld [vmem:[#allocation3 + $0xc0] sm:$0xff]
    %v680 = vld [vmem:[#allocation3 + $0xc8] sm:$0xff]
    %v681 = vld [vmem:[#allocation3 + $0xd0] sm:$0xff]
    %v682 = vld [vmem:[#allocation3 + $0xd8] sm:$0xff]
    %v683 = vld [vmem:[#allocation3 + $0xe0] sm:$0xff]
    %v684 = vld [vmem:[#allocation3 + $0xe8] sm:$0xff]
    %v685 = vld [vmem:[#allocation3 + $0xf0] sm:$0xff]
    %v686 = vld [vmem:[#allocation3 + $0xf8] sm:$0xff]
    %v687 = vld [vmem:[#allocation3 + $0x100] sm:$0xff]
    %v688 = vld [vmem:[#allocation3 + $0x108] sm:$0xff]
    %v689 = vld [vmem:[#allocation3 + $0x110] sm:$0xff]
    %v690 = vld [vmem:[#allocation3 + $0x118] sm:$0xff]
    %v691 = vld [vmem:[#allocation3 + $0x120] sm:$0xff]
    %v692 = vld [vmem:[#allocation3 + $0x128] sm:$0xff]
    %v693 = vld [vmem:[#allocation3 + $0x130] sm:$0xff]
    %v694 = vld [vmem:[#allocation3 + $0x138] sm:$0xff]
    %v695 = vld [vmem:[#allocation3 + $0x140] sm:$0xff]
    %v696 = vld [vmem:[#allocation3 + $0x148] sm:$0xff]
    %v697 = vld [vmem:[#allocation3 + $0x150] sm:$0xff]
    %v698 = vld [vmem:[#allocation3 + $0x158] sm:$0xff]
    %v699 = vld [vmem:[#allocation3 + $0x160] sm:$0xff]
    %v700 = vld [vmem:[#allocation3 + $0x168] sm:$0xff]
    %v701 = vld [vmem:[#allocation3 + $0x170] sm:$0xff]
    %v702 = vld [vmem:[#allocation3 + $0x178] sm:$0xff]
    %v703 = vld [vmem:[#allocation3 + $0x180] sm:$0xff]
    %v704 = vld [vmem:[#allocation3 + $0x188] sm:$0xff]
    %v705 = vld [vmem:[#allocation3 + $0x190] sm:$0xff]
    %v706 = vld [vmem:[#allocation3 + $0x198] sm:$0xff]
    %v707 = vld [vmem:[#allocation3 + $0x1a0] sm:$0xff]
    %v708 = vld [vmem:[#allocation3 + $0x1a8] sm:$0xff]
    %v709 = vld [vmem:[#allocation3 + $0x1b0] sm:$0xff]
    %v710 = vld [vmem:[#allocation3 + $0x1b8] sm:$0xff]
    %v711 = vld [vmem:[#allocation3 + $0x1c0] sm:$0xff]
    %v712 = vld [vmem:[#allocation3 + $0x1c8] sm:$0xff]
    %v713 = vld [vmem:[#allocation3 + $0x1d0] sm:$0xff]
    %v714 = vld [vmem:[#allocation3 + $0x1d8] sm:$0xff]
    %v715 = vld [vmem:[#allocation3 + $0x1e0] sm:$0xff]
    %v716 = vld [vmem:[#allocation3 + $0x1e8] sm:$0xff]
    %v717 = vld [vmem:[#allocation3 + $0x1f0] sm:$0xff]
    %v718 = vld [vmem:[#allocation3 + $0x1f8] sm:$0xff]
    %v719 = vld [vmem:[#allocation3 + $0x200] sm:$0xff]
    %v720 = vld [vmem:[#allocation3 + $0x208] sm:$0xff]
    %v721 = vld [vmem:[#allocation3 + $0x210] sm:$0xff]
    %v722 = vld [vmem:[#allocation3 + $0x218] sm:$0xff]
    %v723 = vld [vmem:[#allocation3 + $0x220] sm:$0xff]
    %v724 = vld [vmem:[#allocation3 + $0x228] sm:$0xff]
    %v725 = vld [vmem:[#allocation3 + $0x230] sm:$0xff]
    %v726 = vld [vmem:[#allocation3 + $0x238] sm:$0xff]
    %v727 = vld [vmem:[#allocation3 + $0x240] sm:$0xff]
    %v728 = vld [vmem:[#allocation3 + $0x248] sm:$0xff]
    %v729 = vld [vmem:[#allocation3 + $0x250] sm:$0xff]
    %v730 = vld [vmem:[#allocation3 + $0x258] sm:$0xff]
    %v731 = vld [vmem:[#allocation3 + $0x260] sm:$0xff]
    %v732 = vld [vmem:[#allocation3 + $0x268] sm:$0xff]
    %v733 = vld [vmem:[#allocation3 + $0x270] sm:$0xff]
    %v734 = vld [vmem:[#allocation3 + $0x278] sm:$0xff]
    %v735 = vld [vmem:[#allocation3 + $0x280] sm:$0xff]
    %v736 = vld [vmem:[#allocation3 + $0x288] sm:$0xff]
    %v737 = vld [vmem:[#allocation3 + $0x290] sm:$0xff]
    %v738 = vld [vmem:[#allocation3 + $0x298] sm:$0xff]
    %v739 = vld [vmem:[#allocation3 + $0x2a0] sm:$0xff]
    %v740 = vld [vmem:[#allocation3 + $0x2a8] sm:$0xff]
    %v741 = vld [vmem:[#allocation3 + $0x2b0] sm:$0xff]
    %v742 = vld [vmem:[#allocation3 + $0x2b8] sm:$0xff]
    %v743 = vld [vmem:[#allocation3 + $0x2c0] sm:$0xff]
    %v744 = vld [vmem:[#allocation3 + $0x2c8] sm:$0xff]
    %v745 = vld [vmem:[#allocation3 + $0x2d0] sm:$0xff]
    %v746 = vld [vmem:[#allocation3 + $0x2d8] sm:$0xff]
    %v747 = vld [vmem:[#allocation3 + $0x2e0] sm:$0xff]
    %v748 = vld [vmem:[#allocation3 + $0x2e8] sm:$0xff]
    %v749 = vld [vmem:[#allocation3 + $0x2f0] sm:$0xff]
    %v750 = vld [vmem:[#allocation3 + $0x2f8] sm:$0xff]
    %v751 = vld [vmem:[#allocation3 + $0x300] sm:$0xff]
    %v752 = vld [vmem:[#allocation3 + $0x308] sm:$0xff]
    %v753 = vld [vmem:[#allocation3 + $0x310] sm:$0xff]
    %v754 = vld [vmem:[#allocation3 + $0x318] sm:$0xff]
    %v755 = vld [vmem:[#allocation3 + $0x320] sm:$0xff]
    %v756 = vld [vmem:[#allocation3 + $0x328] sm:$0xff]
    %v757 = vld [vmem:[#allocation3 + $0x330] sm:$0xff]
    %v758 = vld [vmem:[#allocation3 + $0x338] sm:$0xff]
    %v759 = vld [vmem:[#allocation3 + $0x340] sm:$0xff]
    %v760 = vld [vmem:[#allocation3 + $0x348] sm:$0xff]
    %v761 = vld [vmem:[#allocation3 + $0x350] sm:$0xff]
    %v762 = vld [vmem:[#allocation3 + $0x358] sm:$0xff]
    %v763 = vld [vmem:[#allocation3 + $0x360] sm:$0xff]
    %v764 = vld [vmem:[#allocation3 + $0x368] sm:$0xff]
    %v765 = vld [vmem:[#allocation3 + $0x370] sm:$0xff]
    %v766 = vld [vmem:[#allocation3 + $0x378] sm:$0xff]
    %v767 = vld [vmem:[#allocation3 + $0x380] sm:$0xff]
    %v768 = vld [vmem:[#allocation3 + $0x388] sm:$0xff]
    %v769 = vld [vmem:[#allocation3 + $0x390] sm:$0xff]
    %v770 = vld [vmem:[#allocation3 + $0x398] sm:$0xff]
    %v771 = vld [vmem:[#allocation3 + $0x3a0] sm:$0xff]
    %v772 = vld [vmem:[#allocation3 + $0x3a8] sm:$0xff]
    %v773 = vld [vmem:[#allocation3 + $0x3b0] sm:$0xff]
    %v774 = vld [vmem:[#allocation3 + $0x3b8] sm:$0xff]
    %v775 = vld [vmem:[#allocation3 + $0x3c0] sm:$0xff]
    %v776 = vld [vmem:[#allocation3 + $0x3c8] sm:$0xff]
    %v777 = vld [vmem:[#allocation3 + $0x3d0] sm:$0xff]
    %v778 = vld [vmem:[#allocation3 + $0x3d8] sm:$0xff]
    %v779 = vld [vmem:[#allocation3 + $0x3e0] sm:$0xff]
    %v780 = vld [vmem:[#allocation3 + $0x3e8] sm:$0xff]
    %v781 = vld [vmem:[#allocation3 + $0x3f0] sm:$0xff]
    %v782 = vld [vmem:[#allocation3 + $0x3f8] sm:$0xff]
    %v783 = vld [vmem:[#allocation5] sm:$0xff]
    %v784 = vld [vmem:[#allocation5 + $0x8] sm:$0xff]
    %v785 = vld [vmem:[#allocation5 + $0x10] sm:$0xff]
    %v786 = vld [vmem:[#allocation5 + $0x18] sm:$0xff]
    %v787 = vld [vmem:[#allocation5 + $0x20] sm:$0xff]
    %v788 = vld [vmem:[#allocation5 + $0x28] sm:$0xff]
    %v789 = vld [vmem:[#allocation5 + $0x30] sm:$0xff]
    %v790 = vld [vmem:[#allocation5 + $0x38] sm:$0xff]
    %v791 = vld [vmem:[#allocation5 + $0x40] sm:$0xff]
    %v792 = vld [vmem:[#allocation5 + $0x48] sm:$0xff]
    %v793 = vld [vmem:[#allocation5 + $0x50] sm:$0xff]
    %v794 = vld [vmem:[#allocation5 + $0x58] sm:$0xff]
    %v795 = vld [vmem:[#allocation5 + $0x60] sm:$0xff]
    %v796 = vld [vmem:[#allocation5 + $0x68] sm:$0xff]
    %v797 = vld [vmem:[#allocation5 + $0x70] sm:$0xff]
    %v798 = vld [vmem:[#allocation5 + $0x78] sm:$0xff]
    %v799 = vld [vmem:[#allocation5 + $0x80] sm:$0xff]
    %v800 = vld [vmem:[#allocation5 + $0x88] sm:$0xff]
    %v801 = vld [vmem:[#allocation5 + $0x90] sm:$0xff]
    %v802 = vld [vmem:[#allocation5 + $0x98] sm:$0xff]
    %v803 = vld [vmem:[#allocation5 + $0xa0] sm:$0xff]
    %v804 = vld [vmem:[#allocation5 + $0xa8] sm:$0xff]
    %v805 = vld [vmem:[#allocation5 + $0xb0] sm:$0xff]
    %v806 = vld [vmem:[#allocation5 + $0xb8] sm:$0xff]
    %v807 = vld [vmem:[#allocation5 + $0xc0] sm:$0xff]
    %v808 = vld [vmem:[#allocation5 + $0xc8] sm:$0xff]
    %v809 = vld [vmem:[#allocation5 + $0xd0] sm:$0xff]
    %v810 = vld [vmem:[#allocation5 + $0xd8] sm:$0xff]
    %v811 = vld [vmem:[#allocation5 + $0xe0] sm:$0xff]
    %v812 = vld [vmem:[#allocation5 + $0xe8] sm:$0xff]
    %v813 = vld [vmem:[#allocation5 + $0xf0] sm:$0xff]
    %v814 = vld [vmem:[#allocation5 + $0xf8] sm:$0xff]
    %v815 = vld [vmem:[#allocation5 + $0x100] sm:$0xff]
    %v816 = vld [vmem:[#allocation5 + $0x108] sm:$0xff]
    %v817 = vld [vmem:[#allocation5 + $0x110] sm:$0xff]
    %v818 = vld [vmem:[#allocation5 + $0x118] sm:$0xff]
    %v819 = vld [vmem:[#allocation5 + $0x120] sm:$0xff]
    %v820 = vld [vmem:[#allocation5 + $0x128] sm:$0xff]
    %v821 = vld [vmem:[#allocation5 + $0x130] sm:$0xff]
    %v822 = vld [vmem:[#allocation5 + $0x138] sm:$0xff]
    %v823 = vld [vmem:[#allocation5 + $0x140] sm:$0xff]
    %v824 = vld [vmem:[#allocation5 + $0x148] sm:$0xff]
    %v825 = vld [vmem:[#allocation5 + $0x150] sm:$0xff]
    %v826 = vld [vmem:[#allocation5 + $0x158] sm:$0xff]
    %v827 = vld [vmem:[#allocation5 + $0x160] sm:$0xff]
    %v828 = vld [vmem:[#allocation5 + $0x168] sm:$0xff]
    %v829 = vld [vmem:[#allocation5 + $0x170] sm:$0xff]
    %v830 = vld [vmem:[#allocation5 + $0x178] sm:$0xff]
    %v831 = vld [vmem:[#allocation5 + $0x180] sm:$0xff]
    %v832 = vld [vmem:[#allocation5 + $0x188] sm:$0xff]
    %v833 = vld [vmem:[#allocation5 + $0x190] sm:$0xff]
    %v834 = vld [vmem:[#allocation5 + $0x198] sm:$0xff]
    %v835 = vld [vmem:[#allocation5 + $0x1a0] sm:$0xff]
    %v836 = vld [vmem:[#allocation5 + $0x1a8] sm:$0xff]
    %v837 = vld [vmem:[#allocation5 + $0x1b0] sm:$0xff]
    %v838 = vld [vmem:[#allocation5 + $0x1b8] sm:$0xff]
    %v839 = vld [vmem:[#allocation5 + $0x1c0] sm:$0xff]
    %v840 = vld [vmem:[#allocation5 + $0x1c8] sm:$0xff]
    %v841 = vld [vmem:[#allocation5 + $0x1d0] sm:$0xff]
    %v842 = vld [vmem:[#allocation5 + $0x1d8] sm:$0xff]
    %v843 = vld [vmem:[#allocation5 + $0x1e0] sm:$0xff]
    %v844 = vld [vmem:[#allocation5 + $0x1e8] sm:$0xff]
    %v845 = vld [vmem:[#allocation5 + $0x1f0] sm:$0xff]
    %v846 = vld [vmem:[#allocation5 + $0x1f8] sm:$0xff]
    %v847 = vld [vmem:[#allocation5 + $0x200] sm:$0xff]
    %v848 = vld [vmem:[#allocation5 + $0x208] sm:$0xff]
    %v849 = vld [vmem:[#allocation5 + $0x210] sm:$0xff]
    %v850 = vld [vmem:[#allocation5 + $0x218] sm:$0xff]
    %v851 = vld [vmem:[#allocation5 + $0x220] sm:$0xff]
    %v852 = vld [vmem:[#allocation5 + $0x228] sm:$0xff]
    %v853 = vld [vmem:[#allocation5 + $0x230] sm:$0xff]
    %v854 = vld [vmem:[#allocation5 + $0x238] sm:$0xff]
    %v855 = vld [vmem:[#allocation5 + $0x240] sm:$0xff]
    %v856 = vld [vmem:[#allocation5 + $0x248] sm:$0xff]
    %v857 = vld [vmem:[#allocation5 + $0x250] sm:$0xff]
    %v858 = vld [vmem:[#allocation5 + $0x258] sm:$0xff]
    %v859 = vld [vmem:[#allocation5 + $0x260] sm:$0xff]
    %v860 = vld [vmem:[#allocation5 + $0x268] sm:$0xff]
    %v861 = vld [vmem:[#allocation5 + $0x270] sm:$0xff]
    %v862 = vld [vmem:[#allocation5 + $0x278] sm:$0xff]
    %v863 = vld [vmem:[#allocation5 + $0x280] sm:$0xff]
    %v864 = vld [vmem:[#allocation5 + $0x288] sm:$0xff]
    %v865 = vld [vmem:[#allocation5 + $0x290] sm:$0xff]
    %v866 = vld [vmem:[#allocation5 + $0x298] sm:$0xff]
    %v867 = vld [vmem:[#allocation5 + $0x2a0] sm:$0xff]
    %v868 = vld [vmem:[#allocation5 + $0x2a8] sm:$0xff]
    %v869 = vld [vmem:[#allocation5 + $0x2b0] sm:$0xff]
    %v870 = vld [vmem:[#allocation5 + $0x2b8] sm:$0xff]
    %v871 = vld [vmem:[#allocation5 + $0x2c0] sm:$0xff]
    %v872 = vld [vmem:[#allocation5 + $0x2c8] sm:$0xff]
    %v873 = vld [vmem:[#allocation5 + $0x2d0] sm:$0xff]
    %v874 = vld [vmem:[#allocation5 + $0x2d8] sm:$0xff]
    %v875 = vld [vmem:[#allocation5 + $0x2e0] sm:$0xff]
    %v876 = vld [vmem:[#allocation5 + $0x2e8] sm:$0xff]
    %v877 = vld [vmem:[#allocation5 + $0x2f0] sm:$0xff]
    %v878 = vld [vmem:[#allocation5 + $0x2f8] sm:$0xff]
    %v879 = vld [vmem:[#allocation5 + $0x300] sm:$0xff]
    %v880 = vld [vmem:[#allocation5 + $0x308] sm:$0xff]
    %v881 = vld [vmem:[#allocation5 + $0x310] sm:$0xff]
    %v882 = vld [vmem:[#allocation5 + $0x318] sm:$0xff]
    %v883 = vld [vmem:[#allocation5 + $0x320] sm:$0xff]
    %v884 = vld [vmem:[#allocation5 + $0x328] sm:$0xff]
    %v885 = vld [vmem:[#allocation5 + $0x330] sm:$0xff]
    %v886 = vld [vmem:[#allocation5 + $0x338] sm:$0xff]
    %v887 = vld [vmem:[#allocation5 + $0x340] sm:$0xff]
    %v888 = vld [vmem:[#allocation5 + $0x348] sm:$0xff]
    %v889 = vld [vmem:[#allocation5 + $0x350] sm:$0xff]
    %v890 = vld [vmem:[#allocation5 + $0x358] sm:$0xff]
    %v891 = vld [vmem:[#allocation5 + $0x360] sm:$0xff]
    %v892 = vld [vmem:[#allocation5 + $0x368] sm:$0xff]
    %v893 = vld [vmem:[#allocation5 + $0x370] sm:$0xff]
    %v894 = vld [vmem:[#allocation5 + $0x378] sm:$0xff]
    %v895 = vld [vmem:[#allocation5 + $0x380] sm:$0xff]
    %v896 = vld [vmem:[#allocation5 + $0x388] sm:$0xff]
    %v897 = vld [vmem:[#allocation5 + $0x390] sm:$0xff]
    %v898 = vld [vmem:[#allocation5 + $0x398] sm:$0xff]
    %v899 = vld [vmem:[#allocation5 + $0x3a0] sm:$0xff]
    %v900 = vld [vmem:[#allocation5 + $0x3a8] sm:$0xff]
    %v901 = vld [vmem:[#allocation5 + $0x3b0] sm:$0xff]
    %v902 = vld [vmem:[#allocation5 + $0x3b8] sm:$0xff]
    %v903 = vld [vmem:[#allocation5 + $0x3c0] sm:$0xff]
    %v904 = vld [vmem:[#allocation5 + $0x3c8] sm:$0xff]
    %v905 = vld [vmem:[#allocation5 + $0x3d0] sm:$0xff]
    %v906 = vld [vmem:[#allocation5 + $0x3d8] sm:$0xff]
    %v907 = vld [vmem:[#allocation5 + $0x3e0] sm:$0xff]
    %v908 = vld [vmem:[#allocation5 + $0x3e8] sm:$0xff]
    %v909 = vld [vmem:[#allocation5 + $0x3f0] sm:$0xff]
    %v910 = vld [vmem:[#allocation5 + $0x3f8] sm:$0xff]
    %v911 = vld [vmem:[%s6] sm:$0xff]
    %v912 = vld [vmem:[#allocation2] sm:$0xff]
    %v913 = vld [vmem:[#allocation2 + $0x8] sm:$0xff]
    %v914 = vld [vmem:[#allocation2 + $0x10] sm:$0xff]
    %v915 = vld [vmem:[#allocation2 + $0x18] sm:$0xff]
    %v916 = vld [vmem:[#allocation2 + $0x20] sm:$0xff]
    %v917 = vld [vmem:[#allocation2 + $0x28] sm:$0xff]
    %v918 = vld [vmem:[#allocation2 + $0x30] sm:$0xff]
    %v919 = vld [vmem:[#allocation2 + $0x38] sm:$0xff]
    %v1048 = vunpack.c.l.b16 %v527
    %v1049 = vunpack.c.h.b16 %v527
    %v1050 = vunpack.c.l.b16 %v528
    %v1051 = vunpack.c.h.b16 %v528
    %v1052 = vunpack.c.l.b16 %v529
    %v1053 = vunpack.c.h.b16 %v529
    %v1054 = vunpack.c.l.b16 %v530
    %v1055 = vunpack.c.h.b16 %v530
    %v1056 = vunpack.c.l.b16 %v531
    %v1057 = vunpack.c.h.b16 %v531
    %v1058 = vunpack.c.l.b16 %v532
    %v1059 = vunpack.c.h.b16 %v532
    %v1060 = vunpack.c.l.b16 %v533
    %v1061 = vunpack.c.h.b16 %v533
    %v1062 = vunpack.c.l.b16 %v534
    %v1063 = vunpack.c.h.b16 %v534
    %v1064 = vunpack.c.l.b16 %v535
    %v1065 = vunpack.c.h.b16 %v535
    %v1066 = vunpack.c.l.b16 %v536
    %v1067 = vunpack.c.h.b16 %v536
    %v1068 = vunpack.c.l.b16 %v537
    %v1069 = vunpack.c.h.b16 %v537
    %v1070 = vunpack.c.l.b16 %v538
    %v1071 = vunpack.c.h.b16 %v538
    %v1072 = vunpack.c.l.b16 %v539
    %v1073 = vunpack.c.h.b16 %v539
    %v1074 = vunpack.c.l.b16 %v540
    %v1075 = vunpack.c.h.b16 %v540
    %v1076 = vunpack.c.l.b16 %v541
    %v1077 = vunpack.c.h.b16 %v541
    %v1078 = vunpack.c.l.b16 %v542
    %v1079 = vunpack.c.h.b16 %v542
    %v1080 = vunpack.c.l.b16 %v543
    %v1081 = vunpack.c.h.b16 %v543
    %v1082 = vunpack.c.l.b16 %v544
    %v1083 = vunpack.c.h.b16 %v544
    %v1084 = vunpack.c.l.b16 %v545
    %v1085 = vunpack.c.h.b16 %v545
    %v1086 = vunpack.c.l.b16 %v546
    %v1087 = vunpack.c.h.b16 %v546
    %v1088 = vunpack.c.l.b16 %v547
    %v1089 = vunpack.c.h.b16 %v547
    %v1090 = vunpack.c.l.b16 %v548
    %v1091 = vunpack.c.h.b16 %v548
    %v1092 = vunpack.c.l.b16 %v549
    %v1093 = vunpack.c.h.b16 %v549
    %v1094 = vunpack.c.l.b16 %v550
    %v1095 = vunpack.c.h.b16 %v550
    %v1096 = vunpack.c.l.b16 %v551
    %v1097 = vunpack.c.h.b16 %v551
    %v1098 = vunpack.c.l.b16 %v552
    %v1099 = vunpack.c.h.b16 %v552
    %v1100 = vunpack.c.l.b16 %v553
    %v1101 = vunpack.c.h.b16 %v553
    %v1102 = vunpack.c.l.b16 %v554
    %v1103 = vunpack.c.h.b16 %v554
    %v1104 = vunpack.c.l.b16 %v555
    %v1105 = vunpack.c.h.b16 %v555
    %v1106 = vunpack.c.l.b16 %v556
    %v1107 = vunpack.c.h.b16 %v556
    %v1108 = vunpack.c.l.b16 %v557
    %v1109 = vunpack.c.h.b16 %v557
    %v1110 = vunpack.c.l.b16 %v558
    %v1111 = vunpack.c.h.b16 %v558
    %v1112 = vunpack.c.l.b16 %v559
    %v1113 = vunpack.c.h.b16 %v559
    %v1114 = vunpack.c.l.b16 %v560
    %v1115 = vunpack.c.h.b16 %v560
    %v1116 = vunpack.c.l.b16 %v561
    %v1117 = vunpack.c.h.b16 %v561
    %v1118 = vunpack.c.l.b16 %v562
    %v1119 = vunpack.c.h.b16 %v562
    %v1120 = vunpack.c.l.b16 %v563
    %v1121 = vunpack.c.h.b16 %v563
    %v1122 = vunpack.c.l.b16 %v564
    %v1123 = vunpack.c.h.b16 %v564
    %v1124 = vunpack.c.l.b16 %v565
    %v1125 = vunpack.c.h.b16 %v565
    %v1126 = vunpack.c.l.b16 %v566
    %v1127 = vunpack.c.h.b16 %v566
    %v1128 = vunpack.c.l.b16 %v567
    %v1129 = vunpack.c.h.b16 %v567
    %v1130 = vunpack.c.l.b16 %v568
    %v1131 = vunpack.c.h.b16 %v568
    %v1132 = vunpack.c.l.b16 %v569
    %v1133 = vunpack.c.h.b16 %v569
    %v1134 = vunpack.c.l.b16 %v570
    %v1135 = vunpack.c.h.b16 %v570
    %v1136 = vunpack.c.l.b16 %v571
    %v1137 = vunpack.c.h.b16 %v571
    %v1138 = vunpack.c.l.b16 %v572
    %v1139 = vunpack.c.h.b16 %v572
    %v1140 = vunpack.c.l.b16 %v573
    %v1141 = vunpack.c.h.b16 %v573
    %v1142 = vunpack.c.l.b16 %v574
    %v1143 = vunpack.c.h.b16 %v574
    %v1144 = vunpack.c.l.b16 %v575
    %v1145 = vunpack.c.h.b16 %v575
    %v1146 = vunpack.c.l.b16 %v576
    %v1147 = vunpack.c.h.b16 %v576
    %v1148 = vunpack.c.l.b16 %v577
    %v1149 = vunpack.c.h.b16 %v577
    %v1150 = vunpack.c.l.b16 %v578
    %v1151 = vunpack.c.h.b16 %v578
    %v1152 = vunpack.c.l.b16 %v579
    %v1153 = vunpack.c.h.b16 %v579
    %v1154 = vunpack.c.l.b16 %v580
    %v1155 = vunpack.c.h.b16 %v580
    %v1156 = vunpack.c.l.b16 %v581
    %v1157 = vunpack.c.h.b16 %v581
    %v1158 = vunpack.c.l.b16 %v582
    %v1159 = vunpack.c.h.b16 %v582
    %v1160 = vunpack.c.l.b16 %v583
    %v1161 = vunpack.c.h.b16 %v583
    %v1162 = vunpack.c.l.b16 %v584
    %v1163 = vunpack.c.h.b16 %v584
    %v1164 = vunpack.c.l.b16 %v585
    %v1165 = vunpack.c.h.b16 %v585
    %v1166 = vunpack.c.l.b16 %v586
    %v1167 = vunpack.c.h.b16 %v586
    %v1168 = vunpack.c.l.b16 %v587
    %v1169 = vunpack.c.h.b16 %v587
    %v1170 = vunpack.c.l.b16 %v588
    %v1171 = vunpack.c.h.b16 %v588
    %v1172 = vunpack.c.l.b16 %v589
    %v1173 = vunpack.c.h.b16 %v589
    %v1174 = vunpack.c.l.b16 %v590
    %v1175 = vunpack.c.h.b16 %v590
    %v1176 = vunpack.c.l.b16 %v591
    %v1177 = vunpack.c.h.b16 %v591
    %v1178 = vunpack.c.l.b16 %v592
    %v1179 = vunpack.c.h.b16 %v592
    %v1180 = vunpack.c.l.b16 %v593
    %v1181 = vunpack.c.h.b16 %v593
    %v1182 = vunpack.c.l.b16 %v594
    %v1183 = vunpack.c.h.b16 %v594
    %v1184 = vunpack.c.l.b16 %v595
    %v1185 = vunpack.c.h.b16 %v595
    %v1186 = vunpack.c.l.b16 %v596
    %v1187 = vunpack.c.h.b16 %v596
    %v1188 = vunpack.c.l.b16 %v597
    %v1189 = vunpack.c.h.b16 %v597
    %v1190 = vunpack.c.l.b16 %v598
    %v1191 = vunpack.c.h.b16 %v598
    %v1192 = vunpack.c.l.b16 %v599
    %v1193 = vunpack.c.h.b16 %v599
    %v1194 = vunpack.c.l.b16 %v600
    %v1195 = vunpack.c.h.b16 %v600
    %v1196 = vunpack.c.l.b16 %v601
    %v1197 = vunpack.c.h.b16 %v601
    %v1198 = vunpack.c.l.b16 %v602
    %v1199 = vunpack.c.h.b16 %v602
    %v1200 = vunpack.c.l.b16 %v603
    %v1201 = vunpack.c.h.b16 %v603
    %v1202 = vunpack.c.l.b16 %v604
    %v1203 = vunpack.c.h.b16 %v604
    %v1204 = vunpack.c.l.b16 %v605
    %v1205 = vunpack.c.h.b16 %v605
    %v1206 = vunpack.c.l.b16 %v606
    %v1207 = vunpack.c.h.b16 %v606
    %v1208 = vunpack.c.l.b16 %v607
    %v1209 = vunpack.c.h.b16 %v607
    %v1210 = vunpack.c.l.b16 %v608
    %v1211 = vunpack.c.h.b16 %v608
    %v1212 = vunpack.c.l.b16 %v609
    %v1213 = vunpack.c.h.b16 %v609
    %v1214 = vunpack.c.l.b16 %v610
    %v1215 = vunpack.c.h.b16 %v610
    %v1216 = vunpack.c.l.b16 %v611
    %v1217 = vunpack.c.h.b16 %v611
    %v1218 = vunpack.c.l.b16 %v612
    %v1219 = vunpack.c.h.b16 %v612
    %v1220 = vunpack.c.l.b16 %v613
    %v1221 = vunpack.c.h.b16 %v613
    %v1222 = vunpack.c.l.b16 %v614
    %v1223 = vunpack.c.h.b16 %v614
    %v1224 = vunpack.c.l.b16 %v615
    %v1225 = vunpack.c.h.b16 %v615
    %v1226 = vunpack.c.l.b16 %v616
    %v1227 = vunpack.c.h.b16 %v616
    %v1228 = vunpack.c.l.b16 %v617
    %v1229 = vunpack.c.h.b16 %v617
    %v1230 = vunpack.c.l.b16 %v618
    %v1231 = vunpack.c.h.b16 %v618
    %v1232 = vunpack.c.l.b16 %v619
    %v1233 = vunpack.c.h.b16 %v619
    %v1234 = vunpack.c.l.b16 %v620
    %v1235 = vunpack.c.h.b16 %v620
    %v1236 = vunpack.c.l.b16 %v621
    %v1237 = vunpack.c.h.b16 %v621
    %v1238 = vunpack.c.l.b16 %v622
    %v1239 = vunpack.c.h.b16 %v622
    %v1240 = vunpack.c.l.b16 %v623
    %v1241 = vunpack.c.h.b16 %v623
    %v1242 = vunpack.c.l.b16 %v624
    %v1243 = vunpack.c.h.b16 %v624
    %v1244 = vunpack.c.l.b16 %v625
    %v1245 = vunpack.c.h.b16 %v625
    %v1246 = vunpack.c.l.b16 %v626
    %v1247 = vunpack.c.h.b16 %v626
    %v1248 = vunpack.c.l.b16 %v627
    %v1249 = vunpack.c.h.b16 %v627
    %v1250 = vunpack.c.l.b16 %v628
    %v1251 = vunpack.c.h.b16 %v628
    %v1252 = vunpack.c.l.b16 %v629
    %v1253 = vunpack.c.h.b16 %v629
    %v1254 = vunpack.c.l.b16 %v630
    %v1255 = vunpack.c.h.b16 %v630
    %v1256 = vunpack.c.l.b16 %v631
    %v1257 = vunpack.c.h.b16 %v631
    %v1258 = vunpack.c.l.b16 %v632
    %v1259 = vunpack.c.h.b16 %v632
    %v1260 = vunpack.c.l.b16 %v633
    %v1261 = vunpack.c.h.b16 %v633
    %v1262 = vunpack.c.l.b16 %v634
    %v1263 = vunpack.c.h.b16 %v634
    %v1264 = vunpack.c.l.b16 %v635
    %v1265 = vunpack.c.h.b16 %v635
    %v1266 = vunpack.c.l.b16 %v636
    %v1267 = vunpack.c.h.b16 %v636
    %v1268 = vunpack.c.l.b16 %v637
    %v1269 = vunpack.c.h.b16 %v637
    %v1270 = vunpack.c.l.b16 %v638
    %v1271 = vunpack.c.h.b16 %v638
    %v1272 = vunpack.c.l.b16 %v639
    %v1273 = vunpack.c.h.b16 %v639
    %v1274 = vunpack.c.l.b16 %v640
    %v1275 = vunpack.c.h.b16 %v640
    %v1276 = vunpack.c.l.b16 %v641
    %v1277 = vunpack.c.h.b16 %v641
    %v1278 = vunpack.c.l.b16 %v642
    %v1279 = vunpack.c.h.b16 %v642
    %v1280 = vunpack.c.l.b16 %v643
    %v1281 = vunpack.c.h.b16 %v643
    %v1282 = vunpack.c.l.b16 %v644
    %v1283 = vunpack.c.h.b16 %v644
    %v1284 = vunpack.c.l.b16 %v645
    %v1285 = vunpack.c.h.b16 %v645
    %v1286 = vunpack.c.l.b16 %v646
    %v1287 = vunpack.c.h.b16 %v646
    %v1288 = vunpack.c.l.b16 %v647
    %v1289 = vunpack.c.h.b16 %v647
    %v1290 = vunpack.c.l.b16 %v648
    %v1291 = vunpack.c.h.b16 %v648
    %v1292 = vunpack.c.l.b16 %v649
    %v1293 = vunpack.c.h.b16 %v649
    %v1294 = vunpack.c.l.b16 %v650
    %v1295 = vunpack.c.h.b16 %v650
    %v1296 = vunpack.c.l.b16 %v651
    %v1297 = vunpack.c.h.b16 %v651
    %v1298 = vunpack.c.l.b16 %v652
    %v1299 = vunpack.c.h.b16 %v652
    %v1300 = vunpack.c.l.b16 %v653
    %v1301 = vunpack.c.h.b16 %v653
    %v1302 = vunpack.c.l.b16 %v654
    %v1303 = vunpack.c.h.b16 %v654
    %v1304 = vpack.c.b16 %v1056, %v1048
    %v1305 = vpack.c.b16 %v1057, %v1049
    %v1306 = vpack.c.b16 %v1058, %v1050
    %v1307 = vpack.c.b16 %v1059, %v1051
    %v1308 = vpack.c.b16 %v1060, %v1052
    %v1309 = vpack.c.b16 %v1061, %v1053
    %v1310 = vpack.c.b16 %v1062, %v1054
    %v1311 = vpack.c.b16 %v1063, %v1055
    %v1312 = vpack.c.b16 %v1072, %v1064
    %v1313 = vpack.c.b16 %v1073, %v1065
    %v1314 = vpack.c.b16 %v1074, %v1066
    %v1315 = vpack.c.b16 %v1075, %v1067
    %v1316 = vpack.c.b16 %v1076, %v1068
    %v1317 = vpack.c.b16 %v1077, %v1069
    %v1318 = vpack.c.b16 %v1078, %v1070
    %v1319 = vpack.c.b16 %v1079, %v1071
    %v1320 = vpack.c.b16 %v1088, %v1080
    %v1321 = vpack.c.b16 %v1089, %v1081
    %v1322 = vpack.c.b16 %v1090, %v1082
    %v1323 = vpack.c.b16 %v1091, %v1083
    %v1324 = vpack.c.b16 %v1092, %v1084
    %v1325 = vpack.c.b16 %v1093, %v1085
    %v1326 = vpack.c.b16 %v1094, %v1086
    %v1327 = vpack.c.b16 %v1095, %v1087
    %v1328 = vpack.c.b16 %v1104, %v1096
    %v1329 = vpack.c.b16 %v1105, %v1097
    %v1330 = vpack.c.b16 %v1106, %v1098
    %v1331 = vpack.c.b16 %v1107, %v1099
    %v1332 = vpack.c.b16 %v1108, %v1100
    %v1333 = vpack.c.b16 %v1109, %v1101
    %v1334 = vpack.c.b16 %v1110, %v1102
    %v1335 = vpack.c.b16 %v1111, %v1103
    %v1336 = vpack.c.b16 %v1120, %v1112
    %v1337 = vpack.c.b16 %v1121, %v1113
    %v1338 = vpack.c.b16 %v1122, %v1114
    %v1339 = vpack.c.b16 %v1123, %v1115
    %v1340 = vpack.c.b16 %v1124, %v1116
    %v1341 = vpack.c.b16 %v1125, %v1117
    %v1342 = vpack.c.b16 %v1126, %v1118
    %v1343 = vpack.c.b16 %v1127, %v1119
    %v1344 = vpack.c.b16 %v1136, %v1128
    %v1345 = vpack.c.b16 %v1137, %v1129
    %v1346 = vpack.c.b16 %v1138, %v1130
    %v1347 = vpack.c.b16 %v1139, %v1131
    %v1348 = vpack.c.b16 %v1140, %v1132
    %v1349 = vpack.c.b16 %v1141, %v1133
    %v1350 = vpack.c.b16 %v1142, %v1134
    %v1351 = vpack.c.b16 %v1143, %v1135
    %v1352 = vpack.c.b16 %v1152, %v1144
    %v1353 = vpack.c.b16 %v1153, %v1145
    %v1354 = vpack.c.b16 %v1154, %v1146
    %v1355 = vpack.c.b16 %v1155, %v1147
    %v1356 = vpack.c.b16 %v1156, %v1148
    %v1357 = vpack.c.b16 %v1157, %v1149
    %v1358 = vpack.c.b16 %v1158, %v1150
    %v1359 = vpack.c.b16 %v1159, %v1151
    %v1360 = vpack.c.b16 %v1168, %v1160
    %v1361 = vpack.c.b16 %v1169, %v1161
    %v1362 = vpack.c.b16 %v1170, %v1162
    %v1363 = vpack.c.b16 %v1171, %v1163
    %v1364 = vpack.c.b16 %v1172, %v1164
    %v1365 = vpack.c.b16 %v1173, %v1165
    %v1366 = vpack.c.b16 %v1174, %v1166
    %v1367 = vpack.c.b16 %v1175, %v1167
    %v1368 = vpack.c.b16 %v1184, %v1176
    %v1369 = vpack.c.b16 %v1185, %v1177
    %v1370 = vpack.c.b16 %v1186, %v1178
    %v1371 = vpack.c.b16 %v1187, %v1179
    %v1372 = vpack.c.b16 %v1188, %v1180
    %v1373 = vpack.c.b16 %v1189, %v1181
    %v1374 = vpack.c.b16 %v1190, %v1182
    %v1375 = vpack.c.b16 %v1191, %v1183
    %v1376 = vpack.c.b16 %v1200, %v1192
    %v1377 = vpack.c.b16 %v1201, %v1193
    %v1378 = vpack.c.b16 %v1202, %v1194
    %v1379 = vpack.c.b16 %v1203, %v1195
    %v1380 = vpack.c.b16 %v1204, %v1196
    %v1381 = vpack.c.b16 %v1205, %v1197
    %v1382 = vpack.c.b16 %v1206, %v1198
    %v1383 = vpack.c.b16 %v1207, %v1199
    %v1384 = vpack.c.b16 %v1216, %v1208
    %v1385 = vpack.c.b16 %v1217, %v1209
    %v1386 = vpack.c.b16 %v1218, %v1210
    %v1387 = vpack.c.b16 %v1219, %v1211
    %v1388 = vpack.c.b16 %v1220, %v1212
    %v1389 = vpack.c.b16 %v1221, %v1213
    %v1390 = vpack.c.b16 %v1222, %v1214
    %v1391 = vpack.c.b16 %v1223, %v1215
    %v1392 = vpack.c.b16 %v1232, %v1224
    %v1393 = vpack.c.b16 %v1233, %v1225
    %v1394 = vpack.c.b16 %v1234, %v1226
    %v1395 = vpack.c.b16 %v1235, %v1227
    %v1396 = vpack.c.b16 %v1236, %v1228
    %v1397 = vpack.c.b16 %v1237, %v1229
    %v1398 = vpack.c.b16 %v1238, %v1230
    %v1399 = vpack.c.b16 %v1239, %v1231
    %v1400 = vpack.c.b16 %v1248, %v1240
    %v1401 = vpack.c.b16 %v1249, %v1241
    %v1402 = vpack.c.b16 %v1250, %v1242
    %v1403 = vpack.c.b16 %v1251, %v1243
    %v1404 = vpack.c.b16 %v1252, %v1244
    %v1405 = vpack.c.b16 %v1253, %v1245
    %v1406 = vpack.c.b16 %v1254, %v1246
    %v1407 = vpack.c.b16 %v1255, %v1247
    %v1408 = vpack.c.b16 %v1264, %v1256
    %v1409 = vpack.c.b16 %v1265, %v1257
    %v1410 = vpack.c.b16 %v1266, %v1258
    %v1411 = vpack.c.b16 %v1267, %v1259
    %v1412 = vpack.c.b16 %v1268, %v1260
    %v1413 = vpack.c.b16 %v1269, %v1261
    %v1414 = vpack.c.b16 %v1270, %v1262
    %v1415 = vpack.c.b16 %v1271, %v1263
    %v1416 = vpack.c.b16 %v1280, %v1272
    %v1417 = vpack.c.b16 %v1281, %v1273
    %v1418 = vpack.c.b16 %v1282, %v1274
    %v1419 = vpack.c.b16 %v1283, %v1275
    %v1420 = vpack.c.b16 %v1284, %v1276
    %v1421 = vpack.c.b16 %v1285, %v1277
    %v1422 = vpack.c.b16 %v1286, %v1278
    %v1423 = vpack.c.b16 %v1287, %v1279
    %v1424 = vpack.c.b16 %v1296, %v1288
    %v1425 = vpack.c.b16 %v1297, %v1289
    %v1426 = vpack.c.b16 %v1298, %v1290
    %v1427 = vpack.c.b16 %v1299, %v1291
    %v1428 = vpack.c.b16 %v1300, %v1292
    %v1429 = vpack.c.b16 %v1301, %v1293
    %v1430 = vpack.c.b16 %v1302, %v1294
    %v1431 = vpack.c.b16 %v1303, %v1295
    %1560 = vmatprep.subr.bf16.mxu0 %v1361
    %1561 = vmatpush1.bf16.msra.mxu0 %v1360
    %1562 = vmatprep.subr.bf16.mxu0 %v1353
    %1563 = vmatpush1.bf16.msra.mxu0 %v1352
    %1564 = vmatprep.subr.bf16.mxu0 %v1345
    %1565 = vmatpush1.bf16.msra.mxu0 %v1344
    %1566 = vmatprep.subr.bf16.mxu0 %v1337
    %1567 = vmatpush1.bf16.msra.mxu0 %v1336
    %1568 = vmatprep.subr.bf16.mxu0 %v1329
    %1569 = vmatpush1.bf16.msra.mxu0 %v1328
    %1570 = vmatprep.subr.bf16.mxu0 %v1321
    %1571 = vmatpush1.bf16.msra.mxu0 %v1320
    %1572 = vmatprep.subr.bf16.mxu0 %v1313
    %1573 = vmatpush1.bf16.msra.mxu0 %v1312
    %1574 = vmatprep.subr.bf16.mxu0 %v1305
    %1575 = vmatpush1.bf16.msra.mxu0 %v1304
    %1576 = vmatprep.subr.bf16.mxu0 %v1425
    %1577 = vmatpush2.bf16.msra.mxu0 %v1424
    %1578 = vmatprep.subr.bf16.mxu0 %v1417
    %1579 = vmatpush2.bf16.msra.mxu0 %v1416
    %1580 = vmatprep.subr.bf16.mxu0 %v1409
    %1581 = vmatpush2.bf16.msra.mxu0 %v1408
    %1582 = vmatprep.subr.bf16.mxu0 %v1401
    %1583 = vmatpush2.bf16.msra.mxu0 %v1400
    %1584 = vmatprep.subr.bf16.mxu0 %v1393
    %1585 = vmatpush2.bf16.msra.mxu0 %v1392
    %1586 = vmatprep.subr.bf16.mxu0 %v1385
    %1587 = vmatpush2.bf16.msra.mxu0 %v1384
    %1588 = vmatprep.subr.bf16.mxu0 %v1377
    %1589 = vmatpush2.bf16.msra.mxu0 %v1376
    %1590 = vmatprep.subr.bf16.mxu0 %v1369
    %1591 = vmatpush2.bf16.msra.mxu0 %v1368
    %1592 = vmatprep.mubr.bf16.mxu0 0
    %1593 = vmatmul.mubr.bf16.gmra.mxu0 0
    %v1594 = vpop.f32.mrf.mxu0
    %v1595 = vadd.f32 0.0, %v1594
    %v1596 = vpop.f32.mrf.mxu0
    %v1597 = vadd.f32 0.0, %v1596
    %v1598 = vpop.f32.mrf.mxu0
    %v1599 = vpop.f32.mrf.mxu0
    %1600 = vdwg.mxu0
    %1601 = vmatprep.subr.bf16.mxu0 %v1363
    %1602 = vmatpush1.bf16.msra.mxu0 %v1362
    %1603 = vmatprep.subr.bf16.mxu0 %v1355
    %1604 = vmatpush1.bf16.msra.mxu0 %v1354
    %1605 = vmatprep.subr.bf16.mxu0 %v1347
    %1606 = vmatpush1.bf16.msra.mxu0 %v1346
    %1607 = vmatprep.subr.bf16.mxu0 %v1339
    %1608 = vmatpush1.bf16.msra.mxu0 %v1338
    %1609 = vmatprep.subr.bf16.mxu0 %v1331
    %1610 = vmatpush1.bf16.msra.mxu0 %v1330
    %1611 = vmatprep.subr.bf16.mxu0 %v1323
    %1612 = vmatpush1.bf16.msra.mxu0 %v1322
    %1613 = vmatprep.subr.bf16.mxu0 %v1315
    %1614 = vmatpush1.bf16.msra.mxu0 %v1314
    %1615 = vmatprep.subr.bf16.mxu0 %v1307
    %1616 = vmatpush1.bf16.msra.mxu0 %v1306
    %1617 = vmatprep.subr.bf16.mxu0 %v1427
    %1618 = vmatpush2.bf16.msra.mxu0 %v1426
    %1619 = vmatprep.subr.bf16.mxu0 %v1419
    %1620 = vmatpush2.bf16.msra.mxu0 %v1418
    %1621 = vmatprep.subr.bf16.mxu0 %v1411
    %1622 = vmatpush2.bf16.msra.mxu0 %v1410
    %1623 = vmatprep.subr.bf16.mxu0 %v1403
    %1624 = vmatpush2.bf16.msra.mxu0 %v1402
    %1625 = vmatprep.subr.bf16.mxu0 %v1395
    %1626 = vmatpush2.bf16.msra.mxu0 %v1394
    %1627 = vmatprep.subr.bf16.mxu0 %v1387
    %1628 = vmatpush2.bf16.msra.mxu0 %v1386
    %1629 = vmatprep.subr.bf16.mxu0 %v1379
    %1630 = vmatpush2.bf16.msra.mxu0 %v1378
    %1631 = vmatprep.subr.bf16.mxu0 %v1371
    %1632 = vmatpush2.bf16.msra.mxu0 %v1370
    %1633 = vmatprep.mubr.bf16.mxu0 0
    %1634 = vmatmul.mubr.bf16.gmra.mxu0 0
    %v1635 = vpop.f32.mrf.mxu0
    %v1636 = vadd.f32 0.0, %v1635
    %v1637 = vpop.f32.mrf.mxu0
    %v1638 = vadd.f32 0.0, %v1637
    %v1639 = vpop.f32.mrf.mxu0
    %v1640 = vpop.f32.mrf.mxu0
    %1641 = vdwg.mxu0
    %1642 = vmatprep.subr.bf16.mxu0 %v1365
    %1643 = vmatpush1.bf16.msra.mxu0 %v1364
    %1644 = vmatprep.subr.bf16.mxu0 %v1357
    %1645 = vmatpush1.bf16.msra.mxu0 %v1356
    %1646 = vmatprep.subr.bf16.mxu0 %v1349
    %1647 = vmatpush1.bf16.msra.mxu0 %v1348
    %1648 = vmatprep.subr.bf16.mxu0 %v1341
    %1649 = vmatpush1.bf16.msra.mxu0 %v1340
    %1650 = vmatprep.subr.bf16.mxu0 %v1333
    %1651 = vmatpush1.bf16.msra.mxu0 %v1332
    %1652 = vmatprep.subr.bf16.mxu0 %v1325
    %1653 = vmatpush1.bf16.msra.mxu0 %v1324
    %1654 = vmatprep.subr.bf16.mxu0 %v1317
    %1655 = vmatpush1.bf16.msra.mxu0 %v1316
    %1656 = vmatprep.subr.bf16.mxu0 %v1309
    %1657 = vmatpush1.bf16.msra.mxu0 %v1308
    %1658 = vmatprep.subr.bf16.mxu0 %v1429
    %1659 = vmatpush2.bf16.msra.mxu0 %v1428
    %1660 = vmatprep.subr.bf16.mxu0 %v1421
    %1661 = vmatpush2.bf16.msra.mxu0 %v1420
    %1662 = vmatprep.subr.bf16.mxu0 %v1413
    %1663 = vmatpush2.bf16.msra.mxu0 %v1412
    %1664 = vmatprep.subr.bf16.mxu0 %v1405
    %1665 = vmatpush2.bf16.msra.mxu0 %v1404
    %1666 = vmatprep.subr.bf16.mxu0 %v1397
    %1667 = vmatpush2.bf16.msra.mxu0 %v1396
    %1668 = vmatprep.subr.bf16.mxu0 %v1389
    %1669 = vmatpush2.bf16.msra.mxu0 %v1388
    %1670 = vmatprep.subr.bf16.mxu0 %v1381
    %1671 = vmatpush2.bf16.msra.mxu0 %v1380
    %1672 = vmatprep.subr.bf16.mxu0 %v1373
    %1673 = vmatpush2.bf16.msra.mxu0 %v1372
    %1674 = vmatprep.mubr.bf16.mxu0 0
    %1675 = vmatmul.mubr.bf16.gmra.mxu0 0
    %v1676 = vpop.f32.mrf.mxu0
    %v1677 = vadd.f32 0.0, %v1676
    %v1678 = vpop.f32.mrf.mxu0
    %v1679 = vadd.f32 0.0, %v1678
    %v1680 = vpop.f32.mrf.mxu0
    %v1681 = vpop.f32.mrf.mxu0
    %1682 = vdwg.mxu0
    %1683 = vmatprep.subr.bf16.mxu0 %v1367
    %1684 = vmatpush1.bf16.msra.mxu0 %v1366
    %1685 = vmatprep.subr.bf16.mxu0 %v1359
    %1686 = vmatpush1.bf16.msra.mxu0 %v1358
    %1687 = vmatprep.subr.bf16.mxu0 %v1351
    %1688 = vmatpush1.bf16.msra.mxu0 %v1350
    %1689 = vmatprep.subr.bf16.mxu0 %v1343
    %1690 = vmatpush1.bf16.msra.mxu0 %v1342
    %1691 = vmatprep.subr.bf16.mxu0 %v1335
    %1692 = vmatpush1.bf16.msra.mxu0 %v1334
    %1693 = vmatprep.subr.bf16.mxu0 %v1327
    %1694 = vmatpush1.bf16.msra.mxu0 %v1326
    %1695 = vmatprep.subr.bf16.mxu0 %v1319
    %1696 = vmatpush1.bf16.msra.mxu0 %v1318
    %1697 = vmatprep.subr.bf16.mxu0 %v1311
    %1698 = vmatpush1.bf16.msra.mxu0 %v1310
    %1699 = vmatprep.subr.bf16.mxu0 %v1431
    %1700 = vmatpush2.bf16.msra.mxu0 %v1430
    %1701 = vmatprep.subr.bf16.mxu0 %v1423
    %1702 = vmatpush2.bf16.msra.mxu0 %v1422
    %1703 = vmatprep.subr.bf16.mxu0 %v1415
    %1704 = vmatpush2.bf16.msra.mxu0 %v1414
    %1705 = vmatprep.subr.bf16.mxu0 %v1407
    %1706 = vmatpush2.bf16.msra.mxu0 %v1406
    %1707 = vmatprep.subr.bf16.mxu0 %v1399
    %1708 = vmatpush2.bf16.msra.mxu0 %v1398
    %1709 = vmatprep.subr.bf16.mxu0 %v1391
    %1710 = vmatpush2.bf16.msra.mxu0 %v1390
    %1711 = vmatprep.subr.bf16.mxu0 %v1383
    %1712 = vmatpush2.bf16.msra.mxu0 %v1382
    %1713 = vmatprep.subr.bf16.mxu0 %v1375
    %1714 = vmatpush2.bf16.msra.mxu0 %v1374
    %1715 = vmatprep.mubr.bf16.mxu0 0
    %1716 = vmatmul.mubr.bf16.gmra.mxu0 0
    %v1717 = vpop.f32.mrf.mxu0
    %v1718 = vadd.f32 0.0, %v1717
    %v1719 = vpop.f32.mrf.mxu0
    %v1720 = vadd.f32 0.0, %v1719
    %v1721 = vpop.f32.mrf.mxu0
    %v1722 = vpop.f32.mrf.mxu0
    %1723 = vdwg.mxu0
    %v1724 = vadd.f32 %v912, %v1595
    %v1725 = vadd.f32 %v913, %v1597
    %v1726 = vadd.f32 %v914, %v1636
    %v1727 = vadd.f32 %v915, %v1638
    %v1728 = vadd.f32 %v916, %v1677
    %v1729 = vadd.f32 %v917, %v1679
    %v1730 = vadd.f32 %v918, %v1718
    %v1731 = vadd.f32 %v919, %v1720
    %v1732 = vxor.u32 %v1724, 2147483648
    %v1733 = vxor.u32 %v1725, 2147483648
    %v1734 = vmul.f32 %v1732, 1.442695
    %v1735 = vpow.pop %v1734
    %v1736 = vmul.f32 %v1733, 1.442695
    %v1737 = vpow.pop %v1736
    %v1738 = vadd.f32 %v1735, 1.0
    %v1739 = vadd.f32 %v1737, 1.0
    %v1740 = vrcp.pop %v1738
    %v1741 = vmul.f32 1.0, %v1740
    %v1742 = vrcp.pop %v1739
    %v1743 = vmul.f32 1.0, %v1742
    %v1744 = vxor.u32 %v1726, 2147483648
    %v1745 = vxor.u32 %v1727, 2147483648
    %v1746 = vmul.f32 %v1744, 1.442695
    %v1747 = vpow.pop %v1746
    %v1748 = vmul.f32 %v1745, 1.442695
    %v1749 = vpow.pop %v1748
    %v1750 = vadd.f32 %v1747, 1.0
    %v1751 = vadd.f32 %v1749, 1.0
    %v1752 = vrcp.pop %v1750
    %v1753 = vmul.f32 1.0, %v1752
    %v1754 = vrcp.pop %v1751
    %v1755 = vmul.f32 1.0, %v1754
    %v1756 = vtanh.pop %v1728
    %v1757 = vtanh.pop %v1729
    %v1758 = vxor.u32 %v1730, 2147483648
    %v1759 = vxor.u32 %v1731, 2147483648
    %v1760 = vmul.f32 %v1758, 1.442695
    %v1761 = vpow.pop %v1760
    %v1762 = vmul.f32 %v1759, 1.442695
    %v1763 = vpow.pop %v1762
    %v1764 = vadd.f32 %v1761, 1.0
    %v1765 = vadd.f32 %v1763, 1.0
    %v1766 = vrcp.pop %v1764
    %v1767 = vmul.f32 1.0, %v1766
    %v1768 = vrcp.pop %v1765
    %v1769 = vmul.f32 1.0, %v1768
    %v1770 = vmul.f32 %v1753, 0.0
    %v1771 = vmul.f32 %v1755, 0.0
    %v1772 = vmul.f32 %v1741, %v1756
    %v1773 = vmul.f32 %v1743, %v1757
    %v1774 = vadd.f32 %v1770, %v1772
    %v1775 = vadd.f32 %v1771, %v1773
    %v1776 = vtanh.pop %v1774
    %v1777 = vtanh.pop %v1775
    %v1778 = vmul.f32 %v1767, %v1776
    %v1779 = vmul.f32 %v1769, %v1777
    %v1780 = vpack.c.bf16 %v1778, %v1778
    %v1781 = vpack.c.bf16 %v1779, %v1779
    %v1783 = vlaneseq
    %v1784 = vshrl.u32 %v1783, 7
    %v1785 = vsub.s32 0, %v1784
    %v1786 = vrot.slane %v911, %v1785
    %v1787 = vlaneseq
    %v1788 = vshrl.u32 %v1787, 7
    %v1789 = vsub.s32 1, %v1788
    %v1790 = vrot.slane %v911, %v1789
    %v1791 = vlaneseq
    %v1792 = vshrl.u32 %v1791, 7
    %v1793 = vsub.s32 2, %v1792
    %v1794 = vrot.slane %v911, %v1793
    %v1795 = vlaneseq
    %v1796 = vshrl.u32 %v1795, 7
    %v1797 = vsub.s32 3, %v1796
    %v1798 = vrot.slane %v911, %v1797
    %v1799 = vlaneseq
    %v1800 = vshrl.u32 %v1799, 7
    %v1801 = vsub.s32 4, %v1800
    %v1802 = vrot.slane %v911, %v1801
    %v1803 = vlaneseq
    %v1804 = vshrl.u32 %v1803, 7
    %v1805 = vsub.s32 5, %v1804
    %v1806 = vrot.slane %v911, %v1805
    %v1807 = vlaneseq
    %v1808 = vshrl.u32 %v1807, 7
    %v1809 = vsub.s32 6, %v1808
    %v1810 = vrot.slane %v911, %v1809
    %v1811 = vlaneseq
    %v1812 = vshrl.u32 %v1811, 7
    %v1813 = vsub.s32 7, %v1812
    %v1814 = vrot.slane %v911, %v1813
    %v1951 = vunpack.c.l.b16 %v655
    %v1952 = vunpack.c.h.b16 %v655
    %v1953 = vunpack.c.l.b16 %v656
    %v1954 = vunpack.c.h.b16 %v656
    %v1955 = vunpack.c.l.b16 %v657
    %v1956 = vunpack.c.h.b16 %v657
    %v1957 = vunpack.c.l.b16 %v658
    %v1958 = vunpack.c.h.b16 %v658
    %v1959 = vunpack.c.l.b16 %v659
    %v1960 = vunpack.c.h.b16 %v659
    %v1961 = vunpack.c.l.b16 %v660
    %v1962 = vunpack.c.h.b16 %v660
    %v1963 = vunpack.c.l.b16 %v661
    %v1964 = vunpack.c.h.b16 %v661
    %v1965 = vunpack.c.l.b16 %v662
    %v1966 = vunpack.c.h.b16 %v662
    %v1967 = vunpack.c.l.b16 %v663
    %v1968 = vunpack.c.h.b16 %v663
    %v1969 = vunpack.c.l.b16 %v664
    %v1970 = vunpack.c.h.b16 %v664
    %v1971 = vunpack.c.l.b16 %v665
    %v1972 = vunpack.c.h.b16 %v665
    %v1973 = vunpack.c.l.b16 %v666
    %v1974 = vunpack.c.h.b16 %v666
    %v1975 = vunpack.c.l.b16 %v667
    %v1976 = vunpack.c.h.b16 %v667
    %v1977 = vunpack.c.l.b16 %v668
    %v1978 = vunpack.c.h.b16 %v668
    %v1979 = vunpack.c.l.b16 %v669
    %v1980 = vunpack.c.h.b16 %v669
    %v1981 = vunpack.c.l.b16 %v670
    %v1982 = vunpack.c.h.b16 %v670
    %v1983 = vunpack.c.l.b16 %v671
    %v1984 = vunpack.c.h.b16 %v671
    %v1985 = vunpack.c.l.b16 %v672
    %v1986 = vunpack.c.h.b16 %v672
    %v1987 = vunpack.c.l.b16 %v673
    %v1988 = vunpack.c.h.b16 %v673
    %v1989 = vunpack.c.l.b16 %v674
    %v1990 = vunpack.c.h.b16 %v674
    %v1991 = vunpack.c.l.b16 %v675
    %v1992 = vunpack.c.h.b16 %v675
    %v1993 = vunpack.c.l.b16 %v676
    %v1994 = vunpack.c.h.b16 %v676
    %v1995 = vunpack.c.l.b16 %v677
    %v1996 = vunpack.c.h.b16 %v677
    %v1997 = vunpack.c.l.b16 %v678
    %v1998 = vunpack.c.h.b16 %v678
    %v1999 = vunpack.c.l.b16 %v679
    %v2000 = vunpack.c.h.b16 %v679
    %v2001 = vunpack.c.l.b16 %v680
    %v2002 = vunpack.c.h.b16 %v680
    %v2003 = vunpack.c.l.b16 %v681
    %v2004 = vunpack.c.h.b16 %v681
    %v2005 = vunpack.c.l.b16 %v682
    %v2006 = vunpack.c.h.b16 %v682
    %v2007 = vunpack.c.l.b16 %v683
    %v2008 = vunpack.c.h.b16 %v683
    %v2009 = vunpack.c.l.b16 %v684
    %v2010 = vunpack.c.h.b16 %v684
    %v2011 = vunpack.c.l.b16 %v685
    %v2012 = vunpack.c.h.b16 %v685
    %v2013 = vunpack.c.l.b16 %v686
    %v2014 = vunpack.c.h.b16 %v686
    %v2015 = vunpack.c.l.b16 %v687
    %v2016 = vunpack.c.h.b16 %v687
    %v2017 = vunpack.c.l.b16 %v688
    %v2018 = vunpack.c.h.b16 %v688
    %v2019 = vunpack.c.l.b16 %v689
    %v2020 = vunpack.c.h.b16 %v689
    %v2021 = vunpack.c.l.b16 %v690
    %v2022 = vunpack.c.h.b16 %v690
    %v2023 = vunpack.c.l.b16 %v691
    %v2024 = vunpack.c.h.b16 %v691
    %v2025 = vunpack.c.l.b16 %v692
    %v2026 = vunpack.c.h.b16 %v692
    %v2027 = vunpack.c.l.b16 %v693
    %v2028 = vunpack.c.h.b16 %v693
    %v2029 = vunpack.c.l.b16 %v694
    %v2030 = vunpack.c.h.b16 %v694
    %v2031 = vunpack.c.l.b16 %v695
    %v2032 = vunpack.c.h.b16 %v695
    %v2033 = vunpack.c.l.b16 %v696
    %v2034 = vunpack.c.h.b16 %v696
    %v2035 = vunpack.c.l.b16 %v697
    %v2036 = vunpack.c.h.b16 %v697
    %v2037 = vunpack.c.l.b16 %v698
    %v2038 = vunpack.c.h.b16 %v698
    %v2039 = vunpack.c.l.b16 %v699
    %v2040 = vunpack.c.h.b16 %v699
    %v2041 = vunpack.c.l.b16 %v700
    %v2042 = vunpack.c.h.b16 %v700
    %v2043 = vunpack.c.l.b16 %v701
    %v2044 = vunpack.c.h.b16 %v701
    %v2045 = vunpack.c.l.b16 %v702
    %v2046 = vunpack.c.h.b16 %v702
    %v2047 = vunpack.c.l.b16 %v703
    %v2048 = vunpack.c.h.b16 %v703
    %v2049 = vunpack.c.l.b16 %v704
    %v2050 = vunpack.c.h.b16 %v704
    %v2051 = vunpack.c.l.b16 %v705
    %v2052 = vunpack.c.h.b16 %v705
    %v2053 = vunpack.c.l.b16 %v706
    %v2054 = vunpack.c.h.b16 %v706
    %v2055 = vunpack.c.l.b16 %v707
    %v2056 = vunpack.c.h.b16 %v707
    %v2057 = vunpack.c.l.b16 %v708
    %v2058 = vunpack.c.h.b16 %v708
    %v2059 = vunpack.c.l.b16 %v709
    %v2060 = vunpack.c.h.b16 %v709
    %v2061 = vunpack.c.l.b16 %v710
    %v2062 = vunpack.c.h.b16 %v710
    %v2063 = vunpack.c.l.b16 %v711
    %v2064 = vunpack.c.h.b16 %v711
    %v2065 = vunpack.c.l.b16 %v712
    %v2066 = vunpack.c.h.b16 %v712
    %v2067 = vunpack.c.l.b16 %v713
    %v2068 = vunpack.c.h.b16 %v713
    %v2069 = vunpack.c.l.b16 %v714
    %v2070 = vunpack.c.h.b16 %v714
    %v2071 = vunpack.c.l.b16 %v715
    %v2072 = vunpack.c.h.b16 %v715
    %v2073 = vunpack.c.l.b16 %v716
    %v2074 = vunpack.c.h.b16 %v716
    %v2075 = vunpack.c.l.b16 %v717
    %v2076 = vunpack.c.h.b16 %v717
    %v2077 = vunpack.c.l.b16 %v718
    %v2078 = vunpack.c.h.b16 %v718
    %v2079 = vunpack.c.l.b16 %v719
    %v2080 = vunpack.c.h.b16 %v719
    %v2081 = vunpack.c.l.b16 %v720
    %v2082 = vunpack.c.h.b16 %v720
    %v2083 = vunpack.c.l.b16 %v721
    %v2084 = vunpack.c.h.b16 %v721
    %v2085 = vunpack.c.l.b16 %v722
    %v2086 = vunpack.c.h.b16 %v722
    %v2087 = vunpack.c.l.b16 %v723
    %v2088 = vunpack.c.h.b16 %v723
    %v2089 = vunpack.c.l.b16 %v724
    %v2090 = vunpack.c.h.b16 %v724
    %v2091 = vunpack.c.l.b16 %v725
    %v2092 = vunpack.c.h.b16 %v725
    %v2093 = vunpack.c.l.b16 %v726
    %v2094 = vunpack.c.h.b16 %v726
    %v2095 = vunpack.c.l.b16 %v727
    %v2096 = vunpack.c.h.b16 %v727
    %v2097 = vunpack.c.l.b16 %v728
    %v2098 = vunpack.c.h.b16 %v728
    %v2099 = vunpack.c.l.b16 %v729
    %v2100 = vunpack.c.h.b16 %v729
    %v2101 = vunpack.c.l.b16 %v730
    %v2102 = vunpack.c.h.b16 %v730
    %v2103 = vunpack.c.l.b16 %v731
    %v2104 = vunpack.c.h.b16 %v731
    %v2105 = vunpack.c.l.b16 %v732
    %v2106 = vunpack.c.h.b16 %v732
    %v2107 = vunpack.c.l.b16 %v733
    %v2108 = vunpack.c.h.b16 %v733
    %v2109 = vunpack.c.l.b16 %v734
    %v2110 = vunpack.c.h.b16 %v734
    %v2111 = vunpack.c.l.b16 %v735
    %v2112 = vunpack.c.h.b16 %v735
    %v2113 = vunpack.c.l.b16 %v736
    %v2114 = vunpack.c.h.b16 %v736
    %v2115 = vunpack.c.l.b16 %v737
    %v2116 = vunpack.c.h.b16 %v737
    %v2117 = vunpack.c.l.b16 %v738
    %v2118 = vunpack.c.h.b16 %v738
    %v2119 = vunpack.c.l.b16 %v739
    %v2120 = vunpack.c.h.b16 %v739
    %v2121 = vunpack.c.l.b16 %v740
    %v2122 = vunpack.c.h.b16 %v740
    %v2123 = vunpack.c.l.b16 %v741
    %v2124 = vunpack.c.h.b16 %v741
    %v2125 = vunpack.c.l.b16 %v742
    %v2126 = vunpack.c.h.b16 %v742
    %v2127 = vunpack.c.l.b16 %v743
    %v2128 = vunpack.c.h.b16 %v743
    %v2129 = vunpack.c.l.b16 %v744
    %v2130 = vunpack.c.h.b16 %v744
    %v2131 = vunpack.c.l.b16 %v745
    %v2132 = vunpack.c.h.b16 %v745
    %v2133 = vunpack.c.l.b16 %v746
    %v2134 = vunpack.c.h.b16 %v746
    %v2135 = vunpack.c.l.b16 %v747
    %v2136 = vunpack.c.h.b16 %v747
    %v2137 = vunpack.c.l.b16 %v748
    %v2138 = vunpack.c.h.b16 %v748
    %v2139 = vunpack.c.l.b16 %v749
    %v2140 = vunpack.c.h.b16 %v749
    %v2141 = vunpack.c.l.b16 %v750
    %v2142 = vunpack.c.h.b16 %v750
    %v2143 = vunpack.c.l.b16 %v751
    %v2144 = vunpack.c.h.b16 %v751
    %v2145 = vunpack.c.l.b16 %v752
    %v2146 = vunpack.c.h.b16 %v752
    %v2147 = vunpack.c.l.b16 %v753
    %v2148 = vunpack.c.h.b16 %v753
    %v2149 = vunpack.c.l.b16 %v754
    %v2150 = vunpack.c.h.b16 %v754
    %v2151 = vunpack.c.l.b16 %v755
    %v2152 = vunpack.c.h.b16 %v755
    %v2153 = vunpack.c.l.b16 %v756
    %v2154 = vunpack.c.h.b16 %v756
    %v2155 = vunpack.c.l.b16 %v757
    %v2156 = vunpack.c.h.b16 %v757
    %v2157 = vunpack.c.l.b16 %v758
    %v2158 = vunpack.c.h.b16 %v758
    %v2159 = vunpack.c.l.b16 %v759
    %v2160 = vunpack.c.h.b16 %v759
    %v2161 = vunpack.c.l.b16 %v760
    %v2162 = vunpack.c.h.b16 %v760
    %v2163 = vunpack.c.l.b16 %v761
    %v2164 = vunpack.c.h.b16 %v761
    %v2165 = vunpack.c.l.b16 %v762
    %v2166 = vunpack.c.h.b16 %v762
    %v2167 = vunpack.c.l.b16 %v763
    %v2168 = vunpack.c.h.b16 %v763
    %v2169 = vunpack.c.l.b16 %v764
    %v2170 = vunpack.c.h.b16 %v764
    %v2171 = vunpack.c.l.b16 %v765
    %v2172 = vunpack.c.h.b16 %v765
    %v2173 = vunpack.c.l.b16 %v766
    %v2174 = vunpack.c.h.b16 %v766
    %v2175 = vunpack.c.l.b16 %v767
    %v2176 = vunpack.c.h.b16 %v767
    %v2177 = vunpack.c.l.b16 %v768
    %v2178 = vunpack.c.h.b16 %v768
    %v2179 = vunpack.c.l.b16 %v769
    %v2180 = vunpack.c.h.b16 %v769
    %v2181 = vunpack.c.l.b16 %v770
    %v2182 = vunpack.c.h.b16 %v770
    %v2183 = vunpack.c.l.b16 %v771
    %v2184 = vunpack.c.h.b16 %v771
    %v2185 = vunpack.c.l.b16 %v772
    %v2186 = vunpack.c.h.b16 %v772
    %v2187 = vunpack.c.l.b16 %v773
    %v2188 = vunpack.c.h.b16 %v773
    %v2189 = vunpack.c.l.b16 %v774
    %v2190 = vunpack.c.h.b16 %v774
    %v2191 = vunpack.c.l.b16 %v775
    %v2192 = vunpack.c.h.b16 %v775
    %v2193 = vunpack.c.l.b16 %v776
    %v2194 = vunpack.c.h.b16 %v776
    %v2195 = vunpack.c.l.b16 %v777
    %v2196 = vunpack.c.h.b16 %v777
    %v2197 = vunpack.c.l.b16 %v778
    %v2198 = vunpack.c.h.b16 %v778
    %v2199 = vunpack.c.l.b16 %v779
    %v2200 = vunpack.c.h.b16 %v779
    %v2201 = vunpack.c.l.b16 %v780
    %v2202 = vunpack.c.h.b16 %v780
    %v2203 = vunpack.c.l.b16 %v781
    %v2204 = vunpack.c.h.b16 %v781
    %v2205 = vunpack.c.l.b16 %v782
    %v2206 = vunpack.c.h.b16 %v782
    %v2207 = vpack.c.b16 %v1959, %v1951
    %v2208 = vpack.c.b16 %v1960, %v1952
    %v2209 = vpack.c.b16 %v1961, %v1953
    %v2210 = vpack.c.b16 %v1962, %v1954
    %v2211 = vpack.c.b16 %v1963, %v1955
    %v2212 = vpack.c.b16 %v1964, %v1956
    %v2213 = vpack.c.b16 %v1965, %v1957
    %v2214 = vpack.c.b16 %v1966, %v1958
    %v2215 = vpack.c.b16 %v1975, %v1967
    %v2216 = vpack.c.b16 %v1976, %v1968
    %v2217 = vpack.c.b16 %v1977, %v1969
    %v2218 = vpack.c.b16 %v1978, %v1970
    %v2219 = vpack.c.b16 %v1979, %v1971
    %v2220 = vpack.c.b16 %v1980, %v1972
    %v2221 = vpack.c.b16 %v1981, %v1973
    %v2222 = vpack.c.b16 %v1982, %v1974
    %v2223 = vpack.c.b16 %v1991, %v1983
    %v2224 = vpack.c.b16 %v1992, %v1984
    %v2225 = vpack.c.b16 %v1993, %v1985
    %v2226 = vpack.c.b16 %v1994, %v1986
    %v2227 = vpack.c.b16 %v1995, %v1987
    %v2228 = vpack.c.b16 %v1996, %v1988
    %v2229 = vpack.c.b16 %v1997, %v1989
    %v2230 = vpack.c.b16 %v1998, %v1990
    %v2231 = vpack.c.b16 %v2007, %v1999
    %v2232 = vpack.c.b16 %v2008, %v2000
    %v2233 = vpack.c.b16 %v2009, %v2001
    %v2234 = vpack.c.b16 %v2010, %v2002
    %v2235 = vpack.c.b16 %v2011, %v2003
    %v2236 = vpack.c.b16 %v2012, %v2004
    %v2237 = vpack.c.b16 %v2013, %v2005
    %v2238 = vpack.c.b16 %v2014, %v2006
    %v2239 = vpack.c.b16 %v2023, %v2015
    %v2240 = vpack.c.b16 %v2024, %v2016
    %v2241 = vpack.c.b16 %v2025, %v2017
    %v2242 = vpack.c.b16 %v2026, %v2018
    %v2243 = vpack.c.b16 %v2027, %v2019
    %v2244 = vpack.c.b16 %v2028, %v2020
    %v2245 = vpack.c.b16 %v2029, %v2021
    %v2246 = vpack.c.b16 %v2030, %v2022
    %v2247 = vpack.c.b16 %v2039, %v2031
    %v2248 = vpack.c.b16 %v2040, %v2032
    %v2249 = vpack.c.b16 %v2041, %v2033
    %v2250 = vpack.c.b16 %v2042, %v2034
    %v2251 = vpack.c.b16 %v2043, %v2035
    %v2252 = vpack.c.b16 %v2044, %v2036
    %v2253 = vpack.c.b16 %v2045, %v2037
    %v2254 = vpack.c.b16 %v2046, %v2038
    %v2255 = vpack.c.b16 %v2055, %v2047
    %v2256 = vpack.c.b16 %v2056, %v2048
    %v2257 = vpack.c.b16 %v2057, %v2049
    %v2258 = vpack.c.b16 %v2058, %v2050
    %v2259 = vpack.c.b16 %v2059, %v2051
    %v2260 = vpack.c.b16 %v2060, %v2052
    %v2261 = vpack.c.b16 %v2061, %v2053
    %v2262 = vpack.c.b16 %v2062, %v2054
    %v2263 = vpack.c.b16 %v2071, %v2063
    %v2264 = vpack.c.b16 %v2072, %v2064
    %v2265 = vpack.c.b16 %v2073, %v2065
    %v2266 = vpack.c.b16 %v2074, %v2066
    %v2267 = vpack.c.b16 %v2075, %v2067
    %v2268 = vpack.c.b16 %v2076, %v2068
    %v2269 = vpack.c.b16 %v2077, %v2069
    %v2270 = vpack.c.b16 %v2078, %v2070
    %v2271 = vpack.c.b16 %v2087, %v2079
    %v2272 = vpack.c.b16 %v2088, %v2080
    %v2273 = vpack.c.b16 %v2089, %v2081
    %v2274 = vpack.c.b16 %v2090, %v2082
    %v2275 = vpack.c.b16 %v2091, %v2083
    %v2276 = vpack.c.b16 %v2092, %v2084
    %v2277 = vpack.c.b16 %v2093, %v2085
    %v2278 = vpack.c.b16 %v2094, %v2086
    %v2279 = vpack.c.b16 %v2103, %v2095
    %v2280 = vpack.c.b16 %v2104, %v2096
    %v2281 = vpack.c.b16 %v2105, %v2097
    %v2282 = vpack.c.b16 %v2106, %v2098
    %v2283 = vpack.c.b16 %v2107, %v2099
    %v2284 = vpack.c.b16 %v2108, %v2100
    %v2285 = vpack.c.b16 %v2109, %v2101
    %v2286 = vpack.c.b16 %v2110, %v2102
    %v2287 = vpack.c.b16 %v2119, %v2111
    %v2288 = vpack.c.b16 %v2120, %v2112
    %v2289 = vpack.c.b16 %v2121, %v2113
    %v2290 = vpack.c.b16 %v2122, %v2114
    %v2291 = vpack.c.b16 %v2123, %v2115
    %v2292 = vpack.c.b16 %v2124, %v2116
    %v2293 = vpack.c.b16 %v2125, %v2117
    %v2294 = vpack.c.b16 %v2126, %v2118
    %v2295 = vpack.c.b16 %v2135, %v2127
    %v2296 = vpack.c.b16 %v2136, %v2128
    %v2297 = vpack.c.b16 %v2137, %v2129
    %v2298 = vpack.c.b16 %v2138, %v2130
    %v2299 = vpack.c.b16 %v2139, %v2131
    %v2300 = vpack.c.b16 %v2140, %v2132
    %v2301 = vpack.c.b16 %v2141, %v2133
    %v2302 = vpack.c.b16 %v2142, %v2134
    %v2303 = vpack.c.b16 %v2151, %v2143
    %v2304 = vpack.c.b16 %v2152, %v2144
    %v2305 = vpack.c.b16 %v2153, %v2145
    %v2306 = vpack.c.b16 %v2154, %v2146
    %v2307 = vpack.c.b16 %v2155, %v2147
    %v2308 = vpack.c.b16 %v2156, %v2148
    %v2309 = vpack.c.b16 %v2157, %v2149
    %v2310 = vpack.c.b16 %v2158, %v2150
    %v2311 = vpack.c.b16 %v2167, %v2159
    %v2312 = vpack.c.b16 %v2168, %v2160
    %v2313 = vpack.c.b16 %v2169, %v2161
    %v2314 = vpack.c.b16 %v2170, %v2162
    %v2315 = vpack.c.b16 %v2171, %v2163
    %v2316 = vpack.c.b16 %v2172, %v2164
    %v2317 = vpack.c.b16 %v2173, %v2165
    %v2318 = vpack.c.b16 %v2174, %v2166
    %v2319 = vpack.c.b16 %v2183, %v2175
    %v2320 = vpack.c.b16 %v2184, %v2176
    %v2321 = vpack.c.b16 %v2185, %v2177
    %v2322 = vpack.c.b16 %v2186, %v2178
    %v2323 = vpack.c.b16 %v2187, %v2179
    %v2324 = vpack.c.b16 %v2188, %v2180
    %v2325 = vpack.c.b16 %v2189, %v2181
    %v2326 = vpack.c.b16 %v2190, %v2182
    %v2327 = vpack.c.b16 %v2199, %v2191
    %v2328 = vpack.c.b16 %v2200, %v2192
    %v2329 = vpack.c.b16 %v2201, %v2193
    %v2330 = vpack.c.b16 %v2202, %v2194
    %v2331 = vpack.c.b16 %v2203, %v2195
    %v2332 = vpack.c.b16 %v2204, %v2196
    %v2333 = vpack.c.b16 %v2205, %v2197
    %v2334 = vpack.c.b16 %v2206, %v2198
    %2463 = vmatprep.subr.bf16.mxu0 %v2264
    %2464 = vmatpush1.bf16.msra.mxu0 %v2263
    %2465 = vmatprep.subr.bf16.mxu0 %v2256
    %2466 = vmatpush1.bf16.msra.mxu0 %v2255
    %2467 = vmatprep.subr.bf16.mxu0 %v2248
    %2468 = vmatpush1.bf16.msra.mxu0 %v2247
    %2469 = vmatprep.subr.bf16.mxu0 %v2240
    %2470 = vmatpush1.bf16.msra.mxu0 %v2239
    %2471 = vmatprep.subr.bf16.mxu0 %v2232
    %2472 = vmatpush1.bf16.msra.mxu0 %v2231
    %2473 = vmatprep.subr.bf16.mxu0 %v2224
    %2474 = vmatpush1.bf16.msra.mxu0 %v2223
    %2475 = vmatprep.subr.bf16.mxu0 %v2216
    %2476 = vmatpush1.bf16.msra.mxu0 %v2215
    %2477 = vmatprep.subr.bf16.mxu0 %v2208
    %2478 = vmatpush1.bf16.msra.mxu0 %v2207
    %2479 = vmatprep.subr.bf16.mxu0 %v2328
    %2480 = vmatpush2.bf16.msra.mxu0 %v2327
    %2481 = vmatprep.subr.bf16.mxu0 %v2320
    %2482 = vmatpush2.bf16.msra.mxu0 %v2319
    %2483 = vmatprep.subr.bf16.mxu0 %v2312
    %2484 = vmatpush2.bf16.msra.mxu0 %v2311
    %2485 = vmatprep.subr.bf16.mxu0 %v2304
    %2486 = vmatpush2.bf16.msra.mxu0 %v2303
    %2487 = vmatprep.subr.bf16.mxu0 %v2296
    %2488 = vmatpush2.bf16.msra.mxu0 %v2295
    %2489 = vmatprep.subr.bf16.mxu0 %v2288
    %2490 = vmatpush2.bf16.msra.mxu0 %v2287
    %2491 = vmatprep.subr.bf16.mxu0 %v2280
    %2492 = vmatpush2.bf16.msra.mxu0 %v2279
    %2493 = vmatprep.subr.bf16.mxu0 %v2272
    %2494 = vmatpush2.bf16.msra.mxu0 %v2271
    %2495 = vmatprep.mubr.bf16.mxu0 %v1781
    %2496 = vmatmul.mubr.bf16.gmra.mxu0 %v1780
    %v2497 = vpop.f32.mrf.mxu0
    %v2498 = vadd.f32 %v1786, %v2497
    %v2499 = vpop.f32.mrf.mxu0
    %v2500 = vadd.f32 %v1790, %v2499
    %v2501 = vpop.f32.mrf.mxu0
    %v2502 = vpop.f32.mrf.mxu0
    %2503 = vdwg.mxu0
    %2504 = vmatprep.subr.bf16.mxu0 %v2266
    %2505 = vmatpush1.bf16.msra.mxu0 %v2265
    %2506 = vmatprep.subr.bf16.mxu0 %v2258
    %2507 = vmatpush1.bf16.msra.mxu0 %v2257
    %2508 = vmatprep.subr.bf16.mxu0 %v2250
    %2509 = vmatpush1.bf16.msra.mxu0 %v2249
    %2510 = vmatprep.subr.bf16.mxu0 %v2242
    %2511 = vmatpush1.bf16.msra.mxu0 %v2241
    %2512 = vmatprep.subr.bf16.mxu0 %v2234
    %2513 = vmatpush1.bf16.msra.mxu0 %v2233
    %2514 = vmatprep.subr.bf16.mxu0 %v2226
    %2515 = vmatpush1.bf16.msra.mxu0 %v2225
    %2516 = vmatprep.subr.bf16.mxu0 %v2218
    %2517 = vmatpush1.bf16.msra.mxu0 %v2217
    %2518 = vmatprep.subr.bf16.mxu0 %v2210
    %2519 = vmatpush1.bf16.msra.mxu0 %v2209
    %2520 = vmatprep.subr.bf16.mxu0 %v2330
    %2521 = vmatpush2.bf16.msra.mxu0 %v2329
    %2522 = vmatprep.subr.bf16.mxu0 %v2322
    %2523 = vmatpush2.bf16.msra.mxu0 %v2321
    %2524 = vmatprep.subr.bf16.mxu0 %v2314
    %2525 = vmatpush2.bf16.msra.mxu0 %v2313
    %2526 = vmatprep.subr.bf16.mxu0 %v2306
    %2527 = vmatpush2.bf16.msra.mxu0 %v2305
    %2528 = vmatprep.subr.bf16.mxu0 %v2298
    %2529 = vmatpush2.bf16.msra.mxu0 %v2297
    %2530 = vmatprep.subr.bf16.mxu0 %v2290
    %2531 = vmatpush2.bf16.msra.mxu0 %v2289
    %2532 = vmatprep.subr.bf16.mxu0 %v2282
    %2533 = vmatpush2.bf16.msra.mxu0 %v2281
    %2534 = vmatprep.subr.bf16.mxu0 %v2274
    %2535 = vmatpush2.bf16.msra.mxu0 %v2273
    %2536 = vmatprep.mubr.bf16.mxu0 %v1781
    %2537 = vmatmul.mubr.bf16.gmra.mxu0 %v1780
    %v2538 = vpop.f32.mrf.mxu0
    %v2539 = vadd.f32 %v1794, %v2538
    %v2540 = vpop.f32.mrf.mxu0
    %v2541 = vadd.f32 %v1798, %v2540
    %v2542 = vpop.f32.mrf.mxu0
    %v2543 = vpop.f32.mrf.mxu0
    %2544 = vdwg.mxu0
    %2545 = vmatprep.subr.bf16.mxu0 %v2268
    %2546 = vmatpush1.bf16.msra.mxu0 %v2267
    %2547 = vmatprep.subr.bf16.mxu0 %v2260
    %2548 = vmatpush1.bf16.msra.mxu0 %v2259
    %2549 = vmatprep.subr.bf16.mxu0 %v2252
    %2550 = vmatpush1.bf16.msra.mxu0 %v2251
    %2551 = vmatprep.subr.bf16.mxu0 %v2244
    %2552 = vmatpush1.bf16.msra.mxu0 %v2243
    %2553 = vmatprep.subr.bf16.mxu0 %v2236
    %2554 = vmatpush1.bf16.msra.mxu0 %v2235
    %2555 = vmatprep.subr.bf16.mxu0 %v2228
    %2556 = vmatpush1.bf16.msra.mxu0 %v2227
    %2557 = vmatprep.subr.bf16.mxu0 %v2220
    %2558 = vmatpush1.bf16.msra.mxu0 %v2219
    %2559 = vmatprep.subr.bf16.mxu0 %v2212
    %2560 = vmatpush1.bf16.msra.mxu0 %v2211
    %2561 = vmatprep.subr.bf16.mxu0 %v2332
    %2562 = vmatpush2.bf16.msra.mxu0 %v2331
    %2563 = vmatprep.subr.bf16.mxu0 %v2324
    %2564 = vmatpush2.bf16.msra.mxu0 %v2323
    %2565 = vmatprep.subr.bf16.mxu0 %v2316
    %2566 = vmatpush2.bf16.msra.mxu0 %v2315
    %2567 = vmatprep.subr.bf16.mxu0 %v2308
    %2568 = vmatpush2.bf16.msra.mxu0 %v2307
    %2569 = vmatprep.subr.bf16.mxu0 %v2300
    %2570 = vmatpush2.bf16.msra.mxu0 %v2299
    %2571 = vmatprep.subr.bf16.mxu0 %v2292
    %2572 = vmatpush2.bf16.msra.mxu0 %v2291
    %2573 = vmatprep.subr.bf16.mxu0 %v2284
    %2574 = vmatpush2.bf16.msra.mxu0 %v2283
    %2575 = vmatprep.subr.bf16.mxu0 %v2276
    %2576 = vmatpush2.bf16.msra.mxu0 %v2275
    %2577 = vmatprep.mubr.bf16.mxu0 %v1781
    %2578 = vmatmul.mubr.bf16.gmra.mxu0 %v1780
    %v2579 = vpop.f32.mrf.mxu0
    %v2580 = vadd.f32 %v1802, %v2579
    %v2581 = vpop.f32.mrf.mxu0
    %v2582 = vadd.f32 %v1806, %v2581
    %v2583 = vpop.f32.mrf.mxu0
    %v2584 = vpop.f32.mrf.mxu0
    %2585 = vdwg.mxu0
    %2586 = vmatprep.subr.bf16.mxu0 %v2270
    %2587 = vmatpush1.bf16.msra.mxu0 %v2269
    %2588 = vmatprep.subr.bf16.mxu0 %v2262
    %2589 = vmatpush1.bf16.msra.mxu0 %v2261
    %2590 = vmatprep.subr.bf16.mxu0 %v2254
    %2591 = vmatpush1.bf16.msra.mxu0 %v2253
    %2592 = vmatprep.subr.bf16.mxu0 %v2246
    %2593 = vmatpush1.bf16.msra.mxu0 %v2245
    %2594 = vmatprep.subr.bf16.mxu0 %v2238
    %2595 = vmatpush1.bf16.msra.mxu0 %v2237
    %2596 = vmatprep.subr.bf16.mxu0 %v2230
    %2597 = vmatpush1.bf16.msra.mxu0 %v2229
    %2598 = vmatprep.subr.bf16.mxu0 %v2222
    %2599 = vmatpush1.bf16.msra.mxu0 %v2221
    %2600 = vmatprep.subr.bf16.mxu0 %v2214
    %2601 = vmatpush1.bf16.msra.mxu0 %v2213
    %2602 = vmatprep.subr.bf16.mxu0 %v2334
    %2603 = vmatpush2.bf16.msra.mxu0 %v2333
    %2604 = vmatprep.subr.bf16.mxu0 %v2326
    %2605 = vmatpush2.bf16.msra.mxu0 %v2325
    %2606 = vmatprep.subr.bf16.mxu0 %v2318
    %2607 = vmatpush2.bf16.msra.mxu0 %v2317
    %2608 = vmatprep.subr.bf16.mxu0 %v2310
    %2609 = vmatpush2.bf16.msra.mxu0 %v2309
    %2610 = vmatprep.subr.bf16.mxu0 %v2302
    %2611 = vmatpush2.bf16.msra.mxu0 %v2301
    %2612 = vmatprep.subr.bf16.mxu0 %v2294
    %2613 = vmatpush2.bf16.msra.mxu0 %v2293
    %2614 = vmatprep.subr.bf16.mxu0 %v2286
    %2615 = vmatpush2.bf16.msra.mxu0 %v2285
    %2616 = vmatprep.subr.bf16.mxu0 %v2278
    %2617 = vmatpush2.bf16.msra.mxu0 %v2277
    %2618 = vmatprep.mubr.bf16.mxu0 %v1781
    %2619 = vmatmul.mubr.bf16.gmra.mxu0 %v1780
    %v2620 = vpop.f32.mrf.mxu0
    %v2621 = vadd.f32 %v1810, %v2620
    %v2622 = vpop.f32.mrf.mxu0
    %v2623 = vadd.f32 %v1814, %v2622
    %v2624 = vpop.f32.mrf.mxu0
    %v2625 = vpop.f32.mrf.mxu0
    %2626 = vdwg.mxu0
    %v2755 = vunpack.c.l.b16 %v783
    %v2756 = vunpack.c.h.b16 %v783
    %v2757 = vunpack.c.l.b16 %v784
    %v2758 = vunpack.c.h.b16 %v784
    %v2759 = vunpack.c.l.b16 %v785
    %v2760 = vunpack.c.h.b16 %v785
    %v2761 = vunpack.c.l.b16 %v786
    %v2762 = vunpack.c.h.b16 %v786
    %v2763 = vunpack.c.l.b16 %v787
    %v2764 = vunpack.c.h.b16 %v787
    %v2765 = vunpack.c.l.b16 %v788
    %v2766 = vunpack.c.h.b16 %v788
    %v2767 = vunpack.c.l.b16 %v789
    %v2768 = vunpack.c.h.b16 %v789
    %v2769 = vunpack.c.l.b16 %v790
    %v2770 = vunpack.c.h.b16 %v790
    %v2771 = vunpack.c.l.b16 %v791
    %v2772 = vunpack.c.h.b16 %v791
    %v2773 = vunpack.c.l.b16 %v792
    %v2774 = vunpack.c.h.b16 %v792
    %v2775 = vunpack.c.l.b16 %v793
    %v2776 = vunpack.c.h.b16 %v793
    %v2777 = vunpack.c.l.b16 %v794
    %v2778 = vunpack.c.h.b16 %v794
    %v2779 = vunpack.c.l.b16 %v795
    %v2780 = vunpack.c.h.b16 %v795
    %v2781 = vunpack.c.l.b16 %v796
    %v2782 = vunpack.c.h.b16 %v796
    %v2783 = vunpack.c.l.b16 %v797
    %v2784 = vunpack.c.h.b16 %v797
    %v2785 = vunpack.c.l.b16 %v798
    %v2786 = vunpack.c.h.b16 %v798
    %v2787 = vunpack.c.l.b16 %v799
    %v2788 = vunpack.c.h.b16 %v799
    %v2789 = vunpack.c.l.b16 %v800
    %v2790 = vunpack.c.h.b16 %v800
    %v2791 = vunpack.c.l.b16 %v801
    %v2792 = vunpack.c.h.b16 %v801
    %v2793 = vunpack.c.l.b16 %v802
    %v2794 = vunpack.c.h.b16 %v802
    %v2795 = vunpack.c.l.b16 %v803
    %v2796 = vunpack.c.h.b16 %v803
    %v2797 = vunpack.c.l.b16 %v804
    %v2798 = vunpack.c.h.b16 %v804
    %v2799 = vunpack.c.l.b16 %v805
    %v2800 = vunpack.c.h.b16 %v805
    %v2801 = vunpack.c.l.b16 %v806
    %v2802 = vunpack.c.h.b16 %v806
    %v2803 = vunpack.c.l.b16 %v807
    %v2804 = vunpack.c.h.b16 %v807
    %v2805 = vunpack.c.l.b16 %v808
    %v2806 = vunpack.c.h.b16 %v808
    %v2807 = vunpack.c.l.b16 %v809
    %v2808 = vunpack.c.h.b16 %v809
    %v2809 = vunpack.c.l.b16 %v810
    %v2810 = vunpack.c.h.b16 %v810
    %v2811 = vunpack.c.l.b16 %v811
    %v2812 = vunpack.c.h.b16 %v811
    %v2813 = vunpack.c.l.b16 %v812
    %v2814 = vunpack.c.h.b16 %v812
    %v2815 = vunpack.c.l.b16 %v813
    %v2816 = vunpack.c.h.b16 %v813
    %v2817 = vunpack.c.l.b16 %v814
    %v2818 = vunpack.c.h.b16 %v814
    %v2819 = vunpack.c.l.b16 %v815
    %v2820 = vunpack.c.h.b16 %v815
    %v2821 = vunpack.c.l.b16 %v816
    %v2822 = vunpack.c.h.b16 %v816
    %v2823 = vunpack.c.l.b16 %v817
    %v2824 = vunpack.c.h.b16 %v817
    %v2825 = vunpack.c.l.b16 %v818
    %v2826 = vunpack.c.h.b16 %v818
    %v2827 = vunpack.c.l.b16 %v819
    %v2828 = vunpack.c.h.b16 %v819
    %v2829 = vunpack.c.l.b16 %v820
    %v2830 = vunpack.c.h.b16 %v820
    %v2831 = vunpack.c.l.b16 %v821
    %v2832 = vunpack.c.h.b16 %v821
    %v2833 = vunpack.c.l.b16 %v822
    %v2834 = vunpack.c.h.b16 %v822
    %v2835 = vunpack.c.l.b16 %v823
    %v2836 = vunpack.c.h.b16 %v823
    %v2837 = vunpack.c.l.b16 %v824
    %v2838 = vunpack.c.h.b16 %v824
    %v2839 = vunpack.c.l.b16 %v825
    %v2840 = vunpack.c.h.b16 %v825
    %v2841 = vunpack.c.l.b16 %v826
    %v2842 = vunpack.c.h.b16 %v826
    %v2843 = vunpack.c.l.b16 %v827
    %v2844 = vunpack.c.h.b16 %v827
    %v2845 = vunpack.c.l.b16 %v828
    %v2846 = vunpack.c.h.b16 %v828
    %v2847 = vunpack.c.l.b16 %v829
    %v2848 = vunpack.c.h.b16 %v829
    %v2849 = vunpack.c.l.b16 %v830
    %v2850 = vunpack.c.h.b16 %v830
    %v2851 = vunpack.c.l.b16 %v831
    %v2852 = vunpack.c.h.b16 %v831
    %v2853 = vunpack.c.l.b16 %v832
    %v2854 = vunpack.c.h.b16 %v832
    %v2855 = vunpack.c.l.b16 %v833
    %v2856 = vunpack.c.h.b16 %v833
    %v2857 = vunpack.c.l.b16 %v834
    %v2858 = vunpack.c.h.b16 %v834
    %v2859 = vunpack.c.l.b16 %v835
    %v2860 = vunpack.c.h.b16 %v835
    %v2861 = vunpack.c.l.b16 %v836
    %v2862 = vunpack.c.h.b16 %v836
    %v2863 = vunpack.c.l.b16 %v837
    %v2864 = vunpack.c.h.b16 %v837
    %v2865 = vunpack.c.l.b16 %v838
    %v2866 = vunpack.c.h.b16 %v838
    %v2867 = vunpack.c.l.b16 %v839
    %v2868 = vunpack.c.h.b16 %v839
    %v2869 = vunpack.c.l.b16 %v840
    %v2870 = vunpack.c.h.b16 %v840
    %v2871 = vunpack.c.l.b16 %v841
    %v2872 = vunpack.c.h.b16 %v841
    %v2873 = vunpack.c.l.b16 %v842
    %v2874 = vunpack.c.h.b16 %v842
    %v2875 = vunpack.c.l.b16 %v843
    %v2876 = vunpack.c.h.b16 %v843
    %v2877 = vunpack.c.l.b16 %v844
    %v2878 = vunpack.c.h.b16 %v844
    %v2879 = vunpack.c.l.b16 %v845
    %v2880 = vunpack.c.h.b16 %v845
    %v2881 = vunpack.c.l.b16 %v846
    %v2882 = vunpack.c.h.b16 %v846
    %v2883 = vunpack.c.l.b16 %v847
    %v2884 = vunpack.c.h.b16 %v847
    %v2885 = vunpack.c.l.b16 %v848
    %v2886 = vunpack.c.h.b16 %v848
    %v2887 = vunpack.c.l.b16 %v849
    %v2888 = vunpack.c.h.b16 %v849
    %v2889 = vunpack.c.l.b16 %v850
    %v2890 = vunpack.c.h.b16 %v850
    %v2891 = vunpack.c.l.b16 %v851
    %v2892 = vunpack.c.h.b16 %v851
    %v2893 = vunpack.c.l.b16 %v852
    %v2894 = vunpack.c.h.b16 %v852
    %v2895 = vunpack.c.l.b16 %v853
    %v2896 = vunpack.c.h.b16 %v853
    %v2897 = vunpack.c.l.b16 %v854
    %v2898 = vunpack.c.h.b16 %v854
    %v2899 = vunpack.c.l.b16 %v855
    %v2900 = vunpack.c.h.b16 %v855
    %v2901 = vunpack.c.l.b16 %v856
    %v2902 = vunpack.c.h.b16 %v856
    %v2903 = vunpack.c.l.b16 %v857
    %v2904 = vunpack.c.h.b16 %v857
    %v2905 = vunpack.c.l.b16 %v858
    %v2906 = vunpack.c.h.b16 %v858
    %v2907 = vunpack.c.l.b16 %v859
    %v2908 = vunpack.c.h.b16 %v859
    %v2909 = vunpack.c.l.b16 %v860
    %v2910 = vunpack.c.h.b16 %v860
    %v2911 = vunpack.c.l.b16 %v861
    %v2912 = vunpack.c.h.b16 %v861
    %v2913 = vunpack.c.l.b16 %v862
    %v2914 = vunpack.c.h.b16 %v862
    %v2915 = vunpack.c.l.b16 %v863
    %v2916 = vunpack.c.h.b16 %v863
    %v2917 = vunpack.c.l.b16 %v864
    %v2918 = vunpack.c.h.b16 %v864
    %v2919 = vunpack.c.l.b16 %v865
    %v2920 = vunpack.c.h.b16 %v865
    %v2921 = vunpack.c.l.b16 %v866
    %v2922 = vunpack.c.h.b16 %v866
    %v2923 = vunpack.c.l.b16 %v867
    %v2924 = vunpack.c.h.b16 %v867
    %v2925 = vunpack.c.l.b16 %v868
    %v2926 = vunpack.c.h.b16 %v868
    %v2927 = vunpack.c.l.b16 %v869
    %v2928 = vunpack.c.h.b16 %v869
    %v2929 = vunpack.c.l.b16 %v870
    %v2930 = vunpack.c.h.b16 %v870
    %v2931 = vunpack.c.l.b16 %v871
    %v2932 = vunpack.c.h.b16 %v871
    %v2933 = vunpack.c.l.b16 %v872
    %v2934 = vunpack.c.h.b16 %v872
    %v2935 = vunpack.c.l.b16 %v873
    %v2936 = vunpack.c.h.b16 %v873
    %v2937 = vunpack.c.l.b16 %v874
    %v2938 = vunpack.c.h.b16 %v874
    %v2939 = vunpack.c.l.b16 %v875
    %v2940 = vunpack.c.h.b16 %v875
    %v2941 = vunpack.c.l.b16 %v876
    %v2942 = vunpack.c.h.b16 %v876
    %v2943 = vunpack.c.l.b16 %v877
    %v2944 = vunpack.c.h.b16 %v877
    %v2945 = vunpack.c.l.b16 %v878
    %v2946 = vunpack.c.h.b16 %v878
    %v2947 = vunpack.c.l.b16 %v879
    %v2948 = vunpack.c.h.b16 %v879
    %v2949 = vunpack.c.l.b16 %v880
    %v2950 = vunpack.c.h.b16 %v880
    %v2951 = vunpack.c.l.b16 %v881
    %v2952 = vunpack.c.h.b16 %v881
    %v2953 = vunpack.c.l.b16 %v882
    %v2954 = vunpack.c.h.b16 %v882
    %v2955 = vunpack.c.l.b16 %v883
    %v2956 = vunpack.c.h.b16 %v883
    %v2957 = vunpack.c.l.b16 %v884
    %v2958 = vunpack.c.h.b16 %v884
    %v2959 = vunpack.c.l.b16 %v885
    %v2960 = vunpack.c.h.b16 %v885
    %v2961 = vunpack.c.l.b16 %v886
    %v2962 = vunpack.c.h.b16 %v886
    %v2963 = vunpack.c.l.b16 %v887
    %v2964 = vunpack.c.h.b16 %v887
    %v2965 = vunpack.c.l.b16 %v888
    %v2966 = vunpack.c.h.b16 %v888
    %v2967 = vunpack.c.l.b16 %v889
    %v2968 = vunpack.c.h.b16 %v889
    %v2969 = vunpack.c.l.b16 %v890
    %v2970 = vunpack.c.h.b16 %v890
    %v2971 = vunpack.c.l.b16 %v891
    %v2972 = vunpack.c.h.b16 %v891
    %v2973 = vunpack.c.l.b16 %v892
    %v2974 = vunpack.c.h.b16 %v892
    %v2975 = vunpack.c.l.b16 %v893
    %v2976 = vunpack.c.h.b16 %v893
    %v2977 = vunpack.c.l.b16 %v894
    %v2978 = vunpack.c.h.b16 %v894
    %v2979 = vunpack.c.l.b16 %v895
    %v2980 = vunpack.c.h.b16 %v895
    %v2981 = vunpack.c.l.b16 %v896
    %v2982 = vunpack.c.h.b16 %v896
    %v2983 = vunpack.c.l.b16 %v897
    %v2984 = vunpack.c.h.b16 %v897
    %v2985 = vunpack.c.l.b16 %v898
    %v2986 = vunpack.c.h.b16 %v898
    %v2987 = vunpack.c.l.b16 %v899
    %v2988 = vunpack.c.h.b16 %v899
    %v2989 = vunpack.c.l.b16 %v900
    %v2990 = vunpack.c.h.b16 %v900
    %v2991 = vunpack.c.l.b16 %v901
    %v2992 = vunpack.c.h.b16 %v901
    %v2993 = vunpack.c.l.b16 %v902
    %v2994 = vunpack.c.h.b16 %v902
    %v2995 = vunpack.c.l.b16 %v903
    %v2996 = vunpack.c.h.b16 %v903
    %v2997 = vunpack.c.l.b16 %v904
    %v2998 = vunpack.c.h.b16 %v904
    %v2999 = vunpack.c.l.b16 %v905
    %v3000 = vunpack.c.h.b16 %v905
    %v3001 = vunpack.c.l.b16 %v906
    %v3002 = vunpack.c.h.b16 %v906
    %v3003 = vunpack.c.l.b16 %v907
    %v3004 = vunpack.c.h.b16 %v907
    %v3005 = vunpack.c.l.b16 %v908
    %v3006 = vunpack.c.h.b16 %v908
    %v3007 = vunpack.c.l.b16 %v909
    %v3008 = vunpack.c.h.b16 %v909
    %v3009 = vunpack.c.l.b16 %v910
    %v3010 = vunpack.c.h.b16 %v910
    %v3011 = vpack.c.b16 %v2763, %v2755
    %v3012 = vpack.c.b16 %v2764, %v2756
    %v3013 = vpack.c.b16 %v2765, %v2757
    %v3014 = vpack.c.b16 %v2766, %v2758
    %v3015 = vpack.c.b16 %v2767, %v2759
    %v3016 = vpack.c.b16 %v2768, %v2760
    %v3017 = vpack.c.b16 %v2769, %v2761
    %v3018 = vpack.c.b16 %v2770, %v2762
    %v3019 = vpack.c.b16 %v2779, %v2771
    %v3020 = vpack.c.b16 %v2780, %v2772
    %v3021 = vpack.c.b16 %v2781, %v2773
    %v3022 = vpack.c.b16 %v2782, %v2774
    %v3023 = vpack.c.b16 %v2783, %v2775
    %v3024 = vpack.c.b16 %v2784, %v2776
    %v3025 = vpack.c.b16 %v2785, %v2777
    %v3026 = vpack.c.b16 %v2786, %v2778
    %v3027 = vpack.c.b16 %v2795, %v2787
    %v3028 = vpack.c.b16 %v2796, %v2788
    %v3029 = vpack.c.b16 %v2797, %v2789
    %v3030 = vpack.c.b16 %v2798, %v2790
    %v3031 = vpack.c.b16 %v2799, %v2791
    %v3032 = vpack.c.b16 %v2800, %v2792
    %v3033 = vpack.c.b16 %v2801, %v2793
    %v3034 = vpack.c.b16 %v2802, %v2794
    %v3035 = vpack.c.b16 %v2811, %v2803
    %v3036 = vpack.c.b16 %v2812, %v2804
    %v3037 = vpack.c.b16 %v2813, %v2805
    %v3038 = vpack.c.b16 %v2814, %v2806
    %v3039 = vpack.c.b16 %v2815, %v2807
    %v3040 = vpack.c.b16 %v2816, %v2808
    %v3041 = vpack.c.b16 %v2817, %v2809
    %v3042 = vpack.c.b16 %v2818, %v2810
    %v3043 = vpack.c.b16 %v2827, %v2819
    %v3044 = vpack.c.b16 %v2828, %v2820
    %v3045 = vpack.c.b16 %v2829, %v2821
    %v3046 = vpack.c.b16 %v2830, %v2822
    %v3047 = vpack.c.b16 %v2831, %v2823
    %v3048 = vpack.c.b16 %v2832, %v2824
    %v3049 = vpack.c.b16 %v2833, %v2825
    %v3050 = vpack.c.b16 %v2834, %v2826
    %v3051 = vpack.c.b16 %v2843, %v2835
    %v3052 = vpack.c.b16 %v2844, %v2836
    %v3053 = vpack.c.b16 %v2845, %v2837
    %v3054 = vpack.c.b16 %v2846, %v2838
    %v3055 = vpack.c.b16 %v2847, %v2839
    %v3056 = vpack.c.b16 %v2848, %v2840
    %v3057 = vpack.c.b16 %v2849, %v2841
    %v3058 = vpack.c.b16 %v2850, %v2842
    %v3059 = vpack.c.b16 %v2859, %v2851
    %v3060 = vpack.c.b16 %v2860, %v2852
    %v3061 = vpack.c.b16 %v2861, %v2853
    %v3062 = vpack.c.b16 %v2862, %v2854
    %v3063 = vpack.c.b16 %v2863, %v2855
    %v3064 = vpack.c.b16 %v2864, %v2856
    %v3065 = vpack.c.b16 %v2865, %v2857
    %v3066 = vpack.c.b16 %v2866, %v2858
    %v3067 = vpack.c.b16 %v2875, %v2867
    %v3068 = vpack.c.b16 %v2876, %v2868
    %v3069 = vpack.c.b16 %v2877, %v2869
    %v3070 = vpack.c.b16 %v2878, %v2870
    %v3071 = vpack.c.b16 %v2879, %v2871
    %v3072 = vpack.c.b16 %v2880, %v2872
    %v3073 = vpack.c.b16 %v2881, %v2873
    %v3074 = vpack.c.b16 %v2882, %v2874
    %v3075 = vpack.c.b16 %v2891, %v2883
    %v3076 = vpack.c.b16 %v2892, %v2884
    %v3077 = vpack.c.b16 %v2893, %v2885
    %v3078 = vpack.c.b16 %v2894, %v2886
    %v3079 = vpack.c.b16 %v2895, %v2887
    %v3080 = vpack.c.b16 %v2896, %v2888
    %v3081 = vpack.c.b16 %v2897, %v2889
    %v3082 = vpack.c.b16 %v2898, %v2890
    %v3083 = vpack.c.b16 %v2907, %v2899
    %v3084 = vpack.c.b16 %v2908, %v2900
    %v3085 = vpack.c.b16 %v2909, %v2901
    %v3086 = vpack.c.b16 %v2910, %v2902
    %v3087 = vpack.c.b16 %v2911, %v2903
    %v3088 = vpack.c.b16 %v2912, %v2904
    %v3089 = vpack.c.b16 %v2913, %v2905
    %v3090 = vpack.c.b16 %v2914, %v2906
    %v3091 = vpack.c.b16 %v2923, %v2915
    %v3092 = vpack.c.b16 %v2924, %v2916
    %v3093 = vpack.c.b16 %v2925, %v2917
    %v3094 = vpack.c.b16 %v2926, %v2918
    %v3095 = vpack.c.b16 %v2927, %v2919
    %v3096 = vpack.c.b16 %v2928, %v2920
    %v3097 = vpack.c.b16 %v2929, %v2921
    %v3098 = vpack.c.b16 %v2930, %v2922
    %v3099 = vpack.c.b16 %v2939, %v2931
    %v3100 = vpack.c.b16 %v2940, %v2932
    %v3101 = vpack.c.b16 %v2941, %v2933
    %v3102 = vpack.c.b16 %v2942, %v2934
    %v3103 = vpack.c.b16 %v2943, %v2935
    %v3104 = vpack.c.b16 %v2944, %v2936
    %v3105 = vpack.c.b16 %v2945, %v2937
    %v3106 = vpack.c.b16 %v2946, %v2938
    %v3107 = vpack.c.b16 %v2955, %v2947
    %v3108 = vpack.c.b16 %v2956, %v2948
    %v3109 = vpack.c.b16 %v2957, %v2949
    %v3110 = vpack.c.b16 %v2958, %v2950
    %v3111 = vpack.c.b16 %v2959, %v2951
    %v3112 = vpack.c.b16 %v2960, %v2952
    %v3113 = vpack.c.b16 %v2961, %v2953
    %v3114 = vpack.c.b16 %v2962, %v2954
    %v3115 = vpack.c.b16 %v2971, %v2963
    %v3116 = vpack.c.b16 %v2972, %v2964
    %v3117 = vpack.c.b16 %v2973, %v2965
    %v3118 = vpack.c.b16 %v2974, %v2966
    %v3119 = vpack.c.b16 %v2975, %v2967
    %v3120 = vpack.c.b16 %v2976, %v2968
    %v3121 = vpack.c.b16 %v2977, %v2969
    %v3122 = vpack.c.b16 %v2978, %v2970
    %v3123 = vpack.c.b16 %v2987, %v2979
    %v3124 = vpack.c.b16 %v2988, %v2980
    %v3125 = vpack.c.b16 %v2989, %v2981
    %v3126 = vpack.c.b16 %v2990, %v2982
    %v3127 = vpack.c.b16 %v2991, %v2983
    %v3128 = vpack.c.b16 %v2992, %v2984
    %v3129 = vpack.c.b16 %v2993, %v2985
    %v3130 = vpack.c.b16 %v2994, %v2986
    %v3131 = vpack.c.b16 %v3003, %v2995
    %v3132 = vpack.c.b16 %v3004, %v2996
    %v3133 = vpack.c.b16 %v3005, %v2997
    %v3134 = vpack.c.b16 %v3006, %v2998
    %v3135 = vpack.c.b16 %v3007, %v2999
    %v3136 = vpack.c.b16 %v3008, %v3000
    %v3137 = vpack.c.b16 %v3009, %v3001
    %v3138 = vpack.c.b16 %v3010, %v3002
    %3267 = vmatprep.subr.bf16.mxu0 %v3068
    %3268 = vmatpush1.bf16.msra.mxu0 %v3067
    %3269 = vmatprep.subr.bf16.mxu0 %v3060
    %3270 = vmatpush1.bf16.msra.mxu0 %v3059
    %3271 = vmatprep.subr.bf16.mxu0 %v3052
    %3272 = vmatpush1.bf16.msra.mxu0 %v3051
    %3273 = vmatprep.subr.bf16.mxu0 %v3044
    %3274 = vmatpush1.bf16.msra.mxu0 %v3043
    %3275 = vmatprep.subr.bf16.mxu0 %v3036
    %3276 = vmatpush1.bf16.msra.mxu0 %v3035
    %3277 = vmatprep.subr.bf16.mxu0 %v3028
    %3278 = vmatpush1.bf16.msra.mxu0 %v3027
    %3279 = vmatprep.subr.bf16.mxu0 %v3020
    %3280 = vmatpush1.bf16.msra.mxu0 %v3019
    %3281 = vmatprep.subr.bf16.mxu0 %v3012
    %3282 = vmatpush1.bf16.msra.mxu0 %v3011
    %3283 = vmatprep.subr.bf16.mxu0 %v3132
    %3284 = vmatpush2.bf16.msra.mxu0 %v3131
    %3285 = vmatprep.subr.bf16.mxu0 %v3124
    %3286 = vmatpush2.bf16.msra.mxu0 %v3123
    %3287 = vmatprep.subr.bf16.mxu0 %v3116
    %3288 = vmatpush2.bf16.msra.mxu0 %v3115
    %3289 = vmatprep.subr.bf16.mxu0 %v3108
    %3290 = vmatpush2.bf16.msra.mxu0 %v3107
    %3291 = vmatprep.subr.bf16.mxu0 %v3100
    %3292 = vmatpush2.bf16.msra.mxu0 %v3099
    %3293 = vmatprep.subr.bf16.mxu0 %v3092
    %3294 = vmatpush2.bf16.msra.mxu0 %v3091
    %3295 = vmatprep.subr.bf16.mxu0 %v3084
    %3296 = vmatpush2.bf16.msra.mxu0 %v3083
    %3297 = vmatprep.subr.bf16.mxu0 %v3076
    %3298 = vmatpush2.bf16.msra.mxu0 %v3075
    %3299 = vmatprep.mubr.bf16.mxu0 0
    %3300 = vmatmul.mubr.bf16.gmra.mxu0 0
    %v3301 = vpop.f32.mrf.mxu0
    %v3302 = vadd.f32 0.0, %v3301
    %v3303 = vpop.f32.mrf.mxu0
    %v3304 = vadd.f32 0.0, %v3303
    %v3305 = vpop.f32.mrf.mxu0
    %v3306 = vpop.f32.mrf.mxu0
    %3307 = vdwg.mxu0
    %3308 = vmatprep.subr.bf16.mxu0 %v3070
    %3309 = vmatpush1.bf16.msra.mxu0 %v3069
    %3310 = vmatprep.subr.bf16.mxu0 %v3062
    %3311 = vmatpush1.bf16.msra.mxu0 %v3061
    %3312 = vmatprep.subr.bf16.mxu0 %v3054
    %3313 = vmatpush1.bf16.msra.mxu0 %v3053
    %3314 = vmatprep.subr.bf16.mxu0 %v3046
    %3315 = vmatpush1.bf16.msra.mxu0 %v3045
    %3316 = vmatprep.subr.bf16.mxu0 %v3038
    %3317 = vmatpush1.bf16.msra.mxu0 %v3037
    %3318 = vmatprep.subr.bf16.mxu0 %v3030
    %3319 = vmatpush1.bf16.msra.mxu0 %v3029
    %3320 = vmatprep.subr.bf16.mxu0 %v3022
    %3321 = vmatpush1.bf16.msra.mxu0 %v3021
    %3322 = vmatprep.subr.bf16.mxu0 %v3014
    %3323 = vmatpush1.bf16.msra.mxu0 %v3013
    %3324 = vmatprep.subr.bf16.mxu0 %v3134
    %3325 = vmatpush2.bf16.msra.mxu0 %v3133
    %3326 = vmatprep.subr.bf16.mxu0 %v3126
    %3327 = vmatpush2.bf16.msra.mxu0 %v3125
    %3328 = vmatprep.subr.bf16.mxu0 %v3118
    %3329 = vmatpush2.bf16.msra.mxu0 %v3117
    %3330 = vmatprep.subr.bf16.mxu0 %v3110
    %3331 = vmatpush2.bf16.msra.mxu0 %v3109
    %3332 = vmatprep.subr.bf16.mxu0 %v3102
    %3333 = vmatpush2.bf16.msra.mxu0 %v3101
    %3334 = vmatprep.subr.bf16.mxu0 %v3094
    %3335 = vmatpush2.bf16.msra.mxu0 %v3093
    %3336 = vmatprep.subr.bf16.mxu0 %v3086
    %3337 = vmatpush2.bf16.msra.mxu0 %v3085
    %3338 = vmatprep.subr.bf16.mxu0 %v3078
    %3339 = vmatpush2.bf16.msra.mxu0 %v3077
    %3340 = vmatprep.mubr.bf16.mxu0 0
    %3341 = vmatmul.mubr.bf16.gmra.mxu0 0
    %v3342 = vpop.f32.mrf.mxu0
    %v3343 = vadd.f32 0.0, %v3342
    %v3344 = vpop.f32.mrf.mxu0
    %v3345 = vadd.f32 0.0, %v3344
    %v3346 = vpop.f32.mrf.mxu0
    %v3347 = vpop.f32.mrf.mxu0
    %3348 = vdwg.mxu0
    %3349 = vmatprep.subr.bf16.mxu0 %v3072
    %3350 = vmatpush1.bf16.msra.mxu0 %v3071
    %3351 = vmatprep.subr.bf16.mxu0 %v3064
    %3352 = vmatpush1.bf16.msra.mxu0 %v3063
    %3353 = vmatprep.subr.bf16.mxu0 %v3056
    %3354 = vmatpush1.bf16.msra.mxu0 %v3055
    %3355 = vmatprep.subr.bf16.mxu0 %v3048
    %3356 = vmatpush1.bf16.msra.mxu0 %v3047
    %3357 = vmatprep.subr.bf16.mxu0 %v3040
    %3358 = vmatpush1.bf16.msra.mxu0 %v3039
    %3359 = vmatprep.subr.bf16.mxu0 %v3032
    %3360 = vmatpush1.bf16.msra.mxu0 %v3031
    %3361 = vmatprep.subr.bf16.mxu0 %v3024
    %3362 = vmatpush1.bf16.msra.mxu0 %v3023
    %3363 = vmatprep.subr.bf16.mxu0 %v3016
    %3364 = vmatpush1.bf16.msra.mxu0 %v3015
    %3365 = vmatprep.subr.bf16.mxu0 %v3136
    %3366 = vmatpush2.bf16.msra.mxu0 %v3135
    %3367 = vmatprep.subr.bf16.mxu0 %v3128
    %3368 = vmatpush2.bf16.msra.mxu0 %v3127
    %3369 = vmatprep.subr.bf16.mxu0 %v3120
    %3370 = vmatpush2.bf16.msra.mxu0 %v3119
    %3371 = vmatprep.subr.bf16.mxu0 %v3112
    %3372 = vmatpush2.bf16.msra.mxu0 %v3111
    %3373 = vmatprep.subr.bf16.mxu0 %v3104
    %3374 = vmatpush2.bf16.msra.mxu0 %v3103
    %3375 = vmatprep.subr.bf16.mxu0 %v3096
    %3376 = vmatpush2.bf16.msra.mxu0 %v3095
    %3377 = vmatprep.subr.bf16.mxu0 %v3088
    %3378 = vmatpush2.bf16.msra.mxu0 %v3087
    %3379 = vmatprep.subr.bf16.mxu0 %v3080
    %3380 = vmatpush2.bf16.msra.mxu0 %v3079
    %3381 = vmatprep.mubr.bf16.mxu0 0
    %3382 = vmatmul.mubr.bf16.gmra.mxu0 0
    %v3383 = vpop.f32.mrf.mxu0
    %v3384 = vadd.f32 0.0, %v3383
    %v3385 = vpop.f32.mrf.mxu0
    %v3386 = vadd.f32 0.0, %v3385
    %v3387 = vpop.f32.mrf.mxu0
    %v3388 = vpop.f32.mrf.mxu0
    %3389 = vdwg.mxu0
    %3390 = vmatprep.subr.bf16.mxu0 %v3074
    %3391 = vmatpush1.bf16.msra.mxu0 %v3073
    %3392 = vmatprep.subr.bf16.mxu0 %v3066
    %3393 = vmatpush1.bf16.msra.mxu0 %v3065
    %3394 = vmatprep.subr.bf16.mxu0 %v3058
    %3395 = vmatpush1.bf16.msra.mxu0 %v3057
    %3396 = vmatprep.subr.bf16.mxu0 %v3050
    %3397 = vmatpush1.bf16.msra.mxu0 %v3049
    %3398 = vmatprep.subr.bf16.mxu0 %v3042
    %3399 = vmatpush1.bf16.msra.mxu0 %v3041
    %3400 = vmatprep.subr.bf16.mxu0 %v3034
    %3401 = vmatpush1.bf16.msra.mxu0 %v3033
    %3402 = vmatprep.subr.bf16.mxu0 %v3026
    %3403 = vmatpush1.bf16.msra.mxu0 %v3025
    %3404 = vmatprep.subr.bf16.mxu0 %v3018
    %3405 = vmatpush1.bf16.msra.mxu0 %v3017
    %3406 = vmatprep.subr.bf16.mxu0 %v3138
    %3407 = vmatpush2.bf16.msra.mxu0 %v3137
    %3408 = vmatprep.subr.bf16.mxu0 %v3130
    %3409 = vmatpush2.bf16.msra.mxu0 %v3129
    %3410 = vmatprep.subr.bf16.mxu0 %v3122
    %3411 = vmatpush2.bf16.msra.mxu0 %v3121
    %3412 = vmatprep.subr.bf16.mxu0 %v3114
    %3413 = vmatpush2.bf16.msra.mxu0 %v3113
    %3414 = vmatprep.subr.bf16.mxu0 %v3106
    %3415 = vmatpush2.bf16.msra.mxu0 %v3105
    %3416 = vmatprep.subr.bf16.mxu0 %v3098
    %3417 = vmatpush2.bf16.msra.mxu0 %v3097
    %3418 = vmatprep.subr.bf16.mxu0 %v3090
    %3419 = vmatpush2.bf16.msra.mxu0 %v3089
    %3420 = vmatprep.subr.bf16.mxu0 %v3082
    %3421 = vmatpush2.bf16.msra.mxu0 %v3081
    %3422 = vmatprep.mubr.bf16.mxu0 0
    %3423 = vmatmul.mubr.bf16.gmra.mxu0 0
    %v3424 = vpop.f32.mrf.mxu0
    %v3425 = vadd.f32 0.0, %v3424
    %v3426 = vpop.f32.mrf.mxu0
    %v3427 = vadd.f32 0.0, %v3426
    %v3428 = vpop.f32.mrf.mxu0
    %v3429 = vpop.f32.mrf.mxu0
    %3430 = vdwg.mxu0
    %v3431 = vadd.f32 %v2498, %v3302
    %v3432 = vadd.f32 %v2500, %v3304
    %v3433 = vadd.f32 %v2539, %v3343
    %v3434 = vadd.f32 %v2541, %v3345
    %v3435 = vadd.f32 %v2580, %v3384
    %v3436 = vadd.f32 %v2582, %v3386
    %v3437 = vadd.f32 %v2621, %v3425
    %v3438 = vadd.f32 %v2623, %v3427
    %v3439 = vxor.u32 %v3431, 2147483648
    %v3440 = vxor.u32 %v3432, 2147483648
    %v3441 = vmul.f32 %v3439, 1.442695
    %v3442 = vpow.pop %v3441
    %v3443 = vmul.f32 %v3440, 1.442695
    %v3444 = vpow.pop %v3443
    %v3445 = vadd.f32 %v3442, 1.0
    %v3446 = vadd.f32 %v3444, 1.0
    %v3447 = vrcp.pop %v3445
    %v3448 = vmul.f32 1.0, %v3447
    %v3449 = vrcp.pop %v3446
    %v3450 = vmul.f32 1.0, %v3449
    %v3451 = vxor.u32 %v3433, 2147483648
    %v3452 = vxor.u32 %v3434, 2147483648
    %v3453 = vmul.f32 %v3451, 1.442695
    %v3454 = vpow.pop %v3453
    %v3455 = vmul.f32 %v3452, 1.442695
    %v3456 = vpow.pop %v3455
    %v3457 = vadd.f32 %v3454, 1.0
    %v3458 = vadd.f32 %v3456, 1.0
    %v3459 = vrcp.pop %v3457
    %v3460 = vmul.f32 1.0, %v3459
    %v3461 = vrcp.pop %v3458
    %v3462 = vmul.f32 1.0, %v3461
    %v3463 = vtanh.pop %v3435
    %v3464 = vtanh.pop %v3436
    %v3465 = vxor.u32 %v3437, 2147483648
    %v3466 = vxor.u32 %v3438, 2147483648
    %v3467 = vmul.f32 %v3465, 1.442695
    %v3468 = vpow.pop %v3467
    %v3469 = vmul.f32 %v3466, 1.442695
    %v3470 = vpow.pop %v3469
    %v3471 = vadd.f32 %v3468, 1.0
    %v3472 = vadd.f32 %v3470, 1.0
    %v3473 = vrcp.pop %v3471
    %v3474 = vmul.f32 1.0, %v3473
    %v3475 = vrcp.pop %v3472
    %v3476 = vmul.f32 1.0, %v3475
    %v3477 = vmul.f32 %v3460, 0.0
    %v3478 = vmul.f32 %v3462, 0.0
    %v3479 = vmul.f32 %v3448, %v3463
    %v3480 = vmul.f32 %v3450, %v3464
    %v3481 = vadd.f32 %v3477, %v3479
    %v3482 = vadd.f32 %v3478, %v3480
    %v3483 = vtanh.pop %v3481
    %v3484 = vtanh.pop %v3482
    %v3485 = vmul.f32 %v3474, %v3483
    %v3486 = vmul.f32 %v3476, %v3484
    %3487 = vst [vmem:[%s7] sm:$0xff] %v3485
    %3488 = vst [vmem:[%s7 + $0x8] sm:$0xff] %v3486
    %v3489 = vld [vmem:[#allocation2 + $0x40] sm:$0xff]
    %v3490 = vld [vmem:[#allocation2 + $0x48] sm:$0xff]
    %v3491 = vld [vmem:[#allocation2 + $0x50] sm:$0xff]
    %v3492 = vld [vmem:[#allocation2 + $0x58] sm:$0xff]
    %v3493 = vld [vmem:[#allocation2 + $0x60] sm:$0xff]
    %v3494 = vld [vmem:[#allocation2 + $0x68] sm:$0xff]
    %v3495 = vld [vmem:[#allocation2 + $0x70] sm:$0xff]
    %v3496 = vld [vmem:[#allocation2 + $0x78] sm:$0xff]
    %3497 = vmatprep.subr.bf16.mxu0 %v1361
    %3498 = vmatpush1.bf16.msra.mxu0 %v1360
    %3499 = vmatprep.subr.bf16.mxu0 %v1353
    %3500 = vmatpush1.bf16.msra.mxu0 %v1352
    %3501 = vmatprep.subr.bf16.mxu0 %v1345
    %3502 = vmatpush1.bf16.msra.mxu0 %v1344
    %3503 = vmatprep.subr.bf16.mxu0 %v1337
    %3504 = vmatpush1.bf16.msra.mxu0 %v1336
    %3505 = vmatprep.subr.bf16.mxu0 %v1329
    %3506 = vmatpush1.bf16.msra.mxu0 %v1328
    %3507 = vmatprep.subr.bf16.mxu0 %v1321
    %3508 = vmatpush1.bf16.msra.mxu0 %v1320
    %3509 = vmatprep.subr.bf16.mxu0 %v1313
    %3510 = vmatpush1.bf16.msra.mxu0 %v1312
    %3511 = vmatprep.subr.bf16.mxu0 %v1305
    %3512 = vmatpush1.bf16.msra.mxu0 %v1304
    %3513 = vmatprep.subr.bf16.mxu0 %v1425
    %3514 = vmatpush2.bf16.msra.mxu0 %v1424
    %3515 = vmatprep.subr.bf16.mxu0 %v1417
    %3516 = vmatpush2.bf16.msra.mxu0 %v1416
    %3517 = vmatprep.subr.bf16.mxu0 %v1409
    %3518 = vmatpush2.bf16.msra.mxu0 %v1408
    %3519 = vmatprep.subr.bf16.mxu0 %v1401
    %3520 = vmatpush2.bf16.msra.mxu0 %v1400
    %3521 = vmatprep.subr.bf16.mxu0 %v1393
    %3522 = vmatpush2.bf16.msra.mxu0 %v1392
    %3523 = vmatprep.subr.bf16.mxu0 %v1385
    %3524 = vmatpush2.bf16.msra.mxu0 %v1384
    %3525 = vmatprep.subr.bf16.mxu0 %v1377
    %3526 = vmatpush2.bf16.msra.mxu0 %v1376
    %3527 = vmatprep.subr.bf16.mxu0 %v1369
    %3528 = vmatpush2.bf16.msra.mxu0 %v1368
    %3529 = vmatprep.mubr.bf16.mxu0 %v1781
    %3530 = vmatmul.mubr.bf16.gmra.mxu0 %v1780
    %v3531 = vpop.f32.mrf.mxu0
    %v3532 = vadd.f32 0.0, %v3531
    %v3533 = vpop.f32.mrf.mxu0
    %v3534 = vadd.f32 0.0, %v3533
    %v3535 = vpop.f32.mrf.mxu0
    %v3536 = vpop.f32.mrf.mxu0
    %3537 = vdwg.mxu0
    %3538 = vmatprep.subr.bf16.mxu0 %v1363
    %3539 = vmatpush1.bf16.msra.mxu0 %v1362
    %3540 = vmatprep.subr.bf16.mxu0 %v1355
    %3541 = vmatpush1.bf16.msra.mxu0 %v1354
    %3542 = vmatprep.subr.bf16.mxu0 %v1347
    %3543 = vmatpush1.bf16.msra.mxu0 %v1346
    %3544 = vmatprep.subr.bf16.mxu0 %v1339
    %3545 = vmatpush1.bf16.msra.mxu0 %v1338
    %3546 = vmatprep.subr.bf16.mxu0 %v1331
    %3547 = vmatpush1.bf16.msra.mxu0 %v1330
    %3548 = vmatprep.subr.bf16.mxu0 %v1323
    %3549 = vmatpush1.bf16.msra.mxu0 %v1322
    %3550 = vmatprep.subr.bf16.mxu0 %v1315
    %3551 = vmatpush1.bf16.msra.mxu0 %v1314
    %3552 = vmatprep.subr.bf16.mxu0 %v1307
    %3553 = vmatpush1.bf16.msra.mxu0 %v1306
    %3554 = vmatprep.subr.bf16.mxu0 %v1427
    %3555 = vmatpush2.bf16.msra.mxu0 %v1426
    %3556 = vmatprep.subr.bf16.mxu0 %v1419
    %3557 = vmatpush2.bf16.msra.mxu0 %v1418
    %3558 = vmatprep.subr.bf16.mxu0 %v1411
    %3559 = vmatpush2.bf16.msra.mxu0 %v1410
    %3560 = vmatprep.subr.bf16.mxu0 %v1403
    %3561 = vmatpush2.bf16.msra.mxu0 %v1402
    %3562 = vmatprep.subr.bf16.mxu0 %v1395
    %3563 = vmatpush2.bf16.msra.mxu0 %v1394
    %3564 = vmatprep.subr.bf16.mxu0 %v1387
    %3565 = vmatpush2.bf16.msra.mxu0 %v1386
    %3566 = vmatprep.subr.bf16.mxu0 %v1379
    %3567 = vmatpush2.bf16.msra.mxu0 %v1378
    %3568 = vmatprep.subr.bf16.mxu0 %v1371
    %3569 = vmatpush2.bf16.msra.mxu0 %v1370
    %3570 = vmatprep.mubr.bf16.mxu0 %v1781
    %3571 = vmatmul.mubr.bf16.gmra.mxu0 %v1780
    %v3572 = vpop.f32.mrf.mxu0
    %v3573 = vadd.f32 0.0, %v3572
    %v3574 = vpop.f32.mrf.mxu0
    %v3575 = vadd.f32 0.0, %v3574
    %v3576 = vpop.f32.mrf.mxu0
    %v3577 = vpop.f32.mrf.mxu0
    %3578 = vdwg.mxu0
    %3579 = vmatprep.subr.bf16.mxu0 %v1365
    %3580 = vmatpush1.bf16.msra.mxu0 %v1364
    %3581 = vmatprep.subr.bf16.mxu0 %v1357
    %3582 = vmatpush1.bf16.msra.mxu0 %v1356
    %3583 = vmatprep.subr.bf16.mxu0 %v1349
    %3584 = vmatpush1.bf16.msra.mxu0 %v1348
    %3585 = vmatprep.subr.bf16.mxu0 %v1341
    %3586 = vmatpush1.bf16.msra.mxu0 %v1340
    %3587 = vmatprep.subr.bf16.mxu0 %v1333
    %3588 = vmatpush1.bf16.msra.mxu0 %v1332
    %3589 = vmatprep.subr.bf16.mxu0 %v1325
    %3590 = vmatpush1.bf16.msra.mxu0 %v1324
    %3591 = vmatprep.subr.bf16.mxu0 %v1317
    %3592 = vmatpush1.bf16.msra.mxu0 %v1316
    %3593 = vmatprep.subr.bf16.mxu0 %v1309
    %3594 = vmatpush1.bf16.msra.mxu0 %v1308
    %3595 = vmatprep.subr.bf16.mxu0 %v1429
    %3596 = vmatpush2.bf16.msra.mxu0 %v1428
    %3597 = vmatprep.subr.bf16.mxu0 %v1421
    %3598 = vmatpush2.bf16.msra.mxu0 %v1420
    %3599 = vmatprep.subr.bf16.mxu0 %v1413
    %3600 = vmatpush2.bf16.msra.mxu0 %v1412
    %3601 = vmatprep.subr.bf16.mxu0 %v1405
    %3602 = vmatpush2.bf16.msra.mxu0 %v1404
    %3603 = vmatprep.subr.bf16.mxu0 %v1397
    %3604 = vmatpush2.bf16.msra.mxu0 %v1396
    %3605 = vmatprep.subr.bf16.mxu0 %v1389
    %3606 = vmatpush2.bf16.msra.mxu0 %v1388
    %3607 = vmatprep.subr.bf16.mxu0 %v1381
    %3608 = vmatpush2.bf16.msra.mxu0 %v1380
    %3609 = vmatprep.subr.bf16.mxu0 %v1373
    %3610 = vmatpush2.bf16.msra.mxu0 %v1372
    %3611 = vmatprep.mubr.bf16.mxu0 %v1781
    %3612 = vmatmul.mubr.bf16.gmra.mxu0 %v1780
    %v3613 = vpop.f32.mrf.mxu0
    %v3614 = vadd.f32 0.0, %v3613
    %v3615 = vpop.f32.mrf.mxu0
    %v3616 = vadd.f32 0.0, %v3615
    %v3617 = vpop.f32.mrf.mxu0
    %v3618 = vpop.f32.mrf.mxu0
    %3619 = vdwg.mxu0
    %3620 = vmatprep.subr.bf16.mxu0 %v1367
    %3621 = vmatpush1.bf16.msra.mxu0 %v1366
    %3622 = vmatprep.subr.bf16.mxu0 %v1359
    %3623 = vmatpush1.bf16.msra.mxu0 %v1358
    %3624 = vmatprep.subr.bf16.mxu0 %v1351
    %3625 = vmatpush1.bf16.msra.mxu0 %v1350
    %3626 = vmatprep.subr.bf16.mxu0 %v1343
    %3627 = vmatpush1.bf16.msra.mxu0 %v1342
    %3628 = vmatprep.subr.bf16.mxu0 %v1335
    %3629 = vmatpush1.bf16.msra.mxu0 %v1334
    %3630 = vmatprep.subr.bf16.mxu0 %v1327
    %3631 = vmatpush1.bf16.msra.mxu0 %v1326
    %3632 = vmatprep.subr.bf16.mxu0 %v1319
    %3633 = vmatpush1.bf16.msra.mxu0 %v1318
    %3634 = vmatprep.subr.bf16.mxu0 %v1311
    %3635 = vmatpush1.bf16.msra.mxu0 %v1310
    %3636 = vmatprep.subr.bf16.mxu0 %v1431
    %3637 = vmatpush2.bf16.msra.mxu0 %v1430
    %3638 = vmatprep.subr.bf16.mxu0 %v1423
    %3639 = vmatpush2.bf16.msra.mxu0 %v1422
    %3640 = vmatprep.subr.bf16.mxu0 %v1415
    %3641 = vmatpush2.bf16.msra.mxu0 %v1414
    %3642 = vmatprep.subr.bf16.mxu0 %v1407
    %3643 = vmatpush2.bf16.msra.mxu0 %v1406
    %3644 = vmatprep.subr.bf16.mxu0 %v1399
    %3645 = vmatpush2.bf16.msra.mxu0 %v1398
    %3646 = vmatprep.subr.bf16.mxu0 %v1391
    %3647 = vmatpush2.bf16.msra.mxu0 %v1390
    %3648 = vmatprep.subr.bf16.mxu0 %v1383
    %3649 = vmatpush2.bf16.msra.mxu0 %v1382
    %3650 = vmatprep.subr.bf16.mxu0 %v1375
    %3651 = vmatpush2.bf16.msra.mxu0 %v1374
    %3652 = vmatprep.mubr.bf16.mxu0 %v1781
    %3653 = vmatmul.mubr.bf16.gmra.mxu0 %v1780
    %v3654 = vpop.f32.mrf.mxu0
    %v3655 = vadd.f32 0.0, %v3654
    %v3656 = vpop.f32.mrf.mxu0
    %v3657 = vadd.f32 0.0, %v3656
    %v3658 = vpop.f32.mrf.mxu0
    %v3659 = vpop.f32.mrf.mxu0
    %3660 = vdwg.mxu0
    %v3661 = vadd.f32 %v3489, %v3532
    %v3662 = vadd.f32 %v3490, %v3534
    %v3663 = vadd.f32 %v3491, %v3573
    %v3664 = vadd.f32 %v3492, %v3575
    %v3665 = vadd.f32 %v3493, %v3614
    %v3666 = vadd.f32 %v3494, %v3616
    %v3667 = vadd.f32 %v3495, %v3655
    %v3668 = vadd.f32 %v3496, %v3657
    %v3669 = vxor.u32 %v3661, 2147483648
    %v3670 = vxor.u32 %v3662, 2147483648
    %v3671 = vmul.f32 %v3669, 1.442695
    %v3672 = vpow.pop %v3671
    %v3673 = vmul.f32 %v3670, 1.442695
    %v3674 = vpow.pop %v3673
    %v3675 = vadd.f32 %v3672, 1.0
    %v3676 = vadd.f32 %v3674, 1.0
    %v3677 = vrcp.pop %v3675
    %v3678 = vmul.f32 1.0, %v3677
    %v3679 = vrcp.pop %v3676
    %v3680 = vmul.f32 1.0, %v3679
    %v3681 = vxor.u32 %v3663, 2147483648
    %v3682 = vxor.u32 %v3664, 2147483648
    %v3683 = vmul.f32 %v3681, 1.442695
    %v3684 = vpow.pop %v3683
    %v3685 = vmul.f32 %v3682, 1.442695
    %v3686 = vpow.pop %v3685
    %v3687 = vadd.f32 %v3684, 1.0
    %v3688 = vadd.f32 %v3686, 1.0
    %v3689 = vrcp.pop %v3687
    %v3690 = vmul.f32 1.0, %v3689
    %v3691 = vrcp.pop %v3688
    %v3692 = vmul.f32 1.0, %v3691
    %v3693 = vtanh.pop %v3665
    %v3694 = vtanh.pop %v3666
    %v3695 = vxor.u32 %v3667, 2147483648
    %v3696 = vxor.u32 %v3668, 2147483648
    %v3697 = vmul.f32 %v3695, 1.442695
    %v3698 = vpow.pop %v3697
    %v3699 = vmul.f32 %v3696, 1.442695
    %v3700 = vpow.pop %v3699
    %v3701 = vadd.f32 %v3698, 1.0
    %v3702 = vadd.f32 %v3700, 1.0
    %v3703 = vrcp.pop %v3701
    %v3704 = vmul.f32 1.0, %v3703
    %v3705 = vrcp.pop %v3702
    %v3706 = vmul.f32 1.0, %v3705
    %v3707 = vmul.f32 %v3690, %v1774
    %v3708 = vmul.f32 %v3692, %v1775
    %v3709 = vmul.f32 %v3678, %v3693
    %v3710 = vmul.f32 %v3680, %v3694
    %v3711 = vadd.f32 %v3707, %v3709
    %v3712 = vadd.f32 %v3708, %v3710
    %v3713 = vtanh.pop %v3711
    %v3714 = vtanh.pop %v3712
    %v3715 = vmul.f32 %v3704, %v3713
    %v3716 = vmul.f32 %v3706, %v3714
    %v3717 = vpack.c.bf16 %v3715, %v3715
    %v3718 = vpack.c.bf16 %v3716, %v3716
    %3719 = vmatprep.subr.bf16.mxu0 %v2264
    %3720 = vmatpush1.bf16.msra.mxu0 %v2263
    %3721 = vmatprep.subr.bf16.mxu0 %v2256
    %3722 = vmatpush1.bf16.msra.mxu0 %v2255
    %3723 = vmatprep.subr.bf16.mxu0 %v2248
    %3724 = vmatpush1.bf16.msra.mxu0 %v2247
    %3725 = vmatprep.subr.bf16.mxu0 %v2240
    %3726 = vmatpush1.bf16.msra.mxu0 %v2239
    %3727 = vmatprep.subr.bf16.mxu0 %v2232
    %3728 = vmatpush1.bf16.msra.mxu0 %v2231
    %3729 = vmatprep.subr.bf16.mxu0 %v2224
    %3730 = vmatpush1.bf16.msra.mxu0 %v2223
    %3731 = vmatprep.subr.bf16.mxu0 %v2216
    %3732 = vmatpush1.bf16.msra.mxu0 %v2215
    %3733 = vmatprep.subr.bf16.mxu0 %v2208
    %3734 = vmatpush1.bf16.msra.mxu0 %v2207
    %3735 = vmatprep.subr.bf16.mxu0 %v2328
    %3736 = vmatpush2.bf16.msra.mxu0 %v2327
    %3737 = vmatprep.subr.bf16.mxu0 %v2320
    %3738 = vmatpush2.bf16.msra.mxu0 %v2319
    %3739 = vmatprep.subr.bf16.mxu0 %v2312
    %3740 = vmatpush2.bf16.msra.mxu0 %v2311
    %3741 = vmatprep.subr.bf16.mxu0 %v2304
    %3742 = vmatpush2.bf16.msra.mxu0 %v2303
    %3743 = vmatprep.subr.bf16.mxu0 %v2296
    %3744 = vmatpush2.bf16.msra.mxu0 %v2295
    %3745 = vmatprep.subr.bf16.mxu0 %v2288
    %3746 = vmatpush2.bf16.msra.mxu0 %v2287
    %3747 = vmatprep.subr.bf16.mxu0 %v2280
    %3748 = vmatpush2.bf16.msra.mxu0 %v2279
    %3749 = vmatprep.subr.bf16.mxu0 %v2272
    %3750 = vmatpush2.bf16.msra.mxu0 %v2271
    %3751 = vmatprep.mubr.bf16.mxu0 %v3718
    %3752 = vmatmul.mubr.bf16.gmra.mxu0 %v3717
    %v3753 = vpop.f32.mrf.mxu0
    %v3754 = vadd.f32 %v1786, %v3753
    %v3755 = vpop.f32.mrf.mxu0
    %v3756 = vadd.f32 %v1790, %v3755
    %v3757 = vpop.f32.mrf.mxu0
    %v3758 = vpop.f32.mrf.mxu0
    %3759 = vdwg.mxu0
    %3760 = vmatprep.subr.bf16.mxu0 %v2266
    %3761 = vmatpush1.bf16.msra.mxu0 %v2265
    %3762 = vmatprep.subr.bf16.mxu0 %v2258
    %3763 = vmatpush1.bf16.msra.mxu0 %v2257
    %3764 = vmatprep.subr.bf16.mxu0 %v2250
    %3765 = vmatpush1.bf16.msra.mxu0 %v2249
    %3766 = vmatprep.subr.bf16.mxu0 %v2242
    %3767 = vmatpush1.bf16.msra.mxu0 %v2241
    %3768 = vmatprep.subr.bf16.mxu0 %v2234
    %3769 = vmatpush1.bf16.msra.mxu0 %v2233
    %3770 = vmatprep.subr.bf16.mxu0 %v2226
    %3771 = vmatpush1.bf16.msra.mxu0 %v2225
    %3772 = vmatprep.subr.bf16.mxu0 %v2218
    %3773 = vmatpush1.bf16.msra.mxu0 %v2217
    %3774 = vmatprep.subr.bf16.mxu0 %v2210
    %3775 = vmatpush1.bf16.msra.mxu0 %v2209
    %3776 = vmatprep.subr.bf16.mxu0 %v2330
    %3777 = vmatpush2.bf16.msra.mxu0 %v2329
    %3778 = vmatprep.subr.bf16.mxu0 %v2322
    %3779 = vmatpush2.bf16.msra.mxu0 %v2321
    %3780 = vmatprep.subr.bf16.mxu0 %v2314
    %3781 = vmatpush2.bf16.msra.mxu0 %v2313
    %3782 = vmatprep.subr.bf16.mxu0 %v2306
    %3783 = vmatpush2.bf16.msra.mxu0 %v2305
    %3784 = vmatprep.subr.bf16.mxu0 %v2298
    %3785 = vmatpush2.bf16.msra.mxu0 %v2297
    %3786 = vmatprep.subr.bf16.mxu0 %v2290
    %3787 = vmatpush2.bf16.msra.mxu0 %v2289
    %3788 = vmatprep.subr.bf16.mxu0 %v2282
    %3789 = vmatpush2.bf16.msra.mxu0 %v2281
    %3790 = vmatprep.subr.bf16.mxu0 %v2274
    %3791 = vmatpush2.bf16.msra.mxu0 %v2273
    %3792 = vmatprep.mubr.bf16.mxu0 %v3718
    %3793 = vmatmul.mubr.bf16.gmra.mxu0 %v3717
    %v3794 = vpop.f32.mrf.mxu0
    %v3795 = vadd.f32 %v1794, %v3794
    %v3796 = vpop.f32.mrf.mxu0
    %v3797 = vadd.f32 %v1798, %v3796
    %v3798 = vpop.f32.mrf.mxu0
    %v3799 = vpop.f32.mrf.mxu0
    %3800 = vdwg.mxu0
    %3801 = vmatprep.subr.bf16.mxu0 %v2268
    %3802 = vmatpush1.bf16.msra.mxu0 %v2267
    %3803 = vmatprep.subr.bf16.mxu0 %v2260
    %3804 = vmatpush1.bf16.msra.mxu0 %v2259
    %3805 = vmatprep.subr.bf16.mxu0 %v2252
    %3806 = vmatpush1.bf16.msra.mxu0 %v2251
    %3807 = vmatprep.subr.bf16.mxu0 %v2244
    %3808 = vmatpush1.bf16.msra.mxu0 %v2243
    %3809 = vmatprep.subr.bf16.mxu0 %v2236
    %3810 = vmatpush1.bf16.msra.mxu0 %v2235
    %3811 = vmatprep.subr.bf16.mxu0 %v2228
    %3812 = vmatpush1.bf16.msra.mxu0 %v2227
    %3813 = vmatprep.subr.bf16.mxu0 %v2220
    %3814 = vmatpush1.bf16.msra.mxu0 %v2219
    %3815 = vmatprep.subr.bf16.mxu0 %v2212
    %3816 = vmatpush1.bf16.msra.mxu0 %v2211
    %3817 = vmatprep.subr.bf16.mxu0 %v2332
    %3818 = vmatpush2.bf16.msra.mxu0 %v2331
    %3819 = vmatprep.subr.bf16.mxu0 %v2324
    %3820 = vmatpush2.bf16.msra.mxu0 %v2323
    %3821 = vmatprep.subr.bf16.mxu0 %v2316
    %3822 = vmatpush2.bf16.msra.mxu0 %v2315
    %3823 = vmatprep.subr.bf16.mxu0 %v2308
    %3824 = vmatpush2.bf16.msra.mxu0 %v2307
    %3825 = vmatprep.subr.bf16.mxu0 %v2300
    %3826 = vmatpush2.bf16.msra.mxu0 %v2299
    %3827 = vmatprep.subr.bf16.mxu0 %v2292
    %3828 = vmatpush2.bf16.msra.mxu0 %v2291
    %3829 = vmatprep.subr.bf16.mxu0 %v2284
    %3830 = vmatpush2.bf16.msra.mxu0 %v2283
    %3831 = vmatprep.subr.bf16.mxu0 %v2276
    %3832 = vmatpush2.bf16.msra.mxu0 %v2275
    %3833 = vmatprep.mubr.bf16.mxu0 %v3718
    %3834 = vmatmul.mubr.bf16.gmra.mxu0 %v3717
    %v3835 = vpop.f32.mrf.mxu0
    %v3836 = vadd.f32 %v1802, %v3835
    %v3837 = vpop.f32.mrf.mxu0
    %v3838 = vadd.f32 %v1806, %v3837
    %v3839 = vpop.f32.mrf.mxu0
    %v3840 = vpop.f32.mrf.mxu0
    %3841 = vdwg.mxu0
    %3842 = vmatprep.subr.bf16.mxu0 %v2270
    %3843 = vmatpush1.bf16.msra.mxu0 %v2269
    %3844 = vmatprep.subr.bf16.mxu0 %v2262
    %3845 = vmatpush1.bf16.msra.mxu0 %v2261
    %3846 = vmatprep.subr.bf16.mxu0 %v2254
    %3847 = vmatpush1.bf16.msra.mxu0 %v2253
    %3848 = vmatprep.subr.bf16.mxu0 %v2246
    %3849 = vmatpush1.bf16.msra.mxu0 %v2245
    %3850 = vmatprep.subr.bf16.mxu0 %v2238
    %3851 = vmatpush1.bf16.msra.mxu0 %v2237
    %3852 = vmatprep.subr.bf16.mxu0 %v2230
    %3853 = vmatpush1.bf16.msra.mxu0 %v2229
    %3854 = vmatprep.subr.bf16.mxu0 %v2222
    %3855 = vmatpush1.bf16.msra.mxu0 %v2221
    %3856 = vmatprep.subr.bf16.mxu0 %v2214
    %3857 = vmatpush1.bf16.msra.mxu0 %v2213
    %3858 = vmatprep.subr.bf16.mxu0 %v2334
    %3859 = vmatpush2.bf16.msra.mxu0 %v2333
    %3860 = vmatprep.subr.bf16.mxu0 %v2326
    %3861 = vmatpush2.bf16.msra.mxu0 %v2325
    %3862 = vmatprep.subr.bf16.mxu0 %v2318
    %3863 = vmatpush2.bf16.msra.mxu0 %v2317
    %3864 = vmatprep.subr.bf16.mxu0 %v2310
    %3865 = vmatpush2.bf16.msra.mxu0 %v2309
    %3866 = vmatprep.subr.bf16.mxu0 %v2302
    %3867 = vmatpush2.bf16.msra.mxu0 %v2301
    %3868 = vmatprep.subr.bf16.mxu0 %v2294
    %3869 = vmatpush2.bf16.msra.mxu0 %v2293
    %3870 = vmatprep.subr.bf16.mxu0 %v2286
    %3871 = vmatpush2.bf16.msra.mxu0 %v2285
    %3872 = vmatprep.subr.bf16.mxu0 %v2278
    %3873 = vmatpush2.bf16.msra.mxu0 %v2277
    %3874 = vmatprep.mubr.bf16.mxu0 %v3718
    %3875 = vmatmul.mubr.bf16.gmra.mxu0 %v3717
    %v3876 = vpop.f32.mrf.mxu0
    %v3877 = vadd.f32 %v1810, %v3876
    %v3878 = vpop.f32.mrf.mxu0
    %v3879 = vadd.f32 %v1814, %v3878
    %v3880 = vpop.f32.mrf.mxu0
    %v3881 = vpop.f32.mrf.mxu0
    %3882 = vdwg.mxu0
    %v3883 = vpack.c.bf16 %v3485, %v3485
    %v3884 = vpack.c.bf16 %v3486, %v3486
    %3885 = vmatprep.subr.bf16.mxu0 %v3068
    %3886 = vmatpush1.bf16.msra.mxu0 %v3067
    %3887 = vmatprep.subr.bf16.mxu0 %v3060
    %3888 = vmatpush1.bf16.msra.mxu0 %v3059
    %3889 = vmatprep.subr.bf16.mxu0 %v3052
    %3890 = vmatpush1.bf16.msra.mxu0 %v3051
    %3891 = vmatprep.subr.bf16.mxu0 %v3044
    %3892 = vmatpush1.bf16.msra.mxu0 %v3043
    %3893 = vmatprep.subr.bf16.mxu0 %v3036
    %3894 = vmatpush1.bf16.msra.mxu0 %v3035
    %3895 = vmatprep.subr.bf16.mxu0 %v3028
    %3896 = vmatpush1.bf16.msra.mxu0 %v3027
    %3897 = vmatprep.subr.bf16.mxu0 %v3020
    %3898 = vmatpush1.bf16.msra.mxu0 %v3019
    %3899 = vmatprep.subr.bf16.mxu0 %v3012
    %3900 = vmatpush1.bf16.msra.mxu0 %v3011
    %3901 = vmatprep.subr.bf16.mxu0 %v3132
    %3902 = vmatpush2.bf16.msra.mxu0 %v3131
    %3903 = vmatprep.subr.bf16.mxu0 %v3124
    %3904 = vmatpush2.bf16.msra.mxu0 %v3123
    %3905 = vmatprep.subr.bf16.mxu0 %v3116
    %3906 = vmatpush2.bf16.msra.mxu0 %v3115
    %3907 = vmatprep.subr.bf16.mxu0 %v3108
    %3908 = vmatpush2.bf16.msra.mxu0 %v3107
    %3909 = vmatprep.subr.bf16.mxu0 %v3100
    %3910 = vmatpush2.bf16.msra.mxu0 %v3099
    %3911 = vmatprep.subr.bf16.mxu0 %v3092
    %3912 = vmatpush2.bf16.msra.mxu0 %v3091
    %3913 = vmatprep.subr.bf16.mxu0 %v3084
    %3914 = vmatpush2.bf16.msra.mxu0 %v3083
    %3915 = vmatprep.subr.bf16.mxu0 %v3076
    %3916 = vmatpush2.bf16.msra.mxu0 %v3075
    %3917 = vmatprep.mubr.bf16.mxu0 %v3884
    %3918 = vmatmul.mubr.bf16.gmra.mxu0 %v3883
    %v3919 = vpop.f32.mrf.mxu0
    %v3920 = vadd.f32 0.0, %v3919
    %v3921 = vpop.f32.mrf.mxu0
    %v3922 = vadd.f32 0.0, %v3921
    %v3923 = vpop.f32.mrf.mxu0
    %v3924 = vpop.f32.mrf.mxu0
    %3925 = vdwg.mxu0
    %3926 = vmatprep.subr.bf16.mxu0 %v3070
    %3927 = vmatpush1.bf16.msra.mxu0 %v3069
    %3928 = vmatprep.subr.bf16.mxu0 %v3062
    %3929 = vmatpush1.bf16.msra.mxu0 %v3061
    %3930 = vmatprep.subr.bf16.mxu0 %v3054
    %3931 = vmatpush1.bf16.msra.mxu0 %v3053
    %3932 = vmatprep.subr.bf16.mxu0 %v3046
    %3933 = vmatpush1.bf16.msra.mxu0 %v3045
    %3934 = vmatprep.subr.bf16.mxu0 %v3038
    %3935 = vmatpush1.bf16.msra.mxu0 %v3037
    %3936 = vmatprep.subr.bf16.mxu0 %v3030
    %3937 = vmatpush1.bf16.msra.mxu0 %v3029
    %3938 = vmatprep.subr.bf16.mxu0 %v3022
    %3939 = vmatpush1.bf16.msra.mxu0 %v3021
    %3940 = vmatprep.subr.bf16.mxu0 %v3014
    %3941 = vmatpush1.bf16.msra.mxu0 %v3013
    %3942 = vmatprep.subr.bf16.mxu0 %v3134
    %3943 = vmatpush2.bf16.msra.mxu0 %v3133
    %3944 = vmatprep.subr.bf16.mxu0 %v3126
    %3945 = vmatpush2.bf16.msra.mxu0 %v3125
    %3946 = vmatprep.subr.bf16.mxu0 %v3118
    %3947 = vmatpush2.bf16.msra.mxu0 %v3117
    %3948 = vmatprep.subr.bf16.mxu0 %v3110
    %3949 = vmatpush2.bf16.msra.mxu0 %v3109
    %3950 = vmatprep.subr.bf16.mxu0 %v3102
    %3951 = vmatpush2.bf16.msra.mxu0 %v3101
    %3952 = vmatprep.subr.bf16.mxu0 %v3094
    %3953 = vmatpush2.bf16.msra.mxu0 %v3093
    %3954 = vmatprep.subr.bf16.mxu0 %v3086
    %3955 = vmatpush2.bf16.msra.mxu0 %v3085
    %3956 = vmatprep.subr.bf16.mxu0 %v3078
    %3957 = vmatpush2.bf16.msra.mxu0 %v3077
    %3958 = vmatprep.mubr.bf16.mxu0 %v3884
    %3959 = vmatmul.mubr.bf16.gmra.mxu0 %v3883
    %v3960 = vpop.f32.mrf.mxu0
    %v3961 = vadd.f32 0.0, %v3960
    %v3962 = vpop.f32.mrf.mxu0
    %v3963 = vadd.f32 0.0, %v3962
    %v3964 = vpop.f32.mrf.mxu0
    %v3965 = vpop.f32.mrf.mxu0
    %3966 = vdwg.mxu0
    %3967 = vmatprep.subr.bf16.mxu0 %v3072
    %3968 = vmatpush1.bf16.msra.mxu0 %v3071
    %3969 = vmatprep.subr.bf16.mxu0 %v3064
    %3970 = vmatpush1.bf16.msra.mxu0 %v3063
    %3971 = vmatprep.subr.bf16.mxu0 %v3056
    %3972 = vmatpush1.bf16.msra.mxu0 %v3055
    %3973 = vmatprep.subr.bf16.mxu0 %v3048
    %3974 = vmatpush1.bf16.msra.mxu0 %v3047
    %3975 = vmatprep.subr.bf16.mxu0 %v3040
    %3976 = vmatpush1.bf16.msra.mxu0 %v3039
    %3977 = vmatprep.subr.bf16.mxu0 %v3032
    %3978 = vmatpush1.bf16.msra.mxu0 %v3031
    %3979 = vmatprep.subr.bf16.mxu0 %v3024
    %3980 = vmatpush1.bf16.msra.mxu0 %v3023
    %3981 = vmatprep.subr.bf16.mxu0 %v3016
    %3982 = vmatpush1.bf16.msra.mxu0 %v3015
    %3983 = vmatprep.subr.bf16.mxu0 %v3136
    %3984 = vmatpush2.bf16.msra.mxu0 %v3135
    %3985 = vmatprep.subr.bf16.mxu0 %v3128
    %3986 = vmatpush2.bf16.msra.mxu0 %v3127
    %3987 = vmatprep.subr.bf16.mxu0 %v3120
    %3988 = vmatpush2.bf16.msra.mxu0 %v3119
    %3989 = vmatprep.subr.bf16.mxu0 %v3112
    %3990 = vmatpush2.bf16.msra.mxu0 %v3111
    %3991 = vmatprep.subr.bf16.mxu0 %v3104
    %3992 = vmatpush2.bf16.msra.mxu0 %v3103
    %3993 = vmatprep.subr.bf16.mxu0 %v3096
    %3994 = vmatpush2.bf16.msra.mxu0 %v3095
    %3995 = vmatprep.subr.bf16.mxu0 %v3088
    %3996 = vmatpush2.bf16.msra.mxu0 %v3087
    %3997 = vmatprep.subr.bf16.mxu0 %v3080
    %3998 = vmatpush2.bf16.msra.mxu0 %v3079
    %3999 = vmatprep.mubr.bf16.mxu0 %v3884
    %4000 = vmatmul.mubr.bf16.gmra.mxu0 %v3883
    %v4001 = vpop.f32.mrf.mxu0
    %v4002 = vadd.f32 0.0, %v4001
    %v4003 = vpop.f32.mrf.mxu0
    %v4004 = vadd.f32 0.0, %v4003
    %v4005 = vpop.f32.mrf.mxu0
    %v4006 = vpop.f32.mrf.mxu0
    %4007 = vdwg.mxu0
    %4008 = vmatprep.subr.bf16.mxu0 %v3074
    %4009 = vmatpush1.bf16.msra.mxu0 %v3073
    %4010 = vmatprep.subr.bf16.mxu0 %v3066
    %4011 = vmatpush1.bf16.msra.mxu0 %v3065
    %4012 = vmatprep.subr.bf16.mxu0 %v3058
    %4013 = vmatpush1.bf16.msra.mxu0 %v3057
    %4014 = vmatprep.subr.bf16.mxu0 %v3050
    %4015 = vmatpush1.bf16.msra.mxu0 %v3049
    %4016 = vmatprep.subr.bf16.mxu0 %v3042
    %4017 = vmatpush1.bf16.msra.mxu0 %v3041
    %4018 = vmatprep.subr.bf16.mxu0 %v3034
    %4019 = vmatpush1.bf16.msra.mxu0 %v3033
    %4020 = vmatprep.subr.bf16.mxu0 %v3026
    %4021 = vmatpush1.bf16.msra.mxu0 %v3025
    %4022 = vmatprep.subr.bf16.mxu0 %v3018
    %4023 = vmatpush1.bf16.msra.mxu0 %v3017
    %4024 = vmatprep.subr.bf16.mxu0 %v3138
    %4025 = vmatpush2.bf16.msra.mxu0 %v3137
    %4026 = vmatprep.subr.bf16.mxu0 %v3130
    %4027 = vmatpush2.bf16.msra.mxu0 %v3129
    %4028 = vmatprep.subr.bf16.mxu0 %v3122
    %4029 = vmatpush2.bf16.msra.mxu0 %v3121
    %4030 = vmatprep.subr.bf16.mxu0 %v3114
    %4031 = vmatpush2.bf16.msra.mxu0 %v3113
    %4032 = vmatprep.subr.bf16.mxu0 %v3106
    %4033 = vmatpush2.bf16.msra.mxu0 %v3105
    %4034 = vmatprep.subr.bf16.mxu0 %v3098
    %4035 = vmatpush2.bf16.msra.mxu0 %v3097
    %4036 = vmatprep.subr.bf16.mxu0 %v3090
    %4037 = vmatpush2.bf16.msra.mxu0 %v3089
    %4038 = vmatprep.subr.bf16.mxu0 %v3082
    %4039 = vmatpush2.bf16.msra.mxu0 %v3081
    %4040 = vmatprep.mubr.bf16.mxu0 %v3884
    %4041 = vmatmul.mubr.bf16.gmra.mxu0 %v3883
    %v4042 = vpop.f32.mrf.mxu0
    %v4043 = vadd.f32 0.0, %v4042
    %v4044 = vpop.f32.mrf.mxu0
    %v4045 = vadd.f32 0.0, %v4044
    %v4046 = vpop.f32.mrf.mxu0
    %v4047 = vpop.f32.mrf.mxu0
    %4048 = vdwg.mxu0
    %v4049 = vadd.f32 %v3754, %v3920
    %v4050 = vadd.f32 %v3756, %v3922
    %v4051 = vadd.f32 %v3795, %v3961
    %v4052 = vadd.f32 %v3797, %v3963
    %v4053 = vadd.f32 %v3836, %v4002
    %v4054 = vadd.f32 %v3838, %v4004
    %v4055 = vadd.f32 %v3877, %v4043
    %v4056 = vadd.f32 %v3879, %v4045
    %v4057 = vxor.u32 %v4049, 2147483648
    %v4058 = vxor.u32 %v4050, 2147483648
    %v4059 = vmul.f32 %v4057, 1.442695
    %v4060 = vpow.pop %v4059
    %v4061 = vmul.f32 %v4058, 1.442695
    %v4062 = vpow.pop %v4061
    %v4063 = vadd.f32 %v4060, 1.0
    %v4064 = vadd.f32 %v4062, 1.0
    %v4065 = vrcp.pop %v4063
    %v4066 = vmul.f32 1.0, %v4065
    %v4067 = vrcp.pop %v4064
    %v4068 = vmul.f32 1.0, %v4067
    %v4069 = vxor.u32 %v4051, 2147483648
    %v4070 = vxor.u32 %v4052, 2147483648
    %v4071 = vmul.f32 %v4069, 1.442695
    %v4072 = vpow.pop %v4071
    %v4073 = vmul.f32 %v4070, 1.442695
    %v4074 = vpow.pop %v4073
    %v4075 = vadd.f32 %v4072, 1.0
    %v4076 = vadd.f32 %v4074, 1.0
    %v4077 = vrcp.pop %v4075
    %v4078 = vmul.f32 1.0, %v4077
    %v4079 = vrcp.pop %v4076
    %v4080 = vmul.f32 1.0, %v4079
    %v4081 = vtanh.pop %v4053
    %v4082 = vtanh.pop %v4054
    %v4083 = vxor.u32 %v4055, 2147483648
    %v4084 = vxor.u32 %v4056, 2147483648
    %v4085 = vmul.f32 %v4083, 1.442695
    %v4086 = vpow.pop %v4085
    %v4087 = vmul.f32 %v4084, 1.442695
    %v4088 = vpow.pop %v4087
    %v4089 = vadd.f32 %v4086, 1.0
    %v4090 = vadd.f32 %v4088, 1.0
    %v4091 = vrcp.pop %v4089
    %v4092 = vmul.f32 1.0, %v4091
    %v4093 = vrcp.pop %v4090
    %v4094 = vmul.f32 1.0, %v4093
    %v4095 = vmul.f32 %v4078, %v3481
    %v4096 = vmul.f32 %v4080, %v3482
    %v4097 = vmul.f32 %v4066, %v4081
    %v4098 = vmul.f32 %v4068, %v4082
    %v4099 = vadd.f32 %v4095, %v4097
    %v4100 = vadd.f32 %v4096, %v4098
    %v4101 = vtanh.pop %v4099
    %v4102 = vtanh.pop %v4100
    %v4103 = vmul.f32 %v4092, %v4101
    %v4104 = vmul.f32 %v4094, %v4102
    %4105 = vst [vmem:[%s7 + $0x10] sm:$0xff] %v4103
    %4106 = vst [vmem:[%s7 + $0x18] sm:$0xff] %v4104
    %v4107 = vld [vmem:[#allocation2 + $0x80] sm:$0xff]
    %v4108 = vld [vmem:[#allocation2 + $0x88] sm:$0xff]
    %v4109 = vld [vmem:[#allocation2 + $0x90] sm:$0xff]
    %v4110 = vld [vmem:[#allocation2 + $0x98] sm:$0xff]
    %v4111 = vld [vmem:[#allocation2 + $0xa0] sm:$0xff]
    %v4112 = vld [vmem:[#allocation2 + $0xa8] sm:$0xff]
    %v4113 = vld [vmem:[#allocation2 + $0xb0] sm:$0xff]
    %v4114 = vld [vmem:[#allocation2 + $0xb8] sm:$0xff]
    %4115 = vmatprep.subr.bf16.mxu0 %v1361
    %4116 = vmatpush1.bf16.msra.mxu0 %v1360
    %4117 = vmatprep.subr.bf16.mxu0 %v1353
    %4118 = vmatpush1.bf16.msra.mxu0 %v1352
    %4119 = vmatprep.subr.bf16.mxu0 %v1345
    %4120 = vmatpush1.bf16.msra.mxu0 %v1344
    %4121 = vmatprep.subr.bf16.mxu0 %v1337
    %4122 = vmatpush1.bf16.msra.mxu0 %v1336
    %4123 = vmatprep.subr.bf16.mxu0 %v1329
    %4124 = vmatpush1.bf16.msra.mxu0 %v1328
    %4125 = vmatprep.subr.bf16.mxu0 %v1321
    %4126 = vmatpush1.bf16.msra.mxu0 %v1320
    %4127 = vmatprep.subr.bf16.mxu0 %v1313
    %4128 = vmatpush1.bf16.msra.mxu0 %v1312
    %4129 = vmatprep.subr.bf16.mxu0 %v1305
    %4130 = vmatpush1.bf16.msra.mxu0 %v1304
    %4131 = vmatprep.subr.bf16.mxu0 %v1425
    %4132 = vmatpush2.bf16.msra.mxu0 %v1424
    %4133 = vmatprep.subr.bf16.mxu0 %v1417
    %4134 = vmatpush2.bf16.msra.mxu0 %v1416
    %4135 = vmatprep.subr.bf16.mxu0 %v1409
    %4136 = vmatpush2.bf16.msra.mxu0 %v1408
    %4137 = vmatprep.subr.bf16.mxu0 %v1401
    %4138 = vmatpush2.bf16.msra.mxu0 %v1400
    %4139 = vmatprep.subr.bf16.mxu0 %v1393
    %4140 = vmatpush2.bf16.msra.mxu0 %v1392
    %4141 = vmatprep.subr.bf16.mxu0 %v1385
    %4142 = vmatpush2.bf16.msra.mxu0 %v1384
    %4143 = vmatprep.subr.bf16.mxu0 %v1377
    %4144 = vmatpush2.bf16.msra.mxu0 %v1376
    %4145 = vmatprep.subr.bf16.mxu0 %v1369
    %4146 = vmatpush2.bf16.msra.mxu0 %v1368
    %4147 = vmatprep.mubr.bf16.mxu0 %v3718
    %4148 = vmatmul.mubr.bf16.gmra.mxu0 %v3717
    %v4149 = vpop.f32.mrf.mxu0
    %v4150 = vadd.f32 0.0, %v4149
    %v4151 = vpop.f32.mrf.mxu0
    %v4152 = vadd.f32 0.0, %v4151
    %v4153 = vpop.f32.mrf.mxu0
    %v4154 = vpop.f32.mrf.mxu0
    %4155 = vdwg.mxu0
    %4156 = vmatprep.subr.bf16.mxu0 %v1363
    %4157 = vmatpush1.bf16.msra.mxu0 %v1362
    %4158 = vmatprep.subr.bf16.mxu0 %v1355
    %4159 = vmatpush1.bf16.msra.mxu0 %v1354
    %4160 = vmatprep.subr.bf16.mxu0 %v1347
    %4161 = vmatpush1.bf16.msra.mxu0 %v1346
    %4162 = vmatprep.subr.bf16.mxu0 %v1339
    %4163 = vmatpush1.bf16.msra.mxu0 %v1338
    %4164 = vmatprep.subr.bf16.mxu0 %v1331
    %4165 = vmatpush1.bf16.msra.mxu0 %v1330
    %4166 = vmatprep.subr.bf16.mxu0 %v1323
    %4167 = vmatpush1.bf16.msra.mxu0 %v1322
    %4168 = vmatprep.subr.bf16.mxu0 %v1315
    %4169 = vmatpush1.bf16.msra.mxu0 %v1314
    %4170 = vmatprep.subr.bf16.mxu0 %v1307
    %4171 = vmatpush1.bf16.msra.mxu0 %v1306
    %4172 = vmatprep.subr.bf16.mxu0 %v1427
    %4173 = vmatpush2.bf16.msra.mxu0 %v1426
    %4174 = vmatprep.subr.bf16.mxu0 %v1419
    %4175 = vmatpush2.bf16.msra.mxu0 %v1418
    %4176 = vmatprep.subr.bf16.mxu0 %v1411
    %4177 = vmatpush2.bf16.msra.mxu0 %v1410
    %4178 = vmatprep.subr.bf16.mxu0 %v1403
    %4179 = vmatpush2.bf16.msra.mxu0 %v1402
    %4180 = vmatprep.subr.bf16.mxu0 %v1395
    %4181 = vmatpush2.bf16.msra.mxu0 %v1394
    %4182 = vmatprep.subr.bf16.mxu0 %v1387
    %4183 = vmatpush2.bf16.msra.mxu0 %v1386
    %4184 = vmatprep.subr.bf16.mxu0 %v1379
    %4185 = vmatpush2.bf16.msra.mxu0 %v1378
    %4186 = vmatprep.subr.bf16.mxu0 %v1371
    %4187 = vmatpush2.bf16.msra.mxu0 %v1370
    %4188 = vmatprep.mubr.bf16.mxu0 %v3718
    %4189 = vmatmul.mubr.bf16.gmra.mxu0 %v3717
    %v4190 = vpop.f32.mrf.mxu0
    %v4191 = vadd.f32 0.0, %v4190
    %v4192 = vpop.f32.mrf.mxu0
    %v4193 = vadd.f32 0.0, %v4192
    %v4194 = vpop.f32.mrf.mxu0
    %v4195 = vpop.f32.mrf.mxu0
    %4196 = vdwg.mxu0
    %4197 = vmatprep.subr.bf16.mxu0 %v1365
    %4198 = vmatpush1.bf16.msra.mxu0 %v1364
    %4199 = vmatprep.subr.bf16.mxu0 %v1357
    %4200 = vmatpush1.bf16.msra.mxu0 %v1356
    %4201 = vmatprep.subr.bf16.mxu0 %v1349
    %4202 = vmatpush1.bf16.msra.mxu0 %v1348
    %4203 = vmatprep.subr.bf16.mxu0 %v1341
    %4204 = vmatpush1.bf16.msra.mxu0 %v1340
    %4205 = vmatprep.subr.bf16.mxu0 %v1333
    %4206 = vmatpush1.bf16.msra.mxu0 %v1332
    %4207 = vmatprep.subr.bf16.mxu0 %v1325
    %4208 = vmatpush1.bf16.msra.mxu0 %v1324
    %4209 = vmatprep.subr.bf16.mxu0 %v1317
    %4210 = vmatpush1.bf16.msra.mxu0 %v1316
    %4211 = vmatprep.subr.bf16.mxu0 %v1309
    %4212 = vmatpush1.bf16.msra.mxu0 %v1308
    %4213 = vmatprep.subr.bf16.mxu0 %v1429
    %4214 = vmatpush2.bf16.msra.mxu0 %v1428
    %4215 = vmatprep.subr.bf16.mxu0 %v1421
    %4216 = vmatpush2.bf16.msra.mxu0 %v1420
    %4217 = vmatprep.subr.bf16.mxu0 %v1413
    %4218 = vmatpush2.bf16.msra.mxu0 %v1412
    %4219 = vmatprep.subr.bf16.mxu0 %v1405
    %4220 = vmatpush2.bf16.msra.mxu0 %v1404
    %4221 = vmatprep.subr.bf16.mxu0 %v1397
    %4222 = vmatpush2.bf16.msra.mxu0 %v1396
    %4223 = vmatprep.subr.bf16.mxu0 %v1389
    %4224 = vmatpush2.bf16.msra.mxu0 %v1388
    %4225 = vmatprep.subr.bf16.mxu0 %v1381
    %4226 = vmatpush2.bf16.msra.mxu0 %v1380
    %4227 = vmatprep.subr.bf16.mxu0 %v1373
    %4228 = vmatpush2.bf16.msra.mxu0 %v1372
    %4229 = vmatprep.mubr.bf16.mxu0 %v3718
    %4230 = vmatmul.mubr.bf16.gmra.mxu0 %v3717
    %v4231 = vpop.f32.mrf.mxu0
    %v4232 = vadd.f32 0.0, %v4231
    %v4233 = vpop.f32.mrf.mxu0
    %v4234 = vadd.f32 0.0, %v4233
    %v4235 = vpop.f32.mrf.mxu0
    %v4236 = vpop.f32.mrf.mxu0
    %4237 = vdwg.mxu0
    %4238 = vmatprep.subr.bf16.mxu0 %v1367
    %4239 = vmatpush1.bf16.msra.mxu0 %v1366
    %4240 = vmatprep.subr.bf16.mxu0 %v1359
    %4241 = vmatpush1.bf16.msra.mxu0 %v1358
    %4242 = vmatprep.subr.bf16.mxu0 %v1351
    %4243 = vmatpush1.bf16.msra.mxu0 %v1350
    %4244 = vmatprep.subr.bf16.mxu0 %v1343
    %4245 = vmatpush1.bf16.msra.mxu0 %v1342
    %4246 = vmatprep.subr.bf16.mxu0 %v1335
    %4247 = vmatpush1.bf16.msra.mxu0 %v1334
    %4248 = vmatprep.subr.bf16.mxu0 %v1327
    %4249 = vmatpush1.bf16.msra.mxu0 %v1326
    %4250 = vmatprep.subr.bf16.mxu0 %v1319
    %4251 = vmatpush1.bf16.msra.mxu0 %v1318
    %4252 = vmatprep.subr.bf16.mxu0 %v1311
    %4253 = vmatpush1.bf16.msra.mxu0 %v1310
    %4254 = vmatprep.subr.bf16.mxu0 %v1431
    %4255 = vmatpush2.bf16.msra.mxu0 %v1430
    %4256 = vmatprep.subr.bf16.mxu0 %v1423
    %4257 = vmatpush2.bf16.msra.mxu0 %v1422
    %4258 = vmatprep.subr.bf16.mxu0 %v1415
    %4259 = vmatpush2.bf16.msra.mxu0 %v1414
    %4260 = vmatprep.subr.bf16.mxu0 %v1407
    %4261 = vmatpush2.bf16.msra.mxu0 %v1406
    %4262 = vmatprep.subr.bf16.mxu0 %v1399
    %4263 = vmatpush2.bf16.msra.mxu0 %v1398
    %4264 = vmatprep.subr.bf16.mxu0 %v1391
    %4265 = vmatpush2.bf16.msra.mxu0 %v1390
    %4266 = vmatprep.subr.bf16.mxu0 %v1383
    %4267 = vmatpush2.bf16.msra.mxu0 %v1382
    %4268 = vmatprep.subr.bf16.mxu0 %v1375
    %4269 = vmatpush2.bf16.msra.mxu0 %v1374
    %4270 = vmatprep.mubr.bf16.mxu0 %v3718
    %4271 = vmatmul.mubr.bf16.gmra.mxu0 %v3717
    %v4272 = vpop.f32.mrf.mxu0
    %v4273 = vadd.f32 0.0, %v4272
    %v4274 = vpop.f32.mrf.mxu0
    %v4275 = vadd.f32 0.0, %v4274
    %v4276 = vpop.f32.mrf.mxu0
    %v4277 = vpop.f32.mrf.mxu0
    %4278 = vdwg.mxu0
    %v4279 = vadd.f32 %v4107, %v4150
    %v4280 = vadd.f32 %v4108, %v4152
    %v4281 = vadd.f32 %v4109, %v4191
    %v4282 = vadd.f32 %v4110, %v4193
    %v4283 = vadd.f32 %v4111, %v4232
    %v4284 = vadd.f32 %v4112, %v4234
    %v4285 = vadd.f32 %v4113, %v4273
    %v4286 = vadd.f32 %v4114, %v4275
    %v4287 = vxor.u32 %v4279, 2147483648
    %v4288 = vxor.u32 %v4280, 2147483648
    %v4289 = vmul.f32 %v4287, 1.442695
    %v4290 = vpow.pop %v4289
    %v4291 = vmul.f32 %v4288, 1.442695
    %v4292 = vpow.pop %v4291
    %v4293 = vadd.f32 %v4290, 1.0
    %v4294 = vadd.f32 %v4292, 1.0
    %v4295 = vrcp.pop %v4293
    %v4296 = vmul.f32 1.0, %v4295
    %v4297 = vrcp.pop %v4294
    %v4298 = vmul.f32 1.0, %v4297
    %v4299 = vxor.u32 %v4281, 2147483648
    %v4300 = vxor.u32 %v4282, 2147483648
    %v4301 = vmul.f32 %v4299, 1.442695
    %v4302 = vpow.pop %v4301
    %v4303 = vmul.f32 %v4300, 1.442695
    %v4304 = vpow.pop %v4303
    %v4305 = vadd.f32 %v4302, 1.0
    %v4306 = vadd.f32 %v4304, 1.0
    %v4307 = vrcp.pop %v4305
    %v4308 = vmul.f32 1.0, %v4307
    %v4309 = vrcp.pop %v4306
    %v4310 = vmul.f32 1.0, %v4309
    %v4311 = vtanh.pop %v4283
    %v4312 = vtanh.pop %v4284
    %v4313 = vxor.u32 %v4285, 2147483648
    %v4314 = vxor.u32 %v4286, 2147483648
    %v4315 = vmul.f32 %v4313, 1.442695
    %v4316 = vpow.pop %v4315
    %v4317 = vmul.f32 %v4314, 1.442695
    %v4318 = vpow.pop %v4317
    %v4319 = vadd.f32 %v4316, 1.0
    %v4320 = vadd.f32 %v4318, 1.0
    %v4321 = vrcp.pop %v4319
    %v4322 = vmul.f32 1.0, %v4321
    %v4323 = vrcp.pop %v4320
    %v4324 = vmul.f32 1.0, %v4323
    %v4325 = vmul.f32 %v4308, %v3711
    %v4326 = vmul.f32 %v4310, %v3712
    %v4327 = vmul.f32 %v4296, %v4311
    %v4328 = vmul.f32 %v4298, %v4312
    %v4329 = vadd.f32 %v4325, %v4327
    %v4330 = vadd.f32 %v4326, %v4328
    %v4331 = vtanh.pop %v4329
    %v4332 = vtanh.pop %v4330
    %v4333 = vmul.f32 %v4322, %v4331
    %v4334 = vmul.f32 %v4324, %v4332
    %v4335 = vpack.c.bf16 %v4333, %v4333
    %v4336 = vpack.c.bf16 %v4334, %v4334
    %4337 = vmatprep.subr.bf16.mxu0 %v2264
    %4338 = vmatpush1.bf16.msra.mxu0 %v2263
    %4339 = vmatprep.subr.bf16.mxu0 %v2256
    %4340 = vmatpush1.bf16.msra.mxu0 %v2255
    %4341 = vmatprep.subr.bf16.mxu0 %v2248
    %4342 = vmatpush1.bf16.msra.mxu0 %v2247
    %4343 = vmatprep.subr.bf16.mxu0 %v2240
    %4344 = vmatpush1.bf16.msra.mxu0 %v2239
    %4345 = vmatprep.subr.bf16.mxu0 %v2232
    %4346 = vmatpush1.bf16.msra.mxu0 %v2231
    %4347 = vmatprep.subr.bf16.mxu0 %v2224
    %4348 = vmatpush1.bf16.msra.mxu0 %v2223
    %4349 = vmatprep.subr.bf16.mxu0 %v2216
    %4350 = vmatpush1.bf16.msra.mxu0 %v2215
    %4351 = vmatprep.subr.bf16.mxu0 %v2208
    %4352 = vmatpush1.bf16.msra.mxu0 %v2207
    %4353 = vmatprep.subr.bf16.mxu0 %v2328
    %4354 = vmatpush2.bf16.msra.mxu0 %v2327
    %4355 = vmatprep.subr.bf16.mxu0 %v2320
    %4356 = vmatpush2.bf16.msra.mxu0 %v2319
    %4357 = vmatprep.subr.bf16.mxu0 %v2312
    %4358 = vmatpush2.bf16.msra.mxu0 %v2311
    %4359 = vmatprep.subr.bf16.mxu0 %v2304
    %4360 = vmatpush2.bf16.msra.mxu0 %v2303
    %4361 = vmatprep.subr.bf16.mxu0 %v2296
    %4362 = vmatpush2.bf16.msra.mxu0 %v2295
    %4363 = vmatprep.subr.bf16.mxu0 %v2288
    %4364 = vmatpush2.bf16.msra.mxu0 %v2287
    %4365 = vmatprep.subr.bf16.mxu0 %v2280
    %4366 = vmatpush2.bf16.msra.mxu0 %v2279
    %4367 = vmatprep.subr.bf16.mxu0 %v2272
    %4368 = vmatpush2.bf16.msra.mxu0 %v2271
    %4369 = vmatprep.mubr.bf16.mxu0 %v4336
    %4370 = vmatmul.mubr.bf16.gmra.mxu0 %v4335
    %v4371 = vpop.f32.mrf.mxu0
    %v4372 = vadd.f32 %v1786, %v4371
    %v4373 = vpop.f32.mrf.mxu0
    %v4374 = vadd.f32 %v1790, %v4373
    %v4375 = vpop.f32.mrf.mxu0
    %v4376 = vpop.f32.mrf.mxu0
    %4377 = vdwg.mxu0
    %4378 = vmatprep.subr.bf16.mxu0 %v2266
    %4379 = vmatpush1.bf16.msra.mxu0 %v2265
    %4380 = vmatprep.subr.bf16.mxu0 %v2258
    %4381 = vmatpush1.bf16.msra.mxu0 %v2257
    %4382 = vmatprep.subr.bf16.mxu0 %v2250
    %4383 = vmatpush1.bf16.msra.mxu0 %v2249
    %4384 = vmatprep.subr.bf16.mxu0 %v2242
    %4385 = vmatpush1.bf16.msra.mxu0 %v2241
    %4386 = vmatprep.subr.bf16.mxu0 %v2234
    %4387 = vmatpush1.bf16.msra.mxu0 %v2233
    %4388 = vmatprep.subr.bf16.mxu0 %v2226
    %4389 = vmatpush1.bf16.msra.mxu0 %v2225
    %4390 = vmatprep.subr.bf16.mxu0 %v2218
    %4391 = vmatpush1.bf16.msra.mxu0 %v2217
    %4392 = vmatprep.subr.bf16.mxu0 %v2210
    %4393 = vmatpush1.bf16.msra.mxu0 %v2209
    %4394 = vmatprep.subr.bf16.mxu0 %v2330
    %4395 = vmatpush2.bf16.msra.mxu0 %v2329
    %4396 = vmatprep.subr.bf16.mxu0 %v2322
    %4397 = vmatpush2.bf16.msra.mxu0 %v2321
    %4398 = vmatprep.subr.bf16.mxu0 %v2314
    %4399 = vmatpush2.bf16.msra.mxu0 %v2313
    %4400 = vmatprep.subr.bf16.mxu0 %v2306
    %4401 = vmatpush2.bf16.msra.mxu0 %v2305
    %4402 = vmatprep.subr.bf16.mxu0 %v2298
    %4403 = vmatpush2.bf16.msra.mxu0 %v2297
    %4404 = vmatprep.subr.bf16.mxu0 %v2290
    %4405 = vmatpush2.bf16.msra.mxu0 %v2289
    %4406 = vmatprep.subr.bf16.mxu0 %v2282
    %4407 = vmatpush2.bf16.msra.mxu0 %v2281
    %4408 = vmatprep.subr.bf16.mxu0 %v2274
    %4409 = vmatpush2.bf16.msra.mxu0 %v2273
    %4410 = vmatprep.mubr.bf16.mxu0 %v4336
    %4411 = vmatmul.mubr.bf16.gmra.mxu0 %v4335
    %v4412 = vpop.f32.mrf.mxu0
    %v4413 = vadd.f32 %v1794, %v4412
    %v4414 = vpop.f32.mrf.mxu0
    %v4415 = vadd.f32 %v1798, %v4414
    %v4416 = vpop.f32.mrf.mxu0
    %v4417 = vpop.f32.mrf.mxu0
    %4418 = vdwg.mxu0
    %4419 = vmatprep.subr.bf16.mxu0 %v2268
    %4420 = vmatpush1.bf16.msra.mxu0 %v2267
    %4421 = vmatprep.subr.bf16.mxu0 %v2260
    %4422 = vmatpush1.bf16.msra.mxu0 %v2259
    %4423 = vmatprep.subr.bf16.mxu0 %v2252
    %4424 = vmatpush1.bf16.msra.mxu0 %v2251
    %4425 = vmatprep.subr.bf16.mxu0 %v2244
    %4426 = vmatpush1.bf16.msra.mxu0 %v2243
    %4427 = vmatprep.subr.bf16.mxu0 %v2236
    %4428 = vmatpush1.bf16.msra.mxu0 %v2235
    %4429 = vmatprep.subr.bf16.mxu0 %v2228
    %4430 = vmatpush1.bf16.msra.mxu0 %v2227
    %4431 = vmatprep.subr.bf16.mxu0 %v2220
    %4432 = vmatpush1.bf16.msra.mxu0 %v2219
    %4433 = vmatprep.subr.bf16.mxu0 %v2212
    %4434 = vmatpush1.bf16.msra.mxu0 %v2211
    %4435 = vmatprep.subr.bf16.mxu0 %v2332
    %4436 = vmatpush2.bf16.msra.mxu0 %v2331
    %4437 = vmatprep.subr.bf16.mxu0 %v2324
    %4438 = vmatpush2.bf16.msra.mxu0 %v2323
    %4439 = vmatprep.subr.bf16.mxu0 %v2316
    %4440 = vmatpush2.bf16.msra.mxu0 %v2315
    %4441 = vmatprep.subr.bf16.mxu0 %v2308
    %4442 = vmatpush2.bf16.msra.mxu0 %v2307
    %4443 = vmatprep.subr.bf16.mxu0 %v2300
    %4444 = vmatpush2.bf16.msra.mxu0 %v2299
    %4445 = vmatprep.subr.bf16.mxu0 %v2292
    %4446 = vmatpush2.bf16.msra.mxu0 %v2291
    %4447 = vmatprep.subr.bf16.mxu0 %v2284
    %4448 = vmatpush2.bf16.msra.mxu0 %v2283
    %4449 = vmatprep.subr.bf16.mxu0 %v2276
    %4450 = vmatpush2.bf16.msra.mxu0 %v2275
    %4451 = vmatprep.mubr.bf16.mxu0 %v4336
    %4452 = vmatmul.mubr.bf16.gmra.mxu0 %v4335
    %v4453 = vpop.f32.mrf.mxu0
    %v4454 = vadd.f32 %v1802, %v4453
    %v4455 = vpop.f32.mrf.mxu0
    %v4456 = vadd.f32 %v1806, %v4455
    %v4457 = vpop.f32.mrf.mxu0
    %v4458 = vpop.f32.mrf.mxu0
    %4459 = vdwg.mxu0
    %4460 = vmatprep.subr.bf16.mxu0 %v2270
    %4461 = vmatpush1.bf16.msra.mxu0 %v2269
    %4462 = vmatprep.subr.bf16.mxu0 %v2262
    %4463 = vmatpush1.bf16.msra.mxu0 %v2261
    %4464 = vmatprep.subr.bf16.mxu0 %v2254
    %4465 = vmatpush1.bf16.msra.mxu0 %v2253
    %4466 = vmatprep.subr.bf16.mxu0 %v2246
    %4467 = vmatpush1.bf16.msra.mxu0 %v2245
    %4468 = vmatprep.subr.bf16.mxu0 %v2238
    %4469 = vmatpush1.bf16.msra.mxu0 %v2237
    %4470 = vmatprep.subr.bf16.mxu0 %v2230
    %4471 = vmatpush1.bf16.msra.mxu0 %v2229
    %4472 = vmatprep.subr.bf16.mxu0 %v2222
    %4473 = vmatpush1.bf16.msra.mxu0 %v2221
    %4474 = vmatprep.subr.bf16.mxu0 %v2214
    %4475 = vmatpush1.bf16.msra.mxu0 %v2213
    %4476 = vmatprep.subr.bf16.mxu0 %v2334
    %4477 = vmatpush2.bf16.msra.mxu0 %v2333
    %4478 = vmatprep.subr.bf16.mxu0 %v2326
    %4479 = vmatpush2.bf16.msra.mxu0 %v2325
    %4480 = vmatprep.subr.bf16.mxu0 %v2318
    %4481 = vmatpush2.bf16.msra.mxu0 %v2317
    %4482 = vmatprep.subr.bf16.mxu0 %v2310
    %4483 = vmatpush2.bf16.msra.mxu0 %v2309
    %4484 = vmatprep.subr.bf16.mxu0 %v2302
    %4485 = vmatpush2.bf16.msra.mxu0 %v2301
    %4486 = vmatprep.subr.bf16.mxu0 %v2294
    %4487 = vmatpush2.bf16.msra.mxu0 %v2293
    %4488 = vmatprep.subr.bf16.mxu0 %v2286
    %4489 = vmatpush2.bf16.msra.mxu0 %v2285
    %4490 = vmatprep.subr.bf16.mxu0 %v2278
    %4491 = vmatpush2.bf16.msra.mxu0 %v2277
    %4492 = vmatprep.mubr.bf16.mxu0 %v4336
    %4493 = vmatmul.mubr.bf16.gmra.mxu0 %v4335
    %v4494 = vpop.f32.mrf.mxu0
    %v4495 = vadd.f32 %v1810, %v4494
    %v4496 = vpop.f32.mrf.mxu0
    %v4497 = vadd.f32 %v1814, %v4496
    %v4498 = vpop.f32.mrf.mxu0
    %v4499 = vpop.f32.mrf.mxu0
    %4500 = vdwg.mxu0
    %v4501 = vpack.c.bf16 %v4103, %v4103
    %v4502 = vpack.c.bf16 %v4104, %v4104
    %4503 = vmatprep.subr.bf16.mxu0 %v3068
    %4504 = vmatpush1.bf16.msra.mxu0 %v3067
    %4505 = vmatprep.subr.bf16.mxu0 %v3060
    %4506 = vmatpush1.bf16.msra.mxu0 %v3059
    %4507 = vmatprep.subr.bf16.mxu0 %v3052
    %4508 = vmatpush1.bf16.msra.mxu0 %v3051
    %4509 = vmatprep.subr.bf16.mxu0 %v3044
    %4510 = vmatpush1.bf16.msra.mxu0 %v3043
    %4511 = vmatprep.subr.bf16.mxu0 %v3036
    %4512 = vmatpush1.bf16.msra.mxu0 %v3035
    %4513 = vmatprep.subr.bf16.mxu0 %v3028
    %4514 = vmatpush1.bf16.msra.mxu0 %v3027
    %4515 = vmatprep.subr.bf16.mxu0 %v3020
    %4516 = vmatpush1.bf16.msra.mxu0 %v3019
    %4517 = vmatprep.subr.bf16.mxu0 %v3012
    %4518 = vmatpush1.bf16.msra.mxu0 %v3011
    %4519 = vmatprep.subr.bf16.mxu0 %v3132
    %4520 = vmatpush2.bf16.msra.mxu0 %v3131
    %4521 = vmatprep.subr.bf16.mxu0 %v3124
    %4522 = vmatpush2.bf16.msra.mxu0 %v3123
    %4523 = vmatprep.subr.bf16.mxu0 %v3116
    %4524 = vmatpush2.bf16.msra.mxu0 %v3115
    %4525 = vmatprep.subr.bf16.mxu0 %v3108
    %4526 = vmatpush2.bf16.msra.mxu0 %v3107
    %4527 = vmatprep.subr.bf16.mxu0 %v3100
    %4528 = vmatpush2.bf16.msra.mxu0 %v3099
    %4529 = vmatprep.subr.bf16.mxu0 %v3092
    %4530 = vmatpush2.bf16.msra.mxu0 %v3091
    %4531 = vmatprep.subr.bf16.mxu0 %v3084
    %4532 = vmatpush2.bf16.msra.mxu0 %v3083
    %4533 = vmatprep.subr.bf16.mxu0 %v3076
    %4534 = vmatpush2.bf16.msra.mxu0 %v3075
    %4535 = vmatprep.mubr.bf16.mxu0 %v4502
    %4536 = vmatmul.mubr.bf16.gmra.mxu0 %v4501
    %v4537 = vpop.f32.mrf.mxu0
    %v4538 = vadd.f32 0.0, %v4537
    %v4539 = vpop.f32.mrf.mxu0
    %v4540 = vadd.f32 0.0, %v4539
    %v4541 = vpop.f32.mrf.mxu0
    %v4542 = vpop.f32.mrf.mxu0
    %4543 = vdwg.mxu0
    %4544 = vmatprep.subr.bf16.mxu0 %v3070
    %4545 = vmatpush1.bf16.msra.mxu0 %v3069
    %4546 = vmatprep.subr.bf16.mxu0 %v3062
    %4547 = vmatpush1.bf16.msra.mxu0 %v3061
    %4548 = vmatprep.subr.bf16.mxu0 %v3054
    %4549 = vmatpush1.bf16.msra.mxu0 %v3053
    %4550 = vmatprep.subr.bf16.mxu0 %v3046
    %4551 = vmatpush1.bf16.msra.mxu0 %v3045
    %4552 = vmatprep.subr.bf16.mxu0 %v3038
    %4553 = vmatpush1.bf16.msra.mxu0 %v3037
    %4554 = vmatprep.subr.bf16.mxu0 %v3030
    %4555 = vmatpush1.bf16.msra.mxu0 %v3029
    %4556 = vmatprep.subr.bf16.mxu0 %v3022
    %4557 = vmatpush1.bf16.msra.mxu0 %v3021
    %4558 = vmatprep.subr.bf16.mxu0 %v3014
    %4559 = vmatpush1.bf16.msra.mxu0 %v3013
    %4560 = vmatprep.subr.bf16.mxu0 %v3134
    %4561 = vmatpush2.bf16.msra.mxu0 %v3133
    %4562 = vmatprep.subr.bf16.mxu0 %v3126
    %4563 = vmatpush2.bf16.msra.mxu0 %v3125
    %4564 = vmatprep.subr.bf16.mxu0 %v3118
    %4565 = vmatpush2.bf16.msra.mxu0 %v3117
    %4566 = vmatprep.subr.bf16.mxu0 %v3110
    %4567 = vmatpush2.bf16.msra.mxu0 %v3109
    %4568 = vmatprep.subr.bf16.mxu0 %v3102
    %4569 = vmatpush2.bf16.msra.mxu0 %v3101
    %4570 = vmatprep.subr.bf16.mxu0 %v3094
    %4571 = vmatpush2.bf16.msra.mxu0 %v3093
    %4572 = vmatprep.subr.bf16.mxu0 %v3086
    %4573 = vmatpush2.bf16.msra.mxu0 %v3085
    %4574 = vmatprep.subr.bf16.mxu0 %v3078
    %4575 = vmatpush2.bf16.msra.mxu0 %v3077
    %4576 = vmatprep.mubr.bf16.mxu0 %v4502
    %4577 = vmatmul.mubr.bf16.gmra.mxu0 %v4501
    %v4578 = vpop.f32.mrf.mxu0
    %v4579 = vadd.f32 0.0, %v4578
    %v4580 = vpop.f32.mrf.mxu0
    %v4581 = vadd.f32 0.0, %v4580
    %v4582 = vpop.f32.mrf.mxu0
    %v4583 = vpop.f32.mrf.mxu0
    %4584 = vdwg.mxu0
    %4585 = vmatprep.subr.bf16.mxu0 %v3072
    %4586 = vmatpush1.bf16.msra.mxu0 %v3071
    %4587 = vmatprep.subr.bf16.mxu0 %v3064
    %4588 = vmatpush1.bf16.msra.mxu0 %v3063
    %4589 = vmatprep.subr.bf16.mxu0 %v3056
    %4590 = vmatpush1.bf16.msra.mxu0 %v3055
    %4591 = vmatprep.subr.bf16.mxu0 %v3048
    %4592 = vmatpush1.bf16.msra.mxu0 %v3047
    %4593 = vmatprep.subr.bf16.mxu0 %v3040
    %4594 = vmatpush1.bf16.msra.mxu0 %v3039
    %4595 = vmatprep.subr.bf16.mxu0 %v3032
    %4596 = vmatpush1.bf16.msra.mxu0 %v3031
    %4597 = vmatprep.subr.bf16.mxu0 %v3024
    %4598 = vmatpush1.bf16.msra.mxu0 %v3023
    %4599 = vmatprep.subr.bf16.mxu0 %v3016
    %4600 = vmatpush1.bf16.msra.mxu0 %v3015
    %4601 = vmatprep.subr.bf16.mxu0 %v3136
    %4602 = vmatpush2.bf16.msra.mxu0 %v3135
    %4603 = vmatprep.subr.bf16.mxu0 %v3128
    %4604 = vmatpush2.bf16.msra.mxu0 %v3127
    %4605 = vmatprep.subr.bf16.mxu0 %v3120
    %4606 = vmatpush2.bf16.msra.mxu0 %v3119
    %4607 = vmatprep.subr.bf16.mxu0 %v3112
    %4608 = vmatpush2.bf16.msra.mxu0 %v3111
    %4609 = vmatprep.subr.bf16.mxu0 %v3104
    %4610 = vmatpush2.bf16.msra.mxu0 %v3103
    %4611 = vmatprep.subr.bf16.mxu0 %v3096
    %4612 = vmatpush2.bf16.msra.mxu0 %v3095
    %4613 = vmatprep.subr.bf16.mxu0 %v3088
    %4614 = vmatpush2.bf16.msra.mxu0 %v3087
    %4615 = vmatprep.subr.bf16.mxu0 %v3080
    %4616 = vmatpush2.bf16.msra.mxu0 %v3079
    %4617 = vmatprep.mubr.bf16.mxu0 %v4502
    %4618 = vmatmul.mubr.bf16.gmra.mxu0 %v4501
    %v4619 = vpop.f32.mrf.mxu0
    %v4620 = vadd.f32 0.0, %v4619
    %v4621 = vpop.f32.mrf.mxu0
    %v4622 = vadd.f32 0.0, %v4621
    %v4623 = vpop.f32.mrf.mxu0
    %v4624 = vpop.f32.mrf.mxu0
    %4625 = vdwg.mxu0
    %4626 = vmatprep.subr.bf16.mxu0 %v3074
    %4627 = vmatpush1.bf16.msra.mxu0 %v3073
    %4628 = vmatprep.subr.bf16.mxu0 %v3066
    %4629 = vmatpush1.bf16.msra.mxu0 %v3065
    %4630 = vmatprep.subr.bf16.mxu0 %v3058
    %4631 = vmatpush1.bf16.msra.mxu0 %v3057
    %4632 = vmatprep.subr.bf16.mxu0 %v3050
    %4633 = vmatpush1.bf16.msra.mxu0 %v3049
    %4634 = vmatprep.subr.bf16.mxu0 %v3042
    %4635 = vmatpush1.bf16.msra.mxu0 %v3041
    %4636 = vmatprep.subr.bf16.mxu0 %v3034
    %4637 = vmatpush1.bf16.msra.mxu0 %v3033
    %4638 = vmatprep.subr.bf16.mxu0 %v3026
    %4639 = vmatpush1.bf16.msra.mxu0 %v3025
    %4640 = vmatprep.subr.bf16.mxu0 %v3018
    %4641 = vmatpush1.bf16.msra.mxu0 %v3017
    %4642 = vmatprep.subr.bf16.mxu0 %v3138
    %4643 = vmatpush2.bf16.msra.mxu0 %v3137
    %4644 = vmatprep.subr.bf16.mxu0 %v3130
    %4645 = vmatpush2.bf16.msra.mxu0 %v3129
    %4646 = vmatprep.subr.bf16.mxu0 %v3122
    %4647 = vmatpush2.bf16.msra.mxu0 %v3121
    %4648 = vmatprep.subr.bf16.mxu0 %v3114
    %4649 = vmatpush2.bf16.msra.mxu0 %v3113
    %4650 = vmatprep.subr.bf16.mxu0 %v3106
    %4651 = vmatpush2.bf16.msra.mxu0 %v3105
    %4652 = vmatprep.subr.bf16.mxu0 %v3098
    %4653 = vmatpush2.bf16.msra.mxu0 %v3097
    %4654 = vmatprep.subr.bf16.mxu0 %v3090
    %4655 = vmatpush2.bf16.msra.mxu0 %v3089
    %4656 = vmatprep.subr.bf16.mxu0 %v3082
    %4657 = vmatpush2.bf16.msra.mxu0 %v3081
    %4658 = vmatprep.mubr.bf16.mxu0 %v4502
    %4659 = vmatmul.mubr.bf16.gmra.mxu0 %v4501
    %v4660 = vpop.f32.mrf.mxu0
    %v4661 = vadd.f32 0.0, %v4660
    %v4662 = vpop.f32.mrf.mxu0
    %v4663 = vadd.f32 0.0, %v4662
    %v4664 = vpop.f32.mrf.mxu0
    %v4665 = vpop.f32.mrf.mxu0
    %4666 = vdwg.mxu0
    %v4667 = vadd.f32 %v4372, %v4538
    %v4668 = vadd.f32 %v4374, %v4540
    %v4669 = vadd.f32 %v4413, %v4579
    %v4670 = vadd.f32 %v4415, %v4581
    %v4671 = vadd.f32 %v4454, %v4620
    %v4672 = vadd.f32 %v4456, %v4622
    %v4673 = vadd.f32 %v4495, %v4661
    %v4674 = vadd.f32 %v4497, %v4663
    %v4675 = vxor.u32 %v4667, 2147483648
    %v4676 = vxor.u32 %v4668, 2147483648
    %v4677 = vmul.f32 %v4675, 1.442695
    %v4678 = vpow.pop %v4677
    %v4679 = vmul.f32 %v4676, 1.442695
    %v4680 = vpow.pop %v4679
    %v4681 = vadd.f32 %v4678, 1.0
    %v4682 = vadd.f32 %v4680, 1.0
    %v4683 = vrcp.pop %v4681
    %v4684 = vmul.f32 1.0, %v4683
    %v4685 = vrcp.pop %v4682
    %v4686 = vmul.f32 1.0, %v4685
    %v4687 = vxor.u32 %v4669, 2147483648
    %v4688 = vxor.u32 %v4670, 2147483648
    %v4689 = vmul.f32 %v4687, 1.442695
    %v4690 = vpow.pop %v4689
    %v4691 = vmul.f32 %v4688, 1.442695
    %v4692 = vpow.pop %v4691
    %v4693 = vadd.f32 %v4690, 1.0
    %v4694 = vadd.f32 %v4692, 1.0
    %v4695 = vrcp.pop %v4693
    %v4696 = vmul.f32 1.0, %v4695
    %v4697 = vrcp.pop %v4694
    %v4698 = vmul.f32 1.0, %v4697
    %v4699 = vtanh.pop %v4671
    %v4700 = vtanh.pop %v4672
    %v4701 = vxor.u32 %v4673, 2147483648
    %v4702 = vxor.u32 %v4674, 2147483648
    %v4703 = vmul.f32 %v4701, 1.442695
    %v4704 = vpow.pop %v4703
    %v4705 = vmul.f32 %v4702, 1.442695
    %v4706 = vpow.pop %v4705
    %v4707 = vadd.f32 %v4704, 1.0
    %v4708 = vadd.f32 %v4706, 1.0
    %v4709 = vrcp.pop %v4707
    %v4710 = vmul.f32 1.0, %v4709
    %v4711 = vrcp.pop %v4708
    %v4712 = vmul.f32 1.0, %v4711
    %v4713 = vmul.f32 %v4696, %v4099
    %v4714 = vmul.f32 %v4698, %v4100
    %v4715 = vmul.f32 %v4684, %v4699
    %v4716 = vmul.f32 %v4686, %v4700
    %v4717 = vadd.f32 %v4713, %v4715
    %v4718 = vadd.f32 %v4714, %v4716
    %v4719 = vtanh.pop %v4717
    %v4720 = vtanh.pop %v4718
    %v4721 = vmul.f32 %v4710, %v4719
    %v4722 = vmul.f32 %v4712, %v4720
    %4723 = vst [vmem:[%s7 + $0x20] sm:$0xff] %v4721
    %4724 = vst [vmem:[%s7 + $0x28] sm:$0xff] %v4722
    %v4725 = vld [vmem:[#allocation2 + $0xc0] sm:$0xff]
    %v4726 = vld [vmem:[#allocation2 + $0xc8] sm:$0xff]
    %v4727 = vld [vmem:[#allocation2 + $0xd0] sm:$0xff]
    %v4728 = vld [vmem:[#allocation2 + $0xd8] sm:$0xff]
    %v4729 = vld [vmem:[#allocation2 + $0xe0] sm:$0xff]
    %v4730 = vld [vmem:[#allocation2 + $0xe8] sm:$0xff]
    %v4731 = vld [vmem:[#allocation2 + $0xf0] sm:$0xff]
    %v4732 = vld [vmem:[#allocation2 + $0xf8] sm:$0xff]
    %4733 = vmatprep.subr.bf16.mxu0 %v1361
    %4734 = vmatpush1.bf16.msra.mxu0 %v1360
    %4735 = vmatprep.subr.bf16.mxu0 %v1353
    %4736 = vmatpush1.bf16.msra.mxu0 %v1352
    %4737 = vmatprep.subr.bf16.mxu0 %v1345
    %4738 = vmatpush1.bf16.msra.mxu0 %v1344
    %4739 = vmatprep.subr.bf16.mxu0 %v1337
    %4740 = vmatpush1.bf16.msra.mxu0 %v1336
    %4741 = vmatprep.subr.bf16.mxu0 %v1329
    %4742 = vmatpush1.bf16.msra.mxu0 %v1328
    %4743 = vmatprep.subr.bf16.mxu0 %v1321
    %4744 = vmatpush1.bf16.msra.mxu0 %v1320
    %4745 = vmatprep.subr.bf16.mxu0 %v1313
    %4746 = vmatpush1.bf16.msra.mxu0 %v1312
    %4747 = vmatprep.subr.bf16.mxu0 %v1305
    %4748 = vmatpush1.bf16.msra.mxu0 %v1304
    %4749 = vmatprep.subr.bf16.mxu0 %v1425
    %4750 = vmatpush2.bf16.msra.mxu0 %v1424
    %4751 = vmatprep.subr.bf16.mxu0 %v1417
    %4752 = vmatpush2.bf16.msra.mxu0 %v1416
    %4753 = vmatprep.subr.bf16.mxu0 %v1409
    %4754 = vmatpush2.bf16.msra.mxu0 %v1408
    %4755 = vmatprep.subr.bf16.mxu0 %v1401
    %4756 = vmatpush2.bf16.msra.mxu0 %v1400
    %4757 = vmatprep.subr.bf16.mxu0 %v1393
    %4758 = vmatpush2.bf16.msra.mxu0 %v1392
    %4759 = vmatprep.subr.bf16.mxu0 %v1385
    %4760 = vmatpush2.bf16.msra.mxu0 %v1384
    %4761 = vmatprep.subr.bf16.mxu0 %v1377
    %4762 = vmatpush2.bf16.msra.mxu0 %v1376
    %4763 = vmatprep.subr.bf16.mxu0 %v1369
    %4764 = vmatpush2.bf16.msra.mxu0 %v1368
    %4765 = vmatprep.mubr.bf16.mxu0 %v4336
    %4766 = vmatmul.mubr.bf16.gmra.mxu0 %v4335
    %v4767 = vpop.f32.mrf.mxu0
    %v4768 = vadd.f32 0.0, %v4767
    %v4769 = vpop.f32.mrf.mxu0
    %v4770 = vadd.f32 0.0, %v4769
    %v4771 = vpop.f32.mrf.mxu0
    %v4772 = vpop.f32.mrf.mxu0
    %4773 = vdwg.mxu0
    %4774 = vmatprep.subr.bf16.mxu0 %v1363
    %4775 = vmatpush1.bf16.msra.mxu0 %v1362
    %4776 = vmatprep.subr.bf16.mxu0 %v1355
    %4777 = vmatpush1.bf16.msra.mxu0 %v1354
    %4778 = vmatprep.subr.bf16.mxu0 %v1347
    %4779 = vmatpush1.bf16.msra.mxu0 %v1346
    %4780 = vmatprep.subr.bf16.mxu0 %v1339
    %4781 = vmatpush1.bf16.msra.mxu0 %v1338
    %4782 = vmatprep.subr.bf16.mxu0 %v1331
    %4783 = vmatpush1.bf16.msra.mxu0 %v1330
    %4784 = vmatprep.subr.bf16.mxu0 %v1323
    %4785 = vmatpush1.bf16.msra.mxu0 %v1322
    %4786 = vmatprep.subr.bf16.mxu0 %v1315
    %4787 = vmatpush1.bf16.msra.mxu0 %v1314
    %4788 = vmatprep.subr.bf16.mxu0 %v1307
    %4789 = vmatpush1.bf16.msra.mxu0 %v1306
    %4790 = vmatprep.subr.bf16.mxu0 %v1427
    %4791 = vmatpush2.bf16.msra.mxu0 %v1426
    %4792 = vmatprep.subr.bf16.mxu0 %v1419
    %4793 = vmatpush2.bf16.msra.mxu0 %v1418
    %4794 = vmatprep.subr.bf16.mxu0 %v1411
    %4795 = vmatpush2.bf16.msra.mxu0 %v1410
    %4796 = vmatprep.subr.bf16.mxu0 %v1403
    %4797 = vmatpush2.bf16.msra.mxu0 %v1402
    %4798 = vmatprep.subr.bf16.mxu0 %v1395
    %4799 = vmatpush2.bf16.msra.mxu0 %v1394
    %4800 = vmatprep.subr.bf16.mxu0 %v1387
    %4801 = vmatpush2.bf16.msra.mxu0 %v1386
    %4802 = vmatprep.subr.bf16.mxu0 %v1379
    %4803 = vmatpush2.bf16.msra.mxu0 %v1378
    %4804 = vmatprep.subr.bf16.mxu0 %v1371
    %4805 = vmatpush2.bf16.msra.mxu0 %v1370
    %4806 = vmatprep.mubr.bf16.mxu0 %v4336
    %4807 = vmatmul.mubr.bf16.gmra.mxu0 %v4335
    %v4808 = vpop.f32.mrf.mxu0
    %v4809 = vadd.f32 0.0, %v4808
    %v4810 = vpop.f32.mrf.mxu0
    %v4811 = vadd.f32 0.0, %v4810
    %v4812 = vpop.f32.mrf.mxu0
    %v4813 = vpop.f32.mrf.mxu0
    %4814 = vdwg.mxu0
    %4815 = vmatprep.subr.bf16.mxu0 %v1365
    %4816 = vmatpush1.bf16.msra.mxu0 %v1364
    %4817 = vmatprep.subr.bf16.mxu0 %v1357
    %4818 = vmatpush1.bf16.msra.mxu0 %v1356
    %4819 = vmatprep.subr.bf16.mxu0 %v1349
    %4820 = vmatpush1.bf16.msra.mxu0 %v1348
    %4821 = vmatprep.subr.bf16.mxu0 %v1341
    %4822 = vmatpush1.bf16.msra.mxu0 %v1340
    %4823 = vmatprep.subr.bf16.mxu0 %v1333
    %4824 = vmatpush1.bf16.msra.mxu0 %v1332
    %4825 = vmatprep.subr.bf16.mxu0 %v1325
    %4826 = vmatpush1.bf16.msra.mxu0 %v1324
    %4827 = vmatprep.subr.bf16.mxu0 %v1317
    %4828 = vmatpush1.bf16.msra.mxu0 %v1316
    %4829 = vmatprep.subr.bf16.mxu0 %v1309
    %4830 = vmatpush1.bf16.msra.mxu0 %v1308
    %4831 = vmatprep.subr.bf16.mxu0 %v1429
    %4832 = vmatpush2.bf16.msra.mxu0 %v1428
    %4833 = vmatprep.subr.bf16.mxu0 %v1421
    %4834 = vmatpush2.bf16.msra.mxu0 %v1420
    %4835 = vmatprep.subr.bf16.mxu0 %v1413
    %4836 = vmatpush2.bf16.msra.mxu0 %v1412
    %4837 = vmatprep.subr.bf16.mxu0 %v1405
    %4838 = vmatpush2.bf16.msra.mxu0 %v1404
    %4839 = vmatprep.subr.bf16.mxu0 %v1397
    %4840 = vmatpush2.bf16.msra.mxu0 %v1396
    %4841 = vmatprep.subr.bf16.mxu0 %v1389
    %4842 = vmatpush2.bf16.msra.mxu0 %v1388
    %4843 = vmatprep.subr.bf16.mxu0 %v1381
    %4844 = vmatpush2.bf16.msra.mxu0 %v1380
    %4845 = vmatprep.subr.bf16.mxu0 %v1373
    %4846 = vmatpush2.bf16.msra.mxu0 %v1372
    %4847 = vmatprep.mubr.bf16.mxu0 %v4336
    %4848 = vmatmul.mubr.bf16.gmra.mxu0 %v4335
    %v4849 = vpop.f32.mrf.mxu0
    %v4850 = vadd.f32 0.0, %v4849
    %v4851 = vpop.f32.mrf.mxu0
    %v4852 = vadd.f32 0.0, %v4851
    %v4853 = vpop.f32.mrf.mxu0
    %v4854 = vpop.f32.mrf.mxu0
    %4855 = vdwg.mxu0
    %4856 = vmatprep.subr.bf16.mxu0 %v1367
    %4857 = vmatpush1.bf16.msra.mxu0 %v1366
    %4858 = vmatprep.subr.bf16.mxu0 %v1359
    %4859 = vmatpush1.bf16.msra.mxu0 %v1358
    %4860 = vmatprep.subr.bf16.mxu0 %v1351
    %4861 = vmatpush1.bf16.msra.mxu0 %v1350
    %4862 = vmatprep.subr.bf16.mxu0 %v1343
    %4863 = vmatpush1.bf16.msra.mxu0 %v1342
    %4864 = vmatprep.subr.bf16.mxu0 %v1335
    %4865 = vmatpush1.bf16.msra.mxu0 %v1334
    %4866 = vmatprep.subr.bf16.mxu0 %v1327
    %4867 = vmatpush1.bf16.msra.mxu0 %v1326
    %4868 = vmatprep.subr.bf16.mxu0 %v1319
    %4869 = vmatpush1.bf16.msra.mxu0 %v1318
    %4870 = vmatprep.subr.bf16.mxu0 %v1311
    %4871 = vmatpush1.bf16.msra.mxu0 %v1310
    %4872 = vmatprep.subr.bf16.mxu0 %v1431
    %4873 = vmatpush2.bf16.msra.mxu0 %v1430
    %4874 = vmatprep.subr.bf16.mxu0 %v1423
    %4875 = vmatpush2.bf16.msra.mxu0 %v1422
    %4876 = vmatprep.subr.bf16.mxu0 %v1415
    %4877 = vmatpush2.bf16.msra.mxu0 %v1414
    %4878 = vmatprep.subr.bf16.mxu0 %v1407
    %4879 = vmatpush2.bf16.msra.mxu0 %v1406
    %4880 = vmatprep.subr.bf16.mxu0 %v1399
    %4881 = vmatpush2.bf16.msra.mxu0 %v1398
    %4882 = vmatprep.subr.bf16.mxu0 %v1391
    %4883 = vmatpush2.bf16.msra.mxu0 %v1390
    %4884 = vmatprep.subr.bf16.mxu0 %v1383
    %4885 = vmatpush2.bf16.msra.mxu0 %v1382
    %4886 = vmatprep.subr.bf16.mxu0 %v1375
    %4887 = vmatpush2.bf16.msra.mxu0 %v1374
    %4888 = vmatprep.mubr.bf16.mxu0 %v4336
    %4889 = vmatmul.mubr.bf16.gmra.mxu0 %v4335
    %v4890 = vpop.f32.mrf.mxu0
    %v4891 = vadd.f32 0.0, %v4890
    %v4892 = vpop.f32.mrf.mxu0
    %v4893 = vadd.f32 0.0, %v4892
    %v4894 = vpop.f32.mrf.mxu0
    %v4895 = vpop.f32.mrf.mxu0
    %4896 = vdwg.mxu0
    %v4897 = vadd.f32 %v4725, %v4768
    %v4898 = vadd.f32 %v4726, %v4770
    %v4899 = vadd.f32 %v4727, %v4809
    %v4900 = vadd.f32 %v4728, %v4811
    %v4901 = vadd.f32 %v4729, %v4850
    %v4902 = vadd.f32 %v4730, %v4852
    %v4903 = vadd.f32 %v4731, %v4891
    %v4904 = vadd.f32 %v4732, %v4893
    %v4905 = vxor.u32 %v4897, 2147483648
    %v4906 = vxor.u32 %v4898, 2147483648
    %v4907 = vmul.f32 %v4905, 1.442695
    %v4908 = vpow.pop %v4907
    %v4909 = vmul.f32 %v4906, 1.442695
    %v4910 = vpow.pop %v4909
    %v4911 = vadd.f32 %v4908, 1.0
    %v4912 = vadd.f32 %v4910, 1.0
    %v4913 = vrcp.pop %v4911
    %v4914 = vmul.f32 1.0, %v4913
    %v4915 = vrcp.pop %v4912
    %v4916 = vmul.f32 1.0, %v4915
    %v4917 = vxor.u32 %v4899, 2147483648
    %v4918 = vxor.u32 %v4900, 2147483648
    %v4919 = vmul.f32 %v4917, 1.442695
    %v4920 = vpow.pop %v4919
    %v4921 = vmul.f32 %v4918, 1.442695
    %v4922 = vpow.pop %v4921
    %v4923 = vadd.f32 %v4920, 1.0
    %v4924 = vadd.f32 %v4922, 1.0
    %v4925 = vrcp.pop %v4923
    %v4926 = vmul.f32 1.0, %v4925
    %v4927 = vrcp.pop %v4924
    %v4928 = vmul.f32 1.0, %v4927
    %v4929 = vtanh.pop %v4901
    %v4930 = vtanh.pop %v4902
    %v4931 = vxor.u32 %v4903, 2147483648
    %v4932 = vxor.u32 %v4904, 2147483648
    %v4933 = vmul.f32 %v4931, 1.442695
    %v4934 = vpow.pop %v4933
    %v4935 = vmul.f32 %v4932, 1.442695
    %v4936 = vpow.pop %v4935
    %v4937 = vadd.f32 %v4934, 1.0
    %v4938 = vadd.f32 %v4936, 1.0
    %v4939 = vrcp.pop %v4937
    %v4940 = vmul.f32 1.0, %v4939
    %v4941 = vrcp.pop %v4938
    %v4942 = vmul.f32 1.0, %v4941
    %v4943 = vmul.f32 %v4926, %v4329
    %v4944 = vmul.f32 %v4928, %v4330
    %v4945 = vmul.f32 %v4914, %v4929
    %v4946 = vmul.f32 %v4916, %v4930
    %v4947 = vadd.f32 %v4943, %v4945
    %v4948 = vadd.f32 %v4944, %v4946
    %v4949 = vtanh.pop %v4947
    %v4950 = vtanh.pop %v4948
    %v4951 = vmul.f32 %v4940, %v4949
    %v4952 = vmul.f32 %v4942, %v4950
    %v4953 = vpack.c.bf16 %v4951, %v4951
    %v4954 = vpack.c.bf16 %v4952, %v4952
    %4955 = vmatprep.subr.bf16.mxu0 %v2264
    %4956 = vmatpush1.bf16.msra.mxu0 %v2263
    %4957 = vmatprep.subr.bf16.mxu0 %v2256
    %4958 = vmatpush1.bf16.msra.mxu0 %v2255
    %4959 = vmatprep.subr.bf16.mxu0 %v2248
    %4960 = vmatpush1.bf16.msra.mxu0 %v2247
    %4961 = vmatprep.subr.bf16.mxu0 %v2240
    %4962 = vmatpush1.bf16.msra.mxu0 %v2239
    %4963 = vmatprep.subr.bf16.mxu0 %v2232
    %4964 = vmatpush1.bf16.msra.mxu0 %v2231
    %4965 = vmatprep.subr.bf16.mxu0 %v2224
    %4966 = vmatpush1.bf16.msra.mxu0 %v2223
    %4967 = vmatprep.subr.bf16.mxu0 %v2216
    %4968 = vmatpush1.bf16.msra.mxu0 %v2215
    %4969 = vmatprep.subr.bf16.mxu0 %v2208
    %4970 = vmatpush1.bf16.msra.mxu0 %v2207
    %4971 = vmatprep.subr.bf16.mxu0 %v2328
    %4972 = vmatpush2.bf16.msra.mxu0 %v2327
    %4973 = vmatprep.subr.bf16.mxu0 %v2320
    %4974 = vmatpush2.bf16.msra.mxu0 %v2319
    %4975 = vmatprep.subr.bf16.mxu0 %v2312
    %4976 = vmatpush2.bf16.msra.mxu0 %v2311
    %4977 = vmatprep.subr.bf16.mxu0 %v2304
    %4978 = vmatpush2.bf16.msra.mxu0 %v2303
    %4979 = vmatprep.subr.bf16.mxu0 %v2296
    %4980 = vmatpush2.bf16.msra.mxu0 %v2295
    %4981 = vmatprep.subr.bf16.mxu0 %v2288
    %4982 = vmatpush2.bf16.msra.mxu0 %v2287
    %4983 = vmatprep.subr.bf16.mxu0 %v2280
    %4984 = vmatpush2.bf16.msra.mxu0 %v2279
    %4985 = vmatprep.subr.bf16.mxu0 %v2272
    %4986 = vmatpush2.bf16.msra.mxu0 %v2271
    %4987 = vmatprep.mubr.bf16.mxu0 %v4954
    %4988 = vmatmul.mubr.bf16.gmra.mxu0 %v4953
    %v4989 = vpop.f32.mrf.mxu0
    %v4990 = vadd.f32 %v1786, %v4989
    %v4991 = vpop.f32.mrf.mxu0
    %v4992 = vadd.f32 %v1790, %v4991
    %v4993 = vpop.f32.mrf.mxu0
    %v4994 = vpop.f32.mrf.mxu0
    %4995 = vdwg.mxu0
    %4996 = vmatprep.subr.bf16.mxu0 %v2266
    %4997 = vmatpush1.bf16.msra.mxu0 %v2265
    %4998 = vmatprep.subr.bf16.mxu0 %v2258
    %4999 = vmatpush1.bf16.msra.mxu0 %v2257
    %5000 = vmatprep.subr.bf16.mxu0 %v2250
    %5001 = vmatpush1.bf16.msra.mxu0 %v2249
    %5002 = vmatprep.subr.bf16.mxu0 %v2242
    %5003 = vmatpush1.bf16.msra.mxu0 %v2241
    %5004 = vmatprep.subr.bf16.mxu0 %v2234
    %5005 = vmatpush1.bf16.msra.mxu0 %v2233
    %5006 = vmatprep.subr.bf16.mxu0 %v2226
    %5007 = vmatpush1.bf16.msra.mxu0 %v2225
    %5008 = vmatprep.subr.bf16.mxu0 %v2218
    %5009 = vmatpush1.bf16.msra.mxu0 %v2217
    %5010 = vmatprep.subr.bf16.mxu0 %v2210
    %5011 = vmatpush1.bf16.msra.mxu0 %v2209
    %5012 = vmatprep.subr.bf16.mxu0 %v2330
    %5013 = vmatpush2.bf16.msra.mxu0 %v2329
    %5014 = vmatprep.subr.bf16.mxu0 %v2322
    %5015 = vmatpush2.bf16.msra.mxu0 %v2321
    %5016 = vmatprep.subr.bf16.mxu0 %v2314
    %5017 = vmatpush2.bf16.msra.mxu0 %v2313
    %5018 = vmatprep.subr.bf16.mxu0 %v2306
    %5019 = vmatpush2.bf16.msra.mxu0 %v2305
    %5020 = vmatprep.subr.bf16.mxu0 %v2298
    %5021 = vmatpush2.bf16.msra.mxu0 %v2297
    %5022 = vmatprep.subr.bf16.mxu0 %v2290
    %5023 = vmatpush2.bf16.msra.mxu0 %v2289
    %5024 = vmatprep.subr.bf16.mxu0 %v2282
    %5025 = vmatpush2.bf16.msra.mxu0 %v2281
    %5026 = vmatprep.subr.bf16.mxu0 %v2274
    %5027 = vmatpush2.bf16.msra.mxu0 %v2273
    %5028 = vmatprep.mubr.bf16.mxu0 %v4954
    %5029 = vmatmul.mubr.bf16.gmra.mxu0 %v4953
    %v5030 = vpop.f32.mrf.mxu0
    %v5031 = vadd.f32 %v1794, %v5030
    %v5032 = vpop.f32.mrf.mxu0
    %v5033 = vadd.f32 %v1798, %v5032
    %v5034 = vpop.f32.mrf.mxu0
    %v5035 = vpop.f32.mrf.mxu0
    %5036 = vdwg.mxu0
    %5037 = vmatprep.subr.bf16.mxu0 %v2268
    %5038 = vmatpush1.bf16.msra.mxu0 %v2267
    %5039 = vmatprep.subr.bf16.mxu0 %v2260
    %5040 = vmatpush1.bf16.msra.mxu0 %v2259
    %5041 = vmatprep.subr.bf16.mxu0 %v2252
    %5042 = vmatpush1.bf16.msra.mxu0 %v2251
    %5043 = vmatprep.subr.bf16.mxu0 %v2244
    %5044 = vmatpush1.bf16.msra.mxu0 %v2243
    %5045 = vmatprep.subr.bf16.mxu0 %v2236
    %5046 = vmatpush1.bf16.msra.mxu0 %v2235
    %5047 = vmatprep.subr.bf16.mxu0 %v2228
    %5048 = vmatpush1.bf16.msra.mxu0 %v2227
    %5049 = vmatprep.subr.bf16.mxu0 %v2220
    %5050 = vmatpush1.bf16.msra.mxu0 %v2219
    %5051 = vmatprep.subr.bf16.mxu0 %v2212
    %5052 = vmatpush1.bf16.msra.mxu0 %v2211
    %5053 = vmatprep.subr.bf16.mxu0 %v2332
    %5054 = vmatpush2.bf16.msra.mxu0 %v2331
    %5055 = vmatprep.subr.bf16.mxu0 %v2324
    %5056 = vmatpush2.bf16.msra.mxu0 %v2323
    %5057 = vmatprep.subr.bf16.mxu0 %v2316
    %5058 = vmatpush2.bf16.msra.mxu0 %v2315
    %5059 = vmatprep.subr.bf16.mxu0 %v2308
    %5060 = vmatpush2.bf16.msra.mxu0 %v2307
    %5061 = vmatprep.subr.bf16.mxu0 %v2300
    %5062 = vmatpush2.bf16.msra.mxu0 %v2299
    %5063 = vmatprep.subr.bf16.mxu0 %v2292
    %5064 = vmatpush2.bf16.msra.mxu0 %v2291
    %5065 = vmatprep.subr.bf16.mxu0 %v2284
    %5066 = vmatpush2.bf16.msra.mxu0 %v2283
    %5067 = vmatprep.subr.bf16.mxu0 %v2276
    %5068 = vmatpush2.bf16.msra.mxu0 %v2275
    %5069 = vmatprep.mubr.bf16.mxu0 %v4954
    %5070 = vmatmul.mubr.bf16.gmra.mxu0 %v4953
    %v5071 = vpop.f32.mrf.mxu0
    %v5072 = vadd.f32 %v1802, %v5071
    %v5073 = vpop.f32.mrf.mxu0
    %v5074 = vadd.f32 %v1806, %v5073
    %v5075 = vpop.f32.mrf.mxu0
    %v5076 = vpop.f32.mrf.mxu0
    %5077 = vdwg.mxu0
    %5078 = vmatprep.subr.bf16.mxu0 %v2270
    %5079 = vmatpush1.bf16.msra.mxu0 %v2269
    %5080 = vmatprep.subr.bf16.mxu0 %v2262
    %5081 = vmatpush1.bf16.msra.mxu0 %v2261
    %5082 = vmatprep.subr.bf16.mxu0 %v2254
    %5083 = vmatpush1.bf16.msra.mxu0 %v2253
    %5084 = vmatprep.subr.bf16.mxu0 %v2246
    %5085 = vmatpush1.bf16.msra.mxu0 %v2245
    %5086 = vmatprep.subr.bf16.mxu0 %v2238
    %5087 = vmatpush1.bf16.msra.mxu0 %v2237
    %5088 = vmatprep.subr.bf16.mxu0 %v2230
    %5089 = vmatpush1.bf16.msra.mxu0 %v2229
    %5090 = vmatprep.subr.bf16.mxu0 %v2222
    %5091 = vmatpush1.bf16.msra.mxu0 %v2221
    %5092 = vmatprep.subr.bf16.mxu0 %v2214
    %5093 = vmatpush1.bf16.msra.mxu0 %v2213
    %5094 = vmatprep.subr.bf16.mxu0 %v2334
    %5095 = vmatpush2.bf16.msra.mxu0 %v2333
    %5096 = vmatprep.subr.bf16.mxu0 %v2326
    %5097 = vmatpush2.bf16.msra.mxu0 %v2325
    %5098 = vmatprep.subr.bf16.mxu0 %v2318
    %5099 = vmatpush2.bf16.msra.mxu0 %v2317
    %5100 = vmatprep.subr.bf16.mxu0 %v2310
    %5101 = vmatpush2.bf16.msra.mxu0 %v2309
    %5102 = vmatprep.subr.bf16.mxu0 %v2302
    %5103 = vmatpush2.bf16.msra.mxu0 %v2301
    %5104 = vmatprep.subr.bf16.mxu0 %v2294
    %5105 = vmatpush2.bf16.msra.mxu0 %v2293
    %5106 = vmatprep.subr.bf16.mxu0 %v2286
    %5107 = vmatpush2.bf16.msra.mxu0 %v2285
    %5108 = vmatprep.subr.bf16.mxu0 %v2278
    %5109 = vmatpush2.bf16.msra.mxu0 %v2277
    %5110 = vmatprep.mubr.bf16.mxu0 %v4954
    %5111 = vmatmul.mubr.bf16.gmra.mxu0 %v4953
    %v5112 = vpop.f32.mrf.mxu0
    %v5113 = vadd.f32 %v1810, %v5112
    %v5114 = vpop.f32.mrf.mxu0
    %v5115 = vadd.f32 %v1814, %v5114
    %v5116 = vpop.f32.mrf.mxu0
    %v5117 = vpop.f32.mrf.mxu0
    %5118 = vdwg.mxu0
    %v5119 = vpack.c.bf16 %v4721, %v4721
    %v5120 = vpack.c.bf16 %v4722, %v4722
    %5121 = vmatprep.subr.bf16.mxu0 %v3068
    %5122 = vmatpush1.bf16.msra.mxu0 %v3067
    %5123 = vmatprep.subr.bf16.mxu0 %v3060
    %5124 = vmatpush1.bf16.msra.mxu0 %v3059
    %5125 = vmatprep.subr.bf16.mxu0 %v3052
    %5126 = vmatpush1.bf16.msra.mxu0 %v3051
    %5127 = vmatprep.subr.bf16.mxu0 %v3044
    %5128 = vmatpush1.bf16.msra.mxu0 %v3043
    %5129 = vmatprep.subr.bf16.mxu0 %v3036
    %5130 = vmatpush1.bf16.msra.mxu0 %v3035
    %5131 = vmatprep.subr.bf16.mxu0 %v3028
    %5132 = vmatpush1.bf16.msra.mxu0 %v3027
    %5133 = vmatprep.subr.bf16.mxu0 %v3020
    %5134 = vmatpush1.bf16.msra.mxu0 %v3019
    %5135 = vmatprep.subr.bf16.mxu0 %v3012
    %5136 = vmatpush1.bf16.msra.mxu0 %v3011
    %5137 = vmatprep.subr.bf16.mxu0 %v3132
    %5138 = vmatpush2.bf16.msra.mxu0 %v3131
    %5139 = vmatprep.subr.bf16.mxu0 %v3124
    %5140 = vmatpush2.bf16.msra.mxu0 %v3123
    %5141 = vmatprep.subr.bf16.mxu0 %v3116
    %5142 = vmatpush2.bf16.msra.mxu0 %v3115
    %5143 = vmatprep.subr.bf16.mxu0 %v3108
    %5144 = vmatpush2.bf16.msra.mxu0 %v3107
    %5145 = vmatprep.subr.bf16.mxu0 %v3100
    %5146 = vmatpush2.bf16.msra.mxu0 %v3099
    %5147 = vmatprep.subr.bf16.mxu0 %v3092
    %5148 = vmatpush2.bf16.msra.mxu0 %v3091
    %5149 = vmatprep.subr.bf16.mxu0 %v3084
    %5150 = vmatpush2.bf16.msra.mxu0 %v3083
    %5151 = vmatprep.subr.bf16.mxu0 %v3076
    %5152 = vmatpush2.bf16.msra.mxu0 %v3075
    %5153 = vmatprep.mubr.bf16.mxu0 %v5120
    %5154 = vmatmul.mubr.bf16.gmra.mxu0 %v5119
    %v5155 = vpop.f32.mrf.mxu0
    %v5156 = vadd.f32 0.0, %v5155
    %v5157 = vpop.f32.mrf.mxu0
    %v5158 = vadd.f32 0.0, %v5157
    %v5159 = vpop.f32.mrf.mxu0
    %v5160 = vpop.f32.mrf.mxu0
    %5161 = vdwg.mxu0
    %5162 = vmatprep.subr.bf16.mxu0 %v3070
    %5163 = vmatpush1.bf16.msra.mxu0 %v3069
    %5164 = vmatprep.subr.bf16.mxu0 %v3062
    %5165 = vmatpush1.bf16.msra.mxu0 %v3061
    %5166 = vmatprep.subr.bf16.mxu0 %v3054
    %5167 = vmatpush1.bf16.msra.mxu0 %v3053
    %5168 = vmatprep.subr.bf16.mxu0 %v3046
    %5169 = vmatpush1.bf16.msra.mxu0 %v3045
    %5170 = vmatprep.subr.bf16.mxu0 %v3038
    %5171 = vmatpush1.bf16.msra.mxu0 %v3037
    %5172 = vmatprep.subr.bf16.mxu0 %v3030
    %5173 = vmatpush1.bf16.msra.mxu0 %v3029
    %5174 = vmatprep.subr.bf16.mxu0 %v3022
    %5175 = vmatpush1.bf16.msra.mxu0 %v3021
    %5176 = vmatprep.subr.bf16.mxu0 %v3014
    %5177 = vmatpush1.bf16.msra.mxu0 %v3013
    %5178 = vmatprep.subr.bf16.mxu0 %v3134
    %5179 = vmatpush2.bf16.msra.mxu0 %v3133
    %5180 = vmatprep.subr.bf16.mxu0 %v3126
    %5181 = vmatpush2.bf16.msra.mxu0 %v3125
    %5182 = vmatprep.subr.bf16.mxu0 %v3118
    %5183 = vmatpush2.bf16.msra.mxu0 %v3117
    %5184 = vmatprep.subr.bf16.mxu0 %v3110
    %5185 = vmatpush2.bf16.msra.mxu0 %v3109
    %5186 = vmatprep.subr.bf16.mxu0 %v3102
    %5187 = vmatpush2.bf16.msra.mxu0 %v3101
    %5188 = vmatprep.subr.bf16.mxu0 %v3094
    %5189 = vmatpush2.bf16.msra.mxu0 %v3093
    %5190 = vmatprep.subr.bf16.mxu0 %v3086
    %5191 = vmatpush2.bf16.msra.mxu0 %v3085
    %5192 = vmatprep.subr.bf16.mxu0 %v3078
    %5193 = vmatpush2.bf16.msra.mxu0 %v3077
    %5194 = vmatprep.mubr.bf16.mxu0 %v5120
    %5195 = vmatmul.mubr.bf16.gmra.mxu0 %v5119
    %v5196 = vpop.f32.mrf.mxu0
    %v5197 = vadd.f32 0.0, %v5196
    %v5198 = vpop.f32.mrf.mxu0
    %v5199 = vadd.f32 0.0, %v5198
    %v5200 = vpop.f32.mrf.mxu0
    %v5201 = vpop.f32.mrf.mxu0
    %5202 = vdwg.mxu0
    %5203 = vmatprep.subr.bf16.mxu0 %v3072
    %5204 = vmatpush1.bf16.msra.mxu0 %v3071
    %5205 = vmatprep.subr.bf16.mxu0 %v3064
    %5206 = vmatpush1.bf16.msra.mxu0 %v3063
    %5207 = vmatprep.subr.bf16.mxu0 %v3056
    %5208 = vmatpush1.bf16.msra.mxu0 %v3055
    %5209 = vmatprep.subr.bf16.mxu0 %v3048
    %5210 = vmatpush1.bf16.msra.mxu0 %v3047
    %5211 = vmatprep.subr.bf16.mxu0 %v3040
    %5212 = vmatpush1.bf16.msra.mxu0 %v3039
    %5213 = vmatprep.subr.bf16.mxu0 %v3032
    %5214 = vmatpush1.bf16.msra.mxu0 %v3031
    %5215 = vmatprep.subr.bf16.mxu0 %v3024
    %5216 = vmatpush1.bf16.msra.mxu0 %v3023
    %5217 = vmatprep.subr.bf16.mxu0 %v3016
    %5218 = vmatpush1.bf16.msra.mxu0 %v3015
    %5219 = vmatprep.subr.bf16.mxu0 %v3136
    %5220 = vmatpush2.bf16.msra.mxu0 %v3135
    %5221 = vmatprep.subr.bf16.mxu0 %v3128
    %5222 = vmatpush2.bf16.msra.mxu0 %v3127
    %5223 = vmatprep.subr.bf16.mxu0 %v3120
    %5224 = vmatpush2.bf16.msra.mxu0 %v3119
    %5225 = vmatprep.subr.bf16.mxu0 %v3112
    %5226 = vmatpush2.bf16.msra.mxu0 %v3111
    %5227 = vmatprep.subr.bf16.mxu0 %v3104
    %5228 = vmatpush2.bf16.msra.mxu0 %v3103
    %5229 = vmatprep.subr.bf16.mxu0 %v3096
    %5230 = vmatpush2.bf16.msra.mxu0 %v3095
    %5231 = vmatprep.subr.bf16.mxu0 %v3088
    %5232 = vmatpush2.bf16.msra.mxu0 %v3087
    %5233 = vmatprep.subr.bf16.mxu0 %v3080
    %5234 = vmatpush2.bf16.msra.mxu0 %v3079
    %5235 = vmatprep.mubr.bf16.mxu0 %v5120
    %5236 = vmatmul.mubr.bf16.gmra.mxu0 %v5119
    %v5237 = vpop.f32.mrf.mxu0
    %v5238 = vadd.f32 0.0, %v5237
    %v5239 = vpop.f32.mrf.mxu0
    %v5240 = vadd.f32 0.0, %v5239
    %v5241 = vpop.f32.mrf.mxu0
    %v5242 = vpop.f32.mrf.mxu0
    %5243 = vdwg.mxu0
    %5244 = vmatprep.subr.bf16.mxu0 %v3074
    %5245 = vmatpush1.bf16.msra.mxu0 %v3073
    %5246 = vmatprep.subr.bf16.mxu0 %v3066
    %5247 = vmatpush1.bf16.msra.mxu0 %v3065
    %5248 = vmatprep.subr.bf16.mxu0 %v3058
    %5249 = vmatpush1.bf16.msra.mxu0 %v3057
    %5250 = vmatprep.subr.bf16.mxu0 %v3050
    %5251 = vmatpush1.bf16.msra.mxu0 %v3049
    %5252 = vmatprep.subr.bf16.mxu0 %v3042
    %5253 = vmatpush1.bf16.msra.mxu0 %v3041
    %5254 = vmatprep.subr.bf16.mxu0 %v3034
    %5255 = vmatpush1.bf16.msra.mxu0 %v3033
    %5256 = vmatprep.subr.bf16.mxu0 %v3026
    %5257 = vmatpush1.bf16.msra.mxu0 %v3025
    %5258 = vmatprep.subr.bf16.mxu0 %v3018
    %5259 = vmatpush1.bf16.msra.mxu0 %v3017
    %5260 = vmatprep.subr.bf16.mxu0 %v3138
    %5261 = vmatpush2.bf16.msra.mxu0 %v3137
    %5262 = vmatprep.subr.bf16.mxu0 %v3130
    %5263 = vmatpush2.bf16.msra.mxu0 %v3129
    %5264 = vmatprep.subr.bf16.mxu0 %v3122
    %5265 = vmatpush2.bf16.msra.mxu0 %v3121
    %5266 = vmatprep.subr.bf16.mxu0 %v3114
    %5267 = vmatpush2.bf16.msra.mxu0 %v3113
    %5268 = vmatprep.subr.bf16.mxu0 %v3106
    %5269 = vmatpush2.bf16.msra.mxu0 %v3105
    %5270 = vmatprep.subr.bf16.mxu0 %v3098
    %5271 = vmatpush2.bf16.msra.mxu0 %v3097
    %5272 = vmatprep.subr.bf16.mxu0 %v3090
    %5273 = vmatpush2.bf16.msra.mxu0 %v3089
    %5274 = vmatprep.subr.bf16.mxu0 %v3082
    %5275 = vmatpush2.bf16.msra.mxu0 %v3081
    %5276 = vmatprep.mubr.bf16.mxu0 %v5120
    %5277 = vmatmul.mubr.bf16.gmra.mxu0 %v5119
    %v5278 = vpop.f32.mrf.mxu0
    %v5279 = vadd.f32 0.0, %v5278
    %v5280 = vpop.f32.mrf.mxu0
    %v5281 = vadd.f32 0.0, %v5280
    %v5282 = vpop.f32.mrf.mxu0
    %v5283 = vpop.f32.mrf.mxu0
    %5284 = vdwg.mxu0
    %v5285 = vadd.f32 %v4990, %v5156
    %v5286 = vadd.f32 %v4992, %v5158
    %v5287 = vadd.f32 %v5031, %v5197
    %v5288 = vadd.f32 %v5033, %v5199
    %v5289 = vadd.f32 %v5072, %v5238
    %v5290 = vadd.f32 %v5074, %v5240
    %v5291 = vadd.f32 %v5113, %v5279
    %v5292 = vadd.f32 %v5115, %v5281
    %v5293 = vxor.u32 %v5285, 2147483648
    %v5294 = vxor.u32 %v5286, 2147483648
    %v5295 = vmul.f32 %v5293, 1.442695
    %v5296 = vpow.pop %v5295
    %v5297 = vmul.f32 %v5294, 1.442695
    %v5298 = vpow.pop %v5297
    %v5299 = vadd.f32 %v5296, 1.0
    %v5300 = vadd.f32 %v5298, 1.0
    %v5301 = vrcp.pop %v5299
    %v5302 = vmul.f32 1.0, %v5301
    %v5303 = vrcp.pop %v5300
    %v5304 = vmul.f32 1.0, %v5303
    %v5305 = vxor.u32 %v5287, 2147483648
    %v5306 = vxor.u32 %v5288, 2147483648
    %v5307 = vmul.f32 %v5305, 1.442695
    %v5308 = vpow.pop %v5307
    %v5309 = vmul.f32 %v5306, 1.442695
    %v5310 = vpow.pop %v5309
    %v5311 = vadd.f32 %v5308, 1.0
    %v5312 = vadd.f32 %v5310, 1.0
    %v5313 = vrcp.pop %v5311
    %v5314 = vmul.f32 1.0, %v5313
    %v5315 = vrcp.pop %v5312
    %v5316 = vmul.f32 1.0, %v5315
    %v5317 = vtanh.pop %v5289
    %v5318 = vtanh.pop %v5290
    %v5319 = vxor.u32 %v5291, 2147483648
    %v5320 = vxor.u32 %v5292, 2147483648
    %v5321 = vmul.f32 %v5319, 1.442695
    %v5322 = vpow.pop %v5321
    %v5323 = vmul.f32 %v5320, 1.442695
    %v5324 = vpow.pop %v5323
    %v5325 = vadd.f32 %v5322, 1.0
    %v5326 = vadd.f32 %v5324, 1.0
    %v5327 = vrcp.pop %v5325
    %v5328 = vmul.f32 1.0, %v5327
    %v5329 = vrcp.pop %v5326
    %v5330 = vmul.f32 1.0, %v5329
    %v5331 = vmul.f32 %v5314, %v4717
    %v5332 = vmul.f32 %v5316, %v4718
    %v5333 = vmul.f32 %v5302, %v5317
    %v5334 = vmul.f32 %v5304, %v5318
    %v5335 = vadd.f32 %v5331, %v5333
    %v5336 = vadd.f32 %v5332, %v5334
    %v5337 = vtanh.pop %v5335
    %v5338 = vtanh.pop %v5336
    %v5339 = vmul.f32 %v5328, %v5337
    %v5340 = vmul.f32 %v5330, %v5338
    %5341 = vst [vmem:[%s7 + $0x30] sm:$0xff] %v5339
    %5342 = vst [vmem:[%s7 + $0x38] sm:$0xff] %v5340
    %v5343 = vld [vmem:[#allocation2 + $0x100] sm:$0xff]
    %v5344 = vld [vmem:[#allocation2 + $0x108] sm:$0xff]
    %v5345 = vld [vmem:[#allocation2 + $0x110] sm:$0xff]
    %v5346 = vld [vmem:[#allocation2 + $0x118] sm:$0xff]
    %v5347 = vld [vmem:[#allocation2 + $0x120] sm:$0xff]
    %v5348 = vld [vmem:[#allocation2 + $0x128] sm:$0xff]
    %v5349 = vld [vmem:[#allocation2 + $0x130] sm:$0xff]
    %v5350 = vld [vmem:[#allocation2 + $0x138] sm:$0xff]
    %5351 = vmatprep.subr.bf16.mxu0 %v1361
    %5352 = vmatpush1.bf16.msra.mxu0 %v1360
    %5353 = vmatprep.subr.bf16.mxu0 %v1353
    %5354 = vmatpush1.bf16.msra.mxu0 %v1352
    %5355 = vmatprep.subr.bf16.mxu0 %v1345
    %5356 = vmatpush1.bf16.msra.mxu0 %v1344
    %5357 = vmatprep.subr.bf16.mxu0 %v1337
    %5358 = vmatpush1.bf16.msra.mxu0 %v1336
    %5359 = vmatprep.subr.bf16.mxu0 %v1329
    %5360 = vmatpush1.bf16.msra.mxu0 %v1328
    %5361 = vmatprep.subr.bf16.mxu0 %v1321
    %5362 = vmatpush1.bf16.msra.mxu0 %v1320
    %5363 = vmatprep.subr.bf16.mxu0 %v1313
    %5364 = vmatpush1.bf16.msra.mxu0 %v1312
    %5365 = vmatprep.subr.bf16.mxu0 %v1305
    %5366 = vmatpush1.bf16.msra.mxu0 %v1304
    %5367 = vmatprep.subr.bf16.mxu0 %v1425
    %5368 = vmatpush2.bf16.msra.mxu0 %v1424
    %5369 = vmatprep.subr.bf16.mxu0 %v1417
    %5370 = vmatpush2.bf16.msra.mxu0 %v1416
    %5371 = vmatprep.subr.bf16.mxu0 %v1409
    %5372 = vmatpush2.bf16.msra.mxu0 %v1408
    %5373 = vmatprep.subr.bf16.mxu0 %v1401
    %5374 = vmatpush2.bf16.msra.mxu0 %v1400
    %5375 = vmatprep.subr.bf16.mxu0 %v1393
    %5376 = vmatpush2.bf16.msra.mxu0 %v1392
    %5377 = vmatprep.subr.bf16.mxu0 %v1385
    %5378 = vmatpush2.bf16.msra.mxu0 %v1384
    %5379 = vmatprep.subr.bf16.mxu0 %v1377
    %5380 = vmatpush2.bf16.msra.mxu0 %v1376
    %5381 = vmatprep.subr.bf16.mxu0 %v1369
    %5382 = vmatpush2.bf16.msra.mxu0 %v1368
    %5383 = vmatprep.mubr.bf16.mxu0 %v4954
    %5384 = vmatmul.mubr.bf16.gmra.mxu0 %v4953
    %v5385 = vpop.f32.mrf.mxu0
    %v5386 = vadd.f32 0.0, %v5385
    %v5387 = vpop.f32.mrf.mxu0
    %v5388 = vadd.f32 0.0, %v5387
    %v5389 = vpop.f32.mrf.mxu0
    %v5390 = vpop.f32.mrf.mxu0
    %5391 = vdwg.mxu0
    %5392 = vmatprep.subr.bf16.mxu0 %v1363
    %5393 = vmatpush1.bf16.msra.mxu0 %v1362
    %5394 = vmatprep.subr.bf16.mxu0 %v1355
    %5395 = vmatpush1.bf16.msra.mxu0 %v1354
    %5396 = vmatprep.subr.bf16.mxu0 %v1347
    %5397 = vmatpush1.bf16.msra.mxu0 %v1346
    %5398 = vmatprep.subr.bf16.mxu0 %v1339
    %5399 = vmatpush1.bf16.msra.mxu0 %v1338
    %5400 = vmatprep.subr.bf16.mxu0 %v1331
    %5401 = vmatpush1.bf16.msra.mxu0 %v1330
    %5402 = vmatprep.subr.bf16.mxu0 %v1323
    %5403 = vmatpush1.bf16.msra.mxu0 %v1322
    %5404 = vmatprep.subr.bf16.mxu0 %v1315
    %5405 = vmatpush1.bf16.msra.mxu0 %v1314
    %5406 = vmatprep.subr.bf16.mxu0 %v1307
    %5407 = vmatpush1.bf16.msra.mxu0 %v1306
    %5408 = vmatprep.subr.bf16.mxu0 %v1427
    %5409 = vmatpush2.bf16.msra.mxu0 %v1426
    %5410 = vmatprep.subr.bf16.mxu0 %v1419
    %5411 = vmatpush2.bf16.msra.mxu0 %v1418
    %5412 = vmatprep.subr.bf16.mxu0 %v1411
    %5413 = vmatpush2.bf16.msra.mxu0 %v1410
    %5414 = vmatprep.subr.bf16.mxu0 %v1403
    %5415 = vmatpush2.bf16.msra.mxu0 %v1402
    %5416 = vmatprep.subr.bf16.mxu0 %v1395
    %5417 = vmatpush2.bf16.msra.mxu0 %v1394
    %5418 = vmatprep.subr.bf16.mxu0 %v1387
    %5419 = vmatpush2.bf16.msra.mxu0 %v1386
    %5420 = vmatprep.subr.bf16.mxu0 %v1379
    %5421 = vmatpush2.bf16.msra.mxu0 %v1378
    %5422 = vmatprep.subr.bf16.mxu0 %v1371
    %5423 = vmatpush2.bf16.msra.mxu0 %v1370
    %5424 = vmatprep.mubr.bf16.mxu0 %v4954
    %5425 = vmatmul.mubr.bf16.gmra.mxu0 %v4953
    %v5426 = vpop.f32.mrf.mxu0
    %v5427 = vadd.f32 0.0, %v5426
    %v5428 = vpop.f32.mrf.mxu0
    %v5429 = vadd.f32 0.0, %v5428
    %v5430 = vpop.f32.mrf.mxu0
    %v5431 = vpop.f32.mrf.mxu0
    %5432 = vdwg.mxu0
    %5433 = vmatprep.subr.bf16.mxu0 %v1365
    %5434 = vmatpush1.bf16.msra.mxu0 %v1364
    %5435 = vmatprep.subr.bf16.mxu0 %v1357
    %5436 = vmatpush1.bf16.msra.mxu0 %v1356
    %5437 = vmatprep.subr.bf16.mxu0 %v1349
    %5438 = vmatpush1.bf16.msra.mxu0 %v1348
    %5439 = vmatprep.subr.bf16.mxu0 %v1341
    %5440 = vmatpush1.bf16.msra.mxu0 %v1340
    %5441 = vmatprep.subr.bf16.mxu0 %v1333
    %5442 = vmatpush1.bf16.msra.mxu0 %v1332
    %5443 = vmatprep.subr.bf16.mxu0 %v1325
    %5444 = vmatpush1.bf16.msra.mxu0 %v1324
    %5445 = vmatprep.subr.bf16.mxu0 %v1317
    %5446 = vmatpush1.bf16.msra.mxu0 %v1316
    %5447 = vmatprep.subr.bf16.mxu0 %v1309
    %5448 = vmatpush1.bf16.msra.mxu0 %v1308
    %5449 = vmatprep.subr.bf16.mxu0 %v1429
    %5450 = vmatpush2.bf16.msra.mxu0 %v1428
    %5451 = vmatprep.subr.bf16.mxu0 %v1421
    %5452 = vmatpush2.bf16.msra.mxu0 %v1420
    %5453 = vmatprep.subr.bf16.mxu0 %v1413
    %5454 = vmatpush2.bf16.msra.mxu0 %v1412
    %5455 = vmatprep.subr.bf16.mxu0 %v1405
    %5456 = vmatpush2.bf16.msra.mxu0 %v1404
    %5457 = vmatprep.subr.bf16.mxu0 %v1397
    %5458 = vmatpush2.bf16.msra.mxu0 %v1396
    %5459 = vmatprep.subr.bf16.mxu0 %v1389
    %5460 = vmatpush2.bf16.msra.mxu0 %v1388
    %5461 = vmatprep.subr.bf16.mxu0 %v1381
    %5462 = vmatpush2.bf16.msra.mxu0 %v1380
    %5463 = vmatprep.subr.bf16.mxu0 %v1373
    %5464 = vmatpush2.bf16.msra.mxu0 %v1372
    %5465 = vmatprep.mubr.bf16.mxu0 %v4954
    %5466 = vmatmul.mubr.bf16.gmra.mxu0 %v4953
    %v5467 = vpop.f32.mrf.mxu0
    %v5468 = vadd.f32 0.0, %v5467
    %v5469 = vpop.f32.mrf.mxu0
    %v5470 = vadd.f32 0.0, %v5469
    %v5471 = vpop.f32.mrf.mxu0
    %v5472 = vpop.f32.mrf.mxu0
    %5473 = vdwg.mxu0
    %5474 = vmatprep.subr.bf16.mxu0 %v1367
    %5475 = vmatpush1.bf16.msra.mxu0 %v1366
    %5476 = vmatprep.subr.bf16.mxu0 %v1359
    %5477 = vmatpush1.bf16.msra.mxu0 %v1358
    %5478 = vmatprep.subr.bf16.mxu0 %v1351
    %5479 = vmatpush1.bf16.msra.mxu0 %v1350
    %5480 = vmatprep.subr.bf16.mxu0 %v1343
    %5481 = vmatpush1.bf16.msra.mxu0 %v1342
    %5482 = vmatprep.subr.bf16.mxu0 %v1335
    %5483 = vmatpush1.bf16.msra.mxu0 %v1334
    %5484 = vmatprep.subr.bf16.mxu0 %v1327
    %5485 = vmatpush1.bf16.msra.mxu0 %v1326
    %5486 = vmatprep.subr.bf16.mxu0 %v1319
    %5487 = vmatpush1.bf16.msra.mxu0 %v1318
    %5488 = vmatprep.subr.bf16.mxu0 %v1311
    %5489 = vmatpush1.bf16.msra.mxu0 %v1310
    %5490 = vmatprep.subr.bf16.mxu0 %v1431
    %5491 = vmatpush2.bf16.msra.mxu0 %v1430
    %5492 = vmatprep.subr.bf16.mxu0 %v1423
    %5493 = vmatpush2.bf16.msra.mxu0 %v1422
    %5494 = vmatprep.subr.bf16.mxu0 %v1415
    %5495 = vmatpush2.bf16.msra.mxu0 %v1414
    %5496 = vmatprep.subr.bf16.mxu0 %v1407
    %5497 = vmatpush2.bf16.msra.mxu0 %v1406
    %5498 = vmatprep.subr.bf16.mxu0 %v1399
    %5499 = vmatpush2.bf16.msra.mxu0 %v1398
    %5500 = vmatprep.subr.bf16.mxu0 %v1391
    %5501 = vmatpush2.bf16.msra.mxu0 %v1390
    %5502 = vmatprep.subr.bf16.mxu0 %v1383
    %5503 = vmatpush2.bf16.msra.mxu0 %v1382
    %5504 = vmatprep.subr.bf16.mxu0 %v1375
    %5505 = vmatpush2.bf16.msra.mxu0 %v1374
    %5506 = vmatprep.mubr.bf16.mxu0 %v4954
    %5507 = vmatmul.mubr.bf16.gmra.mxu0 %v4953
    %v5508 = vpop.f32.mrf.mxu0
    %v5509 = vadd.f32 0.0, %v5508
    %v5510 = vpop.f32.mrf.mxu0
    %v5511 = vadd.f32 0.0, %v5510
    %v5512 = vpop.f32.mrf.mxu0
    %v5513 = vpop.f32.mrf.mxu0
    %5514 = vdwg.mxu0
    %v5515 = vadd.f32 %v5343, %v5386
    %v5516 = vadd.f32 %v5344, %v5388
    %v5517 = vadd.f32 %v5345, %v5427
    %v5518 = vadd.f32 %v5346, %v5429
    %v5519 = vadd.f32 %v5347, %v5468
    %v5520 = vadd.f32 %v5348, %v5470
    %v5521 = vadd.f32 %v5349, %v5509
    %v5522 = vadd.f32 %v5350, %v5511
    %v5523 = vxor.u32 %v5515, 2147483648
    %v5524 = vxor.u32 %v5516, 2147483648
    %v5525 = vmul.f32 %v5523, 1.442695
    %v5526 = vpow.pop %v5525
    %v5527 = vmul.f32 %v5524, 1.442695
    %v5528 = vpow.pop %v5527
    %v5529 = vadd.f32 %v5526, 1.0
    %v5530 = vadd.f32 %v5528, 1.0
    %v5531 = vrcp.pop %v5529
    %v5532 = vmul.f32 1.0, %v5531
    %v5533 = vrcp.pop %v5530
    %v5534 = vmul.f32 1.0, %v5533
    %v5535 = vxor.u32 %v5517, 2147483648
    %v5536 = vxor.u32 %v5518, 2147483648
    %v5537 = vmul.f32 %v5535, 1.442695
    %v5538 = vpow.pop %v5537
    %v5539 = vmul.f32 %v5536, 1.442695
    %v5540 = vpow.pop %v5539
    %v5541 = vadd.f32 %v5538, 1.0
    %v5542 = vadd.f32 %v5540, 1.0
    %v5543 = vrcp.pop %v5541
    %v5544 = vmul.f32 1.0, %v5543
    %v5545 = vrcp.pop %v5542
    %v5546 = vmul.f32 1.0, %v5545
    %v5547 = vtanh.pop %v5519
    %v5548 = vtanh.pop %v5520
    %v5549 = vxor.u32 %v5521, 2147483648
    %v5550 = vxor.u32 %v5522, 2147483648
    %v5551 = vmul.f32 %v5549, 1.442695
    %v5552 = vpow.pop %v5551
    %v5553 = vmul.f32 %v5550, 1.442695
    %v5554 = vpow.pop %v5553
    %v5555 = vadd.f32 %v5552, 1.0
    %v5556 = vadd.f32 %v5554, 1.0
    %v5557 = vrcp.pop %v5555
    %v5558 = vmul.f32 1.0, %v5557
    %v5559 = vrcp.pop %v5556
    %v5560 = vmul.f32 1.0, %v5559
    %v5561 = vmul.f32 %v5544, %v4947
    %v5562 = vmul.f32 %v5546, %v4948
    %v5563 = vmul.f32 %v5532, %v5547
    %v5564 = vmul.f32 %v5534, %v5548
    %v5565 = vadd.f32 %v5561, %v5563
    %v5566 = vadd.f32 %v5562, %v5564
    %v5567 = vtanh.pop %v5565
    %v5568 = vtanh.pop %v5566
    %v5569 = vmul.f32 %v5558, %v5567
    %v5570 = vmul.f32 %v5560, %v5568
    %v5571 = vpack.c.bf16 %v5569, %v5569
    %v5572 = vpack.c.bf16 %v5570, %v5570
    %5573 = vmatprep.subr.bf16.mxu0 %v2264
    %5574 = vmatpush1.bf16.msra.mxu0 %v2263
    %5575 = vmatprep.subr.bf16.mxu0 %v2256
    %5576 = vmatpush1.bf16.msra.mxu0 %v2255
    %5577 = vmatprep.subr.bf16.mxu0 %v2248
    %5578 = vmatpush1.bf16.msra.mxu0 %v2247
    %5579 = vmatprep.subr.bf16.mxu0 %v2240
    %5580 = vmatpush1.bf16.msra.mxu0 %v2239
    %5581 = vmatprep.subr.bf16.mxu0 %v2232
    %5582 = vmatpush1.bf16.msra.mxu0 %v2231
    %5583 = vmatprep.subr.bf16.mxu0 %v2224
    %5584 = vmatpush1.bf16.msra.mxu0 %v2223
    %5585 = vmatprep.subr.bf16.mxu0 %v2216
    %5586 = vmatpush1.bf16.msra.mxu0 %v2215
    %5587 = vmatprep.subr.bf16.mxu0 %v2208
    %5588 = vmatpush1.bf16.msra.mxu0 %v2207
    %5589 = vmatprep.subr.bf16.mxu0 %v2328
    %5590 = vmatpush2.bf16.msra.mxu0 %v2327
    %5591 = vmatprep.subr.bf16.mxu0 %v2320
    %5592 = vmatpush2.bf16.msra.mxu0 %v2319
    %5593 = vmatprep.subr.bf16.mxu0 %v2312
    %5594 = vmatpush2.bf16.msra.mxu0 %v2311
    %5595 = vmatprep.subr.bf16.mxu0 %v2304
    %5596 = vmatpush2.bf16.msra.mxu0 %v2303
    %5597 = vmatprep.subr.bf16.mxu0 %v2296
    %5598 = vmatpush2.bf16.msra.mxu0 %v2295
    %5599 = vmatprep.subr.bf16.mxu0 %v2288
    %5600 = vmatpush2.bf16.msra.mxu0 %v2287
    %5601 = vmatprep.subr.bf16.mxu0 %v2280
    %5602 = vmatpush2.bf16.msra.mxu0 %v2279
    %5603 = vmatprep.subr.bf16.mxu0 %v2272
    %5604 = vmatpush2.bf16.msra.mxu0 %v2271
    %5605 = vmatprep.mubr.bf16.mxu0 %v5572
    %5606 = vmatmul.mubr.bf16.gmra.mxu0 %v5571
    %v5607 = vpop.f32.mrf.mxu0
    %v5608 = vadd.f32 %v1786, %v5607
    %v5609 = vpop.f32.mrf.mxu0
    %v5610 = vadd.f32 %v1790, %v5609
    %v5611 = vpop.f32.mrf.mxu0
    %v5612 = vpop.f32.mrf.mxu0
    %5613 = vdwg.mxu0
    %5614 = vmatprep.subr.bf16.mxu0 %v2266
    %5615 = vmatpush1.bf16.msra.mxu0 %v2265
    %5616 = vmatprep.subr.bf16.mxu0 %v2258
    %5617 = vmatpush1.bf16.msra.mxu0 %v2257
    %5618 = vmatprep.subr.bf16.mxu0 %v2250
    %5619 = vmatpush1.bf16.msra.mxu0 %v2249
    %5620 = vmatprep.subr.bf16.mxu0 %v2242
    %5621 = vmatpush1.bf16.msra.mxu0 %v2241
    %5622 = vmatprep.subr.bf16.mxu0 %v2234
    %5623 = vmatpush1.bf16.msra.mxu0 %v2233
    %5624 = vmatprep.subr.bf16.mxu0 %v2226
    %5625 = vmatpush1.bf16.msra.mxu0 %v2225
    %5626 = vmatprep.subr.bf16.mxu0 %v2218
    %5627 = vmatpush1.bf16.msra.mxu0 %v2217
    %5628 = vmatprep.subr.bf16.mxu0 %v2210
    %5629 = vmatpush1.bf16.msra.mxu0 %v2209
    %5630 = vmatprep.subr.bf16.mxu0 %v2330
    %5631 = vmatpush2.bf16.msra.mxu0 %v2329
    %5632 = vmatprep.subr.bf16.mxu0 %v2322
    %5633 = vmatpush2.bf16.msra.mxu0 %v2321
    %5634 = vmatprep.subr.bf16.mxu0 %v2314
    %5635 = vmatpush2.bf16.msra.mxu0 %v2313
    %5636 = vmatprep.subr.bf16.mxu0 %v2306
    %5637 = vmatpush2.bf16.msra.mxu0 %v2305
    %5638 = vmatprep.subr.bf16.mxu0 %v2298
    %5639 = vmatpush2.bf16.msra.mxu0 %v2297
    %5640 = vmatprep.subr.bf16.mxu0 %v2290
    %5641 = vmatpush2.bf16.msra.mxu0 %v2289
    %5642 = vmatprep.subr.bf16.mxu0 %v2282
    %5643 = vmatpush2.bf16.msra.mxu0 %v2281
    %5644 = vmatprep.subr.bf16.mxu0 %v2274
    %5645 = vmatpush2.bf16.msra.mxu0 %v2273
    %5646 = vmatprep.mubr.bf16.mxu0 %v5572
    %5647 = vmatmul.mubr.bf16.gmra.mxu0 %v5571
    %v5648 = vpop.f32.mrf.mxu0
    %v5649 = vadd.f32 %v1794, %v5648
    %v5650 = vpop.f32.mrf.mxu0
    %v5651 = vadd.f32 %v1798, %v5650
    %v5652 = vpop.f32.mrf.mxu0
    %v5653 = vpop.f32.mrf.mxu0
    %5654 = vdwg.mxu0
    %5655 = vmatprep.subr.bf16.mxu0 %v2268
    %5656 = vmatpush1.bf16.msra.mxu0 %v2267
    %5657 = vmatprep.subr.bf16.mxu0 %v2260
    %5658 = vmatpush1.bf16.msra.mxu0 %v2259
    %5659 = vmatprep.subr.bf16.mxu0 %v2252
    %5660 = vmatpush1.bf16.msra.mxu0 %v2251
    %5661 = vmatprep.subr.bf16.mxu0 %v2244
    %5662 = vmatpush1.bf16.msra.mxu0 %v2243
    %5663 = vmatprep.subr.bf16.mxu0 %v2236
    %5664 = vmatpush1.bf16.msra.mxu0 %v2235
    %5665 = vmatprep.subr.bf16.mxu0 %v2228
    %5666 = vmatpush1.bf16.msra.mxu0 %v2227
    %5667 = vmatprep.subr.bf16.mxu0 %v2220
    %5668 = vmatpush1.bf16.msra.mxu0 %v2219
    %5669 = vmatprep.subr.bf16.mxu0 %v2212
    %5670 = vmatpush1.bf16.msra.mxu0 %v2211
    %5671 = vmatprep.subr.bf16.mxu0 %v2332
    %5672 = vmatpush2.bf16.msra.mxu0 %v2331
    %5673 = vmatprep.subr.bf16.mxu0 %v2324
    %5674 = vmatpush2.bf16.msra.mxu0 %v2323
    %5675 = vmatprep.subr.bf16.mxu0 %v2316
    %5676 = vmatpush2.bf16.msra.mxu0 %v2315
    %5677 = vmatprep.subr.bf16.mxu0 %v2308
    %5678 = vmatpush2.bf16.msra.mxu0 %v2307
    %5679 = vmatprep.subr.bf16.mxu0 %v2300
    %5680 = vmatpush2.bf16.msra.mxu0 %v2299
    %5681 = vmatprep.subr.bf16.mxu0 %v2292
    %5682 = vmatpush2.bf16.msra.mxu0 %v2291
    %5683 = vmatprep.subr.bf16.mxu0 %v2284
    %5684 = vmatpush2.bf16.msra.mxu0 %v2283
    %5685 = vmatprep.subr.bf16.mxu0 %v2276
    %5686 = vmatpush2.bf16.msra.mxu0 %v2275
    %5687 = vmatprep.mubr.bf16.mxu0 %v5572
    %5688 = vmatmul.mubr.bf16.gmra.mxu0 %v5571
    %v5689 = vpop.f32.mrf.mxu0
    %v5690 = vadd.f32 %v1802, %v5689
    %v5691 = vpop.f32.mrf.mxu0
    %v5692 = vadd.f32 %v1806, %v5691
    %v5693 = vpop.f32.mrf.mxu0
    %v5694 = vpop.f32.mrf.mxu0
    %5695 = vdwg.mxu0
    %5696 = vmatprep.subr.bf16.mxu0 %v2270
    %5697 = vmatpush1.bf16.msra.mxu0 %v2269
    %5698 = vmatprep.subr.bf16.mxu0 %v2262
    %5699 = vmatpush1.bf16.msra.mxu0 %v2261
    %5700 = vmatprep.subr.bf16.mxu0 %v2254
    %5701 = vmatpush1.bf16.msra.mxu0 %v2253
    %5702 = vmatprep.subr.bf16.mxu0 %v2246
    %5703 = vmatpush1.bf16.msra.mxu0 %v2245
    %5704 = vmatprep.subr.bf16.mxu0 %v2238
    %5705 = vmatpush1.bf16.msra.mxu0 %v2237
    %5706 = vmatprep.subr.bf16.mxu0 %v2230
    %5707 = vmatpush1.bf16.msra.mxu0 %v2229
    %5708 = vmatprep.subr.bf16.mxu0 %v2222
    %5709 = vmatpush1.bf16.msra.mxu0 %v2221
    %5710 = vmatprep.subr.bf16.mxu0 %v2214
    %5711 = vmatpush1.bf16.msra.mxu0 %v2213
    %5712 = vmatprep.subr.bf16.mxu0 %v2334
    %5713 = vmatpush2.bf16.msra.mxu0 %v2333
    %5714 = vmatprep.subr.bf16.mxu0 %v2326
    %5715 = vmatpush2.bf16.msra.mxu0 %v2325
    %5716 = vmatprep.subr.bf16.mxu0 %v2318
    %5717 = vmatpush2.bf16.msra.mxu0 %v2317
    %5718 = vmatprep.subr.bf16.mxu0 %v2310
    %5719 = vmatpush2.bf16.msra.mxu0 %v2309
    %5720 = vmatprep.subr.bf16.mxu0 %v2302
    %5721 = vmatpush2.bf16.msra.mxu0 %v2301
    %5722 = vmatprep.subr.bf16.mxu0 %v2294
    %5723 = vmatpush2.bf16.msra.mxu0 %v2293
    %5724 = vmatprep.subr.bf16.mxu0 %v2286
    %5725 = vmatpush2.bf16.msra.mxu0 %v2285
    %5726 = vmatprep.subr.bf16.mxu0 %v2278
    %5727 = vmatpush2.bf16.msra.mxu0 %v2277
    %5728 = vmatprep.mubr.bf16.mxu0 %v5572
    %5729 = vmatmul.mubr.bf16.gmra.mxu0 %v5571
    %v5730 = vpop.f32.mrf.mxu0
    %v5731 = vadd.f32 %v1810, %v5730
    %v5732 = vpop.f32.mrf.mxu0
    %v5733 = vadd.f32 %v1814, %v5732
    %v5734 = vpop.f32.mrf.mxu0
    %v5735 = vpop.f32.mrf.mxu0
    %5736 = vdwg.mxu0
    %v5737 = vpack.c.bf16 %v5339, %v5339
    %v5738 = vpack.c.bf16 %v5340, %v5340
    %5739 = vmatprep.subr.bf16.mxu0 %v3068
    %5740 = vmatpush1.bf16.msra.mxu0 %v3067
    %5741 = vmatprep.subr.bf16.mxu0 %v3060
    %5742 = vmatpush1.bf16.msra.mxu0 %v3059
    %5743 = vmatprep.subr.bf16.mxu0 %v3052
    %5744 = vmatpush1.bf16.msra.mxu0 %v3051
    %5745 = vmatprep.subr.bf16.mxu0 %v3044
    %5746 = vmatpush1.bf16.msra.mxu0 %v3043
    %5747 = vmatprep.subr.bf16.mxu0 %v3036
    %5748 = vmatpush1.bf16.msra.mxu0 %v3035
    %5749 = vmatprep.subr.bf16.mxu0 %v3028
    %5750 = vmatpush1.bf16.msra.mxu0 %v3027
    %5751 = vmatprep.subr.bf16.mxu0 %v3020
    %5752 = vmatpush1.bf16.msra.mxu0 %v3019
    %5753 = vmatprep.subr.bf16.mxu0 %v3012
    %5754 = vmatpush1.bf16.msra.mxu0 %v3011
    %5755 = vmatprep.subr.bf16.mxu0 %v3132
    %5756 = vmatpush2.bf16.msra.mxu0 %v3131
    %5757 = vmatprep.subr.bf16.mxu0 %v3124
    %5758 = vmatpush2.bf16.msra.mxu0 %v3123
    %5759 = vmatprep.subr.bf16.mxu0 %v3116
    %5760 = vmatpush2.bf16.msra.mxu0 %v3115
    %5761 = vmatprep.subr.bf16.mxu0 %v3108
    %5762 = vmatpush2.bf16.msra.mxu0 %v3107
    %5763 = vmatprep.subr.bf16.mxu0 %v3100
    %5764 = vmatpush2.bf16.msra.mxu0 %v3099
    %5765 = vmatprep.subr.bf16.mxu0 %v3092
    %5766 = vmatpush2.bf16.msra.mxu0 %v3091
    %5767 = vmatprep.subr.bf16.mxu0 %v3084
    %5768 = vmatpush2.bf16.msra.mxu0 %v3083
    %5769 = vmatprep.subr.bf16.mxu0 %v3076
    %5770 = vmatpush2.bf16.msra.mxu0 %v3075
    %5771 = vmatprep.mubr.bf16.mxu0 %v5738
    %5772 = vmatmul.mubr.bf16.gmra.mxu0 %v5737
    %v5773 = vpop.f32.mrf.mxu0
    %v5774 = vadd.f32 0.0, %v5773
    %v5775 = vpop.f32.mrf.mxu0
    %v5776 = vadd.f32 0.0, %v5775
    %v5777 = vpop.f32.mrf.mxu0
    %v5778 = vpop.f32.mrf.mxu0
    %5779 = vdwg.mxu0
    %5780 = vmatprep.subr.bf16.mxu0 %v3070
    %5781 = vmatpush1.bf16.msra.mxu0 %v3069
    %5782 = vmatprep.subr.bf16.mxu0 %v3062
    %5783 = vmatpush1.bf16.msra.mxu0 %v3061
    %5784 = vmatprep.subr.bf16.mxu0 %v3054
    %5785 = vmatpush1.bf16.msra.mxu0 %v3053
    %5786 = vmatprep.subr.bf16.mxu0 %v3046
    %5787 = vmatpush1.bf16.msra.mxu0 %v3045
    %5788 = vmatprep.subr.bf16.mxu0 %v3038
    %5789 = vmatpush1.bf16.msra.mxu0 %v3037
    %5790 = vmatprep.subr.bf16.mxu0 %v3030
    %5791 = vmatpush1.bf16.msra.mxu0 %v3029
    %5792 = vmatprep.subr.bf16.mxu0 %v3022
    %5793 = vmatpush1.bf16.msra.mxu0 %v3021
    %5794 = vmatprep.subr.bf16.mxu0 %v3014
    %5795 = vmatpush1.bf16.msra.mxu0 %v3013
    %5796 = vmatprep.subr.bf16.mxu0 %v3134
    %5797 = vmatpush2.bf16.msra.mxu0 %v3133
    %5798 = vmatprep.subr.bf16.mxu0 %v3126
    %5799 = vmatpush2.bf16.msra.mxu0 %v3125
    %5800 = vmatprep.subr.bf16.mxu0 %v3118
    %5801 = vmatpush2.bf16.msra.mxu0 %v3117
    %5802 = vmatprep.subr.bf16.mxu0 %v3110
    %5803 = vmatpush2.bf16.msra.mxu0 %v3109
    %5804 = vmatprep.subr.bf16.mxu0 %v3102
    %5805 = vmatpush2.bf16.msra.mxu0 %v3101
    %5806 = vmatprep.subr.bf16.mxu0 %v3094
    %5807 = vmatpush2.bf16.msra.mxu0 %v3093
    %5808 = vmatprep.subr.bf16.mxu0 %v3086
    %5809 = vmatpush2.bf16.msra.mxu0 %v3085
    %5810 = vmatprep.subr.bf16.mxu0 %v3078
    %5811 = vmatpush2.bf16.msra.mxu0 %v3077
    %5812 = vmatprep.mubr.bf16.mxu0 %v5738
    %5813 = vmatmul.mubr.bf16.gmra.mxu0 %v5737
    %v5814 = vpop.f32.mrf.mxu0
    %v5815 = vadd.f32 0.0, %v5814
    %v5816 = vpop.f32.mrf.mxu0
    %v5817 = vadd.f32 0.0, %v5816
    %v5818 = vpop.f32.mrf.mxu0
    %v5819 = vpop.f32.mrf.mxu0
    %5820 = vdwg.mxu0
    %5821 = vmatprep.subr.bf16.mxu0 %v3072
    %5822 = vmatpush1.bf16.msra.mxu0 %v3071
    %5823 = vmatprep.subr.bf16.mxu0 %v3064
    %5824 = vmatpush1.bf16.msra.mxu0 %v3063
    %5825 = vmatprep.subr.bf16.mxu0 %v3056
    %5826 = vmatpush1.bf16.msra.mxu0 %v3055
    %5827 = vmatprep.subr.bf16.mxu0 %v3048
    %5828 = vmatpush1.bf16.msra.mxu0 %v3047
    %5829 = vmatprep.subr.bf16.mxu0 %v3040
    %5830 = vmatpush1.bf16.msra.mxu0 %v3039
    %5831 = vmatprep.subr.bf16.mxu0 %v3032
    %5832 = vmatpush1.bf16.msra.mxu0 %v3031
    %5833 = vmatprep.subr.bf16.mxu0 %v3024
    %5834 = vmatpush1.bf16.msra.mxu0 %v3023
    %5835 = vmatprep.subr.bf16.mxu0 %v3016
    %5836 = vmatpush1.bf16.msra.mxu0 %v3015
    %5837 = vmatprep.subr.bf16.mxu0 %v3136
    %5838 = vmatpush2.bf16.msra.mxu0 %v3135
    %5839 = vmatprep.subr.bf16.mxu0 %v3128
    %5840 = vmatpush2.bf16.msra.mxu0 %v3127
    %5841 = vmatprep.subr.bf16.mxu0 %v3120
    %5842 = vmatpush2.bf16.msra.mxu0 %v3119
    %5843 = vmatprep.subr.bf16.mxu0 %v3112
    %5844 = vmatpush2.bf16.msra.mxu0 %v3111
    %5845 = vmatprep.subr.bf16.mxu0 %v3104
    %5846 = vmatpush2.bf16.msra.mxu0 %v3103
    %5847 = vmatprep.subr.bf16.mxu0 %v3096
    %5848 = vmatpush2.bf16.msra.mxu0 %v3095
    %5849 = vmatprep.subr.bf16.mxu0 %v3088
    %5850 = vmatpush2.bf16.msra.mxu0 %v3087
    %5851 = vmatprep.subr.bf16.mxu0 %v3080
    %5852 = vmatpush2.bf16.msra.mxu0 %v3079
    %5853 = vmatprep.mubr.bf16.mxu0 %v5738
    %5854 = vmatmul.mubr.bf16.gmra.mxu0 %v5737
    %v5855 = vpop.f32.mrf.mxu0
    %v5856 = vadd.f32 0.0, %v5855
    %v5857 = vpop.f32.mrf.mxu0
    %v5858 = vadd.f32 0.0, %v5857
    %v5859 = vpop.f32.mrf.mxu0
    %v5860 = vpop.f32.mrf.mxu0
    %5861 = vdwg.mxu0
    %5862 = vmatprep.subr.bf16.mxu0 %v3074
    %5863 = vmatpush1.bf16.msra.mxu0 %v3073
    %5864 = vmatprep.subr.bf16.mxu0 %v3066
    %5865 = vmatpush1.bf16.msra.mxu0 %v3065
    %5866 = vmatprep.subr.bf16.mxu0 %v3058
    %5867 = vmatpush1.bf16.msra.mxu0 %v3057
    %5868 = vmatprep.subr.bf16.mxu0 %v3050
    %5869 = vmatpush1.bf16.msra.mxu0 %v3049
    %5870 = vmatprep.subr.bf16.mxu0 %v3042
    %5871 = vmatpush1.bf16.msra.mxu0 %v3041
    %5872 = vmatprep.subr.bf16.mxu0 %v3034
    %5873 = vmatpush1.bf16.msra.mxu0 %v3033
    %5874 = vmatprep.subr.bf16.mxu0 %v3026
    %5875 = vmatpush1.bf16.msra.mxu0 %v3025
    %5876 = vmatprep.subr.bf16.mxu0 %v3018
    %5877 = vmatpush1.bf16.msra.mxu0 %v3017
    %5878 = vmatprep.subr.bf16.mxu0 %v3138
    %5879 = vmatpush2.bf16.msra.mxu0 %v3137
    %5880 = vmatprep.subr.bf16.mxu0 %v3130
    %5881 = vmatpush2.bf16.msra.mxu0 %v3129
    %5882 = vmatprep.subr.bf16.mxu0 %v3122
    %5883 = vmatpush2.bf16.msra.mxu0 %v3121
    %5884 = vmatprep.subr.bf16.mxu0 %v3114
    %5885 = vmatpush2.bf16.msra.mxu0 %v3113
    %5886 = vmatprep.subr.bf16.mxu0 %v3106
    %5887 = vmatpush2.bf16.msra.mxu0 %v3105
    %5888 = vmatprep.subr.bf16.mxu0 %v3098
    %5889 = vmatpush2.bf16.msra.mxu0 %v3097
    %5890 = vmatprep.subr.bf16.mxu0 %v3090
    %5891 = vmatpush2.bf16.msra.mxu0 %v3089
    %5892 = vmatprep.subr.bf16.mxu0 %v3082
    %5893 = vmatpush2.bf16.msra.mxu0 %v3081
    %5894 = vmatprep.mubr.bf16.mxu0 %v5738
    %5895 = vmatmul.mubr.bf16.gmra.mxu0 %v5737
    %v5896 = vpop.f32.mrf.mxu0
    %v5897 = vadd.f32 0.0, %v5896
    %v5898 = vpop.f32.mrf.mxu0
    %v5899 = vadd.f32 0.0, %v5898
    %v5900 = vpop.f32.mrf.mxu0
    %v5901 = vpop.f32.mrf.mxu0
    %5902 = vdwg.mxu0
    %v5903 = vadd.f32 %v5608, %v5774
    %v5904 = vadd.f32 %v5610, %v5776
    %v5905 = vadd.f32 %v5649, %v5815
    %v5906 = vadd.f32 %v5651, %v5817
    %v5907 = vadd.f32 %v5690, %v5856
    %v5908 = vadd.f32 %v5692, %v5858
    %v5909 = vadd.f32 %v5731, %v5897
    %v5910 = vadd.f32 %v5733, %v5899
    %v5911 = vxor.u32 %v5903, 2147483648
    %v5912 = vxor.u32 %v5904, 2147483648
    %v5913 = vmul.f32 %v5911, 1.442695
    %v5914 = vpow.pop %v5913
    %v5915 = vmul.f32 %v5912, 1.442695
    %v5916 = vpow.pop %v5915
    %v5917 = vadd.f32 %v5914, 1.0
    %v5918 = vadd.f32 %v5916, 1.0
    %v5919 = vrcp.pop %v5917
    %v5920 = vmul.f32 1.0, %v5919
    %v5921 = vrcp.pop %v5918
    %v5922 = vmul.f32 1.0, %v5921
    %v5923 = vxor.u32 %v5905, 2147483648
    %v5924 = vxor.u32 %v5906, 2147483648
    %v5925 = vmul.f32 %v5923, 1.442695
    %v5926 = vpow.pop %v5925
    %v5927 = vmul.f32 %v5924, 1.442695
    %v5928 = vpow.pop %v5927
    %v5929 = vadd.f32 %v5926, 1.0
    %v5930 = vadd.f32 %v5928, 1.0
    %v5931 = vrcp.pop %v5929
    %v5932 = vmul.f32 1.0, %v5931
    %v5933 = vrcp.pop %v5930
    %v5934 = vmul.f32 1.0, %v5933
    %v5935 = vtanh.pop %v5907
    %v5936 = vtanh.pop %v5908
    %v5937 = vxor.u32 %v5909, 2147483648
    %v5938 = vxor.u32 %v5910, 2147483648
    %v5939 = vmul.f32 %v5937, 1.442695
    %v5940 = vpow.pop %v5939
    %v5941 = vmul.f32 %v5938, 1.442695
    %v5942 = vpow.pop %v5941
    %v5943 = vadd.f32 %v5940, 1.0
    %v5944 = vadd.f32 %v5942, 1.0
    %v5945 = vrcp.pop %v5943
    %v5946 = vmul.f32 1.0, %v5945
    %v5947 = vrcp.pop %v5944
    %v5948 = vmul.f32 1.0, %v5947
    %v5949 = vmul.f32 %v5932, %v5335
    %v5950 = vmul.f32 %v5934, %v5336
    %v5951 = vmul.f32 %v5920, %v5935
    %v5952 = vmul.f32 %v5922, %v5936
    %v5953 = vadd.f32 %v5949, %v5951
    %v5954 = vadd.f32 %v5950, %v5952
    %v5955 = vtanh.pop %v5953
    %v5956 = vtanh.pop %v5954
    %v5957 = vmul.f32 %v5946, %v5955
    %v5958 = vmul.f32 %v5948, %v5956
    %5959 = vst [vmem:[%s7 + $0x40] sm:$0xff] %v5957
    %5960 = vst [vmem:[%s7 + $0x48] sm:$0xff] %v5958
    %v5961 = vld [vmem:[#allocation2 + $0x140] sm:$0xff]
    %v5962 = vld [vmem:[#allocation2 + $0x148] sm:$0xff]
    %v5963 = vld [vmem:[#allocation2 + $0x150] sm:$0xff]
    %v5964 = vld [vmem:[#allocation2 + $0x158] sm:$0xff]
    %v5965 = vld [vmem:[#allocation2 + $0x160] sm:$0xff]
    %v5966 = vld [vmem:[#allocation2 + $0x168] sm:$0xff]
    %v5967 = vld [vmem:[#allocation2 + $0x170] sm:$0xff]
    %v5968 = vld [vmem:[#allocation2 + $0x178] sm:$0xff]
    %5969 = vmatprep.subr.bf16.mxu0 %v1361
    %5970 = vmatpush1.bf16.msra.mxu0 %v1360
    %5971 = vmatprep.subr.bf16.mxu0 %v1353
    %5972 = vmatpush1.bf16.msra.mxu0 %v1352
    %5973 = vmatprep.subr.bf16.mxu0 %v1345
    %5974 = vmatpush1.bf16.msra.mxu0 %v1344
    %5975 = vmatprep.subr.bf16.mxu0 %v1337
    %5976 = vmatpush1.bf16.msra.mxu0 %v1336
    %5977 = vmatprep.subr.bf16.mxu0 %v1329
    %5978 = vmatpush1.bf16.msra.mxu0 %v1328
    %5979 = vmatprep.subr.bf16.mxu0 %v1321
    %5980 = vmatpush1.bf16.msra.mxu0 %v1320
    %5981 = vmatprep.subr.bf16.mxu0 %v1313
    %5982 = vmatpush1.bf16.msra.mxu0 %v1312
    %5983 = vmatprep.subr.bf16.mxu0 %v1305
    %5984 = vmatpush1.bf16.msra.mxu0 %v1304
    %5985 = vmatprep.subr.bf16.mxu0 %v1425
    %5986 = vmatpush2.bf16.msra.mxu0 %v1424
    %5987 = vmatprep.subr.bf16.mxu0 %v1417
    %5988 = vmatpush2.bf16.msra.mxu0 %v1416
    %5989 = vmatprep.subr.bf16.mxu0 %v1409
    %5990 = vmatpush2.bf16.msra.mxu0 %v1408
    %5991 = vmatprep.subr.bf16.mxu0 %v1401
    %5992 = vmatpush2.bf16.msra.mxu0 %v1400
    %5993 = vmatprep.subr.bf16.mxu0 %v1393
    %5994 = vmatpush2.bf16.msra.mxu0 %v1392
    %5995 = vmatprep.subr.bf16.mxu0 %v1385
    %5996 = vmatpush2.bf16.msra.mxu0 %v1384
    %5997 = vmatprep.subr.bf16.mxu0 %v1377
    %5998 = vmatpush2.bf16.msra.mxu0 %v1376
    %5999 = vmatprep.subr.bf16.mxu0 %v1369
    %6000 = vmatpush2.bf16.msra.mxu0 %v1368
    %6001 = vmatprep.mubr.bf16.mxu0 %v5572
    %6002 = vmatmul.mubr.bf16.gmra.mxu0 %v5571
    %v6003 = vpop.f32.mrf.mxu0
    %v6004 = vadd.f32 0.0, %v6003
    %v6005 = vpop.f32.mrf.mxu0
    %v6006 = vadd.f32 0.0, %v6005
    %v6007 = vpop.f32.mrf.mxu0
    %v6008 = vpop.f32.mrf.mxu0
    %6009 = vdwg.mxu0
    %6010 = vmatprep.subr.bf16.mxu0 %v1363
    %6011 = vmatpush1.bf16.msra.mxu0 %v1362
    %6012 = vmatprep.subr.bf16.mxu0 %v1355
    %6013 = vmatpush1.bf16.msra.mxu0 %v1354
    %6014 = vmatprep.subr.bf16.mxu0 %v1347
    %6015 = vmatpush1.bf16.msra.mxu0 %v1346
    %6016 = vmatprep.subr.bf16.mxu0 %v1339
    %6017 = vmatpush1.bf16.msra.mxu0 %v1338
    %6018 = vmatprep.subr.bf16.mxu0 %v1331
    %6019 = vmatpush1.bf16.msra.mxu0 %v1330
    %6020 = vmatprep.subr.bf16.mxu0 %v1323
    %6021 = vmatpush1.bf16.msra.mxu0 %v1322
    %6022 = vmatprep.subr.bf16.mxu0 %v1315
    %6023 = vmatpush1.bf16.msra.mxu0 %v1314
    %6024 = vmatprep.subr.bf16.mxu0 %v1307
    %6025 = vmatpush1.bf16.msra.mxu0 %v1306
    %6026 = vmatprep.subr.bf16.mxu0 %v1427
    %6027 = vmatpush2.bf16.msra.mxu0 %v1426
    %6028 = vmatprep.subr.bf16.mxu0 %v1419
    %6029 = vmatpush2.bf16.msra.mxu0 %v1418
    %6030 = vmatprep.subr.bf16.mxu0 %v1411
    %6031 = vmatpush2.bf16.msra.mxu0 %v1410
    %6032 = vmatprep.subr.bf16.mxu0 %v1403
    %6033 = vmatpush2.bf16.msra.mxu0 %v1402
    %6034 = vmatprep.subr.bf16.mxu0 %v1395
    %6035 = vmatpush2.bf16.msra.mxu0 %v1394
    %6036 = vmatprep.subr.bf16.mxu0 %v1387
    %6037 = vmatpush2.bf16.msra.mxu0 %v1386
    %6038 = vmatprep.subr.bf16.mxu0 %v1379
    %6039 = vmatpush2.bf16.msra.mxu0 %v1378
    %6040 = vmatprep.subr.bf16.mxu0 %v1371
    %6041 = vmatpush2.bf16.msra.mxu0 %v1370
    %6042 = vmatprep.mubr.bf16.mxu0 %v5572
    %6043 = vmatmul.mubr.bf16.gmra.mxu0 %v5571
    %v6044 = vpop.f32.mrf.mxu0
    %v6045 = vadd.f32 0.0, %v6044
    %v6046 = vpop.f32.mrf.mxu0
    %v6047 = vadd.f32 0.0, %v6046
    %v6048 = vpop.f32.mrf.mxu0
    %v6049 = vpop.f32.mrf.mxu0
    %6050 = vdwg.mxu0
    %6051 = vmatprep.subr.bf16.mxu0 %v1365
    %6052 = vmatpush1.bf16.msra.mxu0 %v1364
    %6053 = vmatprep.subr.bf16.mxu0 %v1357
    %6054 = vmatpush1.bf16.msra.mxu0 %v1356
    %6055 = vmatprep.subr.bf16.mxu0 %v1349
    %6056 = vmatpush1.bf16.msra.mxu0 %v1348
    %6057 = vmatprep.subr.bf16.mxu0 %v1341
    %6058 = vmatpush1.bf16.msra.mxu0 %v1340
    %6059 = vmatprep.subr.bf16.mxu0 %v1333
    %6060 = vmatpush1.bf16.msra.mxu0 %v1332
    %6061 = vmatprep.subr.bf16.mxu0 %v1325
    %6062 = vmatpush1.bf16.msra.mxu0 %v1324
    %6063 = vmatprep.subr.bf16.mxu0 %v1317
    %6064 = vmatpush1.bf16.msra.mxu0 %v1316
    %6065 = vmatprep.subr.bf16.mxu0 %v1309
    %6066 = vmatpush1.bf16.msra.mxu0 %v1308
    %6067 = vmatprep.subr.bf16.mxu0 %v1429
    %6068 = vmatpush2.bf16.msra.mxu0 %v1428
    %6069 = vmatprep.subr.bf16.mxu0 %v1421
    %6070 = vmatpush2.bf16.msra.mxu0 %v1420
    %6071 = vmatprep.subr.bf16.mxu0 %v1413
    %6072 = vmatpush2.bf16.msra.mxu0 %v1412
    %6073 = vmatprep.subr.bf16.mxu0 %v1405
    %6074 = vmatpush2.bf16.msra.mxu0 %v1404
    %6075 = vmatprep.subr.bf16.mxu0 %v1397
    %6076 = vmatpush2.bf16.msra.mxu0 %v1396
    %6077 = vmatprep.subr.bf16.mxu0 %v1389
    %6078 = vmatpush2.bf16.msra.mxu0 %v1388
    %6079 = vmatprep.subr.bf16.mxu0 %v1381
    %6080 = vmatpush2.bf16.msra.mxu0 %v1380
    %6081 = vmatprep.subr.bf16.mxu0 %v1373
    %6082 = vmatpush2.bf16.msra.mxu0 %v1372
    %6083 = vmatprep.mubr.bf16.mxu0 %v5572
    %6084 = vmatmul.mubr.bf16.gmra.mxu0 %v5571
    %v6085 = vpop.f32.mrf.mxu0
    %v6086 = vadd.f32 0.0, %v6085
    %v6087 = vpop.f32.mrf.mxu0
    %v6088 = vadd.f32 0.0, %v6087
    %v6089 = vpop.f32.mrf.mxu0
    %v6090 = vpop.f32.mrf.mxu0
    %6091 = vdwg.mxu0
    %6092 = vmatprep.subr.bf16.mxu0 %v1367
    %6093 = vmatpush1.bf16.msra.mxu0 %v1366
    %6094 = vmatprep.subr.bf16.mxu0 %v1359
    %6095 = vmatpush1.bf16.msra.mxu0 %v1358
    %6096 = vmatprep.subr.bf16.mxu0 %v1351
    %6097 = vmatpush1.bf16.msra.mxu0 %v1350
    %6098 = vmatprep.subr.bf16.mxu0 %v1343
    %6099 = vmatpush1.bf16.msra.mxu0 %v1342
    %6100 = vmatprep.subr.bf16.mxu0 %v1335
    %6101 = vmatpush1.bf16.msra.mxu0 %v1334
    %6102 = vmatprep.subr.bf16.mxu0 %v1327
    %6103 = vmatpush1.bf16.msra.mxu0 %v1326
    %6104 = vmatprep.subr.bf16.mxu0 %v1319
    %6105 = vmatpush1.bf16.msra.mxu0 %v1318
    %6106 = vmatprep.subr.bf16.mxu0 %v1311
    %6107 = vmatpush1.bf16.msra.mxu0 %v1310
    %6108 = vmatprep.subr.bf16.mxu0 %v1431
    %6109 = vmatpush2.bf16.msra.mxu0 %v1430
    %6110 = vmatprep.subr.bf16.mxu0 %v1423
    %6111 = vmatpush2.bf16.msra.mxu0 %v1422
    %6112 = vmatprep.subr.bf16.mxu0 %v1415
    %6113 = vmatpush2.bf16.msra.mxu0 %v1414
    %6114 = vmatprep.subr.bf16.mxu0 %v1407
    %6115 = vmatpush2.bf16.msra.mxu0 %v1406
    %6116 = vmatprep.subr.bf16.mxu0 %v1399
    %6117 = vmatpush2.bf16.msra.mxu0 %v1398
    %6118 = vmatprep.subr.bf16.mxu0 %v1391
    %6119 = vmatpush2.bf16.msra.mxu0 %v1390
    %6120 = vmatprep.subr.bf16.mxu0 %v1383
    %6121 = vmatpush2.bf16.msra.mxu0 %v1382
    %6122 = vmatprep.subr.bf16.mxu0 %v1375
    %6123 = vmatpush2.bf16.msra.mxu0 %v1374
    %6124 = vmatprep.mubr.bf16.mxu0 %v5572
    %6125 = vmatmul.mubr.bf16.gmra.mxu0 %v5571
    %v6126 = vpop.f32.mrf.mxu0
    %v6127 = vadd.f32 0.0, %v6126
    %v6128 = vpop.f32.mrf.mxu0
    %v6129 = vadd.f32 0.0, %v6128
    %v6130 = vpop.f32.mrf.mxu0
    %v6131 = vpop.f32.mrf.mxu0
    %6132 = vdwg.mxu0
    %v6133 = vadd.f32 %v5961, %v6004
    %v6134 = vadd.f32 %v5962, %v6006
    %v6135 = vadd.f32 %v5963, %v6045
    %v6136 = vadd.f32 %v5964, %v6047
    %v6137 = vadd.f32 %v5965, %v6086
    %v6138 = vadd.f32 %v5966, %v6088
    %v6139 = vadd.f32 %v5967, %v6127
    %v6140 = vadd.f32 %v5968, %v6129
    %v6141 = vxor.u32 %v6133, 2147483648
    %v6142 = vxor.u32 %v6134, 2147483648
    %v6143 = vmul.f32 %v6141, 1.442695
    %v6144 = vpow.pop %v6143
    %v6145 = vmul.f32 %v6142, 1.442695
    %v6146 = vpow.pop %v6145
    %v6147 = vadd.f32 %v6144, 1.0
    %v6148 = vadd.f32 %v6146, 1.0
    %v6149 = vrcp.pop %v6147
    %v6150 = vmul.f32 1.0, %v6149
    %v6151 = vrcp.pop %v6148
    %v6152 = vmul.f32 1.0, %v6151
    %v6153 = vxor.u32 %v6135, 2147483648
    %v6154 = vxor.u32 %v6136, 2147483648
    %v6155 = vmul.f32 %v6153, 1.442695
    %v6156 = vpow.pop %v6155
    %v6157 = vmul.f32 %v6154, 1.442695
    %v6158 = vpow.pop %v6157
    %v6159 = vadd.f32 %v6156, 1.0
    %v6160 = vadd.f32 %v6158, 1.0
    %v6161 = vrcp.pop %v6159
    %v6162 = vmul.f32 1.0, %v6161
    %v6163 = vrcp.pop %v6160
    %v6164 = vmul.f32 1.0, %v6163
    %v6165 = vtanh.pop %v6137
    %v6166 = vtanh.pop %v6138
    %v6167 = vxor.u32 %v6139, 2147483648
    %v6168 = vxor.u32 %v6140, 2147483648
    %v6169 = vmul.f32 %v6167, 1.442695
    %v6170 = vpow.pop %v6169
    %v6171 = vmul.f32 %v6168, 1.442695
    %v6172 = vpow.pop %v6171
    %v6173 = vadd.f32 %v6170, 1.0
    %v6174 = vadd.f32 %v6172, 1.0
    %v6175 = vrcp.pop %v6173
    %v6176 = vmul.f32 1.0, %v6175
    %v6177 = vrcp.pop %v6174
    %v6178 = vmul.f32 1.0, %v6177
    %v6179 = vmul.f32 %v6162, %v5565
    %v6180 = vmul.f32 %v6164, %v5566
    %v6181 = vmul.f32 %v6150, %v6165
    %v6182 = vmul.f32 %v6152, %v6166
    %v6183 = vadd.f32 %v6179, %v6181
    %v6184 = vadd.f32 %v6180, %v6182
    %v6185 = vtanh.pop %v6183
    %v6186 = vtanh.pop %v6184
    %v6187 = vmul.f32 %v6176, %v6185
    %v6188 = vmul.f32 %v6178, %v6186
    %v6189 = vpack.c.bf16 %v6187, %v6187
    %v6190 = vpack.c.bf16 %v6188, %v6188
    %6191 = vmatprep.subr.bf16.mxu0 %v2264
    %6192 = vmatpush1.bf16.msra.mxu0 %v2263
    %6193 = vmatprep.subr.bf16.mxu0 %v2256
    %6194 = vmatpush1.bf16.msra.mxu0 %v2255
    %6195 = vmatprep.subr.bf16.mxu0 %v2248
    %6196 = vmatpush1.bf16.msra.mxu0 %v2247
    %6197 = vmatprep.subr.bf16.mxu0 %v2240
    %6198 = vmatpush1.bf16.msra.mxu0 %v2239
    %6199 = vmatprep.subr.bf16.mxu0 %v2232
    %6200 = vmatpush1.bf16.msra.mxu0 %v2231
    %6201 = vmatprep.subr.bf16.mxu0 %v2224
    %6202 = vmatpush1.bf16.msra.mxu0 %v2223
    %6203 = vmatprep.subr.bf16.mxu0 %v2216
    %6204 = vmatpush1.bf16.msra.mxu0 %v2215
    %6205 = vmatprep.subr.bf16.mxu0 %v2208
    %6206 = vmatpush1.bf16.msra.mxu0 %v2207
    %6207 = vmatprep.subr.bf16.mxu0 %v2328
    %6208 = vmatpush2.bf16.msra.mxu0 %v2327
    %6209 = vmatprep.subr.bf16.mxu0 %v2320
    %6210 = vmatpush2.bf16.msra.mxu0 %v2319
    %6211 = vmatprep.subr.bf16.mxu0 %v2312
    %6212 = vmatpush2.bf16.msra.mxu0 %v2311
    %6213 = vmatprep.subr.bf16.mxu0 %v2304
    %6214 = vmatpush2.bf16.msra.mxu0 %v2303
    %6215 = vmatprep.subr.bf16.mxu0 %v2296
    %6216 = vmatpush2.bf16.msra.mxu0 %v2295
    %6217 = vmatprep.subr.bf16.mxu0 %v2288
    %6218 = vmatpush2.bf16.msra.mxu0 %v2287
    %6219 = vmatprep.subr.bf16.mxu0 %v2280
    %6220 = vmatpush2.bf16.msra.mxu0 %v2279
    %6221 = vmatprep.subr.bf16.mxu0 %v2272
    %6222 = vmatpush2.bf16.msra.mxu0 %v2271
    %6223 = vmatprep.mubr.bf16.mxu0 %v6190
    %6224 = vmatmul.mubr.bf16.gmra.mxu0 %v6189
    %v6225 = vpop.f32.mrf.mxu0
    %v6226 = vadd.f32 %v1786, %v6225
    %v6227 = vpop.f32.mrf.mxu0
    %v6228 = vadd.f32 %v1790, %v6227
    %v6229 = vpop.f32.mrf.mxu0
    %v6230 = vpop.f32.mrf.mxu0
    %6231 = vdwg.mxu0
    %6232 = vmatprep.subr.bf16.mxu0 %v2266
    %6233 = vmatpush1.bf16.msra.mxu0 %v2265
    %6234 = vmatprep.subr.bf16.mxu0 %v2258
    %6235 = vmatpush1.bf16.msra.mxu0 %v2257
    %6236 = vmatprep.subr.bf16.mxu0 %v2250
    %6237 = vmatpush1.bf16.msra.mxu0 %v2249
    %6238 = vmatprep.subr.bf16.mxu0 %v2242
    %6239 = vmatpush1.bf16.msra.mxu0 %v2241
    %6240 = vmatprep.subr.bf16.mxu0 %v2234
    %6241 = vmatpush1.bf16.msra.mxu0 %v2233
    %6242 = vmatprep.subr.bf16.mxu0 %v2226
    %6243 = vmatpush1.bf16.msra.mxu0 %v2225
    %6244 = vmatprep.subr.bf16.mxu0 %v2218
    %6245 = vmatpush1.bf16.msra.mxu0 %v2217
    %6246 = vmatprep.subr.bf16.mxu0 %v2210
    %6247 = vmatpush1.bf16.msra.mxu0 %v2209
    %6248 = vmatprep.subr.bf16.mxu0 %v2330
    %6249 = vmatpush2.bf16.msra.mxu0 %v2329
    %6250 = vmatprep.subr.bf16.mxu0 %v2322
    %6251 = vmatpush2.bf16.msra.mxu0 %v2321
    %6252 = vmatprep.subr.bf16.mxu0 %v2314
    %6253 = vmatpush2.bf16.msra.mxu0 %v2313
    %6254 = vmatprep.subr.bf16.mxu0 %v2306
    %6255 = vmatpush2.bf16.msra.mxu0 %v2305
    %6256 = vmatprep.subr.bf16.mxu0 %v2298
    %6257 = vmatpush2.bf16.msra.mxu0 %v2297
    %6258 = vmatprep.subr.bf16.mxu0 %v2290
    %6259 = vmatpush2.bf16.msra.mxu0 %v2289
    %6260 = vmatprep.subr.bf16.mxu0 %v2282
    %6261 = vmatpush2.bf16.msra.mxu0 %v2281
    %6262 = vmatprep.subr.bf16.mxu0 %v2274
    %6263 = vmatpush2.bf16.msra.mxu0 %v2273
    %6264 = vmatprep.mubr.bf16.mxu0 %v6190
    %6265 = vmatmul.mubr.bf16.gmra.mxu0 %v6189
    %v6266 = vpop.f32.mrf.mxu0
    %v6267 = vadd.f32 %v1794, %v6266
    %v6268 = vpop.f32.mrf.mxu0
    %v6269 = vadd.f32 %v1798, %v6268
    %v6270 = vpop.f32.mrf.mxu0
    %v6271 = vpop.f32.mrf.mxu0
    %6272 = vdwg.mxu0
    %6273 = vmatprep.subr.bf16.mxu0 %v2268
    %6274 = vmatpush1.bf16.msra.mxu0 %v2267
    %6275 = vmatprep.subr.bf16.mxu0 %v2260
    %6276 = vmatpush1.bf16.msra.mxu0 %v2259
    %6277 = vmatprep.subr.bf16.mxu0 %v2252
    %6278 = vmatpush1.bf16.msra.mxu0 %v2251
    %6279 = vmatprep.subr.bf16.mxu0 %v2244
    %6280 = vmatpush1.bf16.msra.mxu0 %v2243
    %6281 = vmatprep.subr.bf16.mxu0 %v2236
    %6282 = vmatpush1.bf16.msra.mxu0 %v2235
    %6283 = vmatprep.subr.bf16.mxu0 %v2228
    %6284 = vmatpush1.bf16.msra.mxu0 %v2227
    %6285 = vmatprep.subr.bf16.mxu0 %v2220
    %6286 = vmatpush1.bf16.msra.mxu0 %v2219
    %6287 = vmatprep.subr.bf16.mxu0 %v2212
    %6288 = vmatpush1.bf16.msra.mxu0 %v2211
    %6289 = vmatprep.subr.bf16.mxu0 %v2332
    %6290 = vmatpush2.bf16.msra.mxu0 %v2331
    %6291 = vmatprep.subr.bf16.mxu0 %v2324
    %6292 = vmatpush2.bf16.msra.mxu0 %v2323
    %6293 = vmatprep.subr.bf16.mxu0 %v2316
    %6294 = vmatpush2.bf16.msra.mxu0 %v2315
    %6295 = vmatprep.subr.bf16.mxu0 %v2308
    %6296 = vmatpush2.bf16.msra.mxu0 %v2307
    %6297 = vmatprep.subr.bf16.mxu0 %v2300
    %6298 = vmatpush2.bf16.msra.mxu0 %v2299
    %6299 = vmatprep.subr.bf16.mxu0 %v2292
    %6300 = vmatpush2.bf16.msra.mxu0 %v2291
    %6301 = vmatprep.subr.bf16.mxu0 %v2284
    %6302 = vmatpush2.bf16.msra.mxu0 %v2283
    %6303 = vmatprep.subr.bf16.mxu0 %v2276
    %6304 = vmatpush2.bf16.msra.mxu0 %v2275
    %6305 = vmatprep.mubr.bf16.mxu0 %v6190
    %6306 = vmatmul.mubr.bf16.gmra.mxu0 %v6189
    %v6307 = vpop.f32.mrf.mxu0
    %v6308 = vadd.f32 %v1802, %v6307
    %v6309 = vpop.f32.mrf.mxu0
    %v6310 = vadd.f32 %v1806, %v6309
    %v6311 = vpop.f32.mrf.mxu0
    %v6312 = vpop.f32.mrf.mxu0
    %6313 = vdwg.mxu0
    %6314 = vmatprep.subr.bf16.mxu0 %v2270
    %6315 = vmatpush1.bf16.msra.mxu0 %v2269
    %6316 = vmatprep.subr.bf16.mxu0 %v2262
    %6317 = vmatpush1.bf16.msra.mxu0 %v2261
    %6318 = vmatprep.subr.bf16.mxu0 %v2254
    %6319 = vmatpush1.bf16.msra.mxu0 %v2253
    %6320 = vmatprep.subr.bf16.mxu0 %v2246
    %6321 = vmatpush1.bf16.msra.mxu0 %v2245
    %6322 = vmatprep.subr.bf16.mxu0 %v2238
    %6323 = vmatpush1.bf16.msra.mxu0 %v2237
    %6324 = vmatprep.subr.bf16.mxu0 %v2230
    %6325 = vmatpush1.bf16.msra.mxu0 %v2229
    %6326 = vmatprep.subr.bf16.mxu0 %v2222
    %6327 = vmatpush1.bf16.msra.mxu0 %v2221
    %6328 = vmatprep.subr.bf16.mxu0 %v2214
    %6329 = vmatpush1.bf16.msra.mxu0 %v2213
    %6330 = vmatprep.subr.bf16.mxu0 %v2334
    %6331 = vmatpush2.bf16.msra.mxu0 %v2333
    %6332 = vmatprep.subr.bf16.mxu0 %v2326
    %6333 = vmatpush2.bf16.msra.mxu0 %v2325
    %6334 = vmatprep.subr.bf16.mxu0 %v2318
    %6335 = vmatpush2.bf16.msra.mxu0 %v2317
    %6336 = vmatprep.subr.bf16.mxu0 %v2310
    %6337 = vmatpush2.bf16.msra.mxu0 %v2309
    %6338 = vmatprep.subr.bf16.mxu0 %v2302
    %6339 = vmatpush2.bf16.msra.mxu0 %v2301
    %6340 = vmatprep.subr.bf16.mxu0 %v2294
    %6341 = vmatpush2.bf16.msra.mxu0 %v2293
    %6342 = vmatprep.subr.bf16.mxu0 %v2286
    %6343 = vmatpush2.bf16.msra.mxu0 %v2285
    %6344 = vmatprep.subr.bf16.mxu0 %v2278
    %6345 = vmatpush2.bf16.msra.mxu0 %v2277
    %6346 = vmatprep.mubr.bf16.mxu0 %v6190
    %6347 = vmatmul.mubr.bf16.gmra.mxu0 %v6189
    %v6348 = vpop.f32.mrf.mxu0
    %v6349 = vadd.f32 %v1810, %v6348
    %v6350 = vpop.f32.mrf.mxu0
    %v6351 = vadd.f32 %v1814, %v6350
    %v6352 = vpop.f32.mrf.mxu0
    %v6353 = vpop.f32.mrf.mxu0
    %6354 = vdwg.mxu0
    %v6355 = vpack.c.bf16 %v5957, %v5957
    %v6356 = vpack.c.bf16 %v5958, %v5958
    %6357 = vmatprep.subr.bf16.mxu0 %v3068
    %6358 = vmatpush1.bf16.msra.mxu0 %v3067
    %6359 = vmatprep.subr.bf16.mxu0 %v3060
    %6360 = vmatpush1.bf16.msra.mxu0 %v3059
    %6361 = vmatprep.subr.bf16.mxu0 %v3052
    %6362 = vmatpush1.bf16.msra.mxu0 %v3051
    %6363 = vmatprep.subr.bf16.mxu0 %v3044
    %6364 = vmatpush1.bf16.msra.mxu0 %v3043
    %6365 = vmatprep.subr.bf16.mxu0 %v3036
    %6366 = vmatpush1.bf16.msra.mxu0 %v3035
    %6367 = vmatprep.subr.bf16.mxu0 %v3028
    %6368 = vmatpush1.bf16.msra.mxu0 %v3027
    %6369 = vmatprep.subr.bf16.mxu0 %v3020
    %6370 = vmatpush1.bf16.msra.mxu0 %v3019
    %6371 = vmatprep.subr.bf16.mxu0 %v3012
    %6372 = vmatpush1.bf16.msra.mxu0 %v3011
    %6373 = vmatprep.subr.bf16.mxu0 %v3132
    %6374 = vmatpush2.bf16.msra.mxu0 %v3131
    %6375 = vmatprep.subr.bf16.mxu0 %v3124
    %6376 = vmatpush2.bf16.msra.mxu0 %v3123
    %6377 = vmatprep.subr.bf16.mxu0 %v3116
    %6378 = vmatpush2.bf16.msra.mxu0 %v3115
    %6379 = vmatprep.subr.bf16.mxu0 %v3108
    %6380 = vmatpush2.bf16.msra.mxu0 %v3107
    %6381 = vmatprep.subr.bf16.mxu0 %v3100
    %6382 = vmatpush2.bf16.msra.mxu0 %v3099
    %6383 = vmatprep.subr.bf16.mxu0 %v3092
    %6384 = vmatpush2.bf16.msra.mxu0 %v3091
    %6385 = vmatprep.subr.bf16.mxu0 %v3084
    %6386 = vmatpush2.bf16.msra.mxu0 %v3083
    %6387 = vmatprep.subr.bf16.mxu0 %v3076
    %6388 = vmatpush2.bf16.msra.mxu0 %v3075
    %6389 = vmatprep.mubr.bf16.mxu0 %v6356
    %6390 = vmatmul.mubr.bf16.gmra.mxu0 %v6355
    %v6391 = vpop.f32.mrf.mxu0
    %v6392 = vadd.f32 0.0, %v6391
    %v6393 = vpop.f32.mrf.mxu0
    %v6394 = vadd.f32 0.0, %v6393
    %v6395 = vpop.f32.mrf.mxu0
    %v6396 = vpop.f32.mrf.mxu0
    %6397 = vdwg.mxu0
    %6398 = vmatprep.subr.bf16.mxu0 %v3070
    %6399 = vmatpush1.bf16.msra.mxu0 %v3069
    %6400 = vmatprep.subr.bf16.mxu0 %v3062
    %6401 = vmatpush1.bf16.msra.mxu0 %v3061
    %6402 = vmatprep.subr.bf16.mxu0 %v3054
    %6403 = vmatpush1.bf16.msra.mxu0 %v3053
    %6404 = vmatprep.subr.bf16.mxu0 %v3046
    %6405 = vmatpush1.bf16.msra.mxu0 %v3045
    %6406 = vmatprep.subr.bf16.mxu0 %v3038
    %6407 = vmatpush1.bf16.msra.mxu0 %v3037
    %6408 = vmatprep.subr.bf16.mxu0 %v3030
    %6409 = vmatpush1.bf16.msra.mxu0 %v3029
    %6410 = vmatprep.subr.bf16.mxu0 %v3022
    %6411 = vmatpush1.bf16.msra.mxu0 %v3021
    %6412 = vmatprep.subr.bf16.mxu0 %v3014
    %6413 = vmatpush1.bf16.msra.mxu0 %v3013
    %6414 = vmatprep.subr.bf16.mxu0 %v3134
    %6415 = vmatpush2.bf16.msra.mxu0 %v3133
    %6416 = vmatprep.subr.bf16.mxu0 %v3126
    %6417 = vmatpush2.bf16.msra.mxu0 %v3125
    %6418 = vmatprep.subr.bf16.mxu0 %v3118
    %6419 = vmatpush2.bf16.msra.mxu0 %v3117
    %6420 = vmatprep.subr.bf16.mxu0 %v3110
    %6421 = vmatpush2.bf16.msra.mxu0 %v3109
    %6422 = vmatprep.subr.bf16.mxu0 %v3102
    %6423 = vmatpush2.bf16.msra.mxu0 %v3101
    %6424 = vmatprep.subr.bf16.mxu0 %v3094
    %6425 = vmatpush2.bf16.msra.mxu0 %v3093
    %6426 = vmatprep.subr.bf16.mxu0 %v3086
    %6427 = vmatpush2.bf16.msra.mxu0 %v3085
    %6428 = vmatprep.subr.bf16.mxu0 %v3078
    %6429 = vmatpush2.bf16.msra.mxu0 %v3077
    %6430 = vmatprep.mubr.bf16.mxu0 %v6356
    %6431 = vmatmul.mubr.bf16.gmra.mxu0 %v6355
    %v6432 = vpop.f32.mrf.mxu0
    %v6433 = vadd.f32 0.0, %v6432
    %v6434 = vpop.f32.mrf.mxu0
    %v6435 = vadd.f32 0.0, %v6434
    %v6436 = vpop.f32.mrf.mxu0
    %v6437 = vpop.f32.mrf.mxu0
    %6438 = vdwg.mxu0
    %6439 = vmatprep.subr.bf16.mxu0 %v3072
    %6440 = vmatpush1.bf16.msra.mxu0 %v3071
    %6441 = vmatprep.subr.bf16.mxu0 %v3064
    %6442 = vmatpush1.bf16.msra.mxu0 %v3063
    %6443 = vmatprep.subr.bf16.mxu0 %v3056
    %6444 = vmatpush1.bf16.msra.mxu0 %v3055
    %6445 = vmatprep.subr.bf16.mxu0 %v3048
    %6446 = vmatpush1.bf16.msra.mxu0 %v3047
    %6447 = vmatprep.subr.bf16.mxu0 %v3040
    %6448 = vmatpush1.bf16.msra.mxu0 %v3039
    %6449 = vmatprep.subr.bf16.mxu0 %v3032
    %6450 = vmatpush1.bf16.msra.mxu0 %v3031
    %6451 = vmatprep.subr.bf16.mxu0 %v3024
    %6452 = vmatpush1.bf16.msra.mxu0 %v3023
    %6453 = vmatprep.subr.bf16.mxu0 %v3016
    %6454 = vmatpush1.bf16.msra.mxu0 %v3015
    %6455 = vmatprep.subr.bf16.mxu0 %v3136
    %6456 = vmatpush2.bf16.msra.mxu0 %v3135
    %6457 = vmatprep.subr.bf16.mxu0 %v3128
    %6458 = vmatpush2.bf16.msra.mxu0 %v3127
    %6459 = vmatprep.subr.bf16.mxu0 %v3120
    %6460 = vmatpush2.bf16.msra.mxu0 %v3119
    %6461 = vmatprep.subr.bf16.mxu0 %v3112
    %6462 = vmatpush2.bf16.msra.mxu0 %v3111
    %6463 = vmatprep.subr.bf16.mxu0 %v3104
    %6464 = vmatpush2.bf16.msra.mxu0 %v3103
    %6465 = vmatprep.subr.bf16.mxu0 %v3096
    %6466 = vmatpush2.bf16.msra.mxu0 %v3095
    %6467 = vmatprep.subr.bf16.mxu0 %v3088
    %6468 = vmatpush2.bf16.msra.mxu0 %v3087
    %6469 = vmatprep.subr.bf16.mxu0 %v3080
    %6470 = vmatpush2.bf16.msra.mxu0 %v3079
    %6471 = vmatprep.mubr.bf16.mxu0 %v6356
    %6472 = vmatmul.mubr.bf16.gmra.mxu0 %v6355
    %v6473 = vpop.f32.mrf.mxu0
    %v6474 = vadd.f32 0.0, %v6473
    %v6475 = vpop.f32.mrf.mxu0
    %v6476 = vadd.f32 0.0, %v6475
    %v6477 = vpop.f32.mrf.mxu0
    %v6478 = vpop.f32.mrf.mxu0
    %6479 = vdwg.mxu0
    %6480 = vmatprep.subr.bf16.mxu0 %v3074
    %6481 = vmatpush1.bf16.msra.mxu0 %v3073
    %6482 = vmatprep.subr.bf16.mxu0 %v3066
    %6483 = vmatpush1.bf16.msra.mxu0 %v3065
    %6484 = vmatprep.subr.bf16.mxu0 %v3058
    %6485 = vmatpush1.bf16.msra.mxu0 %v3057
    %6486 = vmatprep.subr.bf16.mxu0 %v3050
    %6487 = vmatpush1.bf16.msra.mxu0 %v3049
    %6488 = vmatprep.subr.bf16.mxu0 %v3042
    %6489 = vmatpush1.bf16.msra.mxu0 %v3041
    %6490 = vmatprep.subr.bf16.mxu0 %v3034
    %6491 = vmatpush1.bf16.msra.mxu0 %v3033
    %6492 = vmatprep.subr.bf16.mxu0 %v3026
    %6493 = vmatpush1.bf16.msra.mxu0 %v3025
    %6494 = vmatprep.subr.bf16.mxu0 %v3018
    %6495 = vmatpush1.bf16.msra.mxu0 %v3017
    %6496 = vmatprep.subr.bf16.mxu0 %v3138
    %6497 = vmatpush2.bf16.msra.mxu0 %v3137
    %6498 = vmatprep.subr.bf16.mxu0 %v3130
    %6499 = vmatpush2.bf16.msra.mxu0 %v3129
    %6500 = vmatprep.subr.bf16.mxu0 %v3122
    %6501 = vmatpush2.bf16.msra.mxu0 %v3121
    %6502 = vmatprep.subr.bf16.mxu0 %v3114
    %6503 = vmatpush2.bf16.msra.mxu0 %v3113
    %6504 = vmatprep.subr.bf16.mxu0 %v3106
    %6505 = vmatpush2.bf16.msra.mxu0 %v3105
    %6506 = vmatprep.subr.bf16.mxu0 %v3098
    %6507 = vmatpush2.bf16.msra.mxu0 %v3097
    %6508 = vmatprep.subr.bf16.mxu0 %v3090
    %6509 = vmatpush2.bf16.msra.mxu0 %v3089
    %6510 = vmatprep.subr.bf16.mxu0 %v3082
    %6511 = vmatpush2.bf16.msra.mxu0 %v3081
    %6512 = vmatprep.mubr.bf16.mxu0 %v6356
    %6513 = vmatmul.mubr.bf16.gmra.mxu0 %v6355
    %v6514 = vpop.f32.mrf.mxu0
    %v6515 = vadd.f32 0.0, %v6514
    %v6516 = vpop.f32.mrf.mxu0
    %v6517 = vadd.f32 0.0, %v6516
    %v6518 = vpop.f32.mrf.mxu0
    %v6519 = vpop.f32.mrf.mxu0
    %6520 = vdwg.mxu0
    %v6521 = vadd.f32 %v6226, %v6392
    %v6522 = vadd.f32 %v6228, %v6394
    %v6523 = vadd.f32 %v6267, %v6433
    %v6524 = vadd.f32 %v6269, %v6435
    %v6525 = vadd.f32 %v6308, %v6474
    %v6526 = vadd.f32 %v6310, %v6476
    %v6527 = vadd.f32 %v6349, %v6515
    %v6528 = vadd.f32 %v6351, %v6517
    %v6529 = vxor.u32 %v6521, 2147483648
    %v6530 = vxor.u32 %v6522, 2147483648
    %v6531 = vmul.f32 %v6529, 1.442695
    %v6532 = vpow.pop %v6531
    %v6533 = vmul.f32 %v6530, 1.442695
    %v6534 = vpow.pop %v6533
    %v6535 = vadd.f32 %v6532, 1.0
    %v6536 = vadd.f32 %v6534, 1.0
    %v6537 = vrcp.pop %v6535
    %v6538 = vmul.f32 1.0, %v6537
    %v6539 = vrcp.pop %v6536
    %v6540 = vmul.f32 1.0, %v6539
    %v6541 = vxor.u32 %v6523, 2147483648
    %v6542 = vxor.u32 %v6524, 2147483648
    %v6543 = vmul.f32 %v6541, 1.442695
    %v6544 = vpow.pop %v6543
    %v6545 = vmul.f32 %v6542, 1.442695
    %v6546 = vpow.pop %v6545
    %v6547 = vadd.f32 %v6544, 1.0
    %v6548 = vadd.f32 %v6546, 1.0
    %v6549 = vrcp.pop %v6547
    %v6550 = vmul.f32 1.0, %v6549
    %v6551 = vrcp.pop %v6548
    %v6552 = vmul.f32 1.0, %v6551
    %v6553 = vtanh.pop %v6525
    %v6554 = vtanh.pop %v6526
    %v6555 = vxor.u32 %v6527, 2147483648
    %v6556 = vxor.u32 %v6528, 2147483648
    %v6557 = vmul.f32 %v6555, 1.442695
    %v6558 = vpow.pop %v6557
    %v6559 = vmul.f32 %v6556, 1.442695
    %v6560 = vpow.pop %v6559
    %v6561 = vadd.f32 %v6558, 1.0
    %v6562 = vadd.f32 %v6560, 1.0
    %v6563 = vrcp.pop %v6561
    %v6564 = vmul.f32 1.0, %v6563
    %v6565 = vrcp.pop %v6562
    %v6566 = vmul.f32 1.0, %v6565
    %v6567 = vmul.f32 %v6550, %v5953
    %v6568 = vmul.f32 %v6552, %v5954
    %v6569 = vmul.f32 %v6538, %v6553
    %v6570 = vmul.f32 %v6540, %v6554
    %v6571 = vadd.f32 %v6567, %v6569
    %v6572 = vadd.f32 %v6568, %v6570
    %v6573 = vtanh.pop %v6571
    %v6574 = vtanh.pop %v6572
    %v6575 = vmul.f32 %v6564, %v6573
    %v6576 = vmul.f32 %v6566, %v6574
    %6577 = vst [vmem:[%s7 + $0x50] sm:$0xff] %v6575
    %6578 = vst [vmem:[%s7 + $0x58] sm:$0xff] %v6576
    %v6579 = vld [vmem:[#allocation2 + $0x180] sm:$0xff]
    %v6580 = vld [vmem:[#allocation2 + $0x188] sm:$0xff]
    %v6581 = vld [vmem:[#allocation2 + $0x190] sm:$0xff]
    %v6582 = vld [vmem:[#allocation2 + $0x198] sm:$0xff]
    %v6583 = vld [vmem:[#allocation2 + $0x1a0] sm:$0xff]
    %v6584 = vld [vmem:[#allocation2 + $0x1a8] sm:$0xff]
    %v6585 = vld [vmem:[#allocation2 + $0x1b0] sm:$0xff]
    %v6586 = vld [vmem:[#allocation2 + $0x1b8] sm:$0xff]
    %6587 = vmatprep.subr.bf16.mxu0 %v1361
    %6588 = vmatpush1.bf16.msra.mxu0 %v1360
    %6589 = vmatprep.subr.bf16.mxu0 %v1353
    %6590 = vmatpush1.bf16.msra.mxu0 %v1352
    %6591 = vmatprep.subr.bf16.mxu0 %v1345
    %6592 = vmatpush1.bf16.msra.mxu0 %v1344
    %6593 = vmatprep.subr.bf16.mxu0 %v1337
    %6594 = vmatpush1.bf16.msra.mxu0 %v1336
    %6595 = vmatprep.subr.bf16.mxu0 %v1329
    %6596 = vmatpush1.bf16.msra.mxu0 %v1328
    %6597 = vmatprep.subr.bf16.mxu0 %v1321
    %6598 = vmatpush1.bf16.msra.mxu0 %v1320
    %6599 = vmatprep.subr.bf16.mxu0 %v1313
    %6600 = vmatpush1.bf16.msra.mxu0 %v1312
    %6601 = vmatprep.subr.bf16.mxu0 %v1305
    %6602 = vmatpush1.bf16.msra.mxu0 %v1304
    %6603 = vmatprep.subr.bf16.mxu0 %v1425
    %6604 = vmatpush2.bf16.msra.mxu0 %v1424
    %6605 = vmatprep.subr.bf16.mxu0 %v1417
    %6606 = vmatpush2.bf16.msra.mxu0 %v1416
    %6607 = vmatprep.subr.bf16.mxu0 %v1409
    %6608 = vmatpush2.bf16.msra.mxu0 %v1408
    %6609 = vmatprep.subr.bf16.mxu0 %v1401
    %6610 = vmatpush2.bf16.msra.mxu0 %v1400
    %6611 = vmatprep.subr.bf16.mxu0 %v1393
    %6612 = vmatpush2.bf16.msra.mxu0 %v1392
    %6613 = vmatprep.subr.bf16.mxu0 %v1385
    %6614 = vmatpush2.bf16.msra.mxu0 %v1384
    %6615 = vmatprep.subr.bf16.mxu0 %v1377
    %6616 = vmatpush2.bf16.msra.mxu0 %v1376
    %6617 = vmatprep.subr.bf16.mxu0 %v1369
    %6618 = vmatpush2.bf16.msra.mxu0 %v1368
    %6619 = vmatprep.mubr.bf16.mxu0 %v6190
    %6620 = vmatmul.mubr.bf16.gmra.mxu0 %v6189
    %v6621 = vpop.f32.mrf.mxu0
    %v6622 = vadd.f32 0.0, %v6621
    %v6623 = vpop.f32.mrf.mxu0
    %v6624 = vadd.f32 0.0, %v6623
    %v6625 = vpop.f32.mrf.mxu0
    %v6626 = vpop.f32.mrf.mxu0
    %6627 = vdwg.mxu0
    %6628 = vmatprep.subr.bf16.mxu0 %v1363
    %6629 = vmatpush1.bf16.msra.mxu0 %v1362
    %6630 = vmatprep.subr.bf16.mxu0 %v1355
    %6631 = vmatpush1.bf16.msra.mxu0 %v1354
    %6632 = vmatprep.subr.bf16.mxu0 %v1347
    %6633 = vmatpush1.bf16.msra.mxu0 %v1346
    %6634 = vmatprep.subr.bf16.mxu0 %v1339
    %6635 = vmatpush1.bf16.msra.mxu0 %v1338
    %6636 = vmatprep.subr.bf16.mxu0 %v1331
    %6637 = vmatpush1.bf16.msra.mxu0 %v1330
    %6638 = vmatprep.subr.bf16.mxu0 %v1323
    %6639 = vmatpush1.bf16.msra.mxu0 %v1322
    %6640 = vmatprep.subr.bf16.mxu0 %v1315
    %6641 = vmatpush1.bf16.msra.mxu0 %v1314
    %6642 = vmatprep.subr.bf16.mxu0 %v1307
    %6643 = vmatpush1.bf16.msra.mxu0 %v1306
    %6644 = vmatprep.subr.bf16.mxu0 %v1427
    %6645 = vmatpush2.bf16.msra.mxu0 %v1426
    %6646 = vmatprep.subr.bf16.mxu0 %v1419
    %6647 = vmatpush2.bf16.msra.mxu0 %v1418
    %6648 = vmatprep.subr.bf16.mxu0 %v1411
    %6649 = vmatpush2.bf16.msra.mxu0 %v1410
    %6650 = vmatprep.subr.bf16.mxu0 %v1403
    %6651 = vmatpush2.bf16.msra.mxu0 %v1402
    %6652 = vmatprep.subr.bf16.mxu0 %v1395
    %6653 = vmatpush2.bf16.msra.mxu0 %v1394
    %6654 = vmatprep.subr.bf16.mxu0 %v1387
    %6655 = vmatpush2.bf16.msra.mxu0 %v1386
    %6656 = vmatprep.subr.bf16.mxu0 %v1379
    %6657 = vmatpush2.bf16.msra.mxu0 %v1378
    %6658 = vmatprep.subr.bf16.mxu0 %v1371
    %6659 = vmatpush2.bf16.msra.mxu0 %v1370
    %6660 = vmatprep.mubr.bf16.mxu0 %v6190
    %6661 = vmatmul.mubr.bf16.gmra.mxu0 %v6189
    %v6662 = vpop.f32.mrf.mxu0
    %v6663 = vadd.f32 0.0, %v6662
    %v6664 = vpop.f32.mrf.mxu0
    %v6665 = vadd.f32 0.0, %v6664
    %v6666 = vpop.f32.mrf.mxu0
    %v6667 = vpop.f32.mrf.mxu0
    %6668 = vdwg.mxu0
    %6669 = vmatprep.subr.bf16.mxu0 %v1365
    %6670 = vmatpush1.bf16.msra.mxu0 %v1364
    %6671 = vmatprep.subr.bf16.mxu0 %v1357
    %6672 = vmatpush1.bf16.msra.mxu0 %v1356
    %6673 = vmatprep.subr.bf16.mxu0 %v1349
    %6674 = vmatpush1.bf16.msra.mxu0 %v1348
    %6675 = vmatprep.subr.bf16.mxu0 %v1341
    %6676 = vmatpush1.bf16.msra.mxu0 %v1340
    %6677 = vmatprep.subr.bf16.mxu0 %v1333
    %6678 = vmatpush1.bf16.msra.mxu0 %v1332
    %6679 = vmatprep.subr.bf16.mxu0 %v1325
    %6680 = vmatpush1.bf16.msra.mxu0 %v1324
    %6681 = vmatprep.subr.bf16.mxu0 %v1317
    %6682 = vmatpush1.bf16.msra.mxu0 %v1316
    %6683 = vmatprep.subr.bf16.mxu0 %v1309
    %6684 = vmatpush1.bf16.msra.mxu0 %v1308
    %6685 = vmatprep.subr.bf16.mxu0 %v1429
    %6686 = vmatpush2.bf16.msra.mxu0 %v1428
    %6687 = vmatprep.subr.bf16.mxu0 %v1421
    %6688 = vmatpush2.bf16.msra.mxu0 %v1420
    %6689 = vmatprep.subr.bf16.mxu0 %v1413
    %6690 = vmatpush2.bf16.msra.mxu0 %v1412
    %6691 = vmatprep.subr.bf16.mxu0 %v1405
    %6692 = vmatpush2.bf16.msra.mxu0 %v1404
    %6693 = vmatprep.subr.bf16.mxu0 %v1397
    %6694 = vmatpush2.bf16.msra.mxu0 %v1396
    %6695 = vmatprep.subr.bf16.mxu0 %v1389
    %6696 = vmatpush2.bf16.msra.mxu0 %v1388
    %6697 = vmatprep.subr.bf16.mxu0 %v1381
    %6698 = vmatpush2.bf16.msra.mxu0 %v1380
    %6699 = vmatprep.subr.bf16.mxu0 %v1373
    %6700 = vmatpush2.bf16.msra.mxu0 %v1372
    %6701 = vmatprep.mubr.bf16.mxu0 %v6190
    %6702 = vmatmul.mubr.bf16.gmra.mxu0 %v6189
    %v6703 = vpop.f32.mrf.mxu0
    %v6704 = vadd.f32 0.0, %v6703
    %v6705 = vpop.f32.mrf.mxu0
    %v6706 = vadd.f32 0.0, %v6705
    %v6707 = vpop.f32.mrf.mxu0
    %v6708 = vpop.f32.mrf.mxu0
    %6709 = vdwg.mxu0
    %6710 = vmatprep.subr.bf16.mxu0 %v1367
    %6711 = vmatpush1.bf16.msra.mxu0 %v1366
    %6712 = vmatprep.subr.bf16.mxu0 %v1359
    %6713 = vmatpush1.bf16.msra.mxu0 %v1358
    %6714 = vmatprep.subr.bf16.mxu0 %v1351
    %6715 = vmatpush1.bf16.msra.mxu0 %v1350
    %6716 = vmatprep.subr.bf16.mxu0 %v1343
    %6717 = vmatpush1.bf16.msra.mxu0 %v1342
    %6718 = vmatprep.subr.bf16.mxu0 %v1335
    %6719 = vmatpush1.bf16.msra.mxu0 %v1334
    %6720 = vmatprep.subr.bf16.mxu0 %v1327
    %6721 = vmatpush1.bf16.msra.mxu0 %v1326
    %6722 = vmatprep.subr.bf16.mxu0 %v1319
    %6723 = vmatpush1.bf16.msra.mxu0 %v1318
    %6724 = vmatprep.subr.bf16.mxu0 %v1311
    %6725 = vmatpush1.bf16.msra.mxu0 %v1310
    %6726 = vmatprep.subr.bf16.mxu0 %v1431
    %6727 = vmatpush2.bf16.msra.mxu0 %v1430
    %6728 = vmatprep.subr.bf16.mxu0 %v1423
    %6729 = vmatpush2.bf16.msra.mxu0 %v1422
    %6730 = vmatprep.subr.bf16.mxu0 %v1415
    %6731 = vmatpush2.bf16.msra.mxu0 %v1414
    %6732 = vmatprep.subr.bf16.mxu0 %v1407
    %6733 = vmatpush2.bf16.msra.mxu0 %v1406
    %6734 = vmatprep.subr.bf16.mxu0 %v1399
    %6735 = vmatpush2.bf16.msra.mxu0 %v1398
    %6736 = vmatprep.subr.bf16.mxu0 %v1391
    %6737 = vmatpush2.bf16.msra.mxu0 %v1390
    %6738 = vmatprep.subr.bf16.mxu0 %v1383
    %6739 = vmatpush2.bf16.msra.mxu0 %v1382
    %6740 = vmatprep.subr.bf16.mxu0 %v1375
    %6741 = vmatpush2.bf16.msra.mxu0 %v1374
    %6742 = vmatprep.mubr.bf16.mxu0 %v6190
    %6743 = vmatmul.mubr.bf16.gmra.mxu0 %v6189
    %v6744 = vpop.f32.mrf.mxu0
    %v6745 = vadd.f32 0.0, %v6744
    %v6746 = vpop.f32.mrf.mxu0
    %v6747 = vadd.f32 0.0, %v6746
    %v6748 = vpop.f32.mrf.mxu0
    %v6749 = vpop.f32.mrf.mxu0
    %6750 = vdwg.mxu0
    %v6751 = vadd.f32 %v6579, %v6622
    %v6752 = vadd.f32 %v6580, %v6624
    %v6753 = vadd.f32 %v6581, %v6663
    %v6754 = vadd.f32 %v6582, %v6665
    %v6755 = vadd.f32 %v6583, %v6704
    %v6756 = vadd.f32 %v6584, %v6706
    %v6757 = vadd.f32 %v6585, %v6745
    %v6758 = vadd.f32 %v6586, %v6747
    %v6759 = vxor.u32 %v6751, 2147483648
    %v6760 = vxor.u32 %v6752, 2147483648
    %v6761 = vmul.f32 %v6759, 1.442695
    %v6762 = vpow.pop %v6761
    %v6763 = vmul.f32 %v6760, 1.442695
    %v6764 = vpow.pop %v6763
    %v6765 = vadd.f32 %v6762, 1.0
    %v6766 = vadd.f32 %v6764, 1.0
    %v6767 = vrcp.pop %v6765
    %v6768 = vmul.f32 1.0, %v6767
    %v6769 = vrcp.pop %v6766
    %v6770 = vmul.f32 1.0, %v6769
    %v6771 = vxor.u32 %v6753, 2147483648
    %v6772 = vxor.u32 %v6754, 2147483648
    %v6773 = vmul.f32 %v6771, 1.442695
    %v6774 = vpow.pop %v6773
    %v6775 = vmul.f32 %v6772, 1.442695
    %v6776 = vpow.pop %v6775
    %v6777 = vadd.f32 %v6774, 1.0
    %v6778 = vadd.f32 %v6776, 1.0
    %v6779 = vrcp.pop %v6777
    %v6780 = vmul.f32 1.0, %v6779
    %v6781 = vrcp.pop %v6778
    %v6782 = vmul.f32 1.0, %v6781
    %v6783 = vtanh.pop %v6755
    %v6784 = vtanh.pop %v6756
    %v6785 = vxor.u32 %v6757, 2147483648
    %v6786 = vxor.u32 %v6758, 2147483648
    %v6787 = vmul.f32 %v6785, 1.442695
    %v6788 = vpow.pop %v6787
    %v6789 = vmul.f32 %v6786, 1.442695
    %v6790 = vpow.pop %v6789
    %v6791 = vadd.f32 %v6788, 1.0
    %v6792 = vadd.f32 %v6790, 1.0
    %v6793 = vrcp.pop %v6791
    %v6794 = vmul.f32 1.0, %v6793
    %v6795 = vrcp.pop %v6792
    %v6796 = vmul.f32 1.0, %v6795
    %v6797 = vmul.f32 %v6780, %v6183
    %v6798 = vmul.f32 %v6782, %v6184
    %v6799 = vmul.f32 %v6768, %v6783
    %v6800 = vmul.f32 %v6770, %v6784
    %v6801 = vadd.f32 %v6797, %v6799
    %v6802 = vadd.f32 %v6798, %v6800
    %v6803 = vtanh.pop %v6801
    %v6804 = vtanh.pop %v6802
    %v6805 = vmul.f32 %v6794, %v6803
    %v6806 = vmul.f32 %v6796, %v6804
    %v6807 = vpack.c.bf16 %v6805, %v6805
    %v6808 = vpack.c.bf16 %v6806, %v6806
    %6809 = vmatprep.subr.bf16.mxu0 %v2264
    %6810 = vmatpush1.bf16.msra.mxu0 %v2263
    %6811 = vmatprep.subr.bf16.mxu0 %v2256
    %6812 = vmatpush1.bf16.msra.mxu0 %v2255
    %6813 = vmatprep.subr.bf16.mxu0 %v2248
    %6814 = vmatpush1.bf16.msra.mxu0 %v2247
    %6815 = vmatprep.subr.bf16.mxu0 %v2240
    %6816 = vmatpush1.bf16.msra.mxu0 %v2239
    %6817 = vmatprep.subr.bf16.mxu0 %v2232
    %6818 = vmatpush1.bf16.msra.mxu0 %v2231
    %6819 = vmatprep.subr.bf16.mxu0 %v2224
    %6820 = vmatpush1.bf16.msra.mxu0 %v2223
    %6821 = vmatprep.subr.bf16.mxu0 %v2216
    %6822 = vmatpush1.bf16.msra.mxu0 %v2215
    %6823 = vmatprep.subr.bf16.mxu0 %v2208
    %6824 = vmatpush1.bf16.msra.mxu0 %v2207
    %6825 = vmatprep.subr.bf16.mxu0 %v2328
    %6826 = vmatpush2.bf16.msra.mxu0 %v2327
    %6827 = vmatprep.subr.bf16.mxu0 %v2320
    %6828 = vmatpush2.bf16.msra.mxu0 %v2319
    %6829 = vmatprep.subr.bf16.mxu0 %v2312
    %6830 = vmatpush2.bf16.msra.mxu0 %v2311
    %6831 = vmatprep.subr.bf16.mxu0 %v2304
    %6832 = vmatpush2.bf16.msra.mxu0 %v2303
    %6833 = vmatprep.subr.bf16.mxu0 %v2296
    %6834 = vmatpush2.bf16.msra.mxu0 %v2295
    %6835 = vmatprep.subr.bf16.mxu0 %v2288
    %6836 = vmatpush2.bf16.msra.mxu0 %v2287
    %6837 = vmatprep.subr.bf16.mxu0 %v2280
    %6838 = vmatpush2.bf16.msra.mxu0 %v2279
    %6839 = vmatprep.subr.bf16.mxu0 %v2272
    %6840 = vmatpush2.bf16.msra.mxu0 %v2271
    %6841 = vmatprep.mubr.bf16.mxu0 %v6808
    %6842 = vmatmul.mubr.bf16.gmra.mxu0 %v6807
    %v6843 = vpop.f32.mrf.mxu0
    %v6844 = vadd.f32 %v1786, %v6843
    %v6845 = vpop.f32.mrf.mxu0
    %v6846 = vadd.f32 %v1790, %v6845
    %v6847 = vpop.f32.mrf.mxu0
    %v6848 = vpop.f32.mrf.mxu0
    %6849 = vdwg.mxu0
    %6850 = vmatprep.subr.bf16.mxu0 %v2266
    %6851 = vmatpush1.bf16.msra.mxu0 %v2265
    %6852 = vmatprep.subr.bf16.mxu0 %v2258
    %6853 = vmatpush1.bf16.msra.mxu0 %v2257
    %6854 = vmatprep.subr.bf16.mxu0 %v2250
    %6855 = vmatpush1.bf16.msra.mxu0 %v2249
    %6856 = vmatprep.subr.bf16.mxu0 %v2242
    %6857 = vmatpush1.bf16.msra.mxu0 %v2241
    %6858 = vmatprep.subr.bf16.mxu0 %v2234
    %6859 = vmatpush1.bf16.msra.mxu0 %v2233
    %6860 = vmatprep.subr.bf16.mxu0 %v2226
    %6861 = vmatpush1.bf16.msra.mxu0 %v2225
    %6862 = vmatprep.subr.bf16.mxu0 %v2218
    %6863 = vmatpush1.bf16.msra.mxu0 %v2217
    %6864 = vmatprep.subr.bf16.mxu0 %v2210
    %6865 = vmatpush1.bf16.msra.mxu0 %v2209
    %6866 = vmatprep.subr.bf16.mxu0 %v2330
    %6867 = vmatpush2.bf16.msra.mxu0 %v2329
    %6868 = vmatprep.subr.bf16.mxu0 %v2322
    %6869 = vmatpush2.bf16.msra.mxu0 %v2321
    %6870 = vmatprep.subr.bf16.mxu0 %v2314
    %6871 = vmatpush2.bf16.msra.mxu0 %v2313
    %6872 = vmatprep.subr.bf16.mxu0 %v2306
    %6873 = vmatpush2.bf16.msra.mxu0 %v2305
    %6874 = vmatprep.subr.bf16.mxu0 %v2298
    %6875 = vmatpush2.bf16.msra.mxu0 %v2297
    %6876 = vmatprep.subr.bf16.mxu0 %v2290
    %6877 = vmatpush2.bf16.msra.mxu0 %v2289
    %6878 = vmatprep.subr.bf16.mxu0 %v2282
    %6879 = vmatpush2.bf16.msra.mxu0 %v2281
    %6880 = vmatprep.subr.bf16.mxu0 %v2274
    %6881 = vmatpush2.bf16.msra.mxu0 %v2273
    %6882 = vmatprep.mubr.bf16.mxu0 %v6808
    %6883 = vmatmul.mubr.bf16.gmra.mxu0 %v6807
    %v6884 = vpop.f32.mrf.mxu0
    %v6885 = vadd.f32 %v1794, %v6884
    %v6886 = vpop.f32.mrf.mxu0
    %v6887 = vadd.f32 %v1798, %v6886
    %v6888 = vpop.f32.mrf.mxu0
    %v6889 = vpop.f32.mrf.mxu0
    %6890 = vdwg.mxu0
    %6891 = vmatprep.subr.bf16.mxu0 %v2268
    %6892 = vmatpush1.bf16.msra.mxu0 %v2267
    %6893 = vmatprep.subr.bf16.mxu0 %v2260
    %6894 = vmatpush1.bf16.msra.mxu0 %v2259
    %6895 = vmatprep.subr.bf16.mxu0 %v2252
    %6896 = vmatpush1.bf16.msra.mxu0 %v2251
    %6897 = vmatprep.subr.bf16.mxu0 %v2244
    %6898 = vmatpush1.bf16.msra.mxu0 %v2243
    %6899 = vmatprep.subr.bf16.mxu0 %v2236
    %6900 = vmatpush1.bf16.msra.mxu0 %v2235
    %6901 = vmatprep.subr.bf16.mxu0 %v2228
    %6902 = vmatpush1.bf16.msra.mxu0 %v2227
    %6903 = vmatprep.subr.bf16.mxu0 %v2220
    %6904 = vmatpush1.bf16.msra.mxu0 %v2219
    %6905 = vmatprep.subr.bf16.mxu0 %v2212
    %6906 = vmatpush1.bf16.msra.mxu0 %v2211
    %6907 = vmatprep.subr.bf16.mxu0 %v2332
    %6908 = vmatpush2.bf16.msra.mxu0 %v2331
    %6909 = vmatprep.subr.bf16.mxu0 %v2324
    %6910 = vmatpush2.bf16.msra.mxu0 %v2323
    %6911 = vmatprep.subr.bf16.mxu0 %v2316
    %6912 = vmatpush2.bf16.msra.mxu0 %v2315
    %6913 = vmatprep.subr.bf16.mxu0 %v2308
    %6914 = vmatpush2.bf16.msra.mxu0 %v2307
    %6915 = vmatprep.subr.bf16.mxu0 %v2300
    %6916 = vmatpush2.bf16.msra.mxu0 %v2299
    %6917 = vmatprep.subr.bf16.mxu0 %v2292
    %6918 = vmatpush2.bf16.msra.mxu0 %v2291
    %6919 = vmatprep.subr.bf16.mxu0 %v2284
    %6920 = vmatpush2.bf16.msra.mxu0 %v2283
    %6921 = vmatprep.subr.bf16.mxu0 %v2276
    %6922 = vmatpush2.bf16.msra.mxu0 %v2275
    %6923 = vmatprep.mubr.bf16.mxu0 %v6808
    %6924 = vmatmul.mubr.bf16.gmra.mxu0 %v6807
    %v6925 = vpop.f32.mrf.mxu0
    %v6926 = vadd.f32 %v1802, %v6925
    %v6927 = vpop.f32.mrf.mxu0
    %v6928 = vadd.f32 %v1806, %v6927
    %v6929 = vpop.f32.mrf.mxu0
    %v6930 = vpop.f32.mrf.mxu0
    %6931 = vdwg.mxu0
    %6932 = vmatprep.subr.bf16.mxu0 %v2270
    %6933 = vmatpush1.bf16.msra.mxu0 %v2269
    %6934 = vmatprep.subr.bf16.mxu0 %v2262
    %6935 = vmatpush1.bf16.msra.mxu0 %v2261
    %6936 = vmatprep.subr.bf16.mxu0 %v2254
    %6937 = vmatpush1.bf16.msra.mxu0 %v2253
    %6938 = vmatprep.subr.bf16.mxu0 %v2246
    %6939 = vmatpush1.bf16.msra.mxu0 %v2245
    %6940 = vmatprep.subr.bf16.mxu0 %v2238
    %6941 = vmatpush1.bf16.msra.mxu0 %v2237
    %6942 = vmatprep.subr.bf16.mxu0 %v2230
    %6943 = vmatpush1.bf16.msra.mxu0 %v2229
    %6944 = vmatprep.subr.bf16.mxu0 %v2222
    %6945 = vmatpush1.bf16.msra.mxu0 %v2221
    %6946 = vmatprep.subr.bf16.mxu0 %v2214
    %6947 = vmatpush1.bf16.msra.mxu0 %v2213
    %6948 = vmatprep.subr.bf16.mxu0 %v2334
    %6949 = vmatpush2.bf16.msra.mxu0 %v2333
    %6950 = vmatprep.subr.bf16.mxu0 %v2326
    %6951 = vmatpush2.bf16.msra.mxu0 %v2325
    %6952 = vmatprep.subr.bf16.mxu0 %v2318
    %6953 = vmatpush2.bf16.msra.mxu0 %v2317
    %6954 = vmatprep.subr.bf16.mxu0 %v2310
    %6955 = vmatpush2.bf16.msra.mxu0 %v2309
    %6956 = vmatprep.subr.bf16.mxu0 %v2302
    %6957 = vmatpush2.bf16.msra.mxu0 %v2301
    %6958 = vmatprep.subr.bf16.mxu0 %v2294
    %6959 = vmatpush2.bf16.msra.mxu0 %v2293
    %6960 = vmatprep.subr.bf16.mxu0 %v2286
    %6961 = vmatpush2.bf16.msra.mxu0 %v2285
    %6962 = vmatprep.subr.bf16.mxu0 %v2278
    %6963 = vmatpush2.bf16.msra.mxu0 %v2277
    %6964 = vmatprep.mubr.bf16.mxu0 %v6808
    %6965 = vmatmul.mubr.bf16.gmra.mxu0 %v6807
    %v6966 = vpop.f32.mrf.mxu0
    %v6967 = vadd.f32 %v1810, %v6966
    %v6968 = vpop.f32.mrf.mxu0
    %v6969 = vadd.f32 %v1814, %v6968
    %v6970 = vpop.f32.mrf.mxu0
    %v6971 = vpop.f32.mrf.mxu0
    %6972 = vdwg.mxu0
    %v6973 = vpack.c.bf16 %v6575, %v6575
    %v6974 = vpack.c.bf16 %v6576, %v6576
    %6975 = vmatprep.subr.bf16.mxu0 %v3068
    %6976 = vmatpush1.bf16.msra.mxu0 %v3067
    %6977 = vmatprep.subr.bf16.mxu0 %v3060
    %6978 = vmatpush1.bf16.msra.mxu0 %v3059
    %6979 = vmatprep.subr.bf16.mxu0 %v3052
    %6980 = vmatpush1.bf16.msra.mxu0 %v3051
    %6981 = vmatprep.subr.bf16.mxu0 %v3044
    %6982 = vmatpush1.bf16.msra.mxu0 %v3043
    %6983 = vmatprep.subr.bf16.mxu0 %v3036
    %6984 = vmatpush1.bf16.msra.mxu0 %v3035
    %6985 = vmatprep.subr.bf16.mxu0 %v3028
    %6986 = vmatpush1.bf16.msra.mxu0 %v3027
    %6987 = vmatprep.subr.bf16.mxu0 %v3020
    %6988 = vmatpush1.bf16.msra.mxu0 %v3019
    %6989 = vmatprep.subr.bf16.mxu0 %v3012
    %6990 = vmatpush1.bf16.msra.mxu0 %v3011
    %6991 = vmatprep.subr.bf16.mxu0 %v3132
    %6992 = vmatpush2.bf16.msra.mxu0 %v3131
    %6993 = vmatprep.subr.bf16.mxu0 %v3124
    %6994 = vmatpush2.bf16.msra.mxu0 %v3123
    %6995 = vmatprep.subr.bf16.mxu0 %v3116
    %6996 = vmatpush2.bf16.msra.mxu0 %v3115
    %6997 = vmatprep.subr.bf16.mxu0 %v3108
    %6998 = vmatpush2.bf16.msra.mxu0 %v3107
    %6999 = vmatprep.subr.bf16.mxu0 %v3100
    %7000 = vmatpush2.bf16.msra.mxu0 %v3099
    %7001 = vmatprep.subr.bf16.mxu0 %v3092
    %7002 = vmatpush2.bf16.msra.mxu0 %v3091
    %7003 = vmatprep.subr.bf16.mxu0 %v3084
    %7004 = vmatpush2.bf16.msra.mxu0 %v3083
    %7005 = vmatprep.subr.bf16.mxu0 %v3076
    %7006 = vmatpush2.bf16.msra.mxu0 %v3075
    %7007 = vmatprep.mubr.bf16.mxu0 %v6974
    %7008 = vmatmul.mubr.bf16.gmra.mxu0 %v6973
    %v7009 = vpop.f32.mrf.mxu0
    %v7010 = vadd.f32 0.0, %v7009
    %v7011 = vpop.f32.mrf.mxu0
    %v7012 = vadd.f32 0.0, %v7011
    %v7013 = vpop.f32.mrf.mxu0
    %v7014 = vpop.f32.mrf.mxu0
    %7015 = vdwg.mxu0
    %7016 = vmatprep.subr.bf16.mxu0 %v3070
    %7017 = vmatpush1.bf16.msra.mxu0 %v3069
    %7018 = vmatprep.subr.bf16.mxu0 %v3062
    %7019 = vmatpush1.bf16.msra.mxu0 %v3061
    %7020 = vmatprep.subr.bf16.mxu0 %v3054
    %7021 = vmatpush1.bf16.msra.mxu0 %v3053
    %7022 = vmatprep.subr.bf16.mxu0 %v3046
    %7023 = vmatpush1.bf16.msra.mxu0 %v3045
    %7024 = vmatprep.subr.bf16.mxu0 %v3038
    %7025 = vmatpush1.bf16.msra.mxu0 %v3037
    %7026 = vmatprep.subr.bf16.mxu0 %v3030
    %7027 = vmatpush1.bf16.msra.mxu0 %v3029
    %7028 = vmatprep.subr.bf16.mxu0 %v3022
    %7029 = vmatpush1.bf16.msra.mxu0 %v3021
    %7030 = vmatprep.subr.bf16.mxu0 %v3014
    %7031 = vmatpush1.bf16.msra.mxu0 %v3013
    %7032 = vmatprep.subr.bf16.mxu0 %v3134
    %7033 = vmatpush2.bf16.msra.mxu0 %v3133
    %7034 = vmatprep.subr.bf16.mxu0 %v3126
    %7035 = vmatpush2.bf16.msra.mxu0 %v3125
    %7036 = vmatprep.subr.bf16.mxu0 %v3118
    %7037 = vmatpush2.bf16.msra.mxu0 %v3117
    %7038 = vmatprep.subr.bf16.mxu0 %v3110
    %7039 = vmatpush2.bf16.msra.mxu0 %v3109
    %7040 = vmatprep.subr.bf16.mxu0 %v3102
    %7041 = vmatpush2.bf16.msra.mxu0 %v3101
    %7042 = vmatprep.subr.bf16.mxu0 %v3094
    %7043 = vmatpush2.bf16.msra.mxu0 %v3093
    %7044 = vmatprep.subr.bf16.mxu0 %v3086
    %7045 = vmatpush2.bf16.msra.mxu0 %v3085
    %7046 = vmatprep.subr.bf16.mxu0 %v3078
    %7047 = vmatpush2.bf16.msra.mxu0 %v3077
    %7048 = vmatprep.mubr.bf16.mxu0 %v6974
    %7049 = vmatmul.mubr.bf16.gmra.mxu0 %v6973
    %v7050 = vpop.f32.mrf.mxu0
    %v7051 = vadd.f32 0.0, %v7050
    %v7052 = vpop.f32.mrf.mxu0
    %v7053 = vadd.f32 0.0, %v7052
    %v7054 = vpop.f32.mrf.mxu0
    %v7055 = vpop.f32.mrf.mxu0
    %7056 = vdwg.mxu0
    %7057 = vmatprep.subr.bf16.mxu0 %v3072
    %7058 = vmatpush1.bf16.msra.mxu0 %v3071
    %7059 = vmatprep.subr.bf16.mxu0 %v3064
    %7060 = vmatpush1.bf16.msra.mxu0 %v3063
    %7061 = vmatprep.subr.bf16.mxu0 %v3056
    %7062 = vmatpush1.bf16.msra.mxu0 %v3055
    %7063 = vmatprep.subr.bf16.mxu0 %v3048
    %7064 = vmatpush1.bf16.msra.mxu0 %v3047
    %7065 = vmatprep.subr.bf16.mxu0 %v3040
    %7066 = vmatpush1.bf16.msra.mxu0 %v3039
    %7067 = vmatprep.subr.bf16.mxu0 %v3032
    %7068 = vmatpush1.bf16.msra.mxu0 %v3031
    %7069 = vmatprep.subr.bf16.mxu0 %v3024
    %7070 = vmatpush1.bf16.msra.mxu0 %v3023
    %7071 = vmatprep.subr.bf16.mxu0 %v3016
    %7072 = vmatpush1.bf16.msra.mxu0 %v3015
    %7073 = vmatprep.subr.bf16.mxu0 %v3136
    %7074 = vmatpush2.bf16.msra.mxu0 %v3135
    %7075 = vmatprep.subr.bf16.mxu0 %v3128
    %7076 = vmatpush2.bf16.msra.mxu0 %v3127
    %7077 = vmatprep.subr.bf16.mxu0 %v3120
    %7078 = vmatpush2.bf16.msra.mxu0 %v3119
    %7079 = vmatprep.subr.bf16.mxu0 %v3112
    %7080 = vmatpush2.bf16.msra.mxu0 %v3111
    %7081 = vmatprep.subr.bf16.mxu0 %v3104
    %7082 = vmatpush2.bf16.msra.mxu0 %v3103
    %7083 = vmatprep.subr.bf16.mxu0 %v3096
    %7084 = vmatpush2.bf16.msra.mxu0 %v3095
    %7085 = vmatprep.subr.bf16.mxu0 %v3088
    %7086 = vmatpush2.bf16.msra.mxu0 %v3087
    %7087 = vmatprep.subr.bf16.mxu0 %v3080
    %7088 = vmatpush2.bf16.msra.mxu0 %v3079
    %7089 = vmatprep.mubr.bf16.mxu0 %v6974
    %7090 = vmatmul.mubr.bf16.gmra.mxu0 %v6973
    %v7091 = vpop.f32.mrf.mxu0
    %v7092 = vadd.f32 0.0, %v7091
    %v7093 = vpop.f32.mrf.mxu0
    %v7094 = vadd.f32 0.0, %v7093
    %v7095 = vpop.f32.mrf.mxu0
    %v7096 = vpop.f32.mrf.mxu0
    %7097 = vdwg.mxu0
    %7098 = vmatprep.subr.bf16.mxu0 %v3074
    %7099 = vmatpush1.bf16.msra.mxu0 %v3073
    %7100 = vmatprep.subr.bf16.mxu0 %v3066
    %7101 = vmatpush1.bf16.msra.mxu0 %v3065
    %7102 = vmatprep.subr.bf16.mxu0 %v3058
    %7103 = vmatpush1.bf16.msra.mxu0 %v3057
    %7104 = vmatprep.subr.bf16.mxu0 %v3050
    %7105 = vmatpush1.bf16.msra.mxu0 %v3049
    %7106 = vmatprep.subr.bf16.mxu0 %v3042
    %7107 = vmatpush1.bf16.msra.mxu0 %v3041
    %7108 = vmatprep.subr.bf16.mxu0 %v3034
    %7109 = vmatpush1.bf16.msra.mxu0 %v3033
    %7110 = vmatprep.subr.bf16.mxu0 %v3026
    %7111 = vmatpush1.bf16.msra.mxu0 %v3025
    %7112 = vmatprep.subr.bf16.mxu0 %v3018
    %7113 = vmatpush1.bf16.msra.mxu0 %v3017
    %7114 = vmatprep.subr.bf16.mxu0 %v3138
    %7115 = vmatpush2.bf16.msra.mxu0 %v3137
    %7116 = vmatprep.subr.bf16.mxu0 %v3130
    %7117 = vmatpush2.bf16.msra.mxu0 %v3129
    %7118 = vmatprep.subr.bf16.mxu0 %v3122
    %7119 = vmatpush2.bf16.msra.mxu0 %v3121
    %7120 = vmatprep.subr.bf16.mxu0 %v3114
    %7121 = vmatpush2.bf16.msra.mxu0 %v3113
    %7122 = vmatprep.subr.bf16.mxu0 %v3106
    %7123 = vmatpush2.bf16.msra.mxu0 %v3105
    %7124 = vmatprep.subr.bf16.mxu0 %v3098
    %7125 = vmatpush2.bf16.msra.mxu0 %v3097
    %7126 = vmatprep.subr.bf16.mxu0 %v3090
    %7127 = vmatpush2.bf16.msra.mxu0 %v3089
    %7128 = vmatprep.subr.bf16.mxu0 %v3082
    %7129 = vmatpush2.bf16.msra.mxu0 %v3081
    %7130 = vmatprep.mubr.bf16.mxu0 %v6974
    %7131 = vmatmul.mubr.bf16.gmra.mxu0 %v6973
    %v7132 = vpop.f32.mrf.mxu0
    %v7133 = vadd.f32 0.0, %v7132
    %v7134 = vpop.f32.mrf.mxu0
    %v7135 = vadd.f32 0.0, %v7134
    %v7136 = vpop.f32.mrf.mxu0
    %v7137 = vpop.f32.mrf.mxu0
    %7138 = vdwg.mxu0
    %v7139 = vadd.f32 %v6844, %v7010
    %v7140 = vadd.f32 %v6846, %v7012
    %v7141 = vadd.f32 %v6885, %v7051
    %v7142 = vadd.f32 %v6887, %v7053
    %v7143 = vadd.f32 %v6926, %v7092
    %v7144 = vadd.f32 %v6928, %v7094
    %v7145 = vadd.f32 %v6967, %v7133
    %v7146 = vadd.f32 %v6969, %v7135
    %v7147 = vxor.u32 %v7139, 2147483648
    %v7148 = vxor.u32 %v7140, 2147483648
    %v7149 = vmul.f32 %v7147, 1.442695
    %v7150 = vpow.pop %v7149
    %v7151 = vmul.f32 %v7148, 1.442695
    %v7152 = vpow.pop %v7151
    %v7153 = vadd.f32 %v7150, 1.0
    %v7154 = vadd.f32 %v7152, 1.0
    %v7155 = vrcp.pop %v7153
    %v7156 = vmul.f32 1.0, %v7155
    %v7157 = vrcp.pop %v7154
    %v7158 = vmul.f32 1.0, %v7157
    %v7159 = vxor.u32 %v7141, 2147483648
    %v7160 = vxor.u32 %v7142, 2147483648
    %v7161 = vmul.f32 %v7159, 1.442695
    %v7162 = vpow.pop %v7161
    %v7163 = vmul.f32 %v7160, 1.442695
    %v7164 = vpow.pop %v7163
    %v7165 = vadd.f32 %v7162, 1.0
    %v7166 = vadd.f32 %v7164, 1.0
    %v7167 = vrcp.pop %v7165
    %v7168 = vmul.f32 1.0, %v7167
    %v7169 = vrcp.pop %v7166
    %v7170 = vmul.f32 1.0, %v7169
    %v7171 = vtanh.pop %v7143
    %v7172 = vtanh.pop %v7144
    %v7173 = vxor.u32 %v7145, 2147483648
    %v7174 = vxor.u32 %v7146, 2147483648
    %v7175 = vmul.f32 %v7173, 1.442695
    %v7176 = vpow.pop %v7175
    %v7177 = vmul.f32 %v7174, 1.442695
    %v7178 = vpow.pop %v7177
    %v7179 = vadd.f32 %v7176, 1.0
    %v7180 = vadd.f32 %v7178, 1.0
    %v7181 = vrcp.pop %v7179
    %v7182 = vmul.f32 1.0, %v7181
    %v7183 = vrcp.pop %v7180
    %v7184 = vmul.f32 1.0, %v7183
    %v7185 = vmul.f32 %v7168, %v6571
    %v7186 = vmul.f32 %v7170, %v6572
    %v7187 = vmul.f32 %v7156, %v7171
    %v7188 = vmul.f32 %v7158, %v7172
    %v7189 = vadd.f32 %v7185, %v7187
    %v7190 = vadd.f32 %v7186, %v7188
    %v7191 = vtanh.pop %v7189
    %v7192 = vtanh.pop %v7190
    %v7193 = vmul.f32 %v7182, %v7191
    %v7194 = vmul.f32 %v7184, %v7192
    %7195 = vst [vmem:[%s7 + $0x60] sm:$0xff] %v7193
    %7196 = vst [vmem:[%s7 + $0x68] sm:$0xff] %v7194
    %v7197 = vld [vmem:[#allocation2 + $0x1c0] sm:$0xff]
    %v7198 = vld [vmem:[#allocation2 + $0x1c8] sm:$0xff]
    %v7199 = vld [vmem:[#allocation2 + $0x1d0] sm:$0xff]
    %v7200 = vld [vmem:[#allocation2 + $0x1d8] sm:$0xff]
    %v7201 = vld [vmem:[#allocation2 + $0x1e0] sm:$0xff]
    %v7202 = vld [vmem:[#allocation2 + $0x1e8] sm:$0xff]
    %v7203 = vld [vmem:[#allocation2 + $0x1f0] sm:$0xff]
    %v7204 = vld [vmem:[#allocation2 + $0x1f8] sm:$0xff]
    %7205 = vmatprep.subr.bf16.mxu0 %v1361
    %7206 = vmatpush1.bf16.msra.mxu0 %v1360
    %7207 = vmatprep.subr.bf16.mxu0 %v1353
    %7208 = vmatpush1.bf16.msra.mxu0 %v1352
    %7209 = vmatprep.subr.bf16.mxu0 %v1345
    %7210 = vmatpush1.bf16.msra.mxu0 %v1344
    %7211 = vmatprep.subr.bf16.mxu0 %v1337
    %7212 = vmatpush1.bf16.msra.mxu0 %v1336
    %7213 = vmatprep.subr.bf16.mxu0 %v1329
    %7214 = vmatpush1.bf16.msra.mxu0 %v1328
    %7215 = vmatprep.subr.bf16.mxu0 %v1321
    %7216 = vmatpush1.bf16.msra.mxu0 %v1320
    %7217 = vmatprep.subr.bf16.mxu0 %v1313
    %7218 = vmatpush1.bf16.msra.mxu0 %v1312
    %7219 = vmatprep.subr.bf16.mxu0 %v1305
    %7220 = vmatpush1.bf16.msra.mxu0 %v1304
    %7221 = vmatprep.subr.bf16.mxu0 %v1425
    %7222 = vmatpush2.bf16.msra.mxu0 %v1424
    %7223 = vmatprep.subr.bf16.mxu0 %v1417
    %7224 = vmatpush2.bf16.msra.mxu0 %v1416
    %7225 = vmatprep.subr.bf16.mxu0 %v1409
    %7226 = vmatpush2.bf16.msra.mxu0 %v1408
    %7227 = vmatprep.subr.bf16.mxu0 %v1401
    %7228 = vmatpush2.bf16.msra.mxu0 %v1400
    %7229 = vmatprep.subr.bf16.mxu0 %v1393
    %7230 = vmatpush2.bf16.msra.mxu0 %v1392
    %7231 = vmatprep.subr.bf16.mxu0 %v1385
    %7232 = vmatpush2.bf16.msra.mxu0 %v1384
    %7233 = vmatprep.subr.bf16.mxu0 %v1377
    %7234 = vmatpush2.bf16.msra.mxu0 %v1376
    %7235 = vmatprep.subr.bf16.mxu0 %v1369
    %7236 = vmatpush2.bf16.msra.mxu0 %v1368
    %7237 = vmatprep.mubr.bf16.mxu0 %v6808
    %7238 = vmatmul.mubr.bf16.gmra.mxu0 %v6807
    %v7239 = vpop.f32.mrf.mxu0
    %v7240 = vadd.f32 0.0, %v7239
    %v7241 = vpop.f32.mrf.mxu0
    %v7242 = vadd.f32 0.0, %v7241
    %v7243 = vpop.f32.mrf.mxu0
    %v7244 = vpop.f32.mrf.mxu0
    %7245 = vdwg.mxu0
    %7246 = vmatprep.subr.bf16.mxu0 %v1363
    %7247 = vmatpush1.bf16.msra.mxu0 %v1362
    %7248 = vmatprep.subr.bf16.mxu0 %v1355
    %7249 = vmatpush1.bf16.msra.mxu0 %v1354
    %7250 = vmatprep.subr.bf16.mxu0 %v1347
    %7251 = vmatpush1.bf16.msra.mxu0 %v1346
    %7252 = vmatprep.subr.bf16.mxu0 %v1339
    %7253 = vmatpush1.bf16.msra.mxu0 %v1338
    %7254 = vmatprep.subr.bf16.mxu0 %v1331
    %7255 = vmatpush1.bf16.msra.mxu0 %v1330
    %7256 = vmatprep.subr.bf16.mxu0 %v1323
    %7257 = vmatpush1.bf16.msra.mxu0 %v1322
    %7258 = vmatprep.subr.bf16.mxu0 %v1315
    %7259 = vmatpush1.bf16.msra.mxu0 %v1314
    %7260 = vmatprep.subr.bf16.mxu0 %v1307
    %7261 = vmatpush1.bf16.msra.mxu0 %v1306
    %7262 = vmatprep.subr.bf16.mxu0 %v1427
    %7263 = vmatpush2.bf16.msra.mxu0 %v1426
    %7264 = vmatprep.subr.bf16.mxu0 %v1419
    %7265 = vmatpush2.bf16.msra.mxu0 %v1418
    %7266 = vmatprep.subr.bf16.mxu0 %v1411
    %7267 = vmatpush2.bf16.msra.mxu0 %v1410
    %7268 = vmatprep.subr.bf16.mxu0 %v1403
    %7269 = vmatpush2.bf16.msra.mxu0 %v1402
    %7270 = vmatprep.subr.bf16.mxu0 %v1395
    %7271 = vmatpush2.bf16.msra.mxu0 %v1394
    %7272 = vmatprep.subr.bf16.mxu0 %v1387
    %7273 = vmatpush2.bf16.msra.mxu0 %v1386
    %7274 = vmatprep.subr.bf16.mxu0 %v1379
    %7275 = vmatpush2.bf16.msra.mxu0 %v1378
    %7276 = vmatprep.subr.bf16.mxu0 %v1371
    %7277 = vmatpush2.bf16.msra.mxu0 %v1370
    %7278 = vmatprep.mubr.bf16.mxu0 %v6808
    %7279 = vmatmul.mubr.bf16.gmra.mxu0 %v6807
    %v7280 = vpop.f32.mrf.mxu0
    %v7281 = vadd.f32 0.0, %v7280
    %v7282 = vpop.f32.mrf.mxu0
    %v7283 = vadd.f32 0.0, %v7282
    %v7284 = vpop.f32.mrf.mxu0
    %v7285 = vpop.f32.mrf.mxu0
    %7286 = vdwg.mxu0
    %7287 = vmatprep.subr.bf16.mxu0 %v1365
    %7288 = vmatpush1.bf16.msra.mxu0 %v1364
    %7289 = vmatprep.subr.bf16.mxu0 %v1357
    %7290 = vmatpush1.bf16.msra.mxu0 %v1356
    %7291 = vmatprep.subr.bf16.mxu0 %v1349
    %7292 = vmatpush1.bf16.msra.mxu0 %v1348
    %7293 = vmatprep.subr.bf16.mxu0 %v1341
    %7294 = vmatpush1.bf16.msra.mxu0 %v1340
    %7295 = vmatprep.subr.bf16.mxu0 %v1333
    %7296 = vmatpush1.bf16.msra.mxu0 %v1332
    %7297 = vmatprep.subr.bf16.mxu0 %v1325
    %7298 = vmatpush1.bf16.msra.mxu0 %v1324
    %7299 = vmatprep.subr.bf16.mxu0 %v1317
    %7300 = vmatpush1.bf16.msra.mxu0 %v1316
    %7301 = vmatprep.subr.bf16.mxu0 %v1309
    %7302 = vmatpush1.bf16.msra.mxu0 %v1308
    %7303 = vmatprep.subr.bf16.mxu0 %v1429
    %7304 = vmatpush2.bf16.msra.mxu0 %v1428
    %7305 = vmatprep.subr.bf16.mxu0 %v1421
    %7306 = vmatpush2.bf16.msra.mxu0 %v1420
    %7307 = vmatprep.subr.bf16.mxu0 %v1413
    %7308 = vmatpush2.bf16.msra.mxu0 %v1412
    %7309 = vmatprep.subr.bf16.mxu0 %v1405
    %7310 = vmatpush2.bf16.msra.mxu0 %v1404
    %7311 = vmatprep.subr.bf16.mxu0 %v1397
    %7312 = vmatpush2.bf16.msra.mxu0 %v1396
    %7313 = vmatprep.subr.bf16.mxu0 %v1389
    %7314 = vmatpush2.bf16.msra.mxu0 %v1388
    %7315 = vmatprep.subr.bf16.mxu0 %v1381
    %7316 = vmatpush2.bf16.msra.mxu0 %v1380
    %7317 = vmatprep.subr.bf16.mxu0 %v1373
    %7318 = vmatpush2.bf16.msra.mxu0 %v1372
    %7319 = vmatprep.mubr.bf16.mxu0 %v6808
    %7320 = vmatmul.mubr.bf16.gmra.mxu0 %v6807
    %v7321 = vpop.f32.mrf.mxu0
    %v7322 = vadd.f32 0.0, %v7321
    %v7323 = vpop.f32.mrf.mxu0
    %v7324 = vadd.f32 0.0, %v7323
    %v7325 = vpop.f32.mrf.mxu0
    %v7326 = vpop.f32.mrf.mxu0
    %7327 = vdwg.mxu0
    %7328 = vmatprep.subr.bf16.mxu0 %v1367
    %7329 = vmatpush1.bf16.msra.mxu0 %v1366
    %7330 = vmatprep.subr.bf16.mxu0 %v1359
    %7331 = vmatpush1.bf16.msra.mxu0 %v1358
    %7332 = vmatprep.subr.bf16.mxu0 %v1351
    %7333 = vmatpush1.bf16.msra.mxu0 %v1350
    %7334 = vmatprep.subr.bf16.mxu0 %v1343
    %7335 = vmatpush1.bf16.msra.mxu0 %v1342
    %7336 = vmatprep.subr.bf16.mxu0 %v1335
    %7337 = vmatpush1.bf16.msra.mxu0 %v1334
    %7338 = vmatprep.subr.bf16.mxu0 %v1327
    %7339 = vmatpush1.bf16.msra.mxu0 %v1326
    %7340 = vmatprep.subr.bf16.mxu0 %v1319
    %7341 = vmatpush1.bf16.msra.mxu0 %v1318
    %7342 = vmatprep.subr.bf16.mxu0 %v1311
    %7343 = vmatpush1.bf16.msra.mxu0 %v1310
    %7344 = vmatprep.subr.bf16.mxu0 %v1431
    %7345 = vmatpush2.bf16.msra.mxu0 %v1430
    %7346 = vmatprep.subr.bf16.mxu0 %v1423
    %7347 = vmatpush2.bf16.msra.mxu0 %v1422
    %7348 = vmatprep.subr.bf16.mxu0 %v1415
    %7349 = vmatpush2.bf16.msra.mxu0 %v1414
    %7350 = vmatprep.subr.bf16.mxu0 %v1407
    %7351 = vmatpush2.bf16.msra.mxu0 %v1406
    %7352 = vmatprep.subr.bf16.mxu0 %v1399
    %7353 = vmatpush2.bf16.msra.mxu0 %v1398
    %7354 = vmatprep.subr.bf16.mxu0 %v1391
    %7355 = vmatpush2.bf16.msra.mxu0 %v1390
    %7356 = vmatprep.subr.bf16.mxu0 %v1383
    %7357 = vmatpush2.bf16.msra.mxu0 %v1382
    %7358 = vmatprep.subr.bf16.mxu0 %v1375
    %7359 = vmatpush2.bf16.msra.mxu0 %v1374
    %7360 = vmatprep.mubr.bf16.mxu0 %v6808
    %7361 = vmatmul.mubr.bf16.gmra.mxu0 %v6807
    %v7362 = vpop.f32.mrf.mxu0
    %v7363 = vadd.f32 0.0, %v7362
    %v7364 = vpop.f32.mrf.mxu0
    %v7365 = vadd.f32 0.0, %v7364
    %v7366 = vpop.f32.mrf.mxu0
    %v7367 = vpop.f32.mrf.mxu0
    %7368 = vdwg.mxu0
    %v7369 = vadd.f32 %v7197, %v7240
    %v7370 = vadd.f32 %v7198, %v7242
    %v7371 = vadd.f32 %v7199, %v7281
    %v7372 = vadd.f32 %v7200, %v7283
    %v7373 = vadd.f32 %v7201, %v7322
    %v7374 = vadd.f32 %v7202, %v7324
    %v7375 = vadd.f32 %v7203, %v7363
    %v7376 = vadd.f32 %v7204, %v7365
    %v7377 = vxor.u32 %v7369, 2147483648
    %v7378 = vxor.u32 %v7370, 2147483648
    %v7379 = vmul.f32 %v7377, 1.442695
    %v7380 = vpow.pop %v7379
    %v7381 = vmul.f32 %v7378, 1.442695
    %v7382 = vpow.pop %v7381
    %v7383 = vadd.f32 %v7380, 1.0
    %v7384 = vadd.f32 %v7382, 1.0
    %v7385 = vrcp.pop %v7383
    %v7386 = vmul.f32 1.0, %v7385
    %v7387 = vrcp.pop %v7384
    %v7388 = vmul.f32 1.0, %v7387
    %v7389 = vxor.u32 %v7371, 2147483648
    %v7390 = vxor.u32 %v7372, 2147483648
    %v7391 = vmul.f32 %v7389, 1.442695
    %v7392 = vpow.pop %v7391
    %v7393 = vmul.f32 %v7390, 1.442695
    %v7394 = vpow.pop %v7393
    %v7395 = vadd.f32 %v7392, 1.0
    %v7396 = vadd.f32 %v7394, 1.0
    %v7397 = vrcp.pop %v7395
    %v7398 = vmul.f32 1.0, %v7397
    %v7399 = vrcp.pop %v7396
    %v7400 = vmul.f32 1.0, %v7399
    %v7401 = vtanh.pop %v7373
    %v7402 = vtanh.pop %v7374
    %v7403 = vxor.u32 %v7375, 2147483648
    %v7404 = vxor.u32 %v7376, 2147483648
    %v7405 = vmul.f32 %v7403, 1.442695
    %v7406 = vpow.pop %v7405
    %v7407 = vmul.f32 %v7404, 1.442695
    %v7408 = vpow.pop %v7407
    %v7409 = vadd.f32 %v7406, 1.0
    %v7410 = vadd.f32 %v7408, 1.0
    %v7411 = vrcp.pop %v7409
    %v7412 = vmul.f32 1.0, %v7411
    %v7413 = vrcp.pop %v7410
    %v7414 = vmul.f32 1.0, %v7413
    %v7415 = vmul.f32 %v7398, %v6801
    %v7416 = vmul.f32 %v7400, %v6802
    %v7417 = vmul.f32 %v7386, %v7401
    %v7418 = vmul.f32 %v7388, %v7402
    %v7419 = vadd.f32 %v7415, %v7417
    %v7420 = vadd.f32 %v7416, %v7418
    %v7421 = vtanh.pop %v7419
    %v7422 = vtanh.pop %v7420
    %v7423 = vmul.f32 %v7412, %v7421
    %v7424 = vmul.f32 %v7414, %v7422
    %v7425 = vpack.c.bf16 %v7423, %v7423
    %v7426 = vpack.c.bf16 %v7424, %v7424
    %7427 = vmatprep.subr.bf16.mxu0 %v2264
    %7428 = vmatpush1.bf16.msra.mxu0 %v2263
    %7429 = vmatprep.subr.bf16.mxu0 %v2256
    %7430 = vmatpush1.bf16.msra.mxu0 %v2255
    %7431 = vmatprep.subr.bf16.mxu0 %v2248
    %7432 = vmatpush1.bf16.msra.mxu0 %v2247
    %7433 = vmatprep.subr.bf16.mxu0 %v2240
    %7434 = vmatpush1.bf16.msra.mxu0 %v2239
    %7435 = vmatprep.subr.bf16.mxu0 %v2232
    %7436 = vmatpush1.bf16.msra.mxu0 %v2231
    %7437 = vmatprep.subr.bf16.mxu0 %v2224
    %7438 = vmatpush1.bf16.msra.mxu0 %v2223
    %7439 = vmatprep.subr.bf16.mxu0 %v2216
    %7440 = vmatpush1.bf16.msra.mxu0 %v2215
    %7441 = vmatprep.subr.bf16.mxu0 %v2208
    %7442 = vmatpush1.bf16.msra.mxu0 %v2207
    %7443 = vmatprep.subr.bf16.mxu0 %v2328
    %7444 = vmatpush2.bf16.msra.mxu0 %v2327
    %7445 = vmatprep.subr.bf16.mxu0 %v2320
    %7446 = vmatpush2.bf16.msra.mxu0 %v2319
    %7447 = vmatprep.subr.bf16.mxu0 %v2312
    %7448 = vmatpush2.bf16.msra.mxu0 %v2311
    %7449 = vmatprep.subr.bf16.mxu0 %v2304
    %7450 = vmatpush2.bf16.msra.mxu0 %v2303
    %7451 = vmatprep.subr.bf16.mxu0 %v2296
    %7452 = vmatpush2.bf16.msra.mxu0 %v2295
    %7453 = vmatprep.subr.bf16.mxu0 %v2288
    %7454 = vmatpush2.bf16.msra.mxu0 %v2287
    %7455 = vmatprep.subr.bf16.mxu0 %v2280
    %7456 = vmatpush2.bf16.msra.mxu0 %v2279
    %7457 = vmatprep.subr.bf16.mxu0 %v2272
    %7458 = vmatpush2.bf16.msra.mxu0 %v2271
    %7459 = vmatprep.mubr.bf16.mxu0 %v7426
    %7460 = vmatmul.mubr.bf16.gmra.mxu0 %v7425
    %v7461 = vpop.f32.mrf.mxu0
    %v7462 = vadd.f32 %v1786, %v7461
    %v7463 = vpop.f32.mrf.mxu0
    %v7464 = vadd.f32 %v1790, %v7463
    %v7465 = vpop.f32.mrf.mxu0
    %v7466 = vpop.f32.mrf.mxu0
    %7467 = vdwg.mxu0
    %7468 = vmatprep.subr.bf16.mxu0 %v2266
    %7469 = vmatpush1.bf16.msra.mxu0 %v2265
    %7470 = vmatprep.subr.bf16.mxu0 %v2258
    %7471 = vmatpush1.bf16.msra.mxu0 %v2257
    %7472 = vmatprep.subr.bf16.mxu0 %v2250
    %7473 = vmatpush1.bf16.msra.mxu0 %v2249
    %7474 = vmatprep.subr.bf16.mxu0 %v2242
    %7475 = vmatpush1.bf16.msra.mxu0 %v2241
    %7476 = vmatprep.subr.bf16.mxu0 %v2234
    %7477 = vmatpush1.bf16.msra.mxu0 %v2233
    %7478 = vmatprep.subr.bf16.mxu0 %v2226
    %7479 = vmatpush1.bf16.msra.mxu0 %v2225
    %7480 = vmatprep.subr.bf16.mxu0 %v2218
    %7481 = vmatpush1.bf16.msra.mxu0 %v2217
    %7482 = vmatprep.subr.bf16.mxu0 %v2210
    %7483 = vmatpush1.bf16.msra.mxu0 %v2209
    %7484 = vmatprep.subr.bf16.mxu0 %v2330
    %7485 = vmatpush2.bf16.msra.mxu0 %v2329
    %7486 = vmatprep.subr.bf16.mxu0 %v2322
    %7487 = vmatpush2.bf16.msra.mxu0 %v2321
    %7488 = vmatprep.subr.bf16.mxu0 %v2314
    %7489 = vmatpush2.bf16.msra.mxu0 %v2313
    %7490 = vmatprep.subr.bf16.mxu0 %v2306
    %7491 = vmatpush2.bf16.msra.mxu0 %v2305
    %7492 = vmatprep.subr.bf16.mxu0 %v2298
    %7493 = vmatpush2.bf16.msra.mxu0 %v2297
    %7494 = vmatprep.subr.bf16.mxu0 %v2290
    %7495 = vmatpush2.bf16.msra.mxu0 %v2289
    %7496 = vmatprep.subr.bf16.mxu0 %v2282
    %7497 = vmatpush2.bf16.msra.mxu0 %v2281
    %7498 = vmatprep.subr.bf16.mxu0 %v2274
    %7499 = vmatpush2.bf16.msra.mxu0 %v2273
    %7500 = vmatprep.mubr.bf16.mxu0 %v7426
    %7501 = vmatmul.mubr.bf16.gmra.mxu0 %v7425
    %v7502 = vpop.f32.mrf.mxu0
    %v7503 = vadd.f32 %v1794, %v7502
    %v7504 = vpop.f32.mrf.mxu0
    %v7505 = vadd.f32 %v1798, %v7504
    %v7506 = vpop.f32.mrf.mxu0
    %v7507 = vpop.f32.mrf.mxu0
    %7508 = vdwg.mxu0
    %7509 = vmatprep.subr.bf16.mxu0 %v2268
    %7510 = vmatpush1.bf16.msra.mxu0 %v2267
    %7511 = vmatprep.subr.bf16.mxu0 %v2260
    %7512 = vmatpush1.bf16.msra.mxu0 %v2259
    %7513 = vmatprep.subr.bf16.mxu0 %v2252
    %7514 = vmatpush1.bf16.msra.mxu0 %v2251
    %7515 = vmatprep.subr.bf16.mxu0 %v2244
    %7516 = vmatpush1.bf16.msra.mxu0 %v2243
    %7517 = vmatprep.subr.bf16.mxu0 %v2236
    %7518 = vmatpush1.bf16.msra.mxu0 %v2235
    %7519 = vmatprep.subr.bf16.mxu0 %v2228
    %7520 = vmatpush1.bf16.msra.mxu0 %v2227
    %7521 = vmatprep.subr.bf16.mxu0 %v2220
    %7522 = vmatpush1.bf16.msra.mxu0 %v2219
    %7523 = vmatprep.subr.bf16.mxu0 %v2212
    %7524 = vmatpush1.bf16.msra.mxu0 %v2211
    %7525 = vmatprep.subr.bf16.mxu0 %v2332
    %7526 = vmatpush2.bf16.msra.mxu0 %v2331
    %7527 = vmatprep.subr.bf16.mxu0 %v2324
    %7528 = vmatpush2.bf16.msra.mxu0 %v2323
    %7529 = vmatprep.subr.bf16.mxu0 %v2316
    %7530 = vmatpush2.bf16.msra.mxu0 %v2315
    %7531 = vmatprep.subr.bf16.mxu0 %v2308
    %7532 = vmatpush2.bf16.msra.mxu0 %v2307
    %7533 = vmatprep.subr.bf16.mxu0 %v2300
    %7534 = vmatpush2.bf16.msra.mxu0 %v2299
    %7535 = vmatprep.subr.bf16.mxu0 %v2292
    %7536 = vmatpush2.bf16.msra.mxu0 %v2291
    %7537 = vmatprep.subr.bf16.mxu0 %v2284
    %7538 = vmatpush2.bf16.msra.mxu0 %v2283
    %7539 = vmatprep.subr.bf16.mxu0 %v2276
    %7540 = vmatpush2.bf16.msra.mxu0 %v2275
    %7541 = vmatprep.mubr.bf16.mxu0 %v7426
    %7542 = vmatmul.mubr.bf16.gmra.mxu0 %v7425
    %v7543 = vpop.f32.mrf.mxu0
    %v7544 = vadd.f32 %v1802, %v7543
    %v7545 = vpop.f32.mrf.mxu0
    %v7546 = vadd.f32 %v1806, %v7545
    %v7547 = vpop.f32.mrf.mxu0
    %v7548 = vpop.f32.mrf.mxu0
    %7549 = vdwg.mxu0
    %7550 = vmatprep.subr.bf16.mxu0 %v2270
    %7551 = vmatpush1.bf16.msra.mxu0 %v2269
    %7552 = vmatprep.subr.bf16.mxu0 %v2262
    %7553 = vmatpush1.bf16.msra.mxu0 %v2261
    %7554 = vmatprep.subr.bf16.mxu0 %v2254
    %7555 = vmatpush1.bf16.msra.mxu0 %v2253
    %7556 = vmatprep.subr.bf16.mxu0 %v2246
    %7557 = vmatpush1.bf16.msra.mxu0 %v2245
    %7558 = vmatprep.subr.bf16.mxu0 %v2238
    %7559 = vmatpush1.bf16.msra.mxu0 %v2237
    %7560 = vmatprep.subr.bf16.mxu0 %v2230
    %7561 = vmatpush1.bf16.msra.mxu0 %v2229
    %7562 = vmatprep.subr.bf16.mxu0 %v2222
    %7563 = vmatpush1.bf16.msra.mxu0 %v2221
    %7564 = vmatprep.subr.bf16.mxu0 %v2214
    %7565 = vmatpush1.bf16.msra.mxu0 %v2213
    %7566 = vmatprep.subr.bf16.mxu0 %v2334
    %7567 = vmatpush2.bf16.msra.mxu0 %v2333
    %7568 = vmatprep.subr.bf16.mxu0 %v2326
    %7569 = vmatpush2.bf16.msra.mxu0 %v2325
    %7570 = vmatprep.subr.bf16.mxu0 %v2318
    %7571 = vmatpush2.bf16.msra.mxu0 %v2317
    %7572 = vmatprep.subr.bf16.mxu0 %v2310
    %7573 = vmatpush2.bf16.msra.mxu0 %v2309
    %7574 = vmatprep.subr.bf16.mxu0 %v2302
    %7575 = vmatpush2.bf16.msra.mxu0 %v2301
    %7576 = vmatprep.subr.bf16.mxu0 %v2294
    %7577 = vmatpush2.bf16.msra.mxu0 %v2293
    %7578 = vmatprep.subr.bf16.mxu0 %v2286
    %7579 = vmatpush2.bf16.msra.mxu0 %v2285
    %7580 = vmatprep.subr.bf16.mxu0 %v2278
    %7581 = vmatpush2.bf16.msra.mxu0 %v2277
    %7582 = vmatprep.mubr.bf16.mxu0 %v7426
    %7583 = vmatmul.mubr.bf16.gmra.mxu0 %v7425
    %v7584 = vpop.f32.mrf.mxu0
    %v7585 = vadd.f32 %v1810, %v7584
    %v7586 = vpop.f32.mrf.mxu0
    %v7587 = vadd.f32 %v1814, %v7586
    %v7588 = vpop.f32.mrf.mxu0
    %v7589 = vpop.f32.mrf.mxu0
    %7590 = vdwg.mxu0
    %v7591 = vpack.c.bf16 %v7193, %v7193
    %v7592 = vpack.c.bf16 %v7194, %v7194
    %7593 = vmatprep.subr.bf16.mxu0 %v3068
    %7594 = vmatpush1.bf16.msra.mxu0 %v3067
    %7595 = vmatprep.subr.bf16.mxu0 %v3060
    %7596 = vmatpush1.bf16.msra.mxu0 %v3059
    %7597 = vmatprep.subr.bf16.mxu0 %v3052
    %7598 = vmatpush1.bf16.msra.mxu0 %v3051
    %7599 = vmatprep.subr.bf16.mxu0 %v3044
    %7600 = vmatpush1.bf16.msra.mxu0 %v3043
    %7601 = vmatprep.subr.bf16.mxu0 %v3036
    %7602 = vmatpush1.bf16.msra.mxu0 %v3035
    %7603 = vmatprep.subr.bf16.mxu0 %v3028
    %7604 = vmatpush1.bf16.msra.mxu0 %v3027
    %7605 = vmatprep.subr.bf16.mxu0 %v3020
    %7606 = vmatpush1.bf16.msra.mxu0 %v3019
    %7607 = vmatprep.subr.bf16.mxu0 %v3012
    %7608 = vmatpush1.bf16.msra.mxu0 %v3011
    %7609 = vmatprep.subr.bf16.mxu0 %v3132
    %7610 = vmatpush2.bf16.msra.mxu0 %v3131
    %7611 = vmatprep.subr.bf16.mxu0 %v3124
    %7612 = vmatpush2.bf16.msra.mxu0 %v3123
    %7613 = vmatprep.subr.bf16.mxu0 %v3116
    %7614 = vmatpush2.bf16.msra.mxu0 %v3115
    %7615 = vmatprep.subr.bf16.mxu0 %v3108
    %7616 = vmatpush2.bf16.msra.mxu0 %v3107
    %7617 = vmatprep.subr.bf16.mxu0 %v3100
    %7618 = vmatpush2.bf16.msra.mxu0 %v3099
    %7619 = vmatprep.subr.bf16.mxu0 %v3092
    %7620 = vmatpush2.bf16.msra.mxu0 %v3091
    %7621 = vmatprep.subr.bf16.mxu0 %v3084
    %7622 = vmatpush2.bf16.msra.mxu0 %v3083
    %7623 = vmatprep.subr.bf16.mxu0 %v3076
    %7624 = vmatpush2.bf16.msra.mxu0 %v3075
    %7625 = vmatprep.mubr.bf16.mxu0 %v7592
    %7626 = vmatmul.mubr.bf16.gmra.mxu0 %v7591
    %v7627 = vpop.f32.mrf.mxu0
    %v7628 = vadd.f32 0.0, %v7627
    %v7629 = vpop.f32.mrf.mxu0
    %v7630 = vadd.f32 0.0, %v7629
    %v7631 = vpop.f32.mrf.mxu0
    %v7632 = vpop.f32.mrf.mxu0
    %7633 = vdwg.mxu0
    %7634 = vmatprep.subr.bf16.mxu0 %v3070
    %7635 = vmatpush1.bf16.msra.mxu0 %v3069
    %7636 = vmatprep.subr.bf16.mxu0 %v3062
    %7637 = vmatpush1.bf16.msra.mxu0 %v3061
    %7638 = vmatprep.subr.bf16.mxu0 %v3054
    %7639 = vmatpush1.bf16.msra.mxu0 %v3053
    %7640 = vmatprep.subr.bf16.mxu0 %v3046
    %7641 = vmatpush1.bf16.msra.mxu0 %v3045
    %7642 = vmatprep.subr.bf16.mxu0 %v3038
    %7643 = vmatpush1.bf16.msra.mxu0 %v3037
    %7644 = vmatprep.subr.bf16.mxu0 %v3030
    %7645 = vmatpush1.bf16.msra.mxu0 %v3029
    %7646 = vmatprep.subr.bf16.mxu0 %v3022
    %7647 = vmatpush1.bf16.msra.mxu0 %v3021
    %7648 = vmatprep.subr.bf16.mxu0 %v3014
    %7649 = vmatpush1.bf16.msra.mxu0 %v3013
    %7650 = vmatprep.subr.bf16.mxu0 %v3134
    %7651 = vmatpush2.bf16.msra.mxu0 %v3133
    %7652 = vmatprep.subr.bf16.mxu0 %v3126
    %7653 = vmatpush2.bf16.msra.mxu0 %v3125
    %7654 = vmatprep.subr.bf16.mxu0 %v3118
    %7655 = vmatpush2.bf16.msra.mxu0 %v3117
    %7656 = vmatprep.subr.bf16.mxu0 %v3110
    %7657 = vmatpush2.bf16.msra.mxu0 %v3109
    %7658 = vmatprep.subr.bf16.mxu0 %v3102
    %7659 = vmatpush2.bf16.msra.mxu0 %v3101
    %7660 = vmatprep.subr.bf16.mxu0 %v3094
    %7661 = vmatpush2.bf16.msra.mxu0 %v3093
    %7662 = vmatprep.subr.bf16.mxu0 %v3086
    %7663 = vmatpush2.bf16.msra.mxu0 %v3085
    %7664 = vmatprep.subr.bf16.mxu0 %v3078
    %7665 = vmatpush2.bf16.msra.mxu0 %v3077
    %7666 = vmatprep.mubr.bf16.mxu0 %v7592
    %7667 = vmatmul.mubr.bf16.gmra.mxu0 %v7591
    %v7668 = vpop.f32.mrf.mxu0
    %v7669 = vadd.f32 0.0, %v7668
    %v7670 = vpop.f32.mrf.mxu0
    %v7671 = vadd.f32 0.0, %v7670
    %v7672 = vpop.f32.mrf.mxu0
    %v7673 = vpop.f32.mrf.mxu0
    %7674 = vdwg.mxu0
    %7675 = vmatprep.subr.bf16.mxu0 %v3072
    %7676 = vmatpush1.bf16.msra.mxu0 %v3071
    %7677 = vmatprep.subr.bf16.mxu0 %v3064
    %7678 = vmatpush1.bf16.msra.mxu0 %v3063
    %7679 = vmatprep.subr.bf16.mxu0 %v3056
    %7680 = vmatpush1.bf16.msra.mxu0 %v3055
    %7681 = vmatprep.subr.bf16.mxu0 %v3048
    %7682 = vmatpush1.bf16.msra.mxu0 %v3047
    %7683 = vmatprep.subr.bf16.mxu0 %v3040
    %7684 = vmatpush1.bf16.msra.mxu0 %v3039
    %7685 = vmatprep.subr.bf16.mxu0 %v3032
    %7686 = vmatpush1.bf16.msra.mxu0 %v3031
    %7687 = vmatprep.subr.bf16.mxu0 %v3024
    %7688 = vmatpush1.bf16.msra.mxu0 %v3023
    %7689 = vmatprep.subr.bf16.mxu0 %v3016
    %7690 = vmatpush1.bf16.msra.mxu0 %v3015
    %7691 = vmatprep.subr.bf16.mxu0 %v3136
    %7692 = vmatpush2.bf16.msra.mxu0 %v3135
    %7693 = vmatprep.subr.bf16.mxu0 %v3128
    %7694 = vmatpush2.bf16.msra.mxu0 %v3127
    %7695 = vmatprep.subr.bf16.mxu0 %v3120
    %7696 = vmatpush2.bf16.msra.mxu0 %v3119
    %7697 = vmatprep.subr.bf16.mxu0 %v3112
    %7698 = vmatpush2.bf16.msra.mxu0 %v3111
    %7699 = vmatprep.subr.bf16.mxu0 %v3104
    %7700 = vmatpush2.bf16.msra.mxu0 %v3103
    %7701 = vmatprep.subr.bf16.mxu0 %v3096
    %7702 = vmatpush2.bf16.msra.mxu0 %v3095
    %7703 = vmatprep.subr.bf16.mxu0 %v3088
    %7704 = vmatpush2.bf16.msra.mxu0 %v3087
    %7705 = vmatprep.subr.bf16.mxu0 %v3080
    %7706 = vmatpush2.bf16.msra.mxu0 %v3079
    %7707 = vmatprep.mubr.bf16.mxu0 %v7592
    %7708 = vmatmul.mubr.bf16.gmra.mxu0 %v7591
    %v7709 = vpop.f32.mrf.mxu0
    %v7710 = vadd.f32 0.0, %v7709
    %v7711 = vpop.f32.mrf.mxu0
    %v7712 = vadd.f32 0.0, %v7711
    %v7713 = vpop.f32.mrf.mxu0
    %v7714 = vpop.f32.mrf.mxu0
    %7715 = vdwg.mxu0
    %7716 = vmatprep.subr.bf16.mxu0 %v3074
    %7717 = vmatpush1.bf16.msra.mxu0 %v3073
    %7718 = vmatprep.subr.bf16.mxu0 %v3066
    %7719 = vmatpush1.bf16.msra.mxu0 %v3065
    %7720 = vmatprep.subr.bf16.mxu0 %v3058
    %7721 = vmatpush1.bf16.msra.mxu0 %v3057
    %7722 = vmatprep.subr.bf16.mxu0 %v3050
    %7723 = vmatpush1.bf16.msra.mxu0 %v3049
    %7724 = vmatprep.subr.bf16.mxu0 %v3042
    %7725 = vmatpush1.bf16.msra.mxu0 %v3041
    %7726 = vmatprep.subr.bf16.mxu0 %v3034
    %7727 = vmatpush1.bf16.msra.mxu0 %v3033
    %7728 = vmatprep.subr.bf16.mxu0 %v3026
    %7729 = vmatpush1.bf16.msra.mxu0 %v3025
    %7730 = vmatprep.subr.bf16.mxu0 %v3018
    %7731 = vmatpush1.bf16.msra.mxu0 %v3017
    %7732 = vmatprep.subr.bf16.mxu0 %v3138
    %7733 = vmatpush2.bf16.msra.mxu0 %v3137
    %7734 = vmatprep.subr.bf16.mxu0 %v3130
    %7735 = vmatpush2.bf16.msra.mxu0 %v3129
    %7736 = vmatprep.subr.bf16.mxu0 %v3122
    %7737 = vmatpush2.bf16.msra.mxu0 %v3121
    %7738 = vmatprep.subr.bf16.mxu0 %v3114
    %7739 = vmatpush2.bf16.msra.mxu0 %v3113
    %7740 = vmatprep.subr.bf16.mxu0 %v3106
    %7741 = vmatpush2.bf16.msra.mxu0 %v3105
    %7742 = vmatprep.subr.bf16.mxu0 %v3098
    %7743 = vmatpush2.bf16.msra.mxu0 %v3097
    %7744 = vmatprep.subr.bf16.mxu0 %v3090
    %7745 = vmatpush2.bf16.msra.mxu0 %v3089
    %7746 = vmatprep.subr.bf16.mxu0 %v3082
    %7747 = vmatpush2.bf16.msra.mxu0 %v3081
    %7748 = vmatprep.mubr.bf16.mxu0 %v7592
    %7749 = vmatmul.mubr.bf16.gmra.mxu0 %v7591
    %v7750 = vpop.f32.mrf.mxu0
    %v7751 = vadd.f32 0.0, %v7750
    %v7752 = vpop.f32.mrf.mxu0
    %v7753 = vadd.f32 0.0, %v7752
    %v7754 = vpop.f32.mrf.mxu0
    %v7755 = vpop.f32.mrf.mxu0
    %7756 = vdwg.mxu0
    %v7757 = vadd.f32 %v7462, %v7628
    %v7758 = vadd.f32 %v7464, %v7630
    %v7759 = vadd.f32 %v7503, %v7669
    %v7760 = vadd.f32 %v7505, %v7671
    %v7761 = vadd.f32 %v7544, %v7710
    %v7762 = vadd.f32 %v7546, %v7712
    %v7763 = vadd.f32 %v7585, %v7751
    %v7764 = vadd.f32 %v7587, %v7753
    %v7765 = vxor.u32 %v7757, 2147483648
    %v7766 = vxor.u32 %v7758, 2147483648
    %v7767 = vmul.f32 %v7765, 1.442695
    %v7768 = vpow.pop %v7767
    %v7769 = vmul.f32 %v7766, 1.442695
    %v7770 = vpow.pop %v7769
    %v7771 = vadd.f32 %v7768, 1.0
    %v7772 = vadd.f32 %v7770, 1.0
    %v7773 = vrcp.pop %v7771
    %v7774 = vmul.f32 1.0, %v7773
    %v7775 = vrcp.pop %v7772
    %v7776 = vmul.f32 1.0, %v7775
    %v7777 = vxor.u32 %v7759, 2147483648
    %v7778 = vxor.u32 %v7760, 2147483648
    %v7779 = vmul.f32 %v7777, 1.442695
    %v7780 = vpow.pop %v7779
    %v7781 = vmul.f32 %v7778, 1.442695
    %v7782 = vpow.pop %v7781
    %v7783 = vadd.f32 %v7780, 1.0
    %v7784 = vadd.f32 %v7782, 1.0
    %v7785 = vrcp.pop %v7783
    %v7786 = vmul.f32 1.0, %v7785
    %v7787 = vrcp.pop %v7784
    %v7788 = vmul.f32 1.0, %v7787
    %v7789 = vtanh.pop %v7761
    %v7790 = vtanh.pop %v7762
    %v7791 = vxor.u32 %v7763, 2147483648
    %v7792 = vxor.u32 %v7764, 2147483648
    %v7793 = vmul.f32 %v7791, 1.442695
    %v7794 = vpow.pop %v7793
    %v7795 = vmul.f32 %v7792, 1.442695
    %v7796 = vpow.pop %v7795
    %v7797 = vadd.f32 %v7794, 1.0
    %v7798 = vadd.f32 %v7796, 1.0
    %v7799 = vrcp.pop %v7797
    %v7800 = vmul.f32 1.0, %v7799
    %v7801 = vrcp.pop %v7798
    %v7802 = vmul.f32 1.0, %v7801
    %v7803 = vmul.f32 %v7786, %v7189
    %v7804 = vmul.f32 %v7788, %v7190
    %v7805 = vmul.f32 %v7774, %v7789
    %v7806 = vmul.f32 %v7776, %v7790
    %v7807 = vadd.f32 %v7803, %v7805
    %v7808 = vadd.f32 %v7804, %v7806
    %v7809 = vtanh.pop %v7807
    %v7810 = vtanh.pop %v7808
    %v7811 = vmul.f32 %v7800, %v7809
    %v7812 = vmul.f32 %v7802, %v7810
    %7813 = vst [vmem:[%s7 + $0x70] sm:$0xff] %v7811
    %7814 = vst [vmem:[%s7 + $0x78] sm:$0xff] %v7812
    // Predicated region
    $region38: #{improved_lstm_forward.3} parent=1 // pred_check
      _
    $region39: #{improved_lstm_forward.3} parent=1 // pred_check_branch
      %7816 = sbr.rel (0) target = $region41
    $region40: #{improved_lstm_forward.3} parent=1 // pred_region
      _
    $region41: #{improved_lstm_forward.3} parent=1 // pred_fallthru
      _
    // Predicated region
    $region42: #{improved_lstm_forward.3} parent=1 // pred_check
      _
    $region43: #{improved_lstm_forward.3} parent=1 // pred_check_branch
      %7818 = sbr.rel (0) target = $region45
    $region44: #{improved_lstm_forward.3} parent=1 // pred_region
      _
    $region45: #{improved_lstm_forward.3} parent=1 // pred_fallthru
      _
    %7819 = vsyncpa [#allocation4], 1
    %7820 = vsyncpa [#allocation6], 1

</llo_original>
